<compile_context>
chip_gen: v6e
topology: v6e:2x2x1
jax: 0.10.0
libtpu: 0.0.40
codegen_flags: <defaults>
</compile_context>

<pallas_src>
import functools
import math

import jax
import jax.numpy as jnp
from jax.experimental import pallas as pl
from jax.experimental.pallas import tpu as pltpu

NEG_INF = -1e30          # Python float (never a captured traced constant)
LANE = 128


def _align(n, m=LANE):
    return ((n + m - 1) // m) * m


# ----------------------------------------------------------------------------
# Static slab layout (pure function of the config -> Python ints only)
# ----------------------------------------------------------------------------
def _slab_layout(H, num_layers, ff_pad, s_pad, i_pad):
    def build(entries):
        table, off = {}, 0
        for name, width in entries:
            table[name] = (off, width)
            off += _align(width)
        return table, off

    w_entries = [("enc_sa_wqkv", 3 * H), ("enc_sa_wo", H), ("intent_w", i_pad)]
    b_entries = [("enc_sa_bqkv", 3 * H), ("enc_sa_bo", H), ("ln_g", H),
                 ("ln_b", H), ("intent_b", i_pad)]
    f_entries = []
    for i in range(num_layers):
        p = f"l{i}_"
        w_entries += [(p + "sa_wqkv", 3 * H), (p + "sa_wo", H),
                      (p + "ca_wq", H), (p + "ca_wkv", 2 * H), (p + "ca_wo", H),
                      (p + "ff1w", ff_pad)]
        b_entries += [(p + "sa_bqkv", 3 * H), (p + "sa_bo", H),
                      (p + "ca_bq", H), (p + "ca_bkv", 2 * H), (p + "ca_bo", H),
                      (p + "n1g", H), (p + "n1b", H), (p + "n2g", H),
                      (p + "n2b", H), (p + "n3g", H), (p + "n3b", H),
                      (p + "ff1b", ff_pad), (p + "ff2b", H)]
        f_entries += [(p + "ff2w", H)]
    w_entries += [("slot_w", s_pad)]
    b_entries += [("slot_b", s_pad)]

    return build(w_entries), build(b_entries), build(f_entries)


# ----------------------------------------------------------------------------
# Pack natural-shaped params into 3 slabs (run once, outside jit)
# ----------------------------------------------------------------------------
def pack_params(params, *, H, num_layers, ff, ff_pad, slot_size, intent_size,
                s_pad=LANE, i_pad=LANE):
    assert slot_size <= s_pad and intent_size <= i_pad
    (w_tab, w_tot), (b_tab, b_tot), (f_tab, f_tot) = _slab_layout(
        H, num_layers, ff_pad, s_pad, i_pad)

    w_slab = jnp.zeros((H, w_tot), jnp.float32)
    b_slab = jnp.zeros((1, b_tot), jnp.float32)
    f_slab = jnp.zeros((ff_pad, f_tot), jnp.float32)

    def put(slab, tab, name):
        arr = params[name].astype(jnp.float32)
        off, _ = tab[name]
        r, c = arr.shape
        return slab.at[:r, off:off + c].set(arr)

    for name in w_tab:
        w_slab = put(w_slab, w_tab, name)
    for name in b_tab:
        b_slab = put(b_slab, b_tab, name)
    for name in f_tab:
        f_slab = put(f_slab, f_tab, name)

    # Slot bias padding = -1e30 so padded lanes vanish under log_softmax.
    off, _ = b_tab["slot_b"]
    b_slab = b_slab.at[:, off + slot_size:off + s_pad].set(NEG_INF)

    return {"embedding": params["embedding"], "pe": params["pe"],
            "w_slab": w_slab.astype(jnp.bfloat16),
            "b_slab": b_slab,
            "f_slab": f_slab.astype(jnp.bfloat16)}


# ----------------------------------------------------------------------------
# The fused kernel (one grid step == one batch element)
# ----------------------------------------------------------------------------
def _make_fused_kernel(layout, *, L, H, num_layers, nhead_enc, nhead_dec,
                       s_pad, i_pad, eps=1e-5):
    (w_tab, _), (b_tab, _), (f_tab, _) = layout

    def kernel(emb_ref, enc_ref, newt_ref, valid_ref,
               wslab_ref, bslab_ref, fslab_ref, out_ref):

        def w_mat(name):                       # [H, width] bf16 weight
            off, width = w_tab[name]
            return wslab_ref[:, off:off + width]

        def ff2_mat(name):                     # [FF_PAD, H] bf16 weight
            off, width = f_tab[name]
            return fslab_ref[:, off:off + width]

        def bias(name):                        # [1, width] f32
            off, width = b_tab[name]
            return bslab_ref[:, off:off + width]

        def matmul(x, wname, bname, *, relu=False, ff2=False):
            w = ff2_mat(wname) if ff2 else w_mat(wname)
            y = jnp.dot(x.astype(jnp.bfloat16), w,
                        preferred_element_type=jnp.float32) + bias(bname)
            return jnp.maximum(y, 0.0) if relu else y

        def layernorm(x, gname, bname):
            mu = jnp.mean(x, axis=-1, keepdims=True)
            var = jnp.mean((x - mu) ** 2, axis=-1, keepdims=True)
            return (x - mu) * jax.lax.rsqrt(var + eps) * bias(gname) + bias(bname)

        def softmax_rows(s):
            s = s - jnp.max(s, axis=-1, keepdims=True)
            p = jnp.exp(s)
            denom = jnp.sum(p, axis=-1, keepdims=True)   # >= 1 (max row == 0)
            return p * pl.reciprocal(denom, approx=True)

        def mha(q, k, v, wo_name, bo_name, nhead, add_mask):
            # Per-head scores stacked along sublanes -> ONE merged softmax.
            # Head outputs re-packed to [Lq, H] -> single output projection.
            Lq, Lk = q.shape[0], k.shape[0]
            dh = H // nhead
            scale = 1.0 / math.sqrt(dh)
            s_list = []
            for h in range(nhead):
                sl = slice(h * dh, (h + 1) * dh)
                s_h = jax.lax.dot_general(q[:, sl], k[:, sl],
                                          (((1,), (1,)), ((), ())),
                                          preferred_element_type=jnp.float32)
                s_list.append(s_h * scale + add_mask)
            s_all = jnp.concatenate(s_list, axis=0)          # [nhead*Lq, Lk]
            p_all = softmax_rows(s_all)                      # one softmax chain
            o_list = [jnp.dot(p_all[h * Lq:(h + 1) * Lq, :],
                              v[:, h * dh:(h + 1) * dh],
                              preferred_element_type=jnp.float32)
                      for h in range(nhead)]
            o = jnp.concatenate(o_list, axis=1)              # [Lq, H]
            return matmul(o, wo_name, bo_name)

        def self_attn(x, prefix, nhead, add_mask):
            qkv = matmul(x, prefix + "_wqkv", prefix + "_bqkv")   # [L, 3H]
            q, k, v = qkv[:, 0:H], qkv[:, H:2 * H], qkv[:, 2 * H:3 * H]
            return mha(q, k, v, prefix + "_wo", prefix + "_bo", nhead, add_mask)

        def cross_attn(xq, xkv, prefix, nhead, add_mask):
            q = matmul(xq, prefix + "_wq", prefix + "_bq")        # [Lq, H]
            kv = matmul(xkv, prefix + "_wkv", prefix + "_bkv")    # [Lk, 2H]
            k, v = kv[:, 0:H], kv[:, H:2 * H]
            return mha(q, k, v, prefix + "_wo", prefix + "_bo", nhead, add_mask)

        # ---- this batch element's activations (already in VMEM) -------------
        x_enc = enc_ref[0].astype(jnp.float32)     # [L, H]
        emb = emb_ref[0].astype(jnp.float32)       # [L, H] (scaled + pos-enc)
        newt = newt_ref[0].astype(jnp.float32)     # [L, H]
        valid = valid_ref[0].astype(jnp.float32)   # [1, L] (1.0 = real token)

        # ---- encoder self-attention (8 heads, key padding) + LN + residual --
        kpm = (1.0 - valid) * NEG_INF              # [1, L]
        context = self_attn(x_enc, "enc_sa", nhead_enc, kpm)
        enc2 = layernorm(context, "ln_g", "ln_b") + x_enc

        # ---- intent head: masked mean pooling + linear -----------------------
        cnt = jnp.maximum(jnp.sum(valid, axis=-1, keepdims=True), 1.0)  # [1, 1]
        pooled = jnp.dot(valid, enc2, preferred_element_type=jnp.float32)
        pooled = pooled * pl.reciprocal(cnt, approx=True)               # [1, H]
        intent = matmul(pooled, "intent_w", "intent_b")                 # [1, i_pad]

        # ---- masks generated in-kernel ---------------------------------------
        row = jax.lax.broadcasted_iota(jnp.int32, (L, L), 0)
        col = jax.lax.broadcasted_iota(jnp.int32, (L, L), 1)
        tgt_mask = jnp.where(col > row, NEG_INF, 0.0)
        diag_mask = jnp.where(col == row, 0.0, NEG_INF)

        # ---- 2 TransformerDecoder layers (post-norm, ReLU FF) ----------------
        x = emb
        for i in range(num_layers):
            p = f"l{i}_"
            sa = self_attn(x, p + "sa", nhead_dec, tgt_mask)
            x = layernorm(x + sa, p + "n1g", p + "n1b")
            ca = cross_attn(x, newt, p + "ca", nhead_dec, diag_mask)
            x = layernorm(x + ca, p + "n2g", p + "n2b")
            h1 = matmul(x, p + "ff1w", p + "ff1b", relu=True)   # [L, FF_PAD]
            h2 = matmul(h1, p + "ff2w", p + "ff2b", ff2=True)   # [L, H]
            x = layernorm(x + h2, p + "n3g", p + "n3b")

        # ---- slot head + log_softmax over 128-lane padded scores -------------
        scores = matmul(x, "slot_w", "slot_b")                  # [L, s_pad]
        m = jnp.max(scores, axis=-1, keepdims=True)
        sh = scores - m
        lse = jnp.log(jnp.sum(jnp.exp(sh), axis=-1, keepdims=True))
        slot_ls = sh - lse                                      # [L, s_pad]

        # lane-dense single-block output: rows 0..L-1 = slot, row L = intent
        out_ref[0] = jnp.concatenate([slot_ls, intent], axis=0).astype(out_ref.dtype)

    return kernel


# ----------------------------------------------------------------------------
# Forward pass (JAX glue + single fused pallas_call)
# ----------------------------------------------------------------------------
def decoder_forward(packed, input_ids, encoder_outputs, encoder_maskings,
                    bert_subtoken_maskings, *, slot_size, intent_size,
                    num_layers=2, ff_pad=384, nhead_enc=8, nhead_dec=2):
    """infer=False path of Decoder.forward (eval mode: dropouts are identity)."""
    B, L, H = encoder_outputs.shape
    s_pad = i_pad = LANE
    layout = _slab_layout(H, num_layers, ff_pad, s_pad, i_pad)

    # -- embedding gather * sqrt(H) + positional encoding (JAX glue).
    # NOTE: reproduces the reference exactly: PositionalEncoding indexes pe by
    # x.size(0) which is the BATCH dim here (input is batch_first), so pe[b,0,:]
    # is added to every position of batch element b.
    embedded = (packed["embedding"][input_ids] * math.sqrt(H)
                + packed["pe"][:B]).astype(jnp.float32)

    # -- newtensor: left-compacted gather of rows where subtoken mask == 1
    #    (data-dependent gather; stable argsort keeps original order).
    sub = bert_subtoken_maskings.astype(jnp.int32)
    order = jnp.argsort(1 - sub, axis=1, stable=True)
    gathered = jnp.take_along_axis(encoder_outputs, order[..., None], axis=1)
    counts = jnp.sum(sub, axis=1)
    keep = jnp.arange(L)[None, :] < counts[:, None]
    newtensor = jnp.where(keep[..., None], gathered, 0.0).astype(jnp.float32)

    valid = (~encoder_maskings).astype(jnp.float32).reshape(B, 1, L)
    enc32 = encoder_outputs.astype(jnp.float32)

    kernel = _make_fused_kernel(layout, L=L, H=H, num_layers=num_layers,
                                nhead_enc=nhead_enc, nhead_dec=nhead_dec,
                                s_pad=s_pad, i_pad=i_pad)

    act_specs = [
        pl.BlockSpec((1, L, H), lambda b: (b, 0, 0)),    # embedded
        pl.BlockSpec((1, L, H), lambda b: (b, 0, 0)),    # encoder_outputs
        pl.BlockSpec((1, L, H), lambda b: (b, 0, 0)),    # newtensor
        pl.BlockSpec((1, 1, L), lambda b: (b, 0, 0)),    # valid mask
    ]
    slab_specs = [
        pl.BlockSpec(packed["w_slab"].shape, lambda b: (0, 0)),
        pl.BlockSpec(packed["b_slab"].shape, lambda b: (0, 0)),
        pl.BlockSpec(packed["f_slab"].shape, lambda b: (0, 0)),
    ]

    out = pl.pallas_call(
        kernel,
        out_shape=jax.ShapeDtypeStruct((B, L + 1, LANE), jnp.float32),
        grid=(B,),
        in_specs=act_specs + slab_specs,
        out_specs=pl.BlockSpec((1, L + 1, LANE), lambda b: (b, 0, 0)),
        compiler_params=pltpu.CompilerParams(
            dimension_semantics=("parallel",)),
    )(embedded, enc32, newtensor, valid,
      packed["w_slab"], packed["b_slab"], packed["f_slab"])

    slot_scores = out[:, :L, :slot_size].reshape(B * L, slot_size)
    intent_score = out[:, L, :intent_size]
    return slot_scores, intent_score

    # TODO(synk): infer=True branch (autoregressive greedy decode with argmax
    # feedback loop) not implemented; only the training-path semantics are.


# ----------------------------------------------------------------------------
# Deterministic parameter init (natural / PyTorch-like shapes)
# ----------------------------------------------------------------------------
def init_params(key, slot_size, intent_size, H, ff, num_layers, max_len):
    keys = iter(jax.random.split(key, 128))

    def nrm(shape, scale=0.05):
        return (scale * jax.random.normal(next(keys), shape)).astype(jnp.float32)

    def zeros(shape):
        return jnp.zeros(shape, jnp.float32)

    def ones(shape):
        return jnp.ones(shape, jnp.float32)

    p = {}
    p["embedding"] = nrm((slot_size, H), scale=1.0)

    # sinusoidal positional-encoding table, shape [max_len, 1, H]
    position = jnp.arange(max_len, dtype=jnp.float32)[:, None]
    div_term = jnp.exp(jnp.arange(0, H, 2, dtype=jnp.float32)
                       * (-math.log(10000.0) / H))
    pe = jnp.zeros((max_len, 1, H), jnp.float32)
    pe = pe.at[:, 0, 0::2].set(jnp.sin(position * div_term))
    pe = pe.at[:, 0, 1::2].set(jnp.cos(position * div_term))
    p["pe"] = pe

    p["enc_sa_wqkv"] = nrm((H, 3 * H)); p["enc_sa_bqkv"] = zeros((1, 3 * H))
    p["enc_sa_wo"] = nrm((H, H));       p["enc_sa_bo"] = zeros((1, H))
    p["ln_g"] = ones((1, H));           p["ln_b"] = zeros((1, H))
    p["intent_w"] = nrm((H, intent_size)); p["intent_b"] = zeros((1, intent_size))

    for i in range(num_layers):
        pr = f"l{i}_"
        p[pr + "sa_wqkv"] = nrm((H, 3 * H)); p[pr + "sa_bqkv"] = zeros((1, 3 * H))
        p[pr + "sa_wo"] = nrm((H, H));       p[pr + "sa_bo"] = zeros((1, H))
        p[pr + "ca_wq"] = nrm((H, H));       p[pr + "ca_bq"] = zeros((1, H))
        p[pr + "ca_wkv"] = nrm((H, 2 * H));  p[pr + "ca_bkv"] = zeros((1, 2 * H))
        p[pr + "ca_wo"] = nrm((H, H));       p[pr + "ca_bo"] = zeros((1, H))
        p[pr + "n1g"] = ones((1, H)); p[pr + "n1b"] = zeros((1, H))
        p[pr + "n2g"] = ones((1, H)); p[pr + "n2b"] = zeros((1, H))
        p[pr + "n3g"] = ones((1, H)); p[pr + "n3b"] = zeros((1, H))
        p[pr + "ff1w"] = nrm((H, ff)); p[pr + "ff1b"] = zeros((1, ff))
        p[pr + "ff2w"] = nrm((ff, H)); p[pr + "ff2b"] = zeros((1, H))

    p["slot_w"] = nrm((H, slot_size)); p["slot_b"] = zeros((1, slot_size))
    return p


# ----------------------------------------------------------------------------
if __name__ == "__main__":
    B, L = 2, 8                            # batch, sequence length
    ENV_CNN_FILTERS, ENV_CNN_KERNELS = 16, 4
    H = ENV_CNN_FILTERS * ENV_CNN_KERNELS  # ENV_HIDDEN_SIZE = 64 (div by 8 & 2 heads)
    FF = 300                               # dim_feedforward (hard-coded in module)
    FF_PAD = 384                           # lane-dense padding (3 * 128)
    slot_size, intent_size = 16, 8
    NUM_LAYERS = 2

    key = jax.random.PRNGKey(0)
    k_params, k_ids, k_enc = jax.random.split(key, 3)

    params = init_params(k_params, slot_size, intent_size, H, FF, NUM_LAYERS,
                         max_len=128)
    packed = pack_params(params, H=H, num_layers=NUM_LAYERS, ff=FF,
                         ff_pad=FF_PAD, slot_size=slot_size,
                         intent_size=intent_size)

    input_ids = jax.random.randint(k_ids, (B, L), 0, slot_size, dtype=jnp.int32)
    encoder_outputs = jax.random.normal(k_enc, (B, L, H), dtype=jnp.float32)
    encoder_maskings = jnp.array(
        [[False] * L,
         [False] * (L - 2) + [True] * 2])                     # True = padding
    bert_subtoken_maskings = jnp.array(
        [[1, 1, 0, 1, 1, 1, 0, 1],
         [1, 0, 1, 1, 1, 1, 0, 0]], dtype=jnp.int32)

    fwd = jax.jit(functools.partial(decoder_forward,
                                    slot_size=slot_size,
                                    intent_size=intent_size,
                                    num_layers=NUM_LAYERS,
                                    ff_pad=FF_PAD))
    slot_scores, intent_score = fwd(packed, input_ids, encoder_outputs,
                                    encoder_maskings, bert_subtoken_maskings)
    jax.block_until_ready((slot_scores, intent_score))

    assert slot_scores.shape == (B * L, slot_size)
    assert intent_score.shape == (B, intent_size)
    assert bool(jnp.all(jnp.isfinite(slot_scores)))
    assert bool(jnp.all(jnp.isfinite(intent_score)))
    # log_softmax rows should (approximately) sum to 1 in prob space
    assert bool(jnp.all(jnp.abs(jnp.sum(jnp.exp(slot_scores), axis=-1) - 1.0) < 1e-2))
    print("KERNEL_OK")
</pallas_src>

<mosaic_0001>
module attributes {stable_mosaic.version = 11 : i64} {
  func.func @kernel(%arg0: i32, %arg1: memref<1x8x64xf32, #tpu.memory_space<vmem>>, %arg2: memref<1x8x64xf32, #tpu.memory_space<vmem>>, %arg3: memref<1x8x64xf32, #tpu.memory_space<vmem>>, %arg4: memref<1x1x8xf32, #tpu.memory_space<vmem>>, %arg5: memref<64x2944xbf16, #tpu.memory_space<vmem>>, %arg6: memref<1x4992xf32, #tpu.memory_space<vmem>>, %arg7: memref<384x256xbf16, #tpu.memory_space<vmem>>, %arg8: memref<1x9x128xf32, #tpu.memory_space<vmem>>) attributes {dimension_semantics = [#tpu.dimension_semantics<parallel>], iteration_bounds = array<i64: 2>, scalar_prefetch = 0 : i64, scratch_operands = 0 : i64, tpu.core_type = #tpu.core_type<tc>, window_params = [{transform_indices = @transform_0, window_bounds = array<i64: 1, 8, 64>}, {transform_indices = @transform_1, window_bounds = array<i64: 1, 8, 64>}, {transform_indices = @transform_2, window_bounds = array<i64: 1, 8, 64>}, {transform_indices = @transform_3, window_bounds = array<i64: 1, 1, 8>}, {pipeline_mode = #tpu.pipeline_mode<synchronous>, transform_indices = @transform_4, window_bounds = array<i64: 64, 2944>}, {pipeline_mode = #tpu.pipeline_mode<synchronous>, transform_indices = @transform_5, window_bounds = array<i64: 1, 4992>}, {pipeline_mode = #tpu.pipeline_mode<synchronous>, transform_indices = @transform_6, window_bounds = array<i64: 384, 256>}, {transform_indices = @transform_7, window_bounds = array<i64: 1, 9, 128>}]} {
    %c0 = arith.constant 0 : index
    %c0_0 = arith.constant 0 : index
    %c0_1 = arith.constant 0 : index
    %0 = vector.load %arg2[%c0, %c0_0, %c0_1] : memref<1x8x64xf32, #tpu.memory_space<vmem>>, vector<1x8x64xf32>
    %1 = vector.shape_cast %0 : vector<1x8x64xf32> to vector<8x64xf32>
    %c0_2 = arith.constant 0 : index
    %c0_3 = arith.constant 0 : index
    %c0_4 = arith.constant 0 : index
    %2 = vector.load %arg1[%c0_2, %c0_3, %c0_4] : memref<1x8x64xf32, #tpu.memory_space<vmem>>, vector<1x8x64xf32>
    %3 = vector.shape_cast %2 : vector<1x8x64xf32> to vector<8x64xf32>
    %c0_5 = arith.constant 0 : index
    %c0_6 = arith.constant 0 : index
    %c0_7 = arith.constant 0 : index
    %4 = vector.load %arg3[%c0_5, %c0_6, %c0_7] : memref<1x8x64xf32, #tpu.memory_space<vmem>>, vector<1x8x64xf32>
    %5 = vector.shape_cast %4 : vector<1x8x64xf32> to vector<8x64xf32>
    %c0_8 = arith.constant 0 : index
    %c0_9 = arith.constant 0 : index
    %c0_10 = arith.constant 0 : index
    %6 = vector.load %arg4[%c0_8, %c0_9, %c0_10] : memref<1x1x8xf32, #tpu.memory_space<vmem>>, vector<1x1x8xf32>
    %7 = vector.shape_cast %6 : vector<1x1x8xf32> to vector<1x8xf32>
    %cst = arith.constant 1.000000e+00 : f32
    %8 = vector.broadcast %cst : f32 to vector<1x8xf32>
    %9 = arith.subf %8, %7 : vector<1x8xf32>
    %cst_11 = arith.constant -1.000000e+30 : f32
    %10 = vector.broadcast %cst_11 : f32 to vector<1x8xf32>
    %11 = arith.mulf %9, %10 : vector<1x8xf32>
    %c0_12 = arith.constant 0 : index
    %c0_13 = arith.constant 0 : index
    %12 = vector.load %arg5[%c0_12, %c0_13] : memref<64x2944xbf16, #tpu.memory_space<vmem>>, vector<64x192xbf16>
    %13 = arith.truncf %1 : vector<8x64xf32> to vector<8x64xbf16>
    %cst_14 = arith.constant dense<0.000000e+00> : vector<8x192xf32>
    %14 = tpu.matmul %13, %12, %cst_14 {dimension_numbers = #tpu.dot_dimension_numbers<[1], [0], [0], [1], [0, 0, 1, 1], [], []>} : vector<8x64xbf16>, vector<64x192xbf16>, vector<8x192xf32> -> vector<8x192xf32>
    %c0_15 = arith.constant 0 : index
    %c0_16 = arith.constant 0 : index
    %15 = vector.load %arg6[%c0_15, %c0_16] : memref<1x4992xf32, #tpu.memory_space<vmem>>, vector<1x192xf32>
    %16 = vector.broadcast %15 : vector<1x192xf32> to vector<8x192xf32>
    %17 = arith.addf %14, %16 : vector<8x192xf32>
    %18 = vector.extract_strided_slice %17 {offsets = [0, 0], sizes = [8, 64], strides = [1, 1]} : vector<8x192xf32> to vector<8x64xf32>
    %19 = vector.extract_strided_slice %17 {offsets = [0, 64], sizes = [8, 64], strides = [1, 1]} : vector<8x192xf32> to vector<8x64xf32>
    %20 = vector.extract_strided_slice %17 {offsets = [0, 128], sizes = [8, 64], strides = [1, 1]} : vector<8x192xf32> to vector<8x64xf32>
    %21 = vector.extract_strided_slice %18 {offsets = [0, 0], sizes = [8, 8], strides = [1, 1]} : vector<8x64xf32> to vector<8x8xf32>
    %22 = vector.extract_strided_slice %19 {offsets = [0, 0], sizes = [8, 8], strides = [1, 1]} : vector<8x64xf32> to vector<8x8xf32>
    %cst_17 = arith.constant dense<0.000000e+00> : vector<8x8xf32>
    %23 = tpu.matmul %21, %22, %cst_17 {dimension_numbers = #tpu.dot_dimension_numbers<[1], [1], [0], [0], [0, 0, 1, 0], [], []>} : vector<8x8xf32>, vector<8x8xf32>, vector<8x8xf32> -> vector<8x8xf32>
    %cst_18 = arith.constant 0.353553385 : f32
    %24 = vector.broadcast %cst_18 : f32 to vector<8x8xf32>
    %25 = arith.mulf %23, %24 : vector<8x8xf32>
    %26 = vector.broadcast %11 : vector<1x8xf32> to vector<8x8xf32>
    %27 = arith.addf %25, %26 : vector<8x8xf32>
    %28 = vector.extract_strided_slice %18 {offsets = [0, 8], sizes = [8, 8], strides = [1, 1]} : vector<8x64xf32> to vector<8x8xf32>
    %29 = vector.extract_strided_slice %19 {offsets = [0, 8], sizes = [8, 8], strides = [1, 1]} : vector<8x64xf32> to vector<8x8xf32>
    %cst_19 = arith.constant dense<0.000000e+00> : vector<8x8xf32>
    %30 = tpu.matmul %28, %29, %cst_19 {dimension_numbers = #tpu.dot_dimension_numbers<[1], [1], [0], [0], [0, 0, 1, 0], [], []>} : vector<8x8xf32>, vector<8x8xf32>, vector<8x8xf32> -> vector<8x8xf32>
    %cst_20 = arith.constant 0.353553385 : f32
    %31 = vector.broadcast %cst_20 : f32 to vector<8x8xf32>
    %32 = arith.mulf %30, %31 : vector<8x8xf32>
    %33 = vector.broadcast %11 : vector<1x8xf32> to vector<8x8xf32>
    %34 = arith.addf %32, %33 : vector<8x8xf32>
    %35 = vector.extract_strided_slice %18 {offsets = [0, 16], sizes = [8, 8], strides = [1, 1]} : vector<8x64xf32> to vector<8x8xf32>
    %36 = vector.extract_strided_slice %19 {offsets = [0, 16], sizes = [8, 8], strides = [1, 1]} : vector<8x64xf32> to vector<8x8xf32>
    %cst_21 = arith.constant dense<0.000000e+00> : vector<8x8xf32>
    %37 = tpu.matmul %35, %36, %cst_21 {dimension_numbers = #tpu.dot_dimension_numbers<[1], [1], [0], [0], [0, 0, 1, 0], [], []>} : vector<8x8xf32>, vector<8x8xf32>, vector<8x8xf32> -> vector<8x8xf32>
    %cst_22 = arith.constant 0.353553385 : f32
    %38 = vector.broadcast %cst_22 : f32 to vector<8x8xf32>
    %39 = arith.mulf %37, %38 : vector<8x8xf32>
    %40 = vector.broadcast %11 : vector<1x8xf32> to vector<8x8xf32>
    %41 = arith.addf %39, %40 : vector<8x8xf32>
    %42 = vector.extract_strided_slice %18 {offsets = [0, 24], sizes = [8, 8], strides = [1, 1]} : vector<8x64xf32> to vector<8x8xf32>
    %43 = vector.extract_strided_slice %19 {offsets = [0, 24], sizes = [8, 8], strides = [1, 1]} : vector<8x64xf32> to vector<8x8xf32>
    %cst_23 = arith.constant dense<0.000000e+00> : vector<8x8xf32>
    %44 = tpu.matmul %42, %43, %cst_23 {dimension_numbers = #tpu.dot_dimension_numbers<[1], [1], [0], [0], [0, 0, 1, 0], [], []>} : vector<8x8xf32>, vector<8x8xf32>, vector<8x8xf32> -> vector<8x8xf32>
    %cst_24 = arith.constant 0.353553385 : f32
    %45 = vector.broadcast %cst_24 : f32 to vector<8x8xf32>
    %46 = arith.mulf %44, %45 : vector<8x8xf32>
    %47 = vector.broadcast %11 : vector<1x8xf32> to vector<8x8xf32>
    %48 = arith.addf %46, %47 : vector<8x8xf32>
    %49 = vector.extract_strided_slice %18 {offsets = [0, 32], sizes = [8, 8], strides = [1, 1]} : vector<8x64xf32> to vector<8x8xf32>
    %50 = vector.extract_strided_slice %19 {offsets = [0, 32], sizes = [8, 8], strides = [1, 1]} : vector<8x64xf32> to vector<8x8xf32>
    %cst_25 = arith.constant dense<0.000000e+00> : vector<8x8xf32>
    %51 = tpu.matmul %49, %50, %cst_25 {dimension_numbers = #tpu.dot_dimension_numbers<[1], [1], [0], [0], [0, 0, 1, 0], [], []>} : vector<8x8xf32>, vector<8x8xf32>, vector<8x8xf32> -> vector<8x8xf32>
    %cst_26 = arith.constant 0.353553385 : f32
    %52 = vector.broadcast %cst_26 : f32 to vector<8x8xf32>
    %53 = arith.mulf %51, %52 : vector<8x8xf32>
    %54 = vector.broadcast %11 : vector<1x8xf32> to vector<8x8xf32>
    %55 = arith.addf %53, %54 : vector<8x8xf32>
    %56 = vector.extract_strided_slice %18 {offsets = [0, 40], sizes = [8, 8], strides = [1, 1]} : vector<8x64xf32> to vector<8x8xf32>
    %57 = vector.extract_strided_slice %19 {offsets = [0, 40], sizes = [8, 8], strides = [1, 1]} : vector<8x64xf32> to vector<8x8xf32>
    %cst_27 = arith.constant dense<0.000000e+00> : vector<8x8xf32>
    %58 = tpu.matmul %56, %57, %cst_27 {dimension_numbers = #tpu.dot_dimension_numbers<[1], [1], [0], [0], [0, 0, 1, 0], [], []>} : vector<8x8xf32>, vector<8x8xf32>, vector<8x8xf32> -> vector<8x8xf32>
    %cst_28 = arith.constant 0.353553385 : f32
    %59 = vector.broadcast %cst_28 : f32 to vector<8x8xf32>
    %60 = arith.mulf %58, %59 : vector<8x8xf32>
    %61 = vector.broadcast %11 : vector<1x8xf32> to vector<8x8xf32>
    %62 = arith.addf %60, %61 : vector<8x8xf32>
    %63 = vector.extract_strided_slice %18 {offsets = [0, 48], sizes = [8, 8], strides = [1, 1]} : vector<8x64xf32> to vector<8x8xf32>
    %64 = vector.extract_strided_slice %19 {offsets = [0, 48], sizes = [8, 8], strides = [1, 1]} : vector<8x64xf32> to vector<8x8xf32>
    %cst_29 = arith.constant dense<0.000000e+00> : vector<8x8xf32>
    %65 = tpu.matmul %63, %64, %cst_29 {dimension_numbers = #tpu.dot_dimension_numbers<[1], [1], [0], [0], [0, 0, 1, 0], [], []>} : vector<8x8xf32>, vector<8x8xf32>, vector<8x8xf32> -> vector<8x8xf32>
    %cst_30 = arith.constant 0.353553385 : f32
    %66 = vector.broadcast %cst_30 : f32 to vector<8x8xf32>
    %67 = arith.mulf %65, %66 : vector<8x8xf32>
    %68 = vector.broadcast %11 : vector<1x8xf32> to vector<8x8xf32>
    %69 = arith.addf %67, %68 : vector<8x8xf32>
    %70 = vector.extract_strided_slice %18 {offsets = [0, 56], sizes = [8, 8], strides = [1, 1]} : vector<8x64xf32> to vector<8x8xf32>
    %71 = vector.extract_strided_slice %19 {offsets = [0, 56], sizes = [8, 8], strides = [1, 1]} : vector<8x64xf32> to vector<8x8xf32>
    %cst_31 = arith.constant dense<0.000000e+00> : vector<8x8xf32>
    %72 = tpu.matmul %70, %71, %cst_31 {dimension_numbers = #tpu.dot_dimension_numbers<[1], [1], [0], [0], [0, 0, 1, 0], [], []>} : vector<8x8xf32>, vector<8x8xf32>, vector<8x8xf32> -> vector<8x8xf32>
    %cst_32 = arith.constant 0.353553385 : f32
    %73 = vector.broadcast %cst_32 : f32 to vector<8x8xf32>
    %74 = arith.mulf %72, %73 : vector<8x8xf32>
    %75 = vector.broadcast %11 : vector<1x8xf32> to vector<8x8xf32>
    %76 = arith.addf %74, %75 : vector<8x8xf32>
    %77 = tpu.concatenate %27, %34, %41, %48, %55, %62, %69, %76 in 0 : vector<8x8xf32>, vector<8x8xf32>, vector<8x8xf32>, vector<8x8xf32>, vector<8x8xf32>, vector<8x8xf32>, vector<8x8xf32>, vector<8x8xf32> -> vector<64x8xf32>
    %cst_33 = arith.constant dense<0xFF800000> : vector<64xf32>
    %78 = vector.multi_reduction <maximumf>, %77, %cst_33 [1] : vector<64x8xf32> to vector<64xf32>
    %79 = vector.shape_cast %78 : vector<64xf32> to vector<64x1xf32>
    %80 = vector.broadcast %79 : vector<64x1xf32> to vector<64x8xf32>
    %81 = arith.subf %77, %80 : vector<64x8xf32>
    %82 = math.exp %81 : vector<64x8xf32>
    %cst_34 = arith.constant dense<0.000000e+00> : vector<64xf32>
    %83 = vector.multi_reduction <add>, %82, %cst_34 [1] : vector<64x8xf32> to vector<64xf32>
    %84 = vector.shape_cast %83 : vector<64xf32> to vector<64x1xf32>
    %85 = tpu.reciprocal %84 {approx = true} : vector<64x1xf32> -> vector<64x1xf32>
    %86 = vector.broadcast %85 : vector<64x1xf32> to vector<64x8xf32>
    %87 = arith.mulf %82, %86 : vector<64x8xf32>
    %88 = vector.extract_strided_slice %87 {offsets = [0, 0], sizes = [8, 8], strides = [1, 1]} : vector<64x8xf32> to vector<8x8xf32>
    %89 = vector.extract_strided_slice %20 {offsets = [0, 0], sizes = [8, 8], strides = [1, 1]} : vector<8x64xf32> to vector<8x8xf32>
    %cst_35 = arith.constant dense<0.000000e+00> : vector<8x8xf32>
    %90 = tpu.matmul %88, %89, %cst_35 {dimension_numbers = #tpu.dot_dimension_numbers<[1], [0], [0], [1], [0, 0, 1, 1], [], []>} : vector<8x8xf32>, vector<8x8xf32>, vector<8x8xf32> -> vector<8x8xf32>
    %91 = vector.extract_strided_slice %87 {offsets = [8, 0], sizes = [8, 8], strides = [1, 1]} : vector<64x8xf32> to vector<8x8xf32>
    %92 = vector.extract_strided_slice %20 {offsets = [0, 8], sizes = [8, 8], strides = [1, 1]} : vector<8x64xf32> to vector<8x8xf32>
    %cst_36 = arith.constant dense<0.000000e+00> : vector<8x8xf32>
    %93 = tpu.matmul %91, %92, %cst_36 {dimension_numbers = #tpu.dot_dimension_numbers<[1], [0], [0], [1], [0, 0, 1, 1], [], []>} : vector<8x8xf32>, vector<8x8xf32>, vector<8x8xf32> -> vector<8x8xf32>
    %94 = vector.extract_strided_slice %87 {offsets = [16, 0], sizes = [8, 8], strides = [1, 1]} : vector<64x8xf32> to vector<8x8xf32>
    %95 = vector.extract_strided_slice %20 {offsets = [0, 16], sizes = [8, 8], strides = [1, 1]} : vector<8x64xf32> to vector<8x8xf32>
    %cst_37 = arith.constant dense<0.000000e+00> : vector<8x8xf32>
    %96 = tpu.matmul %94, %95, %cst_37 {dimension_numbers = #tpu.dot_dimension_numbers<[1], [0], [0], [1], [0, 0, 1, 1], [], []>} : vector<8x8xf32>, vector<8x8xf32>, vector<8x8xf32> -> vector<8x8xf32>
    %97 = vector.extract_strided_slice %87 {offsets = [24, 0], sizes = [8, 8], strides = [1, 1]} : vector<64x8xf32> to vector<8x8xf32>
    %98 = vector.extract_strided_slice %20 {offsets = [0, 24], sizes = [8, 8], strides = [1, 1]} : vector<8x64xf32> to vector<8x8xf32>
    %cst_38 = arith.constant dense<0.000000e+00> : vector<8x8xf32>
    %99 = tpu.matmul %97, %98, %cst_38 {dimension_numbers = #tpu.dot_dimension_numbers<[1], [0], [0], [1], [0, 0, 1, 1], [], []>} : vector<8x8xf32>, vector<8x8xf32>, vector<8x8xf32> -> vector<8x8xf32>
    %100 = vector.extract_strided_slice %87 {offsets = [32, 0], sizes = [8, 8], strides = [1, 1]} : vector<64x8xf32> to vector<8x8xf32>
    %101 = vector.extract_strided_slice %20 {offsets = [0, 32], sizes = [8, 8], strides = [1, 1]} : vector<8x64xf32> to vector<8x8xf32>
    %cst_39 = arith.constant dense<0.000000e+00> : vector<8x8xf32>
    %102 = tpu.matmul %100, %101, %cst_39 {dimension_numbers = #tpu.dot_dimension_numbers<[1], [0], [0], [1], [0, 0, 1, 1], [], []>} : vector<8x8xf32>, vector<8x8xf32>, vector<8x8xf32> -> vector<8x8xf32>
    %103 = vector.extract_strided_slice %87 {offsets = [40, 0], sizes = [8, 8], strides = [1, 1]} : vector<64x8xf32> to vector<8x8xf32>
    %104 = vector.extract_strided_slice %20 {offsets = [0, 40], sizes = [8, 8], strides = [1, 1]} : vector<8x64xf32> to vector<8x8xf32>
    %cst_40 = arith.constant dense<0.000000e+00> : vector<8x8xf32>
    %105 = tpu.matmul %103, %104, %cst_40 {dimension_numbers = #tpu.dot_dimension_numbers<[1], [0], [0], [1], [0, 0, 1, 1], [], []>} : vector<8x8xf32>, vector<8x8xf32>, vector<8x8xf32> -> vector<8x8xf32>
    %106 = vector.extract_strided_slice %87 {offsets = [48, 0], sizes = [8, 8], strides = [1, 1]} : vector<64x8xf32> to vector<8x8xf32>
    %107 = vector.extract_strided_slice %20 {offsets = [0, 48], sizes = [8, 8], strides = [1, 1]} : vector<8x64xf32> to vector<8x8xf32>
    %cst_41 = arith.constant dense<0.000000e+00> : vector<8x8xf32>
    %108 = tpu.matmul %106, %107, %cst_41 {dimension_numbers = #tpu.dot_dimension_numbers<[1], [0], [0], [1], [0, 0, 1, 1], [], []>} : vector<8x8xf32>, vector<8x8xf32>, vector<8x8xf32> -> vector<8x8xf32>
    %109 = vector.extract_strided_slice %87 {offsets = [56, 0], sizes = [8, 8], strides = [1, 1]} : vector<64x8xf32> to vector<8x8xf32>
    %110 = vector.extract_strided_slice %20 {offsets = [0, 56], sizes = [8, 8], strides = [1, 1]} : vector<8x64xf32> to vector<8x8xf32>
    %cst_42 = arith.constant dense<0.000000e+00> : vector<8x8xf32>
    %111 = tpu.matmul %109, %110, %cst_42 {dimension_numbers = #tpu.dot_dimension_numbers<[1], [0], [0], [1], [0, 0, 1, 1], [], []>} : vector<8x8xf32>, vector<8x8xf32>, vector<8x8xf32> -> vector<8x8xf32>
    %112 = tpu.concatenate %90, %93, %96, %99, %102, %105, %108, %111 in 1 : vector<8x8xf32>, vector<8x8xf32>, vector<8x8xf32>, vector<8x8xf32>, vector<8x8xf32>, vector<8x8xf32>, vector<8x8xf32>, vector<8x8xf32> -> vector<8x64xf32>
    %c0_43 = arith.constant 0 : index
    %c256 = arith.constant 256 : index
    %113 = vector.load %arg5[%c0_43, %c256] : memref<64x2944xbf16, #tpu.memory_space<vmem>>, vector<64x64xbf16>
    %114 = arith.truncf %112 : vector<8x64xf32> to vector<8x64xbf16>
    %cst_44 = arith.constant dense<0.000000e+00> : vector<8x64xf32>
    %115 = tpu.matmul %114, %113, %cst_44 {dimension_numbers = #tpu.dot_dimension_numbers<[1], [0], [0], [1], [0, 0, 1, 1], [], []>} : vector<8x64xbf16>, vector<64x64xbf16>, vector<8x64xf32> -> vector<8x64xf32>
    %c0_45 = arith.constant 0 : index
    %c256_46 = arith.constant 256 : index
    %116 = vector.load %arg6[%c0_45, %c256_46] : memref<1x4992xf32, #tpu.memory_space<vmem>>, vector<1x64xf32>
    %117 = vector.broadcast %116 : vector<1x64xf32> to vector<8x64xf32>
    %118 = arith.addf %115, %117 : vector<8x64xf32>
    %cst_47 = arith.constant dense<0.000000e+00> : vector<8xf32>
    %119 = vector.multi_reduction <add>, %118, %cst_47 [1] : vector<8x64xf32> to vector<8xf32>
    %120 = vector.shape_cast %119 : vector<8xf32> to vector<8x1xf32>
    %cst_48 = arith.constant 6.400000e+01 : f32
    %121 = vector.broadcast %cst_48 : f32 to vector<8x1xf32>
    %122 = arith.divf %120, %121 : vector<8x1xf32>
    %123 = vector.broadcast %122 : vector<8x1xf32> to vector<8x64xf32>
    %124 = arith.subf %118, %123 : vector<8x64xf32>
    %125 = arith.mulf %124, %124 : vector<8x64xf32>
    %cst_49 = arith.constant dense<0.000000e+00> : vector<8xf32>
    %126 = vector.multi_reduction <add>, %125, %cst_49 [1] : vector<8x64xf32> to vector<8xf32>
    %127 = vector.shape_cast %126 : vector<8xf32> to vector<8x1xf32>
    %cst_50 = arith.constant 6.400000e+01 : f32
    %128 = vector.broadcast %cst_50 : f32 to vector<8x1xf32>
    %129 = arith.divf %127, %128 : vector<8x1xf32>
    %130 = vector.broadcast %122 : vector<8x1xf32> to vector<8x64xf32>
    %131 = arith.subf %118, %130 : vector<8x64xf32>
    %cst_51 = arith.constant 9.99999974E-6 : f32
    %132 = vector.broadcast %cst_51 : f32 to vector<8x1xf32>
    %133 = arith.addf %129, %132 : vector<8x1xf32>
    %134 = math.rsqrt %133 : vector<8x1xf32>
    %135 = vector.broadcast %134 : vector<8x1xf32> to vector<8x64xf32>
    %136 = arith.mulf %131, %135 : vector<8x64xf32>
    %c0_52 = arith.constant 0 : index
    %c384 = arith.constant 384 : index
    %137 = vector.load %arg6[%c0_52, %c384] : memref<1x4992xf32, #tpu.memory_space<vmem>>, vector<1x64xf32>
    %138 = vector.broadcast %137 : vector<1x64xf32> to vector<8x64xf32>
    %139 = arith.mulf %136, %138 : vector<8x64xf32>
    %c0_53 = arith.constant 0 : index
    %c512 = arith.constant 512 : index
    %140 = vector.load %arg6[%c0_53, %c512] : memref<1x4992xf32, #tpu.memory_space<vmem>>, vector<1x64xf32>
    %141 = vector.broadcast %140 : vector<1x64xf32> to vector<8x64xf32>
    %142 = arith.addf %139, %141 : vector<8x64xf32>
    %143 = arith.addf %142, %1 : vector<8x64xf32>
    %cst_54 = arith.constant dense<0.000000e+00> : vector<1xf32>
    %144 = vector.multi_reduction <add>, %7, %cst_54 [1] : vector<1x8xf32> to vector<1xf32>
    %145 = vector.shape_cast %144 : vector<1xf32> to vector<1x1xf32>
    %cst_55 = arith.constant 1.000000e+00 : f32
    %146 = vector.broadcast %cst_55 : f32 to vector<1x1xf32>
    %147 = arith.maximumf %145, %146 : vector<1x1xf32>
    %cst_56 = arith.constant dense<0.000000e+00> : vector<1x64xf32>
    %148 = tpu.matmul %7, %143, %cst_56 {dimension_numbers = #tpu.dot_dimension_numbers<[1], [0], [0], [1], [0, 0, 1, 1], [], []>} : vector<1x8xf32>, vector<8x64xf32>, vector<1x64xf32> -> vector<1x64xf32>
    %149 = tpu.reciprocal %147 {approx = true} : vector<1x1xf32> -> vector<1x1xf32>
    %150 = vector.broadcast %149 : vector<1x1xf32> to vector<1x64xf32>
    %151 = arith.mulf %148, %150 : vector<1x64xf32>
    %c0_57 = arith.constant 0 : index
    %c384_58 = arith.constant 384 : index
    %152 = vector.load %arg5[%c0_57, %c384_58] : memref<64x2944xbf16, #tpu.memory_space<vmem>>, vector<64x128xbf16>
    %153 = arith.truncf %151 : vector<1x64xf32> to vector<1x64xbf16>
    %cst_59 = arith.constant dense<0.000000e+00> : vector<1x128xf32>
    %154 = tpu.matmul %153, %152, %cst_59 {dimension_numbers = #tpu.dot_dimension_numbers<[1], [0], [0], [1], [0, 0, 1, 1], [], []>} : vector<1x64xbf16>, vector<64x128xbf16>, vector<1x128xf32> -> vector<1x128xf32>
    %c0_60 = arith.constant 0 : index
    %c640 = arith.constant 640 : index
    %155 = vector.load %arg6[%c0_60, %c640] : memref<1x4992xf32, #tpu.memory_space<vmem>>, vector<1x128xf32>
    %156 = arith.addf %154, %155 : vector<1x128xf32>
    %157 = tpu.iota {dimensions = array<i32: 0>} : vector<8x8xi32>
    %158 = tpu.iota {dimensions = array<i32: 1>} : vector<8x8xi32>
    %159 = arith.cmpi sgt, %158, %157 : vector<8x8xi32>
    %cst_61 = arith.constant -1.000000e+30 : f32
    %cst_62 = arith.constant 0.000000e+00 : f32
    %160 = vector.broadcast %cst_61 : f32 to vector<8x8xf32>
    %161 = vector.broadcast %cst_62 : f32 to vector<8x8xf32>
    %162 = arith.select %159, %160, %161 : vector<8x8xi1>, vector<8x8xf32>
    %163 = arith.cmpi eq, %158, %157 : vector<8x8xi32>
    %cst_63 = arith.constant 0.000000e+00 : f32
    %cst_64 = arith.constant -1.000000e+30 : f32
    %164 = vector.broadcast %cst_63 : f32 to vector<8x8xf32>
    %165 = vector.broadcast %cst_64 : f32 to vector<8x8xf32>
    %166 = arith.select %163, %164, %165 : vector<8x8xi1>, vector<8x8xf32>
    %c0_65 = arith.constant 0 : index
    %c512_66 = arith.constant 512 : index
    %167 = vector.load %arg5[%c0_65, %c512_66] : memref<64x2944xbf16, #tpu.memory_space<vmem>>, vector<64x192xbf16>
    %168 = arith.truncf %3 : vector<8x64xf32> to vector<8x64xbf16>
    %cst_67 = arith.constant dense<0.000000e+00> : vector<8x192xf32>
    %169 = tpu.matmul %168, %167, %cst_67 {dimension_numbers = #tpu.dot_dimension_numbers<[1], [0], [0], [1], [0, 0, 1, 1], [], []>} : vector<8x64xbf16>, vector<64x192xbf16>, vector<8x192xf32> -> vector<8x192xf32>
    %c0_68 = arith.constant 0 : index
    %c768 = arith.constant 768 : index
    %170 = vector.load %arg6[%c0_68, %c768] : memref<1x4992xf32, #tpu.memory_space<vmem>>, vector<1x192xf32>
    %171 = vector.broadcast %170 : vector<1x192xf32> to vector<8x192xf32>
    %172 = arith.addf %169, %171 : vector<8x192xf32>
    %173 = vector.extract_strided_slice %172 {offsets = [0, 0], sizes = [8, 64], strides = [1, 1]} : vector<8x192xf32> to vector<8x64xf32>
    %174 = vector.extract_strided_slice %172 {offsets = [0, 64], sizes = [8, 64], strides = [1, 1]} : vector<8x192xf32> to vector<8x64xf32>
    %175 = vector.extract_strided_slice %172 {offsets = [0, 128], sizes = [8, 64], strides = [1, 1]} : vector<8x192xf32> to vector<8x64xf32>
    %176 = vector.extract_strided_slice %173 {offsets = [0, 0], sizes = [8, 32], strides = [1, 1]} : vector<8x64xf32> to vector<8x32xf32>
    %177 = vector.extract_strided_slice %174 {offsets = [0, 0], sizes = [8, 32], strides = [1, 1]} : vector<8x64xf32> to vector<8x32xf32>
    %cst_69 = arith.constant dense<0.000000e+00> : vector<8x8xf32>
    %178 = tpu.matmul %176, %177, %cst_69 {dimension_numbers = #tpu.dot_dimension_numbers<[1], [1], [0], [0], [0, 0, 1, 0], [], []>} : vector<8x32xf32>, vector<8x32xf32>, vector<8x8xf32> -> vector<8x8xf32>
    %cst_70 = arith.constant 0.176776692 : f32
    %179 = vector.broadcast %cst_70 : f32 to vector<8x8xf32>
    %180 = arith.mulf %178, %179 : vector<8x8xf32>
    %181 = arith.addf %180, %162 : vector<8x8xf32>
    %182 = vector.extract_strided_slice %173 {offsets = [0, 32], sizes = [8, 32], strides = [1, 1]} : vector<8x64xf32> to vector<8x32xf32>
    %183 = vector.extract_strided_slice %174 {offsets = [0, 32], sizes = [8, 32], strides = [1, 1]} : vector<8x64xf32> to vector<8x32xf32>
    %cst_71 = arith.constant dense<0.000000e+00> : vector<8x8xf32>
    %184 = tpu.matmul %182, %183, %cst_71 {dimension_numbers = #tpu.dot_dimension_numbers<[1], [1], [0], [0], [0, 0, 1, 0], [], []>} : vector<8x32xf32>, vector<8x32xf32>, vector<8x8xf32> -> vector<8x8xf32>
    %cst_72 = arith.constant 0.176776692 : f32
    %185 = vector.broadcast %cst_72 : f32 to vector<8x8xf32>
    %186 = arith.mulf %184, %185 : vector<8x8xf32>
    %187 = arith.addf %186, %162 : vector<8x8xf32>
    %188 = tpu.concatenate %181, %187 in 0 : vector<8x8xf32>, vector<8x8xf32> -> vector<16x8xf32>
    %cst_73 = arith.constant dense<0xFF800000> : vector<16xf32>
    %189 = vector.multi_reduction <maximumf>, %188, %cst_73 [1] : vector<16x8xf32> to vector<16xf32>
    %190 = vector.shape_cast %189 : vector<16xf32> to vector<16x1xf32>
    %191 = vector.broadcast %190 : vector<16x1xf32> to vector<16x8xf32>
    %192 = arith.subf %188, %191 : vector<16x8xf32>
    %193 = math.exp %192 : vector<16x8xf32>
    %cst_74 = arith.constant dense<0.000000e+00> : vector<16xf32>
    %194 = vector.multi_reduction <add>, %193, %cst_74 [1] : vector<16x8xf32> to vector<16xf32>
    %195 = vector.shape_cast %194 : vector<16xf32> to vector<16x1xf32>
    %196 = tpu.reciprocal %195 {approx = true} : vector<16x1xf32> -> vector<16x1xf32>
    %197 = vector.broadcast %196 : vector<16x1xf32> to vector<16x8xf32>
    %198 = arith.mulf %193, %197 : vector<16x8xf32>
    %199 = vector.extract_strided_slice %198 {offsets = [0, 0], sizes = [8, 8], strides = [1, 1]} : vector<16x8xf32> to vector<8x8xf32>
    %200 = vector.extract_strided_slice %175 {offsets = [0, 0], sizes = [8, 32], strides = [1, 1]} : vector<8x64xf32> to vector<8x32xf32>
    %cst_75 = arith.constant dense<0.000000e+00> : vector<8x32xf32>
    %201 = tpu.matmul %199, %200, %cst_75 {dimension_numbers = #tpu.dot_dimension_numbers<[1], [0], [0], [1], [0, 0, 1, 1], [], []>} : vector<8x8xf32>, vector<8x32xf32>, vector<8x32xf32> -> vector<8x32xf32>
    %202 = vector.extract_strided_slice %198 {offsets = [8, 0], sizes = [8, 8], strides = [1, 1]} : vector<16x8xf32> to vector<8x8xf32>
    %203 = vector.extract_strided_slice %175 {offsets = [0, 32], sizes = [8, 32], strides = [1, 1]} : vector<8x64xf32> to vector<8x32xf32>
    %cst_76 = arith.constant dense<0.000000e+00> : vector<8x32xf32>
    %204 = tpu.matmul %202, %203, %cst_76 {dimension_numbers = #tpu.dot_dimension_numbers<[1], [0], [0], [1], [0, 0, 1, 1], [], []>} : vector<8x8xf32>, vector<8x32xf32>, vector<8x32xf32> -> vector<8x32xf32>
    %205 = tpu.concatenate %201, %204 in 1 : vector<8x32xf32>, vector<8x32xf32> -> vector<8x64xf32>
    %c0_77 = arith.constant 0 : index
    %c768_78 = arith.constant 768 : index
    %206 = vector.load %arg5[%c0_77, %c768_78] : memref<64x2944xbf16, #tpu.memory_space<vmem>>, vector<64x64xbf16>
    %207 = arith.truncf %205 : vector<8x64xf32> to vector<8x64xbf16>
    %cst_79 = arith.constant dense<0.000000e+00> : vector<8x64xf32>
    %208 = tpu.matmul %207, %206, %cst_79 {dimension_numbers = #tpu.dot_dimension_numbers<[1], [0], [0], [1], [0, 0, 1, 1], [], []>} : vector<8x64xbf16>, vector<64x64xbf16>, vector<8x64xf32> -> vector<8x64xf32>
    %c0_80 = arith.constant 0 : index
    %c1024 = arith.constant 1024 : index
    %209 = vector.load %arg6[%c0_80, %c1024] : memref<1x4992xf32, #tpu.memory_space<vmem>>, vector<1x64xf32>
    %210 = vector.broadcast %209 : vector<1x64xf32> to vector<8x64xf32>
    %211 = arith.addf %208, %210 : vector<8x64xf32>
    %212 = arith.addf %3, %211 : vector<8x64xf32>
    %cst_81 = arith.constant dense<0.000000e+00> : vector<8xf32>
    %213 = vector.multi_reduction <add>, %212, %cst_81 [1] : vector<8x64xf32> to vector<8xf32>
    %214 = vector.shape_cast %213 : vector<8xf32> to vector<8x1xf32>
    %cst_82 = arith.constant 6.400000e+01 : f32
    %215 = vector.broadcast %cst_82 : f32 to vector<8x1xf32>
    %216 = arith.divf %214, %215 : vector<8x1xf32>
    %217 = vector.broadcast %216 : vector<8x1xf32> to vector<8x64xf32>
    %218 = arith.subf %212, %217 : vector<8x64xf32>
    %219 = arith.mulf %218, %218 : vector<8x64xf32>
    %cst_83 = arith.constant dense<0.000000e+00> : vector<8xf32>
    %220 = vector.multi_reduction <add>, %219, %cst_83 [1] : vector<8x64xf32> to vector<8xf32>
    %221 = vector.shape_cast %220 : vector<8xf32> to vector<8x1xf32>
    %cst_84 = arith.constant 6.400000e+01 : f32
    %222 = vector.broadcast %cst_84 : f32 to vector<8x1xf32>
    %223 = arith.divf %221, %222 : vector<8x1xf32>
    %224 = vector.broadcast %216 : vector<8x1xf32> to vector<8x64xf32>
    %225 = arith.subf %212, %224 : vector<8x64xf32>
    %cst_85 = arith.constant 9.99999974E-6 : f32
    %226 = vector.broadcast %cst_85 : f32 to vector<8x1xf32>
    %227 = arith.addf %223, %226 : vector<8x1xf32>
    %228 = math.rsqrt %227 : vector<8x1xf32>
    %229 = vector.broadcast %228 : vector<8x1xf32> to vector<8x64xf32>
    %230 = arith.mulf %225, %229 : vector<8x64xf32>
    %c0_86 = arith.constant 0 : index
    %c1536 = arith.constant 1536 : index
    %231 = vector.load %arg6[%c0_86, %c1536] : memref<1x4992xf32, #tpu.memory_space<vmem>>, vector<1x64xf32>
    %232 = vector.broadcast %231 : vector<1x64xf32> to vector<8x64xf32>
    %233 = arith.mulf %230, %232 : vector<8x64xf32>
    %c0_87 = arith.constant 0 : index
    %c1664 = arith.constant 1664 : index
    %234 = vector.load %arg6[%c0_87, %c1664] : memref<1x4992xf32, #tpu.memory_space<vmem>>, vector<1x64xf32>
    %235 = vector.broadcast %234 : vector<1x64xf32> to vector<8x64xf32>
    %236 = arith.addf %233, %235 : vector<8x64xf32>
    %c0_88 = arith.constant 0 : index
    %c896 = arith.constant 896 : index
    %237 = vector.load %arg5[%c0_88, %c896] : memref<64x2944xbf16, #tpu.memory_space<vmem>>, vector<64x64xbf16>
    %238 = arith.truncf %236 : vector<8x64xf32> to vector<8x64xbf16>
    %cst_89 = arith.constant dense<0.000000e+00> : vector<8x64xf32>
    %239 = tpu.matmul %238, %237, %cst_89 {dimension_numbers = #tpu.dot_dimension_numbers<[1], [0], [0], [1], [0, 0, 1, 1], [], []>} : vector<8x64xbf16>, vector<64x64xbf16>, vector<8x64xf32> -> vector<8x64xf32>
    %c0_90 = arith.constant 0 : index
    %c1152 = arith.constant 1152 : index
    %240 = vector.load %arg6[%c0_90, %c1152] : memref<1x4992xf32, #tpu.memory_space<vmem>>, vector<1x64xf32>
    %241 = vector.broadcast %240 : vector<1x64xf32> to vector<8x64xf32>
    %242 = arith.addf %239, %241 : vector<8x64xf32>
    %c0_91 = arith.constant 0 : index
    %c1024_92 = arith.constant 1024 : index
    %243 = vector.load %arg5[%c0_91, %c1024_92] : memref<64x2944xbf16, #tpu.memory_space<vmem>>, vector<64x128xbf16>
    %244 = arith.truncf %5 : vector<8x64xf32> to vector<8x64xbf16>
    %cst_93 = arith.constant dense<0.000000e+00> : vector<8x128xf32>
    %245 = tpu.matmul %244, %243, %cst_93 {dimension_numbers = #tpu.dot_dimension_numbers<[1], [0], [0], [1], [0, 0, 1, 1], [], []>} : vector<8x64xbf16>, vector<64x128xbf16>, vector<8x128xf32> -> vector<8x128xf32>
    %c0_94 = arith.constant 0 : index
    %c1280 = arith.constant 1280 : index
    %246 = vector.load %arg6[%c0_94, %c1280] : memref<1x4992xf32, #tpu.memory_space<vmem>>, vector<1x128xf32>
    %247 = vector.broadcast %246 : vector<1x128xf32> to vector<8x128xf32>
    %248 = arith.addf %245, %247 : vector<8x128xf32>
    %249 = vector.extract_strided_slice %248 {offsets = [0, 0], sizes = [8, 64], strides = [1, 1]} : vector<8x128xf32> to vector<8x64xf32>
    %250 = vector.extract_strided_slice %248 {offsets = [0, 64], sizes = [8, 64], strides = [1, 1]} : vector<8x128xf32> to vector<8x64xf32>
    %251 = vector.extract_strided_slice %242 {offsets = [0, 0], sizes = [8, 32], strides = [1, 1]} : vector<8x64xf32> to vector<8x32xf32>
    %252 = vector.extract_strided_slice %249 {offsets = [0, 0], sizes = [8, 32], strides = [1, 1]} : vector<8x64xf32> to vector<8x32xf32>
    %cst_95 = arith.constant dense<0.000000e+00> : vector<8x8xf32>
    %253 = tpu.matmul %251, %252, %cst_95 {dimension_numbers = #tpu.dot_dimension_numbers<[1], [1], [0], [0], [0, 0, 1, 0], [], []>} : vector<8x32xf32>, vector<8x32xf32>, vector<8x8xf32> -> vector<8x8xf32>
    %cst_96 = arith.constant 0.176776692 : f32
    %254 = vector.broadcast %cst_96 : f32 to vector<8x8xf32>
    %255 = arith.mulf %253, %254 : vector<8x8xf32>
    %256 = arith.addf %255, %166 : vector<8x8xf32>
    %257 = vector.extract_strided_slice %242 {offsets = [0, 32], sizes = [8, 32], strides = [1, 1]} : vector<8x64xf32> to vector<8x32xf32>
    %258 = vector.extract_strided_slice %249 {offsets = [0, 32], sizes = [8, 32], strides = [1, 1]} : vector<8x64xf32> to vector<8x32xf32>
    %cst_97 = arith.constant dense<0.000000e+00> : vector<8x8xf32>
    %259 = tpu.matmul %257, %258, %cst_97 {dimension_numbers = #tpu.dot_dimension_numbers<[1], [1], [0], [0], [0, 0, 1, 0], [], []>} : vector<8x32xf32>, vector<8x32xf32>, vector<8x8xf32> -> vector<8x8xf32>
    %cst_98 = arith.constant 0.176776692 : f32
    %260 = vector.broadcast %cst_98 : f32 to vector<8x8xf32>
    %261 = arith.mulf %259, %260 : vector<8x8xf32>
    %262 = arith.addf %261, %166 : vector<8x8xf32>
    %263 = tpu.concatenate %256, %262 in 0 : vector<8x8xf32>, vector<8x8xf32> -> vector<16x8xf32>
    %cst_99 = arith.constant dense<0xFF800000> : vector<16xf32>
    %264 = vector.multi_reduction <maximumf>, %263, %cst_99 [1] : vector<16x8xf32> to vector<16xf32>
    %265 = vector.shape_cast %264 : vector<16xf32> to vector<16x1xf32>
    %266 = vector.broadcast %265 : vector<16x1xf32> to vector<16x8xf32>
    %267 = arith.subf %263, %266 : vector<16x8xf32>
    %268 = math.exp %267 : vector<16x8xf32>
    %cst_100 = arith.constant dense<0.000000e+00> : vector<16xf32>
    %269 = vector.multi_reduction <add>, %268, %cst_100 [1] : vector<16x8xf32> to vector<16xf32>
    %270 = vector.shape_cast %269 : vector<16xf32> to vector<16x1xf32>
    %271 = tpu.reciprocal %270 {approx = true} : vector<16x1xf32> -> vector<16x1xf32>
    %272 = vector.broadcast %271 : vector<16x1xf32> to vector<16x8xf32>
    %273 = arith.mulf %268, %272 : vector<16x8xf32>
    %274 = vector.extract_strided_slice %273 {offsets = [0, 0], sizes = [8, 8], strides = [1, 1]} : vector<16x8xf32> to vector<8x8xf32>
    %275 = vector.extract_strided_slice %250 {offsets = [0, 0], sizes = [8, 32], strides = [1, 1]} : vector<8x64xf32> to vector<8x32xf32>
    %cst_101 = arith.constant dense<0.000000e+00> : vector<8x32xf32>
    %276 = tpu.matmul %274, %275, %cst_101 {dimension_numbers = #tpu.dot_dimension_numbers<[1], [0], [0], [1], [0, 0, 1, 1], [], []>} : vector<8x8xf32>, vector<8x32xf32>, vector<8x32xf32> -> vector<8x32xf32>
    %277 = vector.extract_strided_slice %273 {offsets = [8, 0], sizes = [8, 8], strides = [1, 1]} : vector<16x8xf32> to vector<8x8xf32>
    %278 = vector.extract_strided_slice %250 {offsets = [0, 32], sizes = [8, 32], strides = [1, 1]} : vector<8x64xf32> to vector<8x32xf32>
    %cst_102 = arith.constant dense<0.000000e+00> : vector<8x32xf32>
    %279 = tpu.matmul %277, %278, %cst_102 {dimension_numbers = #tpu.dot_dimension_numbers<[1], [0], [0], [1], [0, 0, 1, 1], [], []>} : vector<8x8xf32>, vector<8x32xf32>, vector<8x32xf32> -> vector<8x32xf32>
    %280 = tpu.concatenate %276, %279 in 1 : vector<8x32xf32>, vector<8x32xf32> -> vector<8x64xf32>
    %c0_103 = arith.constant 0 : index
    %c1152_104 = arith.constant 1152 : index
    %281 = vector.load %arg5[%c0_103, %c1152_104] : memref<64x2944xbf16, #tpu.memory_space<vmem>>, vector<64x64xbf16>
    %282 = arith.truncf %280 : vector<8x64xf32> to vector<8x64xbf16>
    %cst_105 = arith.constant dense<0.000000e+00> : vector<8x64xf32>
    %283 = tpu.matmul %282, %281, %cst_105 {dimension_numbers = #tpu.dot_dimension_numbers<[1], [0], [0], [1], [0, 0, 1, 1], [], []>} : vector<8x64xbf16>, vector<64x64xbf16>, vector<8x64xf32> -> vector<8x64xf32>
    %c0_106 = arith.constant 0 : index
    %c1408 = arith.constant 1408 : index
    %284 = vector.load %arg6[%c0_106, %c1408] : memref<1x4992xf32, #tpu.memory_space<vmem>>, vector<1x64xf32>
    %285 = vector.broadcast %284 : vector<1x64xf32> to vector<8x64xf32>
    %286 = arith.addf %283, %285 : vector<8x64xf32>
    %287 = arith.addf %236, %286 : vector<8x64xf32>
    %cst_107 = arith.constant dense<0.000000e+00> : vector<8xf32>
    %288 = vector.multi_reduction <add>, %287, %cst_107 [1] : vector<8x64xf32> to vector<8xf32>
    %289 = vector.shape_cast %288 : vector<8xf32> to vector<8x1xf32>
    %cst_108 = arith.constant 6.400000e+01 : f32
    %290 = vector.broadcast %cst_108 : f32 to vector<8x1xf32>
    %291 = arith.divf %289, %290 : vector<8x1xf32>
    %292 = vector.broadcast %291 : vector<8x1xf32> to vector<8x64xf32>
    %293 = arith.subf %287, %292 : vector<8x64xf32>
    %294 = arith.mulf %293, %293 : vector<8x64xf32>
    %cst_109 = arith.constant dense<0.000000e+00> : vector<8xf32>
    %295 = vector.multi_reduction <add>, %294, %cst_109 [1] : vector<8x64xf32> to vector<8xf32>
    %296 = vector.shape_cast %295 : vector<8xf32> to vector<8x1xf32>
    %cst_110 = arith.constant 6.400000e+01 : f32
    %297 = vector.broadcast %cst_110 : f32 to vector<8x1xf32>
    %298 = arith.divf %296, %297 : vector<8x1xf32>
    %299 = vector.broadcast %291 : vector<8x1xf32> to vector<8x64xf32>
    %300 = arith.subf %287, %299 : vector<8x64xf32>
    %cst_111 = arith.constant 9.99999974E-6 : f32
    %301 = vector.broadcast %cst_111 : f32 to vector<8x1xf32>
    %302 = arith.addf %298, %301 : vector<8x1xf32>
    %303 = math.rsqrt %302 : vector<8x1xf32>
    %304 = vector.broadcast %303 : vector<8x1xf32> to vector<8x64xf32>
    %305 = arith.mulf %300, %304 : vector<8x64xf32>
    %c0_112 = arith.constant 0 : index
    %c1792 = arith.constant 1792 : index
    %306 = vector.load %arg6[%c0_112, %c1792] : memref<1x4992xf32, #tpu.memory_space<vmem>>, vector<1x64xf32>
    %307 = vector.broadcast %306 : vector<1x64xf32> to vector<8x64xf32>
    %308 = arith.mulf %305, %307 : vector<8x64xf32>
    %c0_113 = arith.constant 0 : index
    %c1920 = arith.constant 1920 : index
    %309 = vector.load %arg6[%c0_113, %c1920] : memref<1x4992xf32, #tpu.memory_space<vmem>>, vector<1x64xf32>
    %310 = vector.broadcast %309 : vector<1x64xf32> to vector<8x64xf32>
    %311 = arith.addf %308, %310 : vector<8x64xf32>
    %c0_114 = arith.constant 0 : index
    %c1280_115 = arith.constant 1280 : index
    %312 = vector.load %arg5[%c0_114, %c1280_115] : memref<64x2944xbf16, #tpu.memory_space<vmem>>, vector<64x384xbf16>
    %313 = arith.truncf %311 : vector<8x64xf32> to vector<8x64xbf16>
    %cst_116 = arith.constant dense<0.000000e+00> : vector<8x384xf32>
    %314 = tpu.matmul %313, %312, %cst_116 {dimension_numbers = #tpu.dot_dimension_numbers<[1], [0], [0], [1], [0, 0, 1, 1], [], []>} : vector<8x64xbf16>, vector<64x384xbf16>, vector<8x384xf32> -> vector<8x384xf32>
    %c0_117 = arith.constant 0 : index
    %c2304 = arith.constant 2304 : index
    %315 = vector.load %arg6[%c0_117, %c2304] : memref<1x4992xf32, #tpu.memory_space<vmem>>, vector<1x384xf32>
    %316 = vector.broadcast %315 : vector<1x384xf32> to vector<8x384xf32>
    %317 = arith.addf %314, %316 : vector<8x384xf32>
    %cst_118 = arith.constant 0.000000e+00 : f32
    %318 = vector.broadcast %cst_118 : f32 to vector<8x384xf32>
    %319 = arith.maximumf %317, %318 : vector<8x384xf32>
    %c0_119 = arith.constant 0 : index
    %c0_120 = arith.constant 0 : index
    %320 = vector.load %arg7[%c0_119, %c0_120] : memref<384x256xbf16, #tpu.memory_space<vmem>>, vector<384x64xbf16>
    %321 = arith.truncf %319 : vector<8x384xf32> to vector<8x384xbf16>
    %cst_121 = arith.constant dense<0.000000e+00> : vector<8x64xf32>
    %322 = tpu.matmul %321, %320, %cst_121 {dimension_numbers = #tpu.dot_dimension_numbers<[1], [0], [0], [1], [0, 0, 1, 1], [], []>} : vector<8x384xbf16>, vector<384x64xbf16>, vector<8x64xf32> -> vector<8x64xf32>
    %c0_122 = arith.constant 0 : index
    %c2688 = arith.constant 2688 : index
    %323 = vector.load %arg6[%c0_122, %c2688] : memref<1x4992xf32, #tpu.memory_space<vmem>>, vector<1x64xf32>
    %324 = vector.broadcast %323 : vector<1x64xf32> to vector<8x64xf32>
    %325 = arith.addf %322, %324 : vector<8x64xf32>
    %326 = arith.addf %311, %325 : vector<8x64xf32>
    %cst_123 = arith.constant dense<0.000000e+00> : vector<8xf32>
    %327 = vector.multi_reduction <add>, %326, %cst_123 [1] : vector<8x64xf32> to vector<8xf32>
    %328 = vector.shape_cast %327 : vector<8xf32> to vector<8x1xf32>
    %cst_124 = arith.constant 6.400000e+01 : f32
    %329 = vector.broadcast %cst_124 : f32 to vector<8x1xf32>
    %330 = arith.divf %328, %329 : vector<8x1xf32>
    %331 = vector.broadcast %330 : vector<8x1xf32> to vector<8x64xf32>
    %332 = arith.subf %326, %331 : vector<8x64xf32>
    %333 = arith.mulf %332, %332 : vector<8x64xf32>
    %cst_125 = arith.constant dense<0.000000e+00> : vector<8xf32>
    %334 = vector.multi_reduction <add>, %333, %cst_125 [1] : vector<8x64xf32> to vector<8xf32>
    %335 = vector.shape_cast %334 : vector<8xf32> to vector<8x1xf32>
    %cst_126 = arith.constant 6.400000e+01 : f32
    %336 = vector.broadcast %cst_126 : f32 to vector<8x1xf32>
    %337 = arith.divf %335, %336 : vector<8x1xf32>
    %338 = vector.broadcast %330 : vector<8x1xf32> to vector<8x64xf32>
    %339 = arith.subf %326, %338 : vector<8x64xf32>
    %cst_127 = arith.constant 9.99999974E-6 : f32
    %340 = vector.broadcast %cst_127 : f32 to vector<8x1xf32>
    %341 = arith.addf %337, %340 : vector<8x1xf32>
    %342 = math.rsqrt %341 : vector<8x1xf32>
    %343 = vector.broadcast %342 : vector<8x1xf32> to vector<8x64xf32>
    %344 = arith.mulf %339, %343 : vector<8x64xf32>
    %c0_128 = arith.constant 0 : index
    %c2048 = arith.constant 2048 : index
    %345 = vector.load %arg6[%c0_128, %c2048] : memref<1x4992xf32, #tpu.memory_space<vmem>>, vector<1x64xf32>
    %346 = vector.broadcast %345 : vector<1x64xf32> to vector<8x64xf32>
    %347 = arith.mulf %344, %346 : vector<8x64xf32>
    %c0_129 = arith.constant 0 : index
    %c2176 = arith.constant 2176 : index
    %348 = vector.load %arg6[%c0_129, %c2176] : memref<1x4992xf32, #tpu.memory_space<vmem>>, vector<1x64xf32>
    %349 = vector.broadcast %348 : vector<1x64xf32> to vector<8x64xf32>
    %350 = arith.addf %347, %349 : vector<8x64xf32>
    %c0_130 = arith.constant 0 : index
    %c1664_131 = arith.constant 1664 : index
    %351 = vector.load %arg5[%c0_130, %c1664_131] : memref<64x2944xbf16, #tpu.memory_space<vmem>>, vector<64x192xbf16>
    %352 = arith.truncf %350 : vector<8x64xf32> to vector<8x64xbf16>
    %cst_132 = arith.constant dense<0.000000e+00> : vector<8x192xf32>
    %353 = tpu.matmul %352, %351, %cst_132 {dimension_numbers = #tpu.dot_dimension_numbers<[1], [0], [0], [1], [0, 0, 1, 1], [], []>} : vector<8x64xbf16>, vector<64x192xbf16>, vector<8x192xf32> -> vector<8x192xf32>
    %c0_133 = arith.constant 0 : index
    %c2816 = arith.constant 2816 : index
    %354 = vector.load %arg6[%c0_133, %c2816] : memref<1x4992xf32, #tpu.memory_space<vmem>>, vector<1x192xf32>
    %355 = vector.broadcast %354 : vector<1x192xf32> to vector<8x192xf32>
    %356 = arith.addf %353, %355 : vector<8x192xf32>
    %357 = vector.extract_strided_slice %356 {offsets = [0, 0], sizes = [8, 64], strides = [1, 1]} : vector<8x192xf32> to vector<8x64xf32>
    %358 = vector.extract_strided_slice %356 {offsets = [0, 64], sizes = [8, 64], strides = [1, 1]} : vector<8x192xf32> to vector<8x64xf32>
    %359 = vector.extract_strided_slice %356 {offsets = [0, 128], sizes = [8, 64], strides = [1, 1]} : vector<8x192xf32> to vector<8x64xf32>
    %360 = vector.extract_strided_slice %357 {offsets = [0, 0], sizes = [8, 32], strides = [1, 1]} : vector<8x64xf32> to vector<8x32xf32>
    %361 = vector.extract_strided_slice %358 {offsets = [0, 0], sizes = [8, 32], strides = [1, 1]} : vector<8x64xf32> to vector<8x32xf32>
    %cst_134 = arith.constant dense<0.000000e+00> : vector<8x8xf32>
    %362 = tpu.matmul %360, %361, %cst_134 {dimension_numbers = #tpu.dot_dimension_numbers<[1], [1], [0], [0], [0, 0, 1, 0], [], []>} : vector<8x32xf32>, vector<8x32xf32>, vector<8x8xf32> -> vector<8x8xf32>
    %cst_135 = arith.constant 0.176776692 : f32
    %363 = vector.broadcast %cst_135 : f32 to vector<8x8xf32>
    %364 = arith.mulf %362, %363 : vector<8x8xf32>
    %365 = arith.addf %364, %162 : vector<8x8xf32>
    %366 = vector.extract_strided_slice %357 {offsets = [0, 32], sizes = [8, 32], strides = [1, 1]} : vector<8x64xf32> to vector<8x32xf32>
    %367 = vector.extract_strided_slice %358 {offsets = [0, 32], sizes = [8, 32], strides = [1, 1]} : vector<8x64xf32> to vector<8x32xf32>
    %cst_136 = arith.constant dense<0.000000e+00> : vector<8x8xf32>
    %368 = tpu.matmul %366, %367, %cst_136 {dimension_numbers = #tpu.dot_dimension_numbers<[1], [1], [0], [0], [0, 0, 1, 0], [], []>} : vector<8x32xf32>, vector<8x32xf32>, vector<8x8xf32> -> vector<8x8xf32>
    %cst_137 = arith.constant 0.176776692 : f32
    %369 = vector.broadcast %cst_137 : f32 to vector<8x8xf32>
    %370 = arith.mulf %368, %369 : vector<8x8xf32>
    %371 = arith.addf %370, %162 : vector<8x8xf32>
    %372 = tpu.concatenate %365, %371 in 0 : vector<8x8xf32>, vector<8x8xf32> -> vector<16x8xf32>
    %cst_138 = arith.constant dense<0xFF800000> : vector<16xf32>
    %373 = vector.multi_reduction <maximumf>, %372, %cst_138 [1] : vector<16x8xf32> to vector<16xf32>
    %374 = vector.shape_cast %373 : vector<16xf32> to vector<16x1xf32>
    %375 = vector.broadcast %374 : vector<16x1xf32> to vector<16x8xf32>
    %376 = arith.subf %372, %375 : vector<16x8xf32>
    %377 = math.exp %376 : vector<16x8xf32>
    %cst_139 = arith.constant dense<0.000000e+00> : vector<16xf32>
    %378 = vector.multi_reduction <add>, %377, %cst_139 [1] : vector<16x8xf32> to vector<16xf32>
    %379 = vector.shape_cast %378 : vector<16xf32> to vector<16x1xf32>
    %380 = tpu.reciprocal %379 {approx = true} : vector<16x1xf32> -> vector<16x1xf32>
    %381 = vector.broadcast %380 : vector<16x1xf32> to vector<16x8xf32>
    %382 = arith.mulf %377, %381 : vector<16x8xf32>
    %383 = vector.extract_strided_slice %382 {offsets = [0, 0], sizes = [8, 8], strides = [1, 1]} : vector<16x8xf32> to vector<8x8xf32>
    %384 = vector.extract_strided_slice %359 {offsets = [0, 0], sizes = [8, 32], strides = [1, 1]} : vector<8x64xf32> to vector<8x32xf32>
    %cst_140 = arith.constant dense<0.000000e+00> : vector<8x32xf32>
    %385 = tpu.matmul %383, %384, %cst_140 {dimension_numbers = #tpu.dot_dimension_numbers<[1], [0], [0], [1], [0, 0, 1, 1], [], []>} : vector<8x8xf32>, vector<8x32xf32>, vector<8x32xf32> -> vector<8x32xf32>
    %386 = vector.extract_strided_slice %382 {offsets = [8, 0], sizes = [8, 8], strides = [1, 1]} : vector<16x8xf32> to vector<8x8xf32>
    %387 = vector.extract_strided_slice %359 {offsets = [0, 32], sizes = [8, 32], strides = [1, 1]} : vector<8x64xf32> to vector<8x32xf32>
    %cst_141 = arith.constant dense<0.000000e+00> : vector<8x32xf32>
    %388 = tpu.matmul %386, %387, %cst_141 {dimension_numbers = #tpu.dot_dimension_numbers<[1], [0], [0], [1], [0, 0, 1, 1], [], []>} : vector<8x8xf32>, vector<8x32xf32>, vector<8x32xf32> -> vector<8x32xf32>
    %389 = tpu.concatenate %385, %388 in 1 : vector<8x32xf32>, vector<8x32xf32> -> vector<8x64xf32>
    %c0_142 = arith.constant 0 : index
    %c1920_143 = arith.constant 1920 : index
    %390 = vector.load %arg5[%c0_142, %c1920_143] : memref<64x2944xbf16, #tpu.memory_space<vmem>>, vector<64x64xbf16>
    %391 = arith.truncf %389 : vector<8x64xf32> to vector<8x64xbf16>
    %cst_144 = arith.constant dense<0.000000e+00> : vector<8x64xf32>
    %392 = tpu.matmul %391, %390, %cst_144 {dimension_numbers = #tpu.dot_dimension_numbers<[1], [0], [0], [1], [0, 0, 1, 1], [], []>} : vector<8x64xbf16>, vector<64x64xbf16>, vector<8x64xf32> -> vector<8x64xf32>
    %c0_145 = arith.constant 0 : index
    %c3072 = arith.constant 3072 : index
    %393 = vector.load %arg6[%c0_145, %c3072] : memref<1x4992xf32, #tpu.memory_space<vmem>>, vector<1x64xf32>
    %394 = vector.broadcast %393 : vector<1x64xf32> to vector<8x64xf32>
    %395 = arith.addf %392, %394 : vector<8x64xf32>
    %396 = arith.addf %350, %395 : vector<8x64xf32>
    %cst_146 = arith.constant dense<0.000000e+00> : vector<8xf32>
    %397 = vector.multi_reduction <add>, %396, %cst_146 [1] : vector<8x64xf32> to vector<8xf32>
    %398 = vector.shape_cast %397 : vector<8xf32> to vector<8x1xf32>
    %cst_147 = arith.constant 6.400000e+01 : f32
    %399 = vector.broadcast %cst_147 : f32 to vector<8x1xf32>
    %400 = arith.divf %398, %399 : vector<8x1xf32>
    %401 = vector.broadcast %400 : vector<8x1xf32> to vector<8x64xf32>
    %402 = arith.subf %396, %401 : vector<8x64xf32>
    %403 = arith.mulf %402, %402 : vector<8x64xf32>
    %cst_148 = arith.constant dense<0.000000e+00> : vector<8xf32>
    %404 = vector.multi_reduction <add>, %403, %cst_148 [1] : vector<8x64xf32> to vector<8xf32>
    %405 = vector.shape_cast %404 : vector<8xf32> to vector<8x1xf32>
    %cst_149 = arith.constant 6.400000e+01 : f32
    %406 = vector.broadcast %cst_149 : f32 to vector<8x1xf32>
    %407 = arith.divf %405, %406 : vector<8x1xf32>
    %408 = vector.broadcast %400 : vector<8x1xf32> to vector<8x64xf32>
    %409 = arith.subf %396, %408 : vector<8x64xf32>
    %cst_150 = arith.constant 9.99999974E-6 : f32
    %410 = vector.broadcast %cst_150 : f32 to vector<8x1xf32>
    %411 = arith.addf %407, %410 : vector<8x1xf32>
    %412 = math.rsqrt %411 : vector<8x1xf32>
    %413 = vector.broadcast %412 : vector<8x1xf32> to vector<8x64xf32>
    %414 = arith.mulf %409, %413 : vector<8x64xf32>
    %c0_151 = arith.constant 0 : index
    %c3584 = arith.constant 3584 : index
    %415 = vector.load %arg6[%c0_151, %c3584] : memref<1x4992xf32, #tpu.memory_space<vmem>>, vector<1x64xf32>
    %416 = vector.broadcast %415 : vector<1x64xf32> to vector<8x64xf32>
    %417 = arith.mulf %414, %416 : vector<8x64xf32>
    %c0_152 = arith.constant 0 : index
    %c3712 = arith.constant 3712 : index
    %418 = vector.load %arg6[%c0_152, %c3712] : memref<1x4992xf32, #tpu.memory_space<vmem>>, vector<1x64xf32>
    %419 = vector.broadcast %418 : vector<1x64xf32> to vector<8x64xf32>
    %420 = arith.addf %417, %419 : vector<8x64xf32>
    %c0_153 = arith.constant 0 : index
    %c2048_154 = arith.constant 2048 : index
    %421 = vector.load %arg5[%c0_153, %c2048_154] : memref<64x2944xbf16, #tpu.memory_space<vmem>>, vector<64x64xbf16>
    %422 = arith.truncf %420 : vector<8x64xf32> to vector<8x64xbf16>
    %cst_155 = arith.constant dense<0.000000e+00> : vector<8x64xf32>
    %423 = tpu.matmul %422, %421, %cst_155 {dimension_numbers = #tpu.dot_dimension_numbers<[1], [0], [0], [1], [0, 0, 1, 1], [], []>} : vector<8x64xbf16>, vector<64x64xbf16>, vector<8x64xf32> -> vector<8x64xf32>
    %c0_156 = arith.constant 0 : index
    %c3200 = arith.constant 3200 : index
    %424 = vector.load %arg6[%c0_156, %c3200] : memref<1x4992xf32, #tpu.memory_space<vmem>>, vector<1x64xf32>
    %425 = vector.broadcast %424 : vector<1x64xf32> to vector<8x64xf32>
    %426 = arith.addf %423, %425 : vector<8x64xf32>
    %c0_157 = arith.constant 0 : index
    %c2176_158 = arith.constant 2176 : index
    %427 = vector.load %arg5[%c0_157, %c2176_158] : memref<64x2944xbf16, #tpu.memory_space<vmem>>, vector<64x128xbf16>
    %428 = arith.truncf %5 : vector<8x64xf32> to vector<8x64xbf16>
    %cst_159 = arith.constant dense<0.000000e+00> : vector<8x128xf32>
    %429 = tpu.matmul %428, %427, %cst_159 {dimension_numbers = #tpu.dot_dimension_numbers<[1], [0], [0], [1], [0, 0, 1, 1], [], []>} : vector<8x64xbf16>, vector<64x128xbf16>, vector<8x128xf32> -> vector<8x128xf32>
    %c0_160 = arith.constant 0 : index
    %c3328 = arith.constant 3328 : index
    %430 = vector.load %arg6[%c0_160, %c3328] : memref<1x4992xf32, #tpu.memory_space<vmem>>, vector<1x128xf32>
    %431 = vector.broadcast %430 : vector<1x128xf32> to vector<8x128xf32>
    %432 = arith.addf %429, %431 : vector<8x128xf32>
    %433 = vector.extract_strided_slice %432 {offsets = [0, 0], sizes = [8, 64], strides = [1, 1]} : vector<8x128xf32> to vector<8x64xf32>
    %434 = vector.extract_strided_slice %432 {offsets = [0, 64], sizes = [8, 64], strides = [1, 1]} : vector<8x128xf32> to vector<8x64xf32>
    %435 = vector.extract_strided_slice %426 {offsets = [0, 0], sizes = [8, 32], strides = [1, 1]} : vector<8x64xf32> to vector<8x32xf32>
    %436 = vector.extract_strided_slice %433 {offsets = [0, 0], sizes = [8, 32], strides = [1, 1]} : vector<8x64xf32> to vector<8x32xf32>
    %cst_161 = arith.constant dense<0.000000e+00> : vector<8x8xf32>
    %437 = tpu.matmul %435, %436, %cst_161 {dimension_numbers = #tpu.dot_dimension_numbers<[1], [1], [0], [0], [0, 0, 1, 0], [], []>} : vector<8x32xf32>, vector<8x32xf32>, vector<8x8xf32> -> vector<8x8xf32>
    %cst_162 = arith.constant 0.176776692 : f32
    %438 = vector.broadcast %cst_162 : f32 to vector<8x8xf32>
    %439 = arith.mulf %437, %438 : vector<8x8xf32>
    %440 = arith.addf %439, %166 : vector<8x8xf32>
    %441 = vector.extract_strided_slice %426 {offsets = [0, 32], sizes = [8, 32], strides = [1, 1]} : vector<8x64xf32> to vector<8x32xf32>
    %442 = vector.extract_strided_slice %433 {offsets = [0, 32], sizes = [8, 32], strides = [1, 1]} : vector<8x64xf32> to vector<8x32xf32>
    %cst_163 = arith.constant dense<0.000000e+00> : vector<8x8xf32>
    %443 = tpu.matmul %441, %442, %cst_163 {dimension_numbers = #tpu.dot_dimension_numbers<[1], [1], [0], [0], [0, 0, 1, 0], [], []>} : vector<8x32xf32>, vector<8x32xf32>, vector<8x8xf32> -> vector<8x8xf32>
    %cst_164 = arith.constant 0.176776692 : f32
    %444 = vector.broadcast %cst_164 : f32 to vector<8x8xf32>
    %445 = arith.mulf %443, %444 : vector<8x8xf32>
    %446 = arith.addf %445, %166 : vector<8x8xf32>
    %447 = tpu.concatenate %440, %446 in 0 : vector<8x8xf32>, vector<8x8xf32> -> vector<16x8xf32>
    %cst_165 = arith.constant dense<0xFF800000> : vector<16xf32>
    %448 = vector.multi_reduction <maximumf>, %447, %cst_165 [1] : vector<16x8xf32> to vector<16xf32>
    %449 = vector.shape_cast %448 : vector<16xf32> to vector<16x1xf32>
    %450 = vector.broadcast %449 : vector<16x1xf32> to vector<16x8xf32>
    %451 = arith.subf %447, %450 : vector<16x8xf32>
    %452 = math.exp %451 : vector<16x8xf32>
    %cst_166 = arith.constant dense<0.000000e+00> : vector<16xf32>
    %453 = vector.multi_reduction <add>, %452, %cst_166 [1] : vector<16x8xf32> to vector<16xf32>
    %454 = vector.shape_cast %453 : vector<16xf32> to vector<16x1xf32>
    %455 = tpu.reciprocal %454 {approx = true} : vector<16x1xf32> -> vector<16x1xf32>
    %456 = vector.broadcast %455 : vector<16x1xf32> to vector<16x8xf32>
    %457 = arith.mulf %452, %456 : vector<16x8xf32>
    %458 = vector.extract_strided_slice %457 {offsets = [0, 0], sizes = [8, 8], strides = [1, 1]} : vector<16x8xf32> to vector<8x8xf32>
    %459 = vector.extract_strided_slice %434 {offsets = [0, 0], sizes = [8, 32], strides = [1, 1]} : vector<8x64xf32> to vector<8x32xf32>
    %cst_167 = arith.constant dense<0.000000e+00> : vector<8x32xf32>
    %460 = tpu.matmul %458, %459, %cst_167 {dimension_numbers = #tpu.dot_dimension_numbers<[1], [0], [0], [1], [0, 0, 1, 1], [], []>} : vector<8x8xf32>, vector<8x32xf32>, vector<8x32xf32> -> vector<8x32xf32>
    %461 = vector.extract_strided_slice %457 {offsets = [8, 0], sizes = [8, 8], strides = [1, 1]} : vector<16x8xf32> to vector<8x8xf32>
    %462 = vector.extract_strided_slice %434 {offsets = [0, 32], sizes = [8, 32], strides = [1, 1]} : vector<8x64xf32> to vector<8x32xf32>
    %cst_168 = arith.constant dense<0.000000e+00> : vector<8x32xf32>
    %463 = tpu.matmul %461, %462, %cst_168 {dimension_numbers = #tpu.dot_dimension_numbers<[1], [0], [0], [1], [0, 0, 1, 1], [], []>} : vector<8x8xf32>, vector<8x32xf32>, vector<8x32xf32> -> vector<8x32xf32>
    %464 = tpu.concatenate %460, %463 in 1 : vector<8x32xf32>, vector<8x32xf32> -> vector<8x64xf32>
    %c0_169 = arith.constant 0 : index
    %c2304_170 = arith.constant 2304 : index
    %465 = vector.load %arg5[%c0_169, %c2304_170] : memref<64x2944xbf16, #tpu.memory_space<vmem>>, vector<64x64xbf16>
    %466 = arith.truncf %464 : vector<8x64xf32> to vector<8x64xbf16>
    %cst_171 = arith.constant dense<0.000000e+00> : vector<8x64xf32>
    %467 = tpu.matmul %466, %465, %cst_171 {dimension_numbers = #tpu.dot_dimension_numbers<[1], [0], [0], [1], [0, 0, 1, 1], [], []>} : vector<8x64xbf16>, vector<64x64xbf16>, vector<8x64xf32> -> vector<8x64xf32>
    %c0_172 = arith.constant 0 : index
    %c3456 = arith.constant 3456 : index
    %468 = vector.load %arg6[%c0_172, %c3456] : memref<1x4992xf32, #tpu.memory_space<vmem>>, vector<1x64xf32>
    %469 = vector.broadcast %468 : vector<1x64xf32> to vector<8x64xf32>
    %470 = arith.addf %467, %469 : vector<8x64xf32>
    %471 = arith.addf %420, %470 : vector<8x64xf32>
    %cst_173 = arith.constant dense<0.000000e+00> : vector<8xf32>
    %472 = vector.multi_reduction <add>, %471, %cst_173 [1] : vector<8x64xf32> to vector<8xf32>
    %473 = vector.shape_cast %472 : vector<8xf32> to vector<8x1xf32>
    %cst_174 = arith.constant 6.400000e+01 : f32
    %474 = vector.broadcast %cst_174 : f32 to vector<8x1xf32>
    %475 = arith.divf %473, %474 : vector<8x1xf32>
    %476 = vector.broadcast %475 : vector<8x1xf32> to vector<8x64xf32>
    %477 = arith.subf %471, %476 : vector<8x64xf32>
    %478 = arith.mulf %477, %477 : vector<8x64xf32>
    %cst_175 = arith.constant dense<0.000000e+00> : vector<8xf32>
    %479 = vector.multi_reduction <add>, %478, %cst_175 [1] : vector<8x64xf32> to vector<8xf32>
    %480 = vector.shape_cast %479 : vector<8xf32> to vector<8x1xf32>
    %cst_176 = arith.constant 6.400000e+01 : f32
    %481 = vector.broadcast %cst_176 : f32 to vector<8x1xf32>
    %482 = arith.divf %480, %481 : vector<8x1xf32>
    %483 = vector.broadcast %475 : vector<8x1xf32> to vector<8x64xf32>
    %484 = arith.subf %471, %483 : vector<8x64xf32>
    %cst_177 = arith.constant 9.99999974E-6 : f32
    %485 = vector.broadcast %cst_177 : f32 to vector<8x1xf32>
    %486 = arith.addf %482, %485 : vector<8x1xf32>
    %487 = math.rsqrt %486 : vector<8x1xf32>
    %488 = vector.broadcast %487 : vector<8x1xf32> to vector<8x64xf32>
    %489 = arith.mulf %484, %488 : vector<8x64xf32>
    %c0_178 = arith.constant 0 : index
    %c3840 = arith.constant 3840 : index
    %490 = vector.load %arg6[%c0_178, %c3840] : memref<1x4992xf32, #tpu.memory_space<vmem>>, vector<1x64xf32>
    %491 = vector.broadcast %490 : vector<1x64xf32> to vector<8x64xf32>
    %492 = arith.mulf %489, %491 : vector<8x64xf32>
    %c0_179 = arith.constant 0 : index
    %c3968 = arith.constant 3968 : index
    %493 = vector.load %arg6[%c0_179, %c3968] : memref<1x4992xf32, #tpu.memory_space<vmem>>, vector<1x64xf32>
    %494 = vector.broadcast %493 : vector<1x64xf32> to vector<8x64xf32>
    %495 = arith.addf %492, %494 : vector<8x64xf32>
    %c0_180 = arith.constant 0 : index
    %c2432 = arith.constant 2432 : index
    %496 = vector.load %arg5[%c0_180, %c2432] : memref<64x2944xbf16, #tpu.memory_space<vmem>>, vector<64x384xbf16>
    %497 = arith.truncf %495 : vector<8x64xf32> to vector<8x64xbf16>
    %cst_181 = arith.constant dense<0.000000e+00> : vector<8x384xf32>
    %498 = tpu.matmul %497, %496, %cst_181 {dimension_numbers = #tpu.dot_dimension_numbers<[1], [0], [0], [1], [0, 0, 1, 1], [], []>} : vector<8x64xbf16>, vector<64x384xbf16>, vector<8x384xf32> -> vector<8x384xf32>
    %c0_182 = arith.constant 0 : index
    %c4352 = arith.constant 4352 : index
    %499 = vector.load %arg6[%c0_182, %c4352] : memref<1x4992xf32, #tpu.memory_space<vmem>>, vector<1x384xf32>
    %500 = vector.broadcast %499 : vector<1x384xf32> to vector<8x384xf32>
    %501 = arith.addf %498, %500 : vector<8x384xf32>
    %cst_183 = arith.constant 0.000000e+00 : f32
    %502 = vector.broadcast %cst_183 : f32 to vector<8x384xf32>
    %503 = arith.maximumf %501, %502 : vector<8x384xf32>
    %c0_184 = arith.constant 0 : index
    %c128 = arith.constant 128 : index
    %504 = vector.load %arg7[%c0_184, %c128] : memref<384x256xbf16, #tpu.memory_space<vmem>>, vector<384x64xbf16>
    %505 = arith.truncf %503 : vector<8x384xf32> to vector<8x384xbf16>
    %cst_185 = arith.constant dense<0.000000e+00> : vector<8x64xf32>
    %506 = tpu.matmul %505, %504, %cst_185 {dimension_numbers = #tpu.dot_dimension_numbers<[1], [0], [0], [1], [0, 0, 1, 1], [], []>} : vector<8x384xbf16>, vector<384x64xbf16>, vector<8x64xf32> -> vector<8x64xf32>
    %c0_186 = arith.constant 0 : index
    %c4736 = arith.constant 4736 : index
    %507 = vector.load %arg6[%c0_186, %c4736] : memref<1x4992xf32, #tpu.memory_space<vmem>>, vector<1x64xf32>
    %508 = vector.broadcast %507 : vector<1x64xf32> to vector<8x64xf32>
    %509 = arith.addf %506, %508 : vector<8x64xf32>
    %510 = arith.addf %495, %509 : vector<8x64xf32>
    %cst_187 = arith.constant dense<0.000000e+00> : vector<8xf32>
    %511 = vector.multi_reduction <add>, %510, %cst_187 [1] : vector<8x64xf32> to vector<8xf32>
    %512 = vector.shape_cast %511 : vector<8xf32> to vector<8x1xf32>
    %cst_188 = arith.constant 6.400000e+01 : f32
    %513 = vector.broadcast %cst_188 : f32 to vector<8x1xf32>
    %514 = arith.divf %512, %513 : vector<8x1xf32>
    %515 = vector.broadcast %514 : vector<8x1xf32> to vector<8x64xf32>
    %516 = arith.subf %510, %515 : vector<8x64xf32>
    %517 = arith.mulf %516, %516 : vector<8x64xf32>
    %cst_189 = arith.constant dense<0.000000e+00> : vector<8xf32>
    %518 = vector.multi_reduction <add>, %517, %cst_189 [1] : vector<8x64xf32> to vector<8xf32>
    %519 = vector.shape_cast %518 : vector<8xf32> to vector<8x1xf32>
    %cst_190 = arith.constant 6.400000e+01 : f32
    %520 = vector.broadcast %cst_190 : f32 to vector<8x1xf32>
    %521 = arith.divf %519, %520 : vector<8x1xf32>
    %522 = vector.broadcast %514 : vector<8x1xf32> to vector<8x64xf32>
    %523 = arith.subf %510, %522 : vector<8x64xf32>
    %cst_191 = arith.constant 9.99999974E-6 : f32
    %524 = vector.broadcast %cst_191 : f32 to vector<8x1xf32>
    %525 = arith.addf %521, %524 : vector<8x1xf32>
    %526 = math.rsqrt %525 : vector<8x1xf32>
    %527 = vector.broadcast %526 : vector<8x1xf32> to vector<8x64xf32>
    %528 = arith.mulf %523, %527 : vector<8x64xf32>
    %c0_192 = arith.constant 0 : index
    %c4096 = arith.constant 4096 : index
    %529 = vector.load %arg6[%c0_192, %c4096] : memref<1x4992xf32, #tpu.memory_space<vmem>>, vector<1x64xf32>
    %530 = vector.broadcast %529 : vector<1x64xf32> to vector<8x64xf32>
    %531 = arith.mulf %528, %530 : vector<8x64xf32>
    %c0_193 = arith.constant 0 : index
    %c4224 = arith.constant 4224 : index
    %532 = vector.load %arg6[%c0_193, %c4224] : memref<1x4992xf32, #tpu.memory_space<vmem>>, vector<1x64xf32>
    %533 = vector.broadcast %532 : vector<1x64xf32> to vector<8x64xf32>
    %534 = arith.addf %531, %533 : vector<8x64xf32>
    %c0_194 = arith.constant 0 : index
    %c2816_195 = arith.constant 2816 : index
    %535 = vector.load %arg5[%c0_194, %c2816_195] : memref<64x2944xbf16, #tpu.memory_space<vmem>>, vector<64x128xbf16>
    %536 = arith.truncf %534 : vector<8x64xf32> to vector<8x64xbf16>
    %cst_196 = arith.constant dense<0.000000e+00> : vector<8x128xf32>
    %537 = tpu.matmul %536, %535, %cst_196 {dimension_numbers = #tpu.dot_dimension_numbers<[1], [0], [0], [1], [0, 0, 1, 1], [], []>} : vector<8x64xbf16>, vector<64x128xbf16>, vector<8x128xf32> -> vector<8x128xf32>
    %c0_197 = arith.constant 0 : index
    %c4864 = arith.constant 4864 : index
    %538 = vector.load %arg6[%c0_197, %c4864] : memref<1x4992xf32, #tpu.memory_space<vmem>>, vector<1x128xf32>
    %539 = vector.broadcast %538 : vector<1x128xf32> to vector<8x128xf32>
    %540 = arith.addf %537, %539 : vector<8x128xf32>
    %cst_198 = arith.constant dense<0xFF800000> : vector<8xf32>
    %541 = vector.multi_reduction <maximumf>, %540, %cst_198 [1] : vector<8x128xf32> to vector<8xf32>
    %542 = vector.shape_cast %541 : vector<8xf32> to vector<8x1xf32>
    %543 = vector.broadcast %542 : vector<8x1xf32> to vector<8x128xf32>
    %544 = arith.subf %540, %543 : vector<8x128xf32>
    %545 = math.exp %544 : vector<8x128xf32>
    %cst_199 = arith.constant dense<0.000000e+00> : vector<8xf32>
    %546 = vector.multi_reduction <add>, %545, %cst_199 [1] : vector<8x128xf32> to vector<8xf32>
    %547 = vector.shape_cast %546 : vector<8xf32> to vector<8x1xf32>
    %548 = math.log %547 : vector<8x1xf32>
    %549 = vector.broadcast %548 : vector<8x1xf32> to vector<8x128xf32>
    %550 = arith.subf %544, %549 : vector<8x128xf32>
    %551 = tpu.concatenate %550, %156 in 0 : vector<8x128xf32>, vector<1x128xf32> -> vector<9x128xf32>
    %c0_200 = arith.constant 0 : index
    %c0_201 = arith.constant 0 : index
    %c0_202 = arith.constant 0 : index
    %552 = vector.load %arg8[%c0_200, %c0_201, %c0_202] : memref<1x9x128xf32, #tpu.memory_space<vmem>>, vector<1x9x128xf32>
    %553 = vector.shape_cast %552 : vector<1x9x128xf32> to vector<9x128xf32>
    %554 = vector.shape_cast %551 : vector<9x128xf32> to vector<1x9x128xf32>
    tpu.vector_store %arg8[%c0_200, %c0_201, %c0_202], %554 {strides = array<i32>} : memref<1x9x128xf32, #tpu.memory_space<vmem>>, vector<1x9x128xf32>,
    return
  }
  func.func @transform_0(%arg0: i32) -> (i32, i32, i32) {
    %c0_i32 = arith.constant 0 : i32
    %c0_i32_0 = arith.constant 0 : i32
    %c0_i32_1 = arith.constant 0 : i32
    return %arg0, %c0_i32, %c0_i32_0 : i32, i32, i32
  }
  func.func @transform_1(%arg0: i32) -> (i32, i32, i32) {
    %c0_i32 = arith.constant 0 : i32
    %c0_i32_0 = arith.constant 0 : i32
    %c0_i32_1 = arith.constant 0 : i32
    return %arg0, %c0_i32, %c0_i32_0 : i32, i32, i32
  }
  func.func @transform_2(%arg0: i32) -> (i32, i32, i32) {
    %c0_i32 = arith.constant 0 : i32
    %c0_i32_0 = arith.constant 0 : i32
    %c0_i32_1 = arith.constant 0 : i32
    return %arg0, %c0_i32, %c0_i32_0 : i32, i32, i32
  }
  func.func @transform_3(%arg0: i32) -> (i32, i32, i32) {
    %c0_i32 = arith.constant 0 : i32
    %c0_i32_0 = arith.constant 0 : i32
    %c0_i32_1 = arith.constant 0 : i32
    return %arg0, %c0_i32, %c0_i32_0 : i32, i32, i32
  }
  func.func @transform_4(%arg0: i32) -> (i32, i32) {
    %c0_i32 = arith.constant 0 : i32
    %c0_i32_0 = arith.constant 0 : i32
    %c0_i32_1 = arith.constant 0 : i32
    return %c0_i32, %c0_i32_0 : i32, i32
  }
  func.func @transform_5(%arg0: i32) -> (i32, i32) {
    %c0_i32 = arith.constant 0 : i32
    %c0_i32_0 = arith.constant 0 : i32
    %c0_i32_1 = arith.constant 0 : i32
    return %c0_i32, %c0_i32_0 : i32, i32
  }
  func.func @transform_6(%arg0: i32) -> (i32, i32) {
    %c0_i32 = arith.constant 0 : i32
    %c0_i32_0 = arith.constant 0 : i32
    %c0_i32_1 = arith.constant 0 : i32
    return %c0_i32, %c0_i32_0 : i32, i32
  }
  func.func @transform_7(%arg0: i32) -> (i32, i32, i32) {
    %c0_i32 = arith.constant 0 : i32
    %c0_i32_0 = arith.constant 0 : i32
    %c0_i32_1 = arith.constant 0 : i32
    return %arg0, %c0_i32, %c0_i32_0 : i32, i32, i32
  }
}

</mosaic_0001>

<llo_original>
// kernel: decoder_forward.1
$region0: #{decoder_forward.1}
  #allocation0 [shape = 'u32[]', space=smem, size = 0x4, offset = 0x4, fixed_abs, tag = 'smem constant byte address 0x4 - core index']
  #allocation1 [shape = 'u32[144,128]{1,0:T(1,128)}', space=vmem, size = 0x12000, scoped, tag = 'internal scratch']
  %s0 = inlined_call_operand.vmem [shape: f32[2,8,64], index: 0, kind: input, shape index: {}]
  %s1 = inlined_call_operand.vmem [shape: f32[2,8,64], index: 1, kind: input, shape index: {}]
  %s2 = inlined_call_operand.vmem [shape: f32[2,8,64], index: 2, kind: input, shape index: {}]
  %s3 = inlined_call_operand.vmem [shape: f32[2,1,8], index: 3, kind: input, shape index: {}]
  %s4 = inlined_call_operand.hbm [shape: bf16[64,2944], index: 4, kind: input, shape index: {}]
  %s5 = inlined_call_operand.vmem [shape: f32[1,4992], index: 5, kind: input, shape index: {}]
  %s6 = inlined_call_operand.hbm [shape: bf16[384,256], index: 6, kind: input, shape index: {}]
  %s7 = inlined_call_operand.vmem [shape: f32[2,9,128], index: 7, kind: output, shape index: {}]
  %s8 = sld [smem:[#allocation0]]
  $region69: #{decoder_forward.1} parent=0
    _
  %s10 = ssub.s32 1, %s8
  %s11 = scalar_select 0, %s10, %s8
  $region1: #{decoder_forward.1} parent=0
    #allocation2 [shape = 'u8[376832]{0}', space=vmem, size = 0x5c000, scoped, tag = 'input window, operand 4, single buffered']
    #allocation3 [shape = 's32[2]{0}', space=sflag, size = 0x8, scoped, tag = 'scoped memory for decoder_forward.1']
    #allocation4 [shape = 'u8[196608]{0}', space=vmem, size = 0x30000, scoped, tag = 'input window, operand 6, single buffered']
    #allocation5 [shape = 's32[1]{0}', space=sflag, size = 0x4, scoped, tag = 'scoped memory for decoder_forward.1']
    %12 = vsyncpa [#allocation3], 0
    %13 = vsyncpa [#allocation5], 0
    loop: start=0, step=1, limit=4
    $region2: #{decoder_forward.1} parent=1 // loop_pre_header
      _
    $region3: #{decoder_forward.1} parent=1 // loop_header
      %s15 = sphi 0, %s19
      %p16 = scmp.ge.s32.totalorder %s15, 4
      %s25 = sphi 0, %s27
      %s28 = sphi 0, %s25
      %s29 = sphi 0, %s28
      %s45 = sphi 0, %s29
      %s51 = sphi 0, %s53
      %s54 = sphi 0, %s51
      %s55 = sphi 0, %s54
      %s71 = sphi 0, %s55
      %s77 = sphi 0, %s79
      %s80 = sphi 0, %s77
      %s81 = sphi 0, %s80
      %s97 = sphi 0, %s81
      %s103 = sphi 0, %s105
      %s106 = sphi 0, %s103
      %s107 = sphi 0, %s106
      %s123 = sphi 0, %s107
      %s127 = sphi 0, %s127
      %s129 = sphi 0, %s127
      %s130 = sphi 0, %s129
      %s144 = sphi 0, %s130
      %s148 = sphi 0, %s148
      %s150 = sphi 0, %s148
      %s151 = sphi 0, %s150
      %s165 = sphi 0, %s151
      %s169 = sphi 0, %s169
      %s171 = sphi 0, %s169
      %s172 = sphi 0, %s171
      %s186 = sphi 0, %s172
      %s192 = sphi 0, %s194
      %s195 = sphi 0, %s192
      %s196 = sphi 0, %s195
      %s212 = sphi 0, %s196
    $region4: #{decoder_forward.1} parent=1 // loop_header_branch
      %18 = sbr.rel (%p16) target = $region8
    $region5: #{decoder_forward.1} parent=1 // loop_body
      %s20 = ssub.s32 %s15, 1
      %s21 = ssub.s32 %s15, 2
      %s22 = sadd.s32 %s15, 1
      %s23 = ssub.s32 %s15, %s22
      %p24 = scmp.eq.s32.totalorder %s23, 0
      %s26 = sadd.s32 %s25, 1
      %s27 = scalar_select %p24, %s25, %s26
      %p30 = pneg %p24
      %p31 = scmp.eq.s32.totalorder %s15, 1
      %p32 = por %p30, %p31
      %p33 = scmp.ne.s32.totalorder %s25, %s28
      %p34 = scmp.eq.s32.totalorder %s15, 0
      %p35 = por %p33, %p34
      %p36 = scmp.ne.s32.totalorder %s25, %s28
      %p37 = scmp.eq.s32.totalorder %s20, 1
      %p38 = por %p36, %p37
      %p39 = scmp.ne.s32.totalorder %s28, %s29
      %p40 = scmp.eq.s32.totalorder %s20, 0
      %p41 = por %p39, %p40
      %p42 = scmp.ne.s32.totalorder %s28, %s29
      %p43 = scmp.eq.s32.totalorder %s21, 1
      %p44 = por %p42, %p43
      %p46 = scmp.ne.s32.totalorder %s29, %s45
      %p47 = scmp.eq.s32.totalorder %s21, 0
      %p48 = por %p46, %p47
      %s49 = ssub.s32 %s15, %s22
      %p50 = scmp.eq.s32.totalorder %s49, 0
      %s52 = sadd.s32 %s51, 1
      %s53 = scalar_select %p50, %s51, %s52
      %p56 = pneg %p50
      %p57 = scmp.eq.s32.totalorder %s15, 1
      %p58 = por %p56, %p57
      %p59 = scmp.ne.s32.totalorder %s51, %s54
      %p60 = scmp.eq.s32.totalorder %s15, 0
      %p61 = por %p59, %p60
      %p62 = scmp.ne.s32.totalorder %s51, %s54
      %p63 = scmp.eq.s32.totalorder %s20, 1
      %p64 = por %p62, %p63
      %p65 = scmp.ne.s32.totalorder %s54, %s55
      %p66 = scmp.eq.s32.totalorder %s20, 0
      %p67 = por %p65, %p66
      %p68 = scmp.ne.s32.totalorder %s54, %s55
      %p69 = scmp.eq.s32.totalorder %s21, 1
      %p70 = por %p68, %p69
      %p72 = scmp.ne.s32.totalorder %s55, %s71
      %p73 = scmp.eq.s32.totalorder %s21, 0
      %p74 = por %p72, %p73
      %s75 = ssub.s32 %s15, %s22
      %p76 = scmp.eq.s32.totalorder %s75, 0
      %s78 = sadd.s32 %s77, 1
      %s79 = scalar_select %p76, %s77, %s78
      %p82 = pneg %p76
      %p83 = scmp.eq.s32.totalorder %s15, 1
      %p84 = por %p82, %p83
      %p85 = scmp.ne.s32.totalorder %s77, %s80
      %p86 = scmp.eq.s32.totalorder %s15, 0
      %p87 = por %p85, %p86
      %p88 = scmp.ne.s32.totalorder %s77, %s80
      %p89 = scmp.eq.s32.totalorder %s20, 1
      %p90 = por %p88, %p89
      %p91 = scmp.ne.s32.totalorder %s80, %s81
      %p92 = scmp.eq.s32.totalorder %s20, 0
      %p93 = por %p91, %p92
      %p94 = scmp.ne.s32.totalorder %s80, %s81
      %p95 = scmp.eq.s32.totalorder %s21, 1
      %p96 = por %p94, %p95
      %p98 = scmp.ne.s32.totalorder %s81, %s97
      %p99 = scmp.eq.s32.totalorder %s21, 0
      %p100 = por %p98, %p99
      %s101 = ssub.s32 %s15, %s22
      %p102 = scmp.eq.s32.totalorder %s101, 0
      %s104 = sadd.s32 %s103, 1
      %s105 = scalar_select %p102, %s103, %s104
      %p108 = pneg %p102
      %p109 = scmp.eq.s32.totalorder %s15, 1
      %p110 = por %p108, %p109
      %p111 = scmp.ne.s32.totalorder %s103, %s106
      %p112 = scmp.eq.s32.totalorder %s15, 0
      %p113 = por %p111, %p112
      %p114 = scmp.ne.s32.totalorder %s103, %s106
      %p115 = scmp.eq.s32.totalorder %s20, 1
      %p116 = por %p114, %p115
      %p117 = scmp.ne.s32.totalorder %s106, %s107
      %p118 = scmp.eq.s32.totalorder %s20, 0
      %p119 = por %p117, %p118
      %p120 = scmp.ne.s32.totalorder %s106, %s107
      %p121 = scmp.eq.s32.totalorder %s21, 1
      %p122 = por %p120, %p121
      %p124 = scmp.ne.s32.totalorder %s107, %s123
      %p125 = scmp.eq.s32.totalorder %s21, 0
      %p126 = por %p124, %p125
      %s128 = sadd.s32 %s127, 1
      %p131 = scmp.eq.s32.totalorder %s15, 1
      %p132 = scmp.ne.s32.totalorder %s127, %s129
      %p133 = scmp.eq.s32.totalorder %s15, 0
      %p134 = por %p132, %p133
      %p135 = scmp.ne.s32.totalorder %s127, %s129
      %p136 = scmp.eq.s32.totalorder %s20, 1
      %p137 = por %p135, %p136
      %p138 = scmp.ne.s32.totalorder %s129, %s130
      %p139 = scmp.eq.s32.totalorder %s20, 0
      %p140 = por %p138, %p139
      %p141 = scmp.ne.s32.totalorder %s129, %s130
      %p142 = scmp.eq.s32.totalorder %s21, 1
      %p143 = por %p141, %p142
      %p145 = scmp.ne.s32.totalorder %s130, %s144
      %p146 = scmp.eq.s32.totalorder %s21, 0
      %p147 = por %p145, %p146
      %s149 = sadd.s32 %s148, 1
      %p152 = scmp.eq.s32.totalorder %s15, 1
      %p153 = scmp.ne.s32.totalorder %s148, %s150
      %p154 = scmp.eq.s32.totalorder %s15, 0
      %p155 = por %p153, %p154
      %p156 = scmp.ne.s32.totalorder %s148, %s150
      %p157 = scmp.eq.s32.totalorder %s20, 1
      %p158 = por %p156, %p157
      %p159 = scmp.ne.s32.totalorder %s150, %s151
      %p160 = scmp.eq.s32.totalorder %s20, 0
      %p161 = por %p159, %p160
      %p162 = scmp.ne.s32.totalorder %s150, %s151
      %p163 = scmp.eq.s32.totalorder %s21, 1
      %p164 = por %p162, %p163
      %p166 = scmp.ne.s32.totalorder %s151, %s165
      %p167 = scmp.eq.s32.totalorder %s21, 0
      %p168 = por %p166, %p167
      %s170 = sadd.s32 %s169, 1
      %p173 = scmp.eq.s32.totalorder %s15, 1
      %p174 = scmp.ne.s32.totalorder %s169, %s171
      %p175 = scmp.eq.s32.totalorder %s15, 0
      %p176 = por %p174, %p175
      %p177 = scmp.ne.s32.totalorder %s169, %s171
      %p178 = scmp.eq.s32.totalorder %s20, 1
      %p179 = por %p177, %p178
      %p180 = scmp.ne.s32.totalorder %s171, %s172
      %p181 = scmp.eq.s32.totalorder %s20, 0
      %p182 = por %p180, %p181
      %p183 = scmp.ne.s32.totalorder %s171, %s172
      %p184 = scmp.eq.s32.totalorder %s21, 1
      %p185 = por %p183, %p184
      %p187 = scmp.ne.s32.totalorder %s172, %s186
      %p188 = scmp.eq.s32.totalorder %s21, 0
      %p189 = por %p187, %p188
      %s190 = ssub.s32 %s15, %s22
      %p191 = scmp.eq.s32.totalorder %s190, 0
      %s193 = sadd.s32 %s192, 1
      %s194 = scalar_select %p191, %s192, %s193
      %p197 = pneg %p191
      %p198 = scmp.eq.s32.totalorder %s15, 1
      %p199 = por %p197, %p198
      %p200 = scmp.ne.s32.totalorder %s192, %s195
      %p201 = scmp.eq.s32.totalorder %s15, 0
      %p202 = por %p200, %p201
      %p203 = scmp.ne.s32.totalorder %s192, %s195
      %p204 = scmp.eq.s32.totalorder %s20, 1
      %p205 = por %p203, %p204
      %p206 = scmp.ne.s32.totalorder %s195, %s196
      %p207 = scmp.eq.s32.totalorder %s20, 0
      %p208 = por %p206, %p207
      %p209 = scmp.ne.s32.totalorder %s195, %s196
      %p210 = scmp.eq.s32.totalorder %s21, 1
      %p211 = por %p209, %p210
      %p213 = scmp.ne.s32.totalorder %s196, %s212
      %p214 = scmp.eq.s32.totalorder %s21, 0
      %p215 = por %p213, %p214
      %p216 = scmp.le.s32.totalorder 1, %s15
      %p217 = scmp.lt.s32.totalorder %s15, 3
      %p218 = pnand %p216, %p217
      %p219 = pneg %p218
      // Predicated region
      $region9: #{decoder_forward.1} parent=5 // pred_check
        _
      $region10: #{decoder_forward.1} parent=5 // pred_check_branch
        %221 = sbr.rel (%p218) target = $region12
      $region11: #{decoder_forward.1} parent=5 // pred_region
        %s222 = ssub.s32 %s15, 1
        // Predicated region
        $region13: #{decoder_forward.1} parent=11 // pred_check
          %p223 = pneg %p140
        $region14: #{decoder_forward.1} parent=11 // pred_check_branch
          %225 = sbr.rel (%p223) target = $region16
        $region15: #{decoder_forward.1} parent=11 // pred_region
          %s227 = ssub.s32 11776, 11776
          %228 = vsyncadd [#allocation3], %s227
          %s229 = sshll.u32 [#allocation2], 4
          %s230 = int_to_ptr.vmem [resolvable:$true] %s229
          %235 = dma.hbm_to_vmem [thread:$0]  %s4, 11776, %s230, [#allocation3], 1472, 1472, 92
        $region16: #{decoder_forward.1} parent=11 // pred_fallthru
          _
        // Predicated region
        $region17: #{decoder_forward.1} parent=11 // pred_check
          %p236 = pneg %p161
        $region18: #{decoder_forward.1} parent=11 // pred_check_branch
          %238 = sbr.rel (%p236) target = $region20
        $region19: #{decoder_forward.1} parent=11 // pred_region
          _
        $region20: #{decoder_forward.1} parent=11 // pred_fallthru
          _
        // Predicated region
        $region21: #{decoder_forward.1} parent=11 // pred_check
          %p239 = pneg %p182
        $region22: #{decoder_forward.1} parent=11 // pred_check_branch
          %241 = sbr.rel (%p239) target = $region24
        $region23: #{decoder_forward.1} parent=11 // pred_region
          %s243 = ssub.s32 6144, 6144
          %244 = vsyncadd [#allocation5], %s243
          %s245 = sshll.u32 [#allocation4], 4
          %s246 = int_to_ptr.vmem [resolvable:$true] %s245
          %251 = dma.hbm_to_vmem [thread:$0]  %s6, 6144, %s246, [#allocation5], 128, 128, 8
        $region24: #{decoder_forward.1} parent=11 // pred_fallthru
          _
      $region12: #{decoder_forward.1} parent=5 // pred_fallthru
        _
      %p252 = scmp.lt.s32.totalorder %s15, 2
      // Predicated region
      $region25: #{decoder_forward.1} parent=5 // pred_check
        %p253 = pneg %p252
      $region26: #{decoder_forward.1} parent=5 // pred_check_branch
        %255 = sbr.rel (%p253) target = $region28
      $region27: #{decoder_forward.1} parent=5 // pred_region
        // Predicated region
        $region29: #{decoder_forward.1} parent=27 // pred_check
          %p256 = pneg %p35
        $region30: #{decoder_forward.1} parent=27 // pred_check_branch
          %258 = sbr.rel (%p256) target = $region32
        $region31: #{decoder_forward.1} parent=27 // pred_region
          %p259 = scmp.lt.s32.totalorder %s15, 1
          %s260 = scalar_select %p259, %s15, 1
          %s261 = smul.addr %s260, 8
          %s262 = scalar_lea.vmem %s0, %s261
        $region32: #{decoder_forward.1} parent=27 // pred_fallthru
          _
        // Predicated region
        $region33: #{decoder_forward.1} parent=27 // pred_check
          %p263 = pneg %p61
        $region34: #{decoder_forward.1} parent=27 // pred_check_branch
          %265 = sbr.rel (%p263) target = $region36
        $region35: #{decoder_forward.1} parent=27 // pred_region
          %p266 = scmp.lt.s32.totalorder %s15, 1
          %s267 = scalar_select %p266, %s15, 1
          %s268 = smul.addr %s267, 8
          %s269 = scalar_lea.vmem %s1, %s268
        $region36: #{decoder_forward.1} parent=27 // pred_fallthru
          _
        // Predicated region
        $region37: #{decoder_forward.1} parent=27 // pred_check
          %p270 = pneg %p87
        $region38: #{decoder_forward.1} parent=27 // pred_check_branch
          %272 = sbr.rel (%p270) target = $region40
        $region39: #{decoder_forward.1} parent=27 // pred_region
          %p273 = scmp.lt.s32.totalorder %s15, 1
          %s274 = scalar_select %p273, %s15, 1
          %s275 = smul.addr %s274, 8
          %s276 = scalar_lea.vmem %s2, %s275
        $region40: #{decoder_forward.1} parent=27 // pred_fallthru
          _
        // Predicated region
        $region41: #{decoder_forward.1} parent=27 // pred_check
          %p277 = pneg %p113
        $region42: #{decoder_forward.1} parent=27 // pred_check_branch
          %279 = sbr.rel (%p277) target = $region44
        $region43: #{decoder_forward.1} parent=27 // pred_region
          %p280 = scmp.lt.s32.totalorder %s15, 1
          %s281 = scalar_select %p280, %s15, 1
          %s282 = scalar_lea.vmem %s3, %s281
        $region44: #{decoder_forward.1} parent=27 // pred_fallthru
          _
      $region28: #{decoder_forward.1} parent=5 // pred_fallthru
        _
      %p283 = scmp.le.s32.totalorder 1, %s15
      %p284 = scmp.lt.s32.totalorder %s15, 3
      %p285 = pnand %p283, %p284
      %p286 = pneg %p285
      // Predicated region
      $region45: #{decoder_forward.1} parent=5 // pred_check
        _
      $region46: #{decoder_forward.1} parent=5 // pred_check_branch
        %288 = sbr.rel (%p285) target = $region48
      $region47: #{decoder_forward.1} parent=5 // pred_region
        %s289 = ssub.s32 %s15, 1
        // Predicated region
        $region49: #{decoder_forward.1} parent=47 // pred_check
          %p290 = pneg %p140
        $region50: #{decoder_forward.1} parent=47 // pred_check_branch
          %292 = sbr.rel (%p290) target = $region52
        $region51: #{decoder_forward.1} parent=47 // pred_region
          %293 = dma.done [#allocation3], 11776
        $region52: #{decoder_forward.1} parent=47 // pred_fallthru
          _
        // Predicated region
        $region53: #{decoder_forward.1} parent=47 // pred_check
          %p294 = pneg %p182
        $region54: #{decoder_forward.1} parent=47 // pred_check_branch
          %296 = sbr.rel (%p294) target = $region56
        $region55: #{decoder_forward.1} parent=47 // pred_region
          %297 = dma.done [#allocation5], 6144
        $region56: #{decoder_forward.1} parent=47 // pred_fallthru
          _
        %p298 = scmp.lt.s32.totalorder %s20, 1
        %s299 = scalar_select %p298, %s20, 1
        %s300 = smul.addr %s299, 8
        %s301 = scalar_lea.vmem %s0, %s300
        %p302 = pneg %p41
        %p303 = pneg %p38
        %p304 = scmp.lt.s32.totalorder %s20, 1
        %s305 = scalar_select %p304, %s20, 1
        %s306 = smul.addr %s305, 8
        %s307 = scalar_lea.vmem %s1, %s306
        %p308 = pneg %p67
        %p309 = pneg %p64
        %p310 = scmp.lt.s32.totalorder %s20, 1
        %s311 = scalar_select %p310, %s20, 1
        %s312 = smul.addr %s311, 8
        %s313 = scalar_lea.vmem %s2, %s312
        %p314 = pneg %p93
        %p315 = pneg %p90
        %p316 = scmp.lt.s32.totalorder %s20, 1
        %s317 = scalar_select %p316, %s20, 1
        %s318 = scalar_lea.vmem %s3, %s317
        %p319 = pneg %p119
        %p320 = pneg %p116
        %p321 = pneg %p140
        %p322 = pneg %p137
        %p323 = pneg %p161
        %p324 = pneg %p158
        %p325 = pneg %p182
        %p326 = pneg %p179
        %p327 = pneg %p208
        %p328 = pneg %p205
        %p329 = scmp.lt.s32.totalorder %s20, 1
        %s330 = scalar_select %p329, %s20, 1
        %s331 = smul.addr %s330, 2
        %s332 = smul.addr %s331, 8
        %s333 = scalar_lea.vmem %s7, %s332
        %p334 = scmp.lt.s32.totalorder %s20, 1
        %s335 = scalar_select %p334, %s20, 1
        %s336 = smul.addr %s335, 8
        %s337 = scalar_lea.vmem %s0, %s336
        %p338 = scmp.lt.s32.totalorder %s20, 1
        %s339 = scalar_select %p338, %s20, 1
        %s340 = smul.addr %s339, 8
        %s341 = scalar_lea.vmem %s1, %s340
        %p342 = scmp.lt.s32.totalorder %s20, 1
        %s343 = scalar_select %p342, %s20, 1
        %s344 = smul.addr %s343, 8
        %s345 = scalar_lea.vmem %s2, %s344
        %p346 = scmp.lt.s32.totalorder %s20, 1
        %s347 = scalar_select %p346, %s20, 1
        %s348 = scalar_lea.vmem %s3, %s347
        %p349 = scmp.lt.s32.totalorder %s20, 1
        %s350 = scalar_select %p349, %s20, 1
        %s351 = smul.addr %s350, 2
        %s352 = smul.addr %s351, 8
        %s353 = scalar_lea.vmem %s7, %s352
        %v355 = vld [vmem:[%s341] sm:$0xff]
        %v356 = vld [vmem:[%s337] sm:$0xff]
        %v357 = vld [vmem:[%s345] sm:$0xff]
        %v358 = vld [vmem:[%s348] sm:$0x1]
        %v359 = vsub.f32 1.0, %v358
        %v360 = vmul.f32 %v359, -1e+30
        %v361 = vld [vmem:[#allocation2] sm:$0xff]
        %v362 = vld [vmem:[#allocation2 + $0x5c] sm:$0xff]
        %v363 = vld [vmem:[#allocation2 + $0xb8] sm:$0xff]
        %v364 = vld [vmem:[#allocation2 + $0x114] sm:$0xff]
        %v365 = vld [vmem:[#allocation2 + $0x170] sm:$0xff]
        %v366 = vld [vmem:[#allocation2 + $0x1cc] sm:$0xff]
        %v367 = vld [vmem:[#allocation2 + $0x228] sm:$0xff]
        %v368 = vld [vmem:[#allocation2 + $0x284] sm:$0xff]
        %v369 = vpack.c.bf16 %v355, %v355
        %v370 = vld [vmem:[%s5] sm:$0x3]
        %v372 = vlaneseq
        %v373 = vshrl.u32 %v372, 7
        %v374 = vsub.s32 0, %v373
        %v375 = vrot.slane %v370, %v374
        %v376 = vlaneseq
        %v377 = vshrl.u32 %v376, 7
        %v378 = vsub.s32 1, %v377
        %v379 = vrot.slane %v370, %v378
        %v390 = vunpack.c.l.b16 %v361
        %v391 = vunpack.c.h.b16 %v361
        %v392 = vunpack.c.l.b16 %v362
        %v393 = vunpack.c.h.b16 %v362
        %v394 = vunpack.c.l.b16 %v363
        %v395 = vunpack.c.h.b16 %v363
        %v396 = vunpack.c.l.b16 %v364
        %v397 = vunpack.c.h.b16 %v364
        %v398 = vunpack.c.l.b16 %v365
        %v399 = vunpack.c.h.b16 %v365
        %v400 = vunpack.c.l.b16 %v366
        %v401 = vunpack.c.h.b16 %v366
        %v402 = vunpack.c.l.b16 %v367
        %v403 = vunpack.c.h.b16 %v367
        %v404 = vunpack.c.l.b16 %v368
        %v405 = vunpack.c.h.b16 %v368
        %v406 = vpack.c.b16 %v392, %v390
        %v407 = vpack.c.b16 %v393, %v391
        %v408 = vpack.c.b16 %v396, %v394
        %v409 = vpack.c.b16 %v397, %v395
        %v410 = vpack.c.b16 %v400, %v398
        %v411 = vpack.c.b16 %v401, %v399
        %v412 = vpack.c.b16 %v404, %v402
        %v413 = vpack.c.b16 %v405, %v403
        %vm422 = vcmask 523264
        %v424 = vsel %vm422, %v369, 0
        %426 = vmatprep.subr.bf16.mxu0 0
        %427 = vmatpush1.bf16.msra.mxu0 0
        %428 = vmatprep.subr.bf16.mxu0 0
        %429 = vmatpush1.bf16.msra.mxu0 0
        %430 = vmatprep.subr.bf16.mxu0 0
        %431 = vmatpush1.bf16.msra.mxu0 0
        %432 = vmatprep.subr.bf16.mxu0 0
        %433 = vmatpush1.bf16.msra.mxu0 0
        %434 = vmatprep.subr.bf16.mxu0 %v413
        %435 = vmatpush1.bf16.msra.mxu0 %v412
        %436 = vmatprep.subr.bf16.mxu0 %v411
        %437 = vmatpush1.bf16.msra.mxu0 %v410
        %438 = vmatprep.subr.bf16.mxu0 %v409
        %439 = vmatpush1.bf16.msra.mxu0 %v408
        %440 = vmatprep.subr.bf16.mxu0 %v407
        %441 = vmatpush1.bf16.msra.mxu0 %v406
        %442 = vmatprep.subr.bf16.mxu0 0
        %443 = vmatpush2.bf16.msra.mxu0 0
        %444 = vmatprep.subr.bf16.mxu0 0
        %445 = vmatpush2.bf16.msra.mxu0 0
        %446 = vmatprep.subr.bf16.mxu0 0
        %447 = vmatpush2.bf16.msra.mxu0 0
        %448 = vmatprep.subr.bf16.mxu0 0
        %449 = vmatpush2.bf16.msra.mxu0 0
        %450 = vmatprep.subr.bf16.mxu0 0
        %451 = vmatpush2.bf16.msra.mxu0 0
        %452 = vmatprep.subr.bf16.mxu0 0
        %453 = vmatpush2.bf16.msra.mxu0 0
        %454 = vmatprep.subr.bf16.mxu0 0
        %455 = vmatpush2.bf16.msra.mxu0 0
        %456 = vmatprep.subr.bf16.mxu0 0
        %457 = vmatpush2.bf16.msra.mxu0 0
        %458 = vmatprep.mubr.bf16.mxu0 0
        %459 = vmatmul.mubr.bf16.gmra.mxu0 %v424
        %v460 = vpop.f32.mrf.mxu0
        %v461 = vadd.f32 %v375, %v460
        %v462 = vpop.f32.mrf.mxu0
        %v463 = vadd.f32 %v379, %v462
        %v464 = vpop.f32.mrf.mxu0
        %v465 = vpop.f32.mrf.mxu0
        %466 = vdwg.mxu0
        %468 = vrot.lane.b32.xlu0 %v461, 64
        %v469 = vpop.permute.xlu0 %468
        %vm470 = vcmask 64512
        %v471 = vsel %vm470, %v461, 0
        %v473 = vsel %vm470, %v469, 0
        %475 = vmatprep.subr.mxu0 0.0
        %476 = vmatpush1.xpose.msra.mxu0 0.0
        %477 = vmatprep.subr.mxu0 0.0
        %478 = vmatpush1.xpose.msra.mxu0 0.0
        %479 = vmatprep.subr.mxu0 0.0
        %480 = vmatpush1.xpose.msra.mxu0 0.0
        %481 = vmatprep.subr.mxu0 0.0
        %482 = vmatpush1.xpose.msra.mxu0 0.0
        %483 = vmatprep.subr.mxu0 0.0
        %484 = vmatpush1.xpose.msra.mxu0 0.0
        %485 = vmatprep.subr.mxu0 0.0
        %486 = vmatpush1.xpose.msra.mxu0 0.0
        %487 = vmatprep.subr.mxu0 0.0
        %488 = vmatpush1.xpose.msra.mxu0 0.0
        %489 = vmatprep.subr.mxu0 0.0
        %490 = vmatpush1.xpose.msra.mxu0 0.0
        %491 = vmatprep.subr.mxu0 0.0
        %492 = vmatpush1.xpose.msra.mxu0 0.0
        %493 = vmatprep.subr.mxu0 0.0
        %494 = vmatpush1.xpose.msra.mxu0 0.0
        %495 = vmatprep.subr.mxu0 0.0
        %496 = vmatpush1.xpose.msra.mxu0 0.0
        %497 = vmatprep.subr.mxu0 0.0
        %498 = vmatpush1.xpose.msra.mxu0 0.0
        %499 = vmatprep.subr.mxu0 0.0
        %500 = vmatpush1.xpose.msra.mxu0 0.0
        %501 = vmatprep.subr.mxu0 0.0
        %502 = vmatpush1.xpose.msra.mxu0 0.0
        %503 = vmatprep.subr.mxu0 0.0
        %504 = vmatpush1.xpose.msra.mxu0 0.0
        %505 = vmatprep.subr.mxu0 0.0
        %506 = vmatpush1.xpose.msra.mxu0 %v473
        %507 = vmatprep.subr.mxu0 0.0
        %508 = vmatpush2.xpose.msra.mxu0 0.0
        %509 = vmatprep.subr.mxu0 0.0
        %510 = vmatpush2.xpose.msra.mxu0 0.0
        %511 = vmatprep.subr.mxu0 0.0
        %512 = vmatpush2.xpose.msra.mxu0 0.0
        %513 = vmatprep.subr.mxu0 0.0
        %514 = vmatpush2.xpose.msra.mxu0 0.0
        %515 = vmatprep.subr.mxu0 0.0
        %516 = vmatpush2.xpose.msra.mxu0 0.0
        %517 = vmatprep.subr.mxu0 0.0
        %518 = vmatpush2.xpose.msra.mxu0 0.0
        %519 = vmatprep.subr.mxu0 0.0
        %520 = vmatpush2.xpose.msra.mxu0 0.0
        %521 = vmatprep.subr.mxu0 0.0
        %522 = vmatpush2.xpose.msra.mxu0 0.0
        %523 = vmatprep.subr.mxu0 0.0
        %524 = vmatpush2.xpose.msra.mxu0 0.0
        %525 = vmatprep.subr.mxu0 0.0
        %526 = vmatpush2.xpose.msra.mxu0 0.0
        %527 = vmatprep.subr.mxu0 0.0
        %528 = vmatpush2.xpose.msra.mxu0 0.0
        %529 = vmatprep.subr.mxu0 0.0
        %530 = vmatpush2.xpose.msra.mxu0 0.0
        %531 = vmatprep.subr.mxu0 0.0
        %532 = vmatpush2.xpose.msra.mxu0 0.0
        %533 = vmatprep.subr.mxu0 0.0
        %534 = vmatpush2.xpose.msra.mxu0 0.0
        %535 = vmatprep.subr.mxu0 0.0
        %536 = vmatpush2.xpose.msra.mxu0 0.0
        %537 = vmatprep.subr.mxu0 0.0
        %538 = vmatpush2.xpose.msra.mxu0 0.0
        %539 = vmatprep.mubr.f32.mxu0 0.0
        %540 = vmatmul.mubr.f32.gmra.mxu0 %v471
        %v541 = vpop.f32.mrf.mxu0
        %v542 = vadd.f32 0.0, %v541
        %v543 = vpop.f32.mrf.mxu0
        %544 = vdwg.mxu0
        %v545 = vmul.f32 %v542, 0.35355338
        %v547 = vlaneseq
        %v548 = vshrl.u32 %v547, 7
        %v549 = vsub.s32 0, %v548
        %v550 = vrot.slane %v360, %v549
        %v552 = vadd.f32 %v545, %v550
        %553 = vrot.lane.b32.xlu0 %v461, 120
        %v554 = vpop.permute.xlu0 %553
        %555 = vrot.lane.b32.xlu0 %v461, 56
        %v556 = vpop.permute.xlu0 %555
        %v557 = vsel %vm470, %v554, 0
        %v559 = vsel %vm470, %v556, 0
        %561 = vmatprep.subr.mxu0 0.0
        %562 = vmatpush1.xpose.msra.mxu0 0.0
        %563 = vmatprep.subr.mxu0 0.0
        %564 = vmatpush1.xpose.msra.mxu0 0.0
        %565 = vmatprep.subr.mxu0 0.0
        %566 = vmatpush1.xpose.msra.mxu0 0.0
        %567 = vmatprep.subr.mxu0 0.0
        %568 = vmatpush1.xpose.msra.mxu0 0.0
        %569 = vmatprep.subr.mxu0 0.0
        %570 = vmatpush1.xpose.msra.mxu0 0.0
        %571 = vmatprep.subr.mxu0 0.0
        %572 = vmatpush1.xpose.msra.mxu0 0.0
        %573 = vmatprep.subr.mxu0 0.0
        %574 = vmatpush1.xpose.msra.mxu0 0.0
        %575 = vmatprep.subr.mxu0 0.0
        %576 = vmatpush1.xpose.msra.mxu0 0.0
        %577 = vmatprep.subr.mxu0 0.0
        %578 = vmatpush1.xpose.msra.mxu0 0.0
        %579 = vmatprep.subr.mxu0 0.0
        %580 = vmatpush1.xpose.msra.mxu0 0.0
        %581 = vmatprep.subr.mxu0 0.0
        %582 = vmatpush1.xpose.msra.mxu0 0.0
        %583 = vmatprep.subr.mxu0 0.0
        %584 = vmatpush1.xpose.msra.mxu0 0.0
        %585 = vmatprep.subr.mxu0 0.0
        %586 = vmatpush1.xpose.msra.mxu0 0.0
        %587 = vmatprep.subr.mxu0 0.0
        %588 = vmatpush1.xpose.msra.mxu0 0.0
        %589 = vmatprep.subr.mxu0 0.0
        %590 = vmatpush1.xpose.msra.mxu0 0.0
        %591 = vmatprep.subr.mxu0 0.0
        %592 = vmatpush1.xpose.msra.mxu0 %v559
        %593 = vmatprep.subr.mxu0 0.0
        %594 = vmatpush2.xpose.msra.mxu0 0.0
        %595 = vmatprep.subr.mxu0 0.0
        %596 = vmatpush2.xpose.msra.mxu0 0.0
        %597 = vmatprep.subr.mxu0 0.0
        %598 = vmatpush2.xpose.msra.mxu0 0.0
        %599 = vmatprep.subr.mxu0 0.0
        %600 = vmatpush2.xpose.msra.mxu0 0.0
        %601 = vmatprep.subr.mxu0 0.0
        %602 = vmatpush2.xpose.msra.mxu0 0.0
        %603 = vmatprep.subr.mxu0 0.0
        %604 = vmatpush2.xpose.msra.mxu0 0.0
        %605 = vmatprep.subr.mxu0 0.0
        %606 = vmatpush2.xpose.msra.mxu0 0.0
        %607 = vmatprep.subr.mxu0 0.0
        %608 = vmatpush2.xpose.msra.mxu0 0.0
        %609 = vmatprep.subr.mxu0 0.0
        %610 = vmatpush2.xpose.msra.mxu0 0.0
        %611 = vmatprep.subr.mxu0 0.0
        %612 = vmatpush2.xpose.msra.mxu0 0.0
        %613 = vmatprep.subr.mxu0 0.0
        %614 = vmatpush2.xpose.msra.mxu0 0.0
        %615 = vmatprep.subr.mxu0 0.0
        %616 = vmatpush2.xpose.msra.mxu0 0.0
        %617 = vmatprep.subr.mxu0 0.0
        %618 = vmatpush2.xpose.msra.mxu0 0.0
        %619 = vmatprep.subr.mxu0 0.0
        %620 = vmatpush2.xpose.msra.mxu0 0.0
        %621 = vmatprep.subr.mxu0 0.0
        %622 = vmatpush2.xpose.msra.mxu0 0.0
        %623 = vmatprep.subr.mxu0 0.0
        %624 = vmatpush2.xpose.msra.mxu0 0.0
        %625 = vmatprep.mubr.f32.mxu0 0.0
        %626 = vmatmul.mubr.f32.gmra.mxu0 %v557
        %v627 = vpop.f32.mrf.mxu0
        %v628 = vadd.f32 0.0, %v627
        %v629 = vpop.f32.mrf.mxu0
        %630 = vdwg.mxu0
        %v631 = vmul.f32 %v628, 0.35355338
        %v632 = vadd.f32 %v631, %v550
        %633 = vrot.lane.b32.xlu0 %v461, 112
        %v634 = vpop.permute.xlu0 %633
        %635 = vrot.lane.b32.xlu0 %v461, 48
        %v636 = vpop.permute.xlu0 %635
        %v637 = vsel %vm470, %v634, 0
        %v639 = vsel %vm470, %v636, 0
        %641 = vmatprep.subr.mxu0 0.0
        %642 = vmatpush1.xpose.msra.mxu0 0.0
        %643 = vmatprep.subr.mxu0 0.0
        %644 = vmatpush1.xpose.msra.mxu0 0.0
        %645 = vmatprep.subr.mxu0 0.0
        %646 = vmatpush1.xpose.msra.mxu0 0.0
        %647 = vmatprep.subr.mxu0 0.0
        %648 = vmatpush1.xpose.msra.mxu0 0.0
        %649 = vmatprep.subr.mxu0 0.0
        %650 = vmatpush1.xpose.msra.mxu0 0.0
        %651 = vmatprep.subr.mxu0 0.0
        %652 = vmatpush1.xpose.msra.mxu0 0.0
        %653 = vmatprep.subr.mxu0 0.0
        %654 = vmatpush1.xpose.msra.mxu0 0.0
        %655 = vmatprep.subr.mxu0 0.0
        %656 = vmatpush1.xpose.msra.mxu0 0.0
        %657 = vmatprep.subr.mxu0 0.0
        %658 = vmatpush1.xpose.msra.mxu0 0.0
        %659 = vmatprep.subr.mxu0 0.0
        %660 = vmatpush1.xpose.msra.mxu0 0.0
        %661 = vmatprep.subr.mxu0 0.0
        %662 = vmatpush1.xpose.msra.mxu0 0.0
        %663 = vmatprep.subr.mxu0 0.0
        %664 = vmatpush1.xpose.msra.mxu0 0.0
        %665 = vmatprep.subr.mxu0 0.0
        %666 = vmatpush1.xpose.msra.mxu0 0.0
        %667 = vmatprep.subr.mxu0 0.0
        %668 = vmatpush1.xpose.msra.mxu0 0.0
        %669 = vmatprep.subr.mxu0 0.0
        %670 = vmatpush1.xpose.msra.mxu0 0.0
        %671 = vmatprep.subr.mxu0 0.0
        %672 = vmatpush1.xpose.msra.mxu0 %v639
        %673 = vmatprep.subr.mxu0 0.0
        %674 = vmatpush2.xpose.msra.mxu0 0.0
        %675 = vmatprep.subr.mxu0 0.0
        %676 = vmatpush2.xpose.msra.mxu0 0.0
        %677 = vmatprep.subr.mxu0 0.0
        %678 = vmatpush2.xpose.msra.mxu0 0.0
        %679 = vmatprep.subr.mxu0 0.0
        %680 = vmatpush2.xpose.msra.mxu0 0.0
        %681 = vmatprep.subr.mxu0 0.0
        %682 = vmatpush2.xpose.msra.mxu0 0.0
        %683 = vmatprep.subr.mxu0 0.0
        %684 = vmatpush2.xpose.msra.mxu0 0.0
        %685 = vmatprep.subr.mxu0 0.0
        %686 = vmatpush2.xpose.msra.mxu0 0.0
        %687 = vmatprep.subr.mxu0 0.0
        %688 = vmatpush2.xpose.msra.mxu0 0.0
        %689 = vmatprep.subr.mxu0 0.0
        %690 = vmatpush2.xpose.msra.mxu0 0.0
        %691 = vmatprep.subr.mxu0 0.0
        %692 = vmatpush2.xpose.msra.mxu0 0.0
        %693 = vmatprep.subr.mxu0 0.0
        %694 = vmatpush2.xpose.msra.mxu0 0.0
        %695 = vmatprep.subr.mxu0 0.0
        %696 = vmatpush2.xpose.msra.mxu0 0.0
        %697 = vmatprep.subr.mxu0 0.0
        %698 = vmatpush2.xpose.msra.mxu0 0.0
        %699 = vmatprep.subr.mxu0 0.0
        %700 = vmatpush2.xpose.msra.mxu0 0.0
        %701 = vmatprep.subr.mxu0 0.0
        %702 = vmatpush2.xpose.msra.mxu0 0.0
        %703 = vmatprep.subr.mxu0 0.0
        %704 = vmatpush2.xpose.msra.mxu0 0.0
        %705 = vmatprep.mubr.f32.mxu0 0.0
        %706 = vmatmul.mubr.f32.gmra.mxu0 %v637
        %v707 = vpop.f32.mrf.mxu0
        %v708 = vadd.f32 0.0, %v707
        %v709 = vpop.f32.mrf.mxu0
        %710 = vdwg.mxu0
        %v711 = vmul.f32 %v708, 0.35355338
        %v712 = vadd.f32 %v711, %v550
        %713 = vrot.lane.b32.xlu0 %v461, 104
        %v714 = vpop.permute.xlu0 %713
        %715 = vrot.lane.b32.xlu0 %v461, 40
        %v716 = vpop.permute.xlu0 %715
        %v717 = vsel %vm470, %v714, 0
        %v719 = vsel %vm470, %v716, 0
        %721 = vmatprep.subr.mxu0 0.0
        %722 = vmatpush1.xpose.msra.mxu0 0.0
        %723 = vmatprep.subr.mxu0 0.0
        %724 = vmatpush1.xpose.msra.mxu0 0.0
        %725 = vmatprep.subr.mxu0 0.0
        %726 = vmatpush1.xpose.msra.mxu0 0.0
        %727 = vmatprep.subr.mxu0 0.0
        %728 = vmatpush1.xpose.msra.mxu0 0.0
        %729 = vmatprep.subr.mxu0 0.0
        %730 = vmatpush1.xpose.msra.mxu0 0.0
        %731 = vmatprep.subr.mxu0 0.0
        %732 = vmatpush1.xpose.msra.mxu0 0.0
        %733 = vmatprep.subr.mxu0 0.0
        %734 = vmatpush1.xpose.msra.mxu0 0.0
        %735 = vmatprep.subr.mxu0 0.0
        %736 = vmatpush1.xpose.msra.mxu0 0.0
        %737 = vmatprep.subr.mxu0 0.0
        %738 = vmatpush1.xpose.msra.mxu0 0.0
        %739 = vmatprep.subr.mxu0 0.0
        %740 = vmatpush1.xpose.msra.mxu0 0.0
        %741 = vmatprep.subr.mxu0 0.0
        %742 = vmatpush1.xpose.msra.mxu0 0.0
        %743 = vmatprep.subr.mxu0 0.0
        %744 = vmatpush1.xpose.msra.mxu0 0.0
        %745 = vmatprep.subr.mxu0 0.0
        %746 = vmatpush1.xpose.msra.mxu0 0.0
        %747 = vmatprep.subr.mxu0 0.0
        %748 = vmatpush1.xpose.msra.mxu0 0.0
        %749 = vmatprep.subr.mxu0 0.0
        %750 = vmatpush1.xpose.msra.mxu0 0.0
        %751 = vmatprep.subr.mxu0 0.0
        %752 = vmatpush1.xpose.msra.mxu0 %v719
        %753 = vmatprep.subr.mxu0 0.0
        %754 = vmatpush2.xpose.msra.mxu0 0.0
        %755 = vmatprep.subr.mxu0 0.0
        %756 = vmatpush2.xpose.msra.mxu0 0.0
        %757 = vmatprep.subr.mxu0 0.0
        %758 = vmatpush2.xpose.msra.mxu0 0.0
        %759 = vmatprep.subr.mxu0 0.0
        %760 = vmatpush2.xpose.msra.mxu0 0.0
        %761 = vmatprep.subr.mxu0 0.0
        %762 = vmatpush2.xpose.msra.mxu0 0.0
        %763 = vmatprep.subr.mxu0 0.0
        %764 = vmatpush2.xpose.msra.mxu0 0.0
        %765 = vmatprep.subr.mxu0 0.0
        %766 = vmatpush2.xpose.msra.mxu0 0.0
        %767 = vmatprep.subr.mxu0 0.0
        %768 = vmatpush2.xpose.msra.mxu0 0.0
        %769 = vmatprep.subr.mxu0 0.0
        %770 = vmatpush2.xpose.msra.mxu0 0.0
        %771 = vmatprep.subr.mxu0 0.0
        %772 = vmatpush2.xpose.msra.mxu0 0.0
        %773 = vmatprep.subr.mxu0 0.0
        %774 = vmatpush2.xpose.msra.mxu0 0.0
        %775 = vmatprep.subr.mxu0 0.0
        %776 = vmatpush2.xpose.msra.mxu0 0.0
        %777 = vmatprep.subr.mxu0 0.0
        %778 = vmatpush2.xpose.msra.mxu0 0.0
        %779 = vmatprep.subr.mxu0 0.0
        %780 = vmatpush2.xpose.msra.mxu0 0.0
        %781 = vmatprep.subr.mxu0 0.0
        %782 = vmatpush2.xpose.msra.mxu0 0.0
        %783 = vmatprep.subr.mxu0 0.0
        %784 = vmatpush2.xpose.msra.mxu0 0.0
        %785 = vmatprep.mubr.f32.mxu0 0.0
        %786 = vmatmul.mubr.f32.gmra.mxu0 %v717
        %v787 = vpop.f32.mrf.mxu0
        %v788 = vadd.f32 0.0, %v787
        %v789 = vpop.f32.mrf.mxu0
        %790 = vdwg.mxu0
        %v791 = vmul.f32 %v788, 0.35355338
        %v792 = vadd.f32 %v791, %v550
        %793 = vrot.lane.b32.xlu0 %v461, 96
        %v794 = vpop.permute.xlu0 %793
        %795 = vrot.lane.b32.xlu0 %v461, 32
        %v796 = vpop.permute.xlu0 %795
        %v797 = vsel %vm470, %v794, 0
        %v799 = vsel %vm470, %v796, 0
        %801 = vmatprep.subr.mxu0 0.0
        %802 = vmatpush1.xpose.msra.mxu0 0.0
        %803 = vmatprep.subr.mxu0 0.0
        %804 = vmatpush1.xpose.msra.mxu0 0.0
        %805 = vmatprep.subr.mxu0 0.0
        %806 = vmatpush1.xpose.msra.mxu0 0.0
        %807 = vmatprep.subr.mxu0 0.0
        %808 = vmatpush1.xpose.msra.mxu0 0.0
        %809 = vmatprep.subr.mxu0 0.0
        %810 = vmatpush1.xpose.msra.mxu0 0.0
        %811 = vmatprep.subr.mxu0 0.0
        %812 = vmatpush1.xpose.msra.mxu0 0.0
        %813 = vmatprep.subr.mxu0 0.0
        %814 = vmatpush1.xpose.msra.mxu0 0.0
        %815 = vmatprep.subr.mxu0 0.0
        %816 = vmatpush1.xpose.msra.mxu0 0.0
        %817 = vmatprep.subr.mxu0 0.0
        %818 = vmatpush1.xpose.msra.mxu0 0.0
        %819 = vmatprep.subr.mxu0 0.0
        %820 = vmatpush1.xpose.msra.mxu0 0.0
        %821 = vmatprep.subr.mxu0 0.0
        %822 = vmatpush1.xpose.msra.mxu0 0.0
        %823 = vmatprep.subr.mxu0 0.0
        %824 = vmatpush1.xpose.msra.mxu0 0.0
        %825 = vmatprep.subr.mxu0 0.0
        %826 = vmatpush1.xpose.msra.mxu0 0.0
        %827 = vmatprep.subr.mxu0 0.0
        %828 = vmatpush1.xpose.msra.mxu0 0.0
        %829 = vmatprep.subr.mxu0 0.0
        %830 = vmatpush1.xpose.msra.mxu0 0.0
        %831 = vmatprep.subr.mxu0 0.0
        %832 = vmatpush1.xpose.msra.mxu0 %v799
        %833 = vmatprep.subr.mxu0 0.0
        %834 = vmatpush2.xpose.msra.mxu0 0.0
        %835 = vmatprep.subr.mxu0 0.0
        %836 = vmatpush2.xpose.msra.mxu0 0.0
        %837 = vmatprep.subr.mxu0 0.0
        %838 = vmatpush2.xpose.msra.mxu0 0.0
        %839 = vmatprep.subr.mxu0 0.0
        %840 = vmatpush2.xpose.msra.mxu0 0.0
        %841 = vmatprep.subr.mxu0 0.0
        %842 = vmatpush2.xpose.msra.mxu0 0.0
        %843 = vmatprep.subr.mxu0 0.0
        %844 = vmatpush2.xpose.msra.mxu0 0.0
        %845 = vmatprep.subr.mxu0 0.0
        %846 = vmatpush2.xpose.msra.mxu0 0.0
        %847 = vmatprep.subr.mxu0 0.0
        %848 = vmatpush2.xpose.msra.mxu0 0.0
        %849 = vmatprep.subr.mxu0 0.0
        %850 = vmatpush2.xpose.msra.mxu0 0.0
        %851 = vmatprep.subr.mxu0 0.0
        %852 = vmatpush2.xpose.msra.mxu0 0.0
        %853 = vmatprep.subr.mxu0 0.0
        %854 = vmatpush2.xpose.msra.mxu0 0.0
        %855 = vmatprep.subr.mxu0 0.0
        %856 = vmatpush2.xpose.msra.mxu0 0.0
        %857 = vmatprep.subr.mxu0 0.0
        %858 = vmatpush2.xpose.msra.mxu0 0.0
        %859 = vmatprep.subr.mxu0 0.0
        %860 = vmatpush2.xpose.msra.mxu0 0.0
        %861 = vmatprep.subr.mxu0 0.0
        %862 = vmatpush2.xpose.msra.mxu0 0.0
        %863 = vmatprep.subr.mxu0 0.0
        %864 = vmatpush2.xpose.msra.mxu0 0.0
        %865 = vmatprep.mubr.f32.mxu0 0.0
        %866 = vmatmul.mubr.f32.gmra.mxu0 %v797
        %v867 = vpop.f32.mrf.mxu0
        %v868 = vadd.f32 0.0, %v867
        %v869 = vpop.f32.mrf.mxu0
        %870 = vdwg.mxu0
        %v871 = vmul.f32 %v868, 0.35355338
        %v872 = vadd.f32 %v871, %v550
        %873 = vrot.lane.b32.xlu0 %v461, 88
        %v874 = vpop.permute.xlu0 %873
        %875 = vrot.lane.b32.xlu0 %v461, 24
        %v876 = vpop.permute.xlu0 %875
        %v877 = vsel %vm470, %v874, 0
        %v879 = vsel %vm470, %v876, 0
        %881 = vmatprep.subr.mxu0 0.0
        %882 = vmatpush1.xpose.msra.mxu0 0.0
        %883 = vmatprep.subr.mxu0 0.0
        %884 = vmatpush1.xpose.msra.mxu0 0.0
        %885 = vmatprep.subr.mxu0 0.0
        %886 = vmatpush1.xpose.msra.mxu0 0.0
        %887 = vmatprep.subr.mxu0 0.0
        %888 = vmatpush1.xpose.msra.mxu0 0.0
        %889 = vmatprep.subr.mxu0 0.0
        %890 = vmatpush1.xpose.msra.mxu0 0.0
        %891 = vmatprep.subr.mxu0 0.0
        %892 = vmatpush1.xpose.msra.mxu0 0.0
        %893 = vmatprep.subr.mxu0 0.0
        %894 = vmatpush1.xpose.msra.mxu0 0.0
        %895 = vmatprep.subr.mxu0 0.0
        %896 = vmatpush1.xpose.msra.mxu0 0.0
        %897 = vmatprep.subr.mxu0 0.0
        %898 = vmatpush1.xpose.msra.mxu0 0.0
        %899 = vmatprep.subr.mxu0 0.0
        %900 = vmatpush1.xpose.msra.mxu0 0.0
        %901 = vmatprep.subr.mxu0 0.0
        %902 = vmatpush1.xpose.msra.mxu0 0.0
        %903 = vmatprep.subr.mxu0 0.0
        %904 = vmatpush1.xpose.msra.mxu0 0.0
        %905 = vmatprep.subr.mxu0 0.0
        %906 = vmatpush1.xpose.msra.mxu0 0.0
        %907 = vmatprep.subr.mxu0 0.0
        %908 = vmatpush1.xpose.msra.mxu0 0.0
        %909 = vmatprep.subr.mxu0 0.0
        %910 = vmatpush1.xpose.msra.mxu0 0.0
        %911 = vmatprep.subr.mxu0 0.0
        %912 = vmatpush1.xpose.msra.mxu0 %v879
        %913 = vmatprep.subr.mxu0 0.0
        %914 = vmatpush2.xpose.msra.mxu0 0.0
        %915 = vmatprep.subr.mxu0 0.0
        %916 = vmatpush2.xpose.msra.mxu0 0.0
        %917 = vmatprep.subr.mxu0 0.0
        %918 = vmatpush2.xpose.msra.mxu0 0.0
        %919 = vmatprep.subr.mxu0 0.0
        %920 = vmatpush2.xpose.msra.mxu0 0.0
        %921 = vmatprep.subr.mxu0 0.0
        %922 = vmatpush2.xpose.msra.mxu0 0.0
        %923 = vmatprep.subr.mxu0 0.0
        %924 = vmatpush2.xpose.msra.mxu0 0.0
        %925 = vmatprep.subr.mxu0 0.0
        %926 = vmatpush2.xpose.msra.mxu0 0.0
        %927 = vmatprep.subr.mxu0 0.0
        %928 = vmatpush2.xpose.msra.mxu0 0.0
        %929 = vmatprep.subr.mxu0 0.0
        %930 = vmatpush2.xpose.msra.mxu0 0.0
        %931 = vmatprep.subr.mxu0 0.0
        %932 = vmatpush2.xpose.msra.mxu0 0.0
        %933 = vmatprep.subr.mxu0 0.0
        %934 = vmatpush2.xpose.msra.mxu0 0.0
        %935 = vmatprep.subr.mxu0 0.0
        %936 = vmatpush2.xpose.msra.mxu0 0.0
        %937 = vmatprep.subr.mxu0 0.0
        %938 = vmatpush2.xpose.msra.mxu0 0.0
        %939 = vmatprep.subr.mxu0 0.0
        %940 = vmatpush2.xpose.msra.mxu0 0.0
        %941 = vmatprep.subr.mxu0 0.0
        %942 = vmatpush2.xpose.msra.mxu0 0.0
        %943 = vmatprep.subr.mxu0 0.0
        %944 = vmatpush2.xpose.msra.mxu0 0.0
        %945 = vmatprep.mubr.f32.mxu0 0.0
        %946 = vmatmul.mubr.f32.gmra.mxu0 %v877
        %v947 = vpop.f32.mrf.mxu0
        %v948 = vadd.f32 0.0, %v947
        %v949 = vpop.f32.mrf.mxu0
        %950 = vdwg.mxu0
        %v951 = vmul.f32 %v948, 0.35355338
        %v952 = vadd.f32 %v951, %v550
        %953 = vrot.lane.b32.xlu0 %v461, 80
        %v954 = vpop.permute.xlu0 %953
        %955 = vrot.lane.b32.xlu0 %v461, 16
        %v956 = vpop.permute.xlu0 %955
        %v957 = vsel %vm470, %v954, 0
        %v959 = vsel %vm470, %v956, 0
        %961 = vmatprep.subr.mxu0 0.0
        %962 = vmatpush1.xpose.msra.mxu0 0.0
        %963 = vmatprep.subr.mxu0 0.0
        %964 = vmatpush1.xpose.msra.mxu0 0.0
        %965 = vmatprep.subr.mxu0 0.0
        %966 = vmatpush1.xpose.msra.mxu0 0.0
        %967 = vmatprep.subr.mxu0 0.0
        %968 = vmatpush1.xpose.msra.mxu0 0.0
        %969 = vmatprep.subr.mxu0 0.0
        %970 = vmatpush1.xpose.msra.mxu0 0.0
        %971 = vmatprep.subr.mxu0 0.0
        %972 = vmatpush1.xpose.msra.mxu0 0.0
        %973 = vmatprep.subr.mxu0 0.0
        %974 = vmatpush1.xpose.msra.mxu0 0.0
        %975 = vmatprep.subr.mxu0 0.0
        %976 = vmatpush1.xpose.msra.mxu0 0.0
        %977 = vmatprep.subr.mxu0 0.0
        %978 = vmatpush1.xpose.msra.mxu0 0.0
        %979 = vmatprep.subr.mxu0 0.0
        %980 = vmatpush1.xpose.msra.mxu0 0.0
        %981 = vmatprep.subr.mxu0 0.0
        %982 = vmatpush1.xpose.msra.mxu0 0.0
        %983 = vmatprep.subr.mxu0 0.0
        %984 = vmatpush1.xpose.msra.mxu0 0.0
        %985 = vmatprep.subr.mxu0 0.0
        %986 = vmatpush1.xpose.msra.mxu0 0.0
        %987 = vmatprep.subr.mxu0 0.0
        %988 = vmatpush1.xpose.msra.mxu0 0.0
        %989 = vmatprep.subr.mxu0 0.0
        %990 = vmatpush1.xpose.msra.mxu0 0.0
        %991 = vmatprep.subr.mxu0 0.0
        %992 = vmatpush1.xpose.msra.mxu0 %v959
        %993 = vmatprep.subr.mxu0 0.0
        %994 = vmatpush2.xpose.msra.mxu0 0.0
        %995 = vmatprep.subr.mxu0 0.0
        %996 = vmatpush2.xpose.msra.mxu0 0.0
        %997 = vmatprep.subr.mxu0 0.0
        %998 = vmatpush2.xpose.msra.mxu0 0.0
        %999 = vmatprep.subr.mxu0 0.0
        %1000 = vmatpush2.xpose.msra.mxu0 0.0
        %1001 = vmatprep.subr.mxu0 0.0
        %1002 = vmatpush2.xpose.msra.mxu0 0.0
        %1003 = vmatprep.subr.mxu0 0.0
        %1004 = vmatpush2.xpose.msra.mxu0 0.0
        %1005 = vmatprep.subr.mxu0 0.0
        %1006 = vmatpush2.xpose.msra.mxu0 0.0
        %1007 = vmatprep.subr.mxu0 0.0
        %1008 = vmatpush2.xpose.msra.mxu0 0.0
        %1009 = vmatprep.subr.mxu0 0.0
        %1010 = vmatpush2.xpose.msra.mxu0 0.0
        %1011 = vmatprep.subr.mxu0 0.0
        %1012 = vmatpush2.xpose.msra.mxu0 0.0
        %1013 = vmatprep.subr.mxu0 0.0
        %1014 = vmatpush2.xpose.msra.mxu0 0.0
        %1015 = vmatprep.subr.mxu0 0.0
        %1016 = vmatpush2.xpose.msra.mxu0 0.0
        %1017 = vmatprep.subr.mxu0 0.0
        %1018 = vmatpush2.xpose.msra.mxu0 0.0
        %1019 = vmatprep.subr.mxu0 0.0
        %1020 = vmatpush2.xpose.msra.mxu0 0.0
        %1021 = vmatprep.subr.mxu0 0.0
        %1022 = vmatpush2.xpose.msra.mxu0 0.0
        %1023 = vmatprep.subr.mxu0 0.0
        %1024 = vmatpush2.xpose.msra.mxu0 0.0
        %1025 = vmatprep.mubr.f32.mxu0 0.0
        %1026 = vmatmul.mubr.f32.gmra.mxu0 %v957
        %v1027 = vpop.f32.mrf.mxu0
        %v1028 = vadd.f32 0.0, %v1027
        %v1029 = vpop.f32.mrf.mxu0
        %1030 = vdwg.mxu0
        %v1031 = vmul.f32 %v1028, 0.35355338
        %v1032 = vadd.f32 %v1031, %v550
        %1033 = vrot.lane.b32.xlu0 %v461, 72
        %v1034 = vpop.permute.xlu0 %1033
        %1035 = vrot.lane.b32.xlu0 %v461, 8
        %v1036 = vpop.permute.xlu0 %1035
        %v1037 = vsel %vm470, %v1034, 0
        %v1039 = vsel %vm470, %v1036, 0
        %1041 = vmatprep.subr.mxu0 0.0
        %1042 = vmatpush1.xpose.msra.mxu0 0.0
        %1043 = vmatprep.subr.mxu0 0.0
        %1044 = vmatpush1.xpose.msra.mxu0 0.0
        %1045 = vmatprep.subr.mxu0 0.0
        %1046 = vmatpush1.xpose.msra.mxu0 0.0
        %1047 = vmatprep.subr.mxu0 0.0
        %1048 = vmatpush1.xpose.msra.mxu0 0.0
        %1049 = vmatprep.subr.mxu0 0.0
        %1050 = vmatpush1.xpose.msra.mxu0 0.0
        %1051 = vmatprep.subr.mxu0 0.0
        %1052 = vmatpush1.xpose.msra.mxu0 0.0
        %1053 = vmatprep.subr.mxu0 0.0
        %1054 = vmatpush1.xpose.msra.mxu0 0.0
        %1055 = vmatprep.subr.mxu0 0.0
        %1056 = vmatpush1.xpose.msra.mxu0 0.0
        %1057 = vmatprep.subr.mxu0 0.0
        %1058 = vmatpush1.xpose.msra.mxu0 0.0
        %1059 = vmatprep.subr.mxu0 0.0
        %1060 = vmatpush1.xpose.msra.mxu0 0.0
        %1061 = vmatprep.subr.mxu0 0.0
        %1062 = vmatpush1.xpose.msra.mxu0 0.0
        %1063 = vmatprep.subr.mxu0 0.0
        %1064 = vmatpush1.xpose.msra.mxu0 0.0
        %1065 = vmatprep.subr.mxu0 0.0
        %1066 = vmatpush1.xpose.msra.mxu0 0.0
        %1067 = vmatprep.subr.mxu0 0.0
        %1068 = vmatpush1.xpose.msra.mxu0 0.0
        %1069 = vmatprep.subr.mxu0 0.0
        %1070 = vmatpush1.xpose.msra.mxu0 0.0
        %1071 = vmatprep.subr.mxu0 0.0
        %1072 = vmatpush1.xpose.msra.mxu0 %v1039
        %1073 = vmatprep.subr.mxu0 0.0
        %1074 = vmatpush2.xpose.msra.mxu0 0.0
        %1075 = vmatprep.subr.mxu0 0.0
        %1076 = vmatpush2.xpose.msra.mxu0 0.0
        %1077 = vmatprep.subr.mxu0 0.0
        %1078 = vmatpush2.xpose.msra.mxu0 0.0
        %1079 = vmatprep.subr.mxu0 0.0
        %1080 = vmatpush2.xpose.msra.mxu0 0.0
        %1081 = vmatprep.subr.mxu0 0.0
        %1082 = vmatpush2.xpose.msra.mxu0 0.0
        %1083 = vmatprep.subr.mxu0 0.0
        %1084 = vmatpush2.xpose.msra.mxu0 0.0
        %1085 = vmatprep.subr.mxu0 0.0
        %1086 = vmatpush2.xpose.msra.mxu0 0.0
        %1087 = vmatprep.subr.mxu0 0.0
        %1088 = vmatpush2.xpose.msra.mxu0 0.0
        %1089 = vmatprep.subr.mxu0 0.0
        %1090 = vmatpush2.xpose.msra.mxu0 0.0
        %1091 = vmatprep.subr.mxu0 0.0
        %1092 = vmatpush2.xpose.msra.mxu0 0.0
        %1093 = vmatprep.subr.mxu0 0.0
        %1094 = vmatpush2.xpose.msra.mxu0 0.0
        %1095 = vmatprep.subr.mxu0 0.0
        %1096 = vmatpush2.xpose.msra.mxu0 0.0
        %1097 = vmatprep.subr.mxu0 0.0
        %1098 = vmatpush2.xpose.msra.mxu0 0.0
        %1099 = vmatprep.subr.mxu0 0.0
        %1100 = vmatpush2.xpose.msra.mxu0 0.0
        %1101 = vmatprep.subr.mxu0 0.0
        %1102 = vmatpush2.xpose.msra.mxu0 0.0
        %1103 = vmatprep.subr.mxu0 0.0
        %1104 = vmatpush2.xpose.msra.mxu0 0.0
        %1105 = vmatprep.mubr.f32.mxu0 0.0
        %1106 = vmatmul.mubr.f32.gmra.mxu0 %v1037
        %v1107 = vpop.f32.mrf.mxu0
        %v1108 = vadd.f32 0.0, %v1107
        %v1109 = vpop.f32.mrf.mxu0
        %1110 = vdwg.mxu0
        %v1111 = vmul.f32 %v1108, 0.35355338
        %v1112 = vadd.f32 %v1111, %v550
        %v1113 = vsel %vm470, %v552, -inf
        %1114 = vmax.xlane.f32.xlu0 %v1113
        %v1115 = vpop.xlane.xlu0 %1114
        %v1116 = vsel %vm470, %v632, -inf
        %1117 = vmax.xlane.f32.xlu0 %v1116
        %v1118 = vpop.xlane.xlu0 %1117
        %v1119 = vsel %vm470, %v712, -inf
        %1120 = vmax.xlane.f32.xlu0 %v1119
        %v1121 = vpop.xlane.xlu0 %1120
        %v1122 = vsel %vm470, %v792, -inf
        %1123 = vmax.xlane.f32.xlu0 %v1122
        %v1124 = vpop.xlane.xlu0 %1123
        %v1125 = vsel %vm470, %v872, -inf
        %1126 = vmax.xlane.f32.xlu0 %v1125
        %v1127 = vpop.xlane.xlu0 %1126
        %v1128 = vsel %vm470, %v952, -inf
        %1129 = vmax.xlane.f32.xlu0 %v1128
        %v1130 = vpop.xlane.xlu0 %1129
        %v1131 = vsel %vm470, %v1032, -inf
        %1132 = vmax.xlane.f32.xlu0 %v1131
        %v1133 = vpop.xlane.xlu0 %1132
        %v1134 = vsel %vm470, %v1112, -inf
        %1135 = vmax.xlane.f32.xlu0 %v1134
        %v1136 = vpop.xlane.xlu0 %1135
        %v1137 = vsub.f32 %v552, %v1115
        %v1138 = vsub.f32 %v632, %v1118
        %v1139 = vsub.f32 %v712, %v1121
        %v1140 = vsub.f32 %v792, %v1124
        %v1141 = vsub.f32 %v872, %v1127
        %v1142 = vsub.f32 %v952, %v1130
        %v1143 = vsub.f32 %v1032, %v1133
        %v1144 = vsub.f32 %v1112, %v1136
        %v1145 = vmul.f32 %v1137, 1.442695
        %v1146 = vpow.pop %v1145
        %v1147 = vmul.f32 %v1138, 1.442695
        %v1148 = vpow.pop %v1147
        %v1149 = vmul.f32 %v1139, 1.442695
        %v1150 = vpow.pop %v1149
        %v1151 = vmul.f32 %v1140, 1.442695
        %v1152 = vpow.pop %v1151
        %v1153 = vmul.f32 %v1141, 1.442695
        %v1154 = vpow.pop %v1153
        %v1155 = vmul.f32 %v1142, 1.442695
        %v1156 = vpow.pop %v1155
        %v1157 = vmul.f32 %v1143, 1.442695
        %v1158 = vpow.pop %v1157
        %v1159 = vmul.f32 %v1144, 1.442695
        %v1160 = vpow.pop %v1159
        %v1161 = vsel %vm470, %v1146, 0.0
        %1162 = vadd.xlane.f32.xlu0 %v1161
        %v1163 = vpop.xlane.xlu0 %1162
        %v1164 = vsel %vm470, %v1148, 0.0
        %1165 = vadd.xlane.f32.xlu0 %v1164
        %v1166 = vpop.xlane.xlu0 %1165
        %v1167 = vsel %vm470, %v1150, 0.0
        %1168 = vadd.xlane.f32.xlu0 %v1167
        %v1169 = vpop.xlane.xlu0 %1168
        %v1170 = vsel %vm470, %v1152, 0.0
        %1171 = vadd.xlane.f32.xlu0 %v1170
        %v1172 = vpop.xlane.xlu0 %1171
        %v1173 = vsel %vm470, %v1154, 0.0
        %1174 = vadd.xlane.f32.xlu0 %v1173
        %v1175 = vpop.xlane.xlu0 %1174
        %v1176 = vsel %vm470, %v1156, 0.0
        %1177 = vadd.xlane.f32.xlu0 %v1176
        %v1178 = vpop.xlane.xlu0 %1177
        %v1179 = vsel %vm470, %v1158, 0.0
        %1180 = vadd.xlane.f32.xlu0 %v1179
        %v1181 = vpop.xlane.xlu0 %1180
        %v1182 = vsel %vm470, %v1160, 0.0
        %1183 = vadd.xlane.f32.xlu0 %v1182
        %v1184 = vpop.xlane.xlu0 %1183
        %v1185 = vrcp.pop %v1163
        %v1186 = vrcp.pop %v1166
        %v1187 = vrcp.pop %v1169
        %v1188 = vrcp.pop %v1172
        %v1189 = vrcp.pop %v1175
        %v1190 = vrcp.pop %v1178
        %v1191 = vrcp.pop %v1181
        %v1192 = vrcp.pop %v1184
        %v1193 = vmul.f32 %v1146, %v1185
        %v1194 = vmul.f32 %v1148, %v1186
        %v1195 = vmul.f32 %v1150, %v1187
        %v1196 = vmul.f32 %v1152, %v1188
        %v1197 = vmul.f32 %v1154, %v1189
        %v1198 = vmul.f32 %v1156, %v1190
        %v1199 = vmul.f32 %v1158, %v1191
        %v1200 = vmul.f32 %v1160, %v1192
        %v1202 = vsel %vm470, %v1193, 0
        %1204 = vmatprep.subr.mxu0 0.0
        %1205 = vmatpush1.msra.mxu0 0.0
        %1206 = vmatprep.subr.mxu0 0.0
        %1207 = vmatpush1.msra.mxu0 0.0
        %1208 = vmatprep.subr.mxu0 0.0
        %1209 = vmatpush1.msra.mxu0 0.0
        %1210 = vmatprep.subr.mxu0 0.0
        %1211 = vmatpush1.msra.mxu0 0.0
        %1212 = vmatprep.subr.mxu0 0.0
        %1213 = vmatpush1.msra.mxu0 0.0
        %1214 = vmatprep.subr.mxu0 0.0
        %1215 = vmatpush1.msra.mxu0 0.0
        %1216 = vmatprep.subr.mxu0 0.0
        %1217 = vmatpush1.msra.mxu0 0.0
        %1218 = vmatprep.subr.mxu0 0.0
        %1219 = vmatpush1.msra.mxu0 0.0
        %1220 = vmatprep.subr.mxu0 0.0
        %1221 = vmatpush1.msra.mxu0 0.0
        %1222 = vmatprep.subr.mxu0 0.0
        %1223 = vmatpush1.msra.mxu0 0.0
        %1224 = vmatprep.subr.mxu0 0.0
        %1225 = vmatpush1.msra.mxu0 0.0
        %1226 = vmatprep.subr.mxu0 0.0
        %1227 = vmatpush1.msra.mxu0 0.0
        %1228 = vmatprep.subr.mxu0 0.0
        %1229 = vmatpush1.msra.mxu0 0.0
        %1230 = vmatprep.subr.mxu0 0.0
        %1231 = vmatpush1.msra.mxu0 0.0
        %1232 = vmatprep.subr.mxu0 0.0
        %1233 = vmatpush1.msra.mxu0 0.0
        %1234 = vmatprep.subr.mxu0 0.0
        %1235 = vmatpush1.msra.mxu0 %v463
        %1236 = vmatprep.subr.mxu0 0.0
        %1237 = vmatpush2.msra.mxu0 0.0
        %1238 = vmatprep.subr.mxu0 0.0
        %1239 = vmatpush2.msra.mxu0 0.0
        %1240 = vmatprep.subr.mxu0 0.0
        %1241 = vmatpush2.msra.mxu0 0.0
        %1242 = vmatprep.subr.mxu0 0.0
        %1243 = vmatpush2.msra.mxu0 0.0
        %1244 = vmatprep.subr.mxu0 0.0
        %1245 = vmatpush2.msra.mxu0 0.0
        %1246 = vmatprep.subr.mxu0 0.0
        %1247 = vmatpush2.msra.mxu0 0.0
        %1248 = vmatprep.subr.mxu0 0.0
        %1249 = vmatpush2.msra.mxu0 0.0
        %1250 = vmatprep.subr.mxu0 0.0
        %1251 = vmatpush2.msra.mxu0 0.0
        %1252 = vmatprep.subr.mxu0 0.0
        %1253 = vmatpush2.msra.mxu0 0.0
        %1254 = vmatprep.subr.mxu0 0.0
        %1255 = vmatpush2.msra.mxu0 0.0
        %1256 = vmatprep.subr.mxu0 0.0
        %1257 = vmatpush2.msra.mxu0 0.0
        %1258 = vmatprep.subr.mxu0 0.0
        %1259 = vmatpush2.msra.mxu0 0.0
        %1260 = vmatprep.subr.mxu0 0.0
        %1261 = vmatpush2.msra.mxu0 0.0
        %1262 = vmatprep.subr.mxu0 0.0
        %1263 = vmatpush2.msra.mxu0 0.0
        %1264 = vmatprep.subr.mxu0 0.0
        %1265 = vmatpush2.msra.mxu0 0.0
        %1266 = vmatprep.subr.mxu0 0.0
        %1267 = vmatpush2.msra.mxu0 0.0
        %1268 = vmatprep.mubr.f32.mxu0 0.0
        %1269 = vmatmul.mubr.f32.gmra.mxu0 %v1202
        %v1270 = vpop.f32.mrf.mxu0
        %v1271 = vadd.f32 0.0, %v1270
        %v1272 = vpop.f32.mrf.mxu0
        %1273 = vdwg.mxu0
        %1275 = vrot.lane.b32.xlu0 %v463, 120
        %v1276 = vpop.permute.xlu0 %1275
        %v1279 = vsel %vm470, %v1194, 0
        %1281 = vmatprep.subr.mxu0 0.0
        %1282 = vmatpush1.msra.mxu0 0.0
        %1283 = vmatprep.subr.mxu0 0.0
        %1284 = vmatpush1.msra.mxu0 0.0
        %1285 = vmatprep.subr.mxu0 0.0
        %1286 = vmatpush1.msra.mxu0 0.0
        %1287 = vmatprep.subr.mxu0 0.0
        %1288 = vmatpush1.msra.mxu0 0.0
        %1289 = vmatprep.subr.mxu0 0.0
        %1290 = vmatpush1.msra.mxu0 0.0
        %1291 = vmatprep.subr.mxu0 0.0
        %1292 = vmatpush1.msra.mxu0 0.0
        %1293 = vmatprep.subr.mxu0 0.0
        %1294 = vmatpush1.msra.mxu0 0.0
        %1295 = vmatprep.subr.mxu0 0.0
        %1296 = vmatpush1.msra.mxu0 0.0
        %1297 = vmatprep.subr.mxu0 0.0
        %1298 = vmatpush1.msra.mxu0 0.0
        %1299 = vmatprep.subr.mxu0 0.0
        %1300 = vmatpush1.msra.mxu0 0.0
        %1301 = vmatprep.subr.mxu0 0.0
        %1302 = vmatpush1.msra.mxu0 0.0
        %1303 = vmatprep.subr.mxu0 0.0
        %1304 = vmatpush1.msra.mxu0 0.0
        %1305 = vmatprep.subr.mxu0 0.0
        %1306 = vmatpush1.msra.mxu0 0.0
        %1307 = vmatprep.subr.mxu0 0.0
        %1308 = vmatpush1.msra.mxu0 0.0
        %1309 = vmatprep.subr.mxu0 0.0
        %1310 = vmatpush1.msra.mxu0 0.0
        %1311 = vmatprep.subr.mxu0 0.0
        %1312 = vmatpush1.msra.mxu0 %v1276
        %1313 = vmatprep.subr.mxu0 0.0
        %1314 = vmatpush2.msra.mxu0 0.0
        %1315 = vmatprep.subr.mxu0 0.0
        %1316 = vmatpush2.msra.mxu0 0.0
        %1317 = vmatprep.subr.mxu0 0.0
        %1318 = vmatpush2.msra.mxu0 0.0
        %1319 = vmatprep.subr.mxu0 0.0
        %1320 = vmatpush2.msra.mxu0 0.0
        %1321 = vmatprep.subr.mxu0 0.0
        %1322 = vmatpush2.msra.mxu0 0.0
        %1323 = vmatprep.subr.mxu0 0.0
        %1324 = vmatpush2.msra.mxu0 0.0
        %1325 = vmatprep.subr.mxu0 0.0
        %1326 = vmatpush2.msra.mxu0 0.0
        %1327 = vmatprep.subr.mxu0 0.0
        %1328 = vmatpush2.msra.mxu0 0.0
        %1329 = vmatprep.subr.mxu0 0.0
        %1330 = vmatpush2.msra.mxu0 0.0
        %1331 = vmatprep.subr.mxu0 0.0
        %1332 = vmatpush2.msra.mxu0 0.0
        %1333 = vmatprep.subr.mxu0 0.0
        %1334 = vmatpush2.msra.mxu0 0.0
        %1335 = vmatprep.subr.mxu0 0.0
        %1336 = vmatpush2.msra.mxu0 0.0
        %1337 = vmatprep.subr.mxu0 0.0
        %1338 = vmatpush2.msra.mxu0 0.0
        %1339 = vmatprep.subr.mxu0 0.0
        %1340 = vmatpush2.msra.mxu0 0.0
        %1341 = vmatprep.subr.mxu0 0.0
        %1342 = vmatpush2.msra.mxu0 0.0
        %1343 = vmatprep.subr.mxu0 0.0
        %1344 = vmatpush2.msra.mxu0 0.0
        %1345 = vmatprep.mubr.f32.mxu0 0.0
        %1346 = vmatmul.mubr.f32.gmra.mxu0 %v1279
        %v1347 = vpop.f32.mrf.mxu0
        %v1348 = vadd.f32 0.0, %v1347
        %v1349 = vpop.f32.mrf.mxu0
        %1350 = vdwg.mxu0
        %1351 = vrot.lane.b32.xlu0 %v463, 112
        %v1352 = vpop.permute.xlu0 %1351
        %v1355 = vsel %vm470, %v1195, 0
        %1357 = vmatprep.subr.mxu0 0.0
        %1358 = vmatpush1.msra.mxu0 0.0
        %1359 = vmatprep.subr.mxu0 0.0
        %1360 = vmatpush1.msra.mxu0 0.0
        %1361 = vmatprep.subr.mxu0 0.0
        %1362 = vmatpush1.msra.mxu0 0.0
        %1363 = vmatprep.subr.mxu0 0.0
        %1364 = vmatpush1.msra.mxu0 0.0
        %1365 = vmatprep.subr.mxu0 0.0
        %1366 = vmatpush1.msra.mxu0 0.0
        %1367 = vmatprep.subr.mxu0 0.0
        %1368 = vmatpush1.msra.mxu0 0.0
        %1369 = vmatprep.subr.mxu0 0.0
        %1370 = vmatpush1.msra.mxu0 0.0
        %1371 = vmatprep.subr.mxu0 0.0
        %1372 = vmatpush1.msra.mxu0 0.0
        %1373 = vmatprep.subr.mxu0 0.0
        %1374 = vmatpush1.msra.mxu0 0.0
        %1375 = vmatprep.subr.mxu0 0.0
        %1376 = vmatpush1.msra.mxu0 0.0
        %1377 = vmatprep.subr.mxu0 0.0
        %1378 = vmatpush1.msra.mxu0 0.0
        %1379 = vmatprep.subr.mxu0 0.0
        %1380 = vmatpush1.msra.mxu0 0.0
        %1381 = vmatprep.subr.mxu0 0.0
        %1382 = vmatpush1.msra.mxu0 0.0
        %1383 = vmatprep.subr.mxu0 0.0
        %1384 = vmatpush1.msra.mxu0 0.0
        %1385 = vmatprep.subr.mxu0 0.0
        %1386 = vmatpush1.msra.mxu0 0.0
        %1387 = vmatprep.subr.mxu0 0.0
        %1388 = vmatpush1.msra.mxu0 %v1352
        %1389 = vmatprep.subr.mxu0 0.0
        %1390 = vmatpush2.msra.mxu0 0.0
        %1391 = vmatprep.subr.mxu0 0.0
        %1392 = vmatpush2.msra.mxu0 0.0
        %1393 = vmatprep.subr.mxu0 0.0
        %1394 = vmatpush2.msra.mxu0 0.0
        %1395 = vmatprep.subr.mxu0 0.0
        %1396 = vmatpush2.msra.mxu0 0.0
        %1397 = vmatprep.subr.mxu0 0.0
        %1398 = vmatpush2.msra.mxu0 0.0
        %1399 = vmatprep.subr.mxu0 0.0
        %1400 = vmatpush2.msra.mxu0 0.0
        %1401 = vmatprep.subr.mxu0 0.0
        %1402 = vmatpush2.msra.mxu0 0.0
        %1403 = vmatprep.subr.mxu0 0.0
        %1404 = vmatpush2.msra.mxu0 0.0
        %1405 = vmatprep.subr.mxu0 0.0
        %1406 = vmatpush2.msra.mxu0 0.0
        %1407 = vmatprep.subr.mxu0 0.0
        %1408 = vmatpush2.msra.mxu0 0.0
        %1409 = vmatprep.subr.mxu0 0.0
        %1410 = vmatpush2.msra.mxu0 0.0
        %1411 = vmatprep.subr.mxu0 0.0
        %1412 = vmatpush2.msra.mxu0 0.0
        %1413 = vmatprep.subr.mxu0 0.0
        %1414 = vmatpush2.msra.mxu0 0.0
        %1415 = vmatprep.subr.mxu0 0.0
        %1416 = vmatpush2.msra.mxu0 0.0
        %1417 = vmatprep.subr.mxu0 0.0
        %1418 = vmatpush2.msra.mxu0 0.0
        %1419 = vmatprep.subr.mxu0 0.0
        %1420 = vmatpush2.msra.mxu0 0.0
        %1421 = vmatprep.mubr.f32.mxu0 0.0
        %1422 = vmatmul.mubr.f32.gmra.mxu0 %v1355
        %v1423 = vpop.f32.mrf.mxu0
        %v1424 = vadd.f32 0.0, %v1423
        %v1425 = vpop.f32.mrf.mxu0
        %1426 = vdwg.mxu0
        %1427 = vrot.lane.b32.xlu0 %v463, 104
        %v1428 = vpop.permute.xlu0 %1427
        %v1431 = vsel %vm470, %v1196, 0
        %1433 = vmatprep.subr.mxu0 0.0
        %1434 = vmatpush1.msra.mxu0 0.0
        %1435 = vmatprep.subr.mxu0 0.0
        %1436 = vmatpush1.msra.mxu0 0.0
        %1437 = vmatprep.subr.mxu0 0.0
        %1438 = vmatpush1.msra.mxu0 0.0
        %1439 = vmatprep.subr.mxu0 0.0
        %1440 = vmatpush1.msra.mxu0 0.0
        %1441 = vmatprep.subr.mxu0 0.0
        %1442 = vmatpush1.msra.mxu0 0.0
        %1443 = vmatprep.subr.mxu0 0.0
        %1444 = vmatpush1.msra.mxu0 0.0
        %1445 = vmatprep.subr.mxu0 0.0
        %1446 = vmatpush1.msra.mxu0 0.0
        %1447 = vmatprep.subr.mxu0 0.0
        %1448 = vmatpush1.msra.mxu0 0.0
        %1449 = vmatprep.subr.mxu0 0.0
        %1450 = vmatpush1.msra.mxu0 0.0
        %1451 = vmatprep.subr.mxu0 0.0
        %1452 = vmatpush1.msra.mxu0 0.0
        %1453 = vmatprep.subr.mxu0 0.0
        %1454 = vmatpush1.msra.mxu0 0.0
        %1455 = vmatprep.subr.mxu0 0.0
        %1456 = vmatpush1.msra.mxu0 0.0
        %1457 = vmatprep.subr.mxu0 0.0
        %1458 = vmatpush1.msra.mxu0 0.0
        %1459 = vmatprep.subr.mxu0 0.0
        %1460 = vmatpush1.msra.mxu0 0.0
        %1461 = vmatprep.subr.mxu0 0.0
        %1462 = vmatpush1.msra.mxu0 0.0
        %1463 = vmatprep.subr.mxu0 0.0
        %1464 = vmatpush1.msra.mxu0 %v1428
        %1465 = vmatprep.subr.mxu0 0.0
        %1466 = vmatpush2.msra.mxu0 0.0
        %1467 = vmatprep.subr.mxu0 0.0
        %1468 = vmatpush2.msra.mxu0 0.0
        %1469 = vmatprep.subr.mxu0 0.0
        %1470 = vmatpush2.msra.mxu0 0.0
        %1471 = vmatprep.subr.mxu0 0.0
        %1472 = vmatpush2.msra.mxu0 0.0
        %1473 = vmatprep.subr.mxu0 0.0
        %1474 = vmatpush2.msra.mxu0 0.0
        %1475 = vmatprep.subr.mxu0 0.0
        %1476 = vmatpush2.msra.mxu0 0.0
        %1477 = vmatprep.subr.mxu0 0.0
        %1478 = vmatpush2.msra.mxu0 0.0
        %1479 = vmatprep.subr.mxu0 0.0
        %1480 = vmatpush2.msra.mxu0 0.0
        %1481 = vmatprep.subr.mxu0 0.0
        %1482 = vmatpush2.msra.mxu0 0.0
        %1483 = vmatprep.subr.mxu0 0.0
        %1484 = vmatpush2.msra.mxu0 0.0
        %1485 = vmatprep.subr.mxu0 0.0
        %1486 = vmatpush2.msra.mxu0 0.0
        %1487 = vmatprep.subr.mxu0 0.0
        %1488 = vmatpush2.msra.mxu0 0.0
        %1489 = vmatprep.subr.mxu0 0.0
        %1490 = vmatpush2.msra.mxu0 0.0
        %1491 = vmatprep.subr.mxu0 0.0
        %1492 = vmatpush2.msra.mxu0 0.0
        %1493 = vmatprep.subr.mxu0 0.0
        %1494 = vmatpush2.msra.mxu0 0.0
        %1495 = vmatprep.subr.mxu0 0.0
        %1496 = vmatpush2.msra.mxu0 0.0
        %1497 = vmatprep.mubr.f32.mxu0 0.0
        %1498 = vmatmul.mubr.f32.gmra.mxu0 %v1431
        %v1499 = vpop.f32.mrf.mxu0
        %v1500 = vadd.f32 0.0, %v1499
        %v1501 = vpop.f32.mrf.mxu0
        %1502 = vdwg.mxu0
        %1503 = vrot.lane.b32.xlu0 %v463, 96
        %v1504 = vpop.permute.xlu0 %1503
        %v1507 = vsel %vm470, %v1197, 0
        %1509 = vmatprep.subr.mxu0 0.0
        %1510 = vmatpush1.msra.mxu0 0.0
        %1511 = vmatprep.subr.mxu0 0.0
        %1512 = vmatpush1.msra.mxu0 0.0
        %1513 = vmatprep.subr.mxu0 0.0
        %1514 = vmatpush1.msra.mxu0 0.0
        %1515 = vmatprep.subr.mxu0 0.0
        %1516 = vmatpush1.msra.mxu0 0.0
        %1517 = vmatprep.subr.mxu0 0.0
        %1518 = vmatpush1.msra.mxu0 0.0
        %1519 = vmatprep.subr.mxu0 0.0
        %1520 = vmatpush1.msra.mxu0 0.0
        %1521 = vmatprep.subr.mxu0 0.0
        %1522 = vmatpush1.msra.mxu0 0.0
        %1523 = vmatprep.subr.mxu0 0.0
        %1524 = vmatpush1.msra.mxu0 0.0
        %1525 = vmatprep.subr.mxu0 0.0
        %1526 = vmatpush1.msra.mxu0 0.0
        %1527 = vmatprep.subr.mxu0 0.0
        %1528 = vmatpush1.msra.mxu0 0.0
        %1529 = vmatprep.subr.mxu0 0.0
        %1530 = vmatpush1.msra.mxu0 0.0
        %1531 = vmatprep.subr.mxu0 0.0
        %1532 = vmatpush1.msra.mxu0 0.0
        %1533 = vmatprep.subr.mxu0 0.0
        %1534 = vmatpush1.msra.mxu0 0.0
        %1535 = vmatprep.subr.mxu0 0.0
        %1536 = vmatpush1.msra.mxu0 0.0
        %1537 = vmatprep.subr.mxu0 0.0
        %1538 = vmatpush1.msra.mxu0 0.0
        %1539 = vmatprep.subr.mxu0 0.0
        %1540 = vmatpush1.msra.mxu0 %v1504
        %1541 = vmatprep.subr.mxu0 0.0
        %1542 = vmatpush2.msra.mxu0 0.0
        %1543 = vmatprep.subr.mxu0 0.0
        %1544 = vmatpush2.msra.mxu0 0.0
        %1545 = vmatprep.subr.mxu0 0.0
        %1546 = vmatpush2.msra.mxu0 0.0
        %1547 = vmatprep.subr.mxu0 0.0
        %1548 = vmatpush2.msra.mxu0 0.0
        %1549 = vmatprep.subr.mxu0 0.0
        %1550 = vmatpush2.msra.mxu0 0.0
        %1551 = vmatprep.subr.mxu0 0.0
        %1552 = vmatpush2.msra.mxu0 0.0
        %1553 = vmatprep.subr.mxu0 0.0
        %1554 = vmatpush2.msra.mxu0 0.0
        %1555 = vmatprep.subr.mxu0 0.0
        %1556 = vmatpush2.msra.mxu0 0.0
        %1557 = vmatprep.subr.mxu0 0.0
        %1558 = vmatpush2.msra.mxu0 0.0
        %1559 = vmatprep.subr.mxu0 0.0
        %1560 = vmatpush2.msra.mxu0 0.0
        %1561 = vmatprep.subr.mxu0 0.0
        %1562 = vmatpush2.msra.mxu0 0.0
        %1563 = vmatprep.subr.mxu0 0.0
        %1564 = vmatpush2.msra.mxu0 0.0
        %1565 = vmatprep.subr.mxu0 0.0
        %1566 = vmatpush2.msra.mxu0 0.0
        %1567 = vmatprep.subr.mxu0 0.0
        %1568 = vmatpush2.msra.mxu0 0.0
        %1569 = vmatprep.subr.mxu0 0.0
        %1570 = vmatpush2.msra.mxu0 0.0
        %1571 = vmatprep.subr.mxu0 0.0
        %1572 = vmatpush2.msra.mxu0 0.0
        %1573 = vmatprep.mubr.f32.mxu0 0.0
        %1574 = vmatmul.mubr.f32.gmra.mxu0 %v1507
        %v1575 = vpop.f32.mrf.mxu0
        %v1576 = vadd.f32 0.0, %v1575
        %v1577 = vpop.f32.mrf.mxu0
        %1578 = vdwg.mxu0
        %1579 = vrot.lane.b32.xlu0 %v463, 88
        %v1580 = vpop.permute.xlu0 %1579
        %v1583 = vsel %vm470, %v1198, 0
        %1585 = vmatprep.subr.mxu0 0.0
        %1586 = vmatpush1.msra.mxu0 0.0
        %1587 = vmatprep.subr.mxu0 0.0
        %1588 = vmatpush1.msra.mxu0 0.0
        %1589 = vmatprep.subr.mxu0 0.0
        %1590 = vmatpush1.msra.mxu0 0.0
        %1591 = vmatprep.subr.mxu0 0.0
        %1592 = vmatpush1.msra.mxu0 0.0
        %1593 = vmatprep.subr.mxu0 0.0
        %1594 = vmatpush1.msra.mxu0 0.0
        %1595 = vmatprep.subr.mxu0 0.0
        %1596 = vmatpush1.msra.mxu0 0.0
        %1597 = vmatprep.subr.mxu0 0.0
        %1598 = vmatpush1.msra.mxu0 0.0
        %1599 = vmatprep.subr.mxu0 0.0
        %1600 = vmatpush1.msra.mxu0 0.0
        %1601 = vmatprep.subr.mxu0 0.0
        %1602 = vmatpush1.msra.mxu0 0.0
        %1603 = vmatprep.subr.mxu0 0.0
        %1604 = vmatpush1.msra.mxu0 0.0
        %1605 = vmatprep.subr.mxu0 0.0
        %1606 = vmatpush1.msra.mxu0 0.0
        %1607 = vmatprep.subr.mxu0 0.0
        %1608 = vmatpush1.msra.mxu0 0.0
        %1609 = vmatprep.subr.mxu0 0.0
        %1610 = vmatpush1.msra.mxu0 0.0
        %1611 = vmatprep.subr.mxu0 0.0
        %1612 = vmatpush1.msra.mxu0 0.0
        %1613 = vmatprep.subr.mxu0 0.0
        %1614 = vmatpush1.msra.mxu0 0.0
        %1615 = vmatprep.subr.mxu0 0.0
        %1616 = vmatpush1.msra.mxu0 %v1580
        %1617 = vmatprep.subr.mxu0 0.0
        %1618 = vmatpush2.msra.mxu0 0.0
        %1619 = vmatprep.subr.mxu0 0.0
        %1620 = vmatpush2.msra.mxu0 0.0
        %1621 = vmatprep.subr.mxu0 0.0
        %1622 = vmatpush2.msra.mxu0 0.0
        %1623 = vmatprep.subr.mxu0 0.0
        %1624 = vmatpush2.msra.mxu0 0.0
        %1625 = vmatprep.subr.mxu0 0.0
        %1626 = vmatpush2.msra.mxu0 0.0
        %1627 = vmatprep.subr.mxu0 0.0
        %1628 = vmatpush2.msra.mxu0 0.0
        %1629 = vmatprep.subr.mxu0 0.0
        %1630 = vmatpush2.msra.mxu0 0.0
        %1631 = vmatprep.subr.mxu0 0.0
        %1632 = vmatpush2.msra.mxu0 0.0
        %1633 = vmatprep.subr.mxu0 0.0
        %1634 = vmatpush2.msra.mxu0 0.0
        %1635 = vmatprep.subr.mxu0 0.0
        %1636 = vmatpush2.msra.mxu0 0.0
        %1637 = vmatprep.subr.mxu0 0.0
        %1638 = vmatpush2.msra.mxu0 0.0
        %1639 = vmatprep.subr.mxu0 0.0
        %1640 = vmatpush2.msra.mxu0 0.0
        %1641 = vmatprep.subr.mxu0 0.0
        %1642 = vmatpush2.msra.mxu0 0.0
        %1643 = vmatprep.subr.mxu0 0.0
        %1644 = vmatpush2.msra.mxu0 0.0
        %1645 = vmatprep.subr.mxu0 0.0
        %1646 = vmatpush2.msra.mxu0 0.0
        %1647 = vmatprep.subr.mxu0 0.0
        %1648 = vmatpush2.msra.mxu0 0.0
        %1649 = vmatprep.mubr.f32.mxu0 0.0
        %1650 = vmatmul.mubr.f32.gmra.mxu0 %v1583
        %v1651 = vpop.f32.mrf.mxu0
        %v1652 = vadd.f32 0.0, %v1651
        %v1653 = vpop.f32.mrf.mxu0
        %1654 = vdwg.mxu0
        %1655 = vrot.lane.b32.xlu0 %v463, 80
        %v1656 = vpop.permute.xlu0 %1655
        %v1659 = vsel %vm470, %v1199, 0
        %1661 = vmatprep.subr.mxu0 0.0
        %1662 = vmatpush1.msra.mxu0 0.0
        %1663 = vmatprep.subr.mxu0 0.0
        %1664 = vmatpush1.msra.mxu0 0.0
        %1665 = vmatprep.subr.mxu0 0.0
        %1666 = vmatpush1.msra.mxu0 0.0
        %1667 = vmatprep.subr.mxu0 0.0
        %1668 = vmatpush1.msra.mxu0 0.0
        %1669 = vmatprep.subr.mxu0 0.0
        %1670 = vmatpush1.msra.mxu0 0.0
        %1671 = vmatprep.subr.mxu0 0.0
        %1672 = vmatpush1.msra.mxu0 0.0
        %1673 = vmatprep.subr.mxu0 0.0
        %1674 = vmatpush1.msra.mxu0 0.0
        %1675 = vmatprep.subr.mxu0 0.0
        %1676 = vmatpush1.msra.mxu0 0.0
        %1677 = vmatprep.subr.mxu0 0.0
        %1678 = vmatpush1.msra.mxu0 0.0
        %1679 = vmatprep.subr.mxu0 0.0
        %1680 = vmatpush1.msra.mxu0 0.0
        %1681 = vmatprep.subr.mxu0 0.0
        %1682 = vmatpush1.msra.mxu0 0.0
        %1683 = vmatprep.subr.mxu0 0.0
        %1684 = vmatpush1.msra.mxu0 0.0
        %1685 = vmatprep.subr.mxu0 0.0
        %1686 = vmatpush1.msra.mxu0 0.0
        %1687 = vmatprep.subr.mxu0 0.0
        %1688 = vmatpush1.msra.mxu0 0.0
        %1689 = vmatprep.subr.mxu0 0.0
        %1690 = vmatpush1.msra.mxu0 0.0
        %1691 = vmatprep.subr.mxu0 0.0
        %1692 = vmatpush1.msra.mxu0 %v1656
        %1693 = vmatprep.subr.mxu0 0.0
        %1694 = vmatpush2.msra.mxu0 0.0
        %1695 = vmatprep.subr.mxu0 0.0
        %1696 = vmatpush2.msra.mxu0 0.0
        %1697 = vmatprep.subr.mxu0 0.0
        %1698 = vmatpush2.msra.mxu0 0.0
        %1699 = vmatprep.subr.mxu0 0.0
        %1700 = vmatpush2.msra.mxu0 0.0
        %1701 = vmatprep.subr.mxu0 0.0
        %1702 = vmatpush2.msra.mxu0 0.0
        %1703 = vmatprep.subr.mxu0 0.0
        %1704 = vmatpush2.msra.mxu0 0.0
        %1705 = vmatprep.subr.mxu0 0.0
        %1706 = vmatpush2.msra.mxu0 0.0
        %1707 = vmatprep.subr.mxu0 0.0
        %1708 = vmatpush2.msra.mxu0 0.0
        %1709 = vmatprep.subr.mxu0 0.0
        %1710 = vmatpush2.msra.mxu0 0.0
        %1711 = vmatprep.subr.mxu0 0.0
        %1712 = vmatpush2.msra.mxu0 0.0
        %1713 = vmatprep.subr.mxu0 0.0
        %1714 = vmatpush2.msra.mxu0 0.0
        %1715 = vmatprep.subr.mxu0 0.0
        %1716 = vmatpush2.msra.mxu0 0.0
        %1717 = vmatprep.subr.mxu0 0.0
        %1718 = vmatpush2.msra.mxu0 0.0
        %1719 = vmatprep.subr.mxu0 0.0
        %1720 = vmatpush2.msra.mxu0 0.0
        %1721 = vmatprep.subr.mxu0 0.0
        %1722 = vmatpush2.msra.mxu0 0.0
        %1723 = vmatprep.subr.mxu0 0.0
        %1724 = vmatpush2.msra.mxu0 0.0
        %1725 = vmatprep.mubr.f32.mxu0 0.0
        %1726 = vmatmul.mubr.f32.gmra.mxu0 %v1659
        %v1727 = vpop.f32.mrf.mxu0
        %v1728 = vadd.f32 0.0, %v1727
        %v1729 = vpop.f32.mrf.mxu0
        %1730 = vdwg.mxu0
        %1731 = vrot.lane.b32.xlu0 %v463, 72
        %v1732 = vpop.permute.xlu0 %1731
        %v1735 = vsel %vm470, %v1200, 0
        %1737 = vmatprep.subr.mxu0 0.0
        %1738 = vmatpush1.msra.mxu0 0.0
        %1739 = vmatprep.subr.mxu0 0.0
        %1740 = vmatpush1.msra.mxu0 0.0
        %1741 = vmatprep.subr.mxu0 0.0
        %1742 = vmatpush1.msra.mxu0 0.0
        %1743 = vmatprep.subr.mxu0 0.0
        %1744 = vmatpush1.msra.mxu0 0.0
        %1745 = vmatprep.subr.mxu0 0.0
        %1746 = vmatpush1.msra.mxu0 0.0
        %1747 = vmatprep.subr.mxu0 0.0
        %1748 = vmatpush1.msra.mxu0 0.0
        %1749 = vmatprep.subr.mxu0 0.0
        %1750 = vmatpush1.msra.mxu0 0.0
        %1751 = vmatprep.subr.mxu0 0.0
        %1752 = vmatpush1.msra.mxu0 0.0
        %1753 = vmatprep.subr.mxu0 0.0
        %1754 = vmatpush1.msra.mxu0 0.0
        %1755 = vmatprep.subr.mxu0 0.0
        %1756 = vmatpush1.msra.mxu0 0.0
        %1757 = vmatprep.subr.mxu0 0.0
        %1758 = vmatpush1.msra.mxu0 0.0
        %1759 = vmatprep.subr.mxu0 0.0
        %1760 = vmatpush1.msra.mxu0 0.0
        %1761 = vmatprep.subr.mxu0 0.0
        %1762 = vmatpush1.msra.mxu0 0.0
        %1763 = vmatprep.subr.mxu0 0.0
        %1764 = vmatpush1.msra.mxu0 0.0
        %1765 = vmatprep.subr.mxu0 0.0
        %1766 = vmatpush1.msra.mxu0 0.0
        %1767 = vmatprep.subr.mxu0 0.0
        %1768 = vmatpush1.msra.mxu0 %v1732
        %1769 = vmatprep.subr.mxu0 0.0
        %1770 = vmatpush2.msra.mxu0 0.0
        %1771 = vmatprep.subr.mxu0 0.0
        %1772 = vmatpush2.msra.mxu0 0.0
        %1773 = vmatprep.subr.mxu0 0.0
        %1774 = vmatpush2.msra.mxu0 0.0
        %1775 = vmatprep.subr.mxu0 0.0
        %1776 = vmatpush2.msra.mxu0 0.0
        %1777 = vmatprep.subr.mxu0 0.0
        %1778 = vmatpush2.msra.mxu0 0.0
        %1779 = vmatprep.subr.mxu0 0.0
        %1780 = vmatpush2.msra.mxu0 0.0
        %1781 = vmatprep.subr.mxu0 0.0
        %1782 = vmatpush2.msra.mxu0 0.0
        %1783 = vmatprep.subr.mxu0 0.0
        %1784 = vmatpush2.msra.mxu0 0.0
        %1785 = vmatprep.subr.mxu0 0.0
        %1786 = vmatpush2.msra.mxu0 0.0
        %1787 = vmatprep.subr.mxu0 0.0
        %1788 = vmatpush2.msra.mxu0 0.0
        %1789 = vmatprep.subr.mxu0 0.0
        %1790 = vmatpush2.msra.mxu0 0.0
        %1791 = vmatprep.subr.mxu0 0.0
        %1792 = vmatpush2.msra.mxu0 0.0
        %1793 = vmatprep.subr.mxu0 0.0
        %1794 = vmatpush2.msra.mxu0 0.0
        %1795 = vmatprep.subr.mxu0 0.0
        %1796 = vmatpush2.msra.mxu0 0.0
        %1797 = vmatprep.subr.mxu0 0.0
        %1798 = vmatpush2.msra.mxu0 0.0
        %1799 = vmatprep.subr.mxu0 0.0
        %1800 = vmatpush2.msra.mxu0 0.0
        %1801 = vmatprep.mubr.f32.mxu0 0.0
        %1802 = vmatmul.mubr.f32.gmra.mxu0 %v1735
        %v1803 = vpop.f32.mrf.mxu0
        %v1804 = vadd.f32 0.0, %v1803
        %v1805 = vpop.f32.mrf.mxu0
        %1806 = vdwg.mxu0
        %1808 = vrot.lane.b32.xlu0 %v1348, 8
        %v1809 = vpop.permute.xlu0 %1808
        %1812 = vrot.lane.b32.xlu0 %v1424, 16
        %v1813 = vpop.permute.xlu0 %1812
        %1816 = vrot.lane.b32.xlu0 %v1500, 24
        %v1817 = vpop.permute.xlu0 %1816
        %1820 = vrot.lane.b32.xlu0 %v1576, 32
        %v1821 = vpop.permute.xlu0 %1820
        %1824 = vrot.lane.b32.xlu0 %v1652, 40
        %v1825 = vpop.permute.xlu0 %1824
        %1828 = vrot.lane.b32.xlu0 %v1728, 48
        %v1829 = vpop.permute.xlu0 %1828
        %1832 = vrot.lane.b32.xlu0 %v1804, 56
        %v1833 = vpop.permute.xlu0 %1832
        %v1835 = vsel %vm470, %v1271, %v1809
        %vm1836 = vcmask 130048
        %v1837 = vsel %vm1836, %v1835, %v1813
        %vm1838 = vcmask 195584
        %v1839 = vsel %vm1838, %v1837, %v1817
        %vm1840 = vcmask 261120
        %v1841 = vsel %vm1840, %v1839, %v1821
        %vm1842 = vcmask 326656
        %v1843 = vsel %vm1842, %v1841, %v1825
        %vm1844 = vcmask 392192
        %v1845 = vsel %vm1844, %v1843, %v1829
        %vm1846 = vcmask 457728
        %v1847 = vsel %vm1846, %v1845, %v1833
        %v1848 = vld [vmem:[#allocation2 + $0x8] sm:$0xf]
        %v1849 = vld [vmem:[#allocation2 + $0x64] sm:$0xf]
        %v1850 = vld [vmem:[#allocation2 + $0xc0] sm:$0xf]
        %v1851 = vld [vmem:[#allocation2 + $0x11c] sm:$0xf]
        %v1852 = vld [vmem:[#allocation2 + $0x178] sm:$0xf]
        %v1853 = vld [vmem:[#allocation2 + $0x1d4] sm:$0xf]
        %v1854 = vld [vmem:[#allocation2 + $0x230] sm:$0xf]
        %v1855 = vld [vmem:[#allocation2 + $0x28c] sm:$0xf]
        %v1856 = vpack.c.bf16 %v1847, %v1847
        %v1857 = vld [vmem:[%s5 + $0x2] sm:$0x1]
        %v1859 = vlaneseq
        %v1860 = vshrl.u32 %v1859, 7
        %v1861 = vsub.s32 0, %v1860
        %v1862 = vrot.slane %v1857, %v1861
        %v1872 = vunpack.c.l.b16 %v1848
        %v1873 = vunpack.c.l.b16 %v1849
        %v1874 = vunpack.c.l.b16 %v1850
        %v1875 = vunpack.c.l.b16 %v1851
        %v1876 = vunpack.c.l.b16 %v1852
        %v1877 = vunpack.c.l.b16 %v1853
        %v1878 = vunpack.c.l.b16 %v1854
        %v1879 = vunpack.c.l.b16 %v1855
        %v1880 = vpack.c.b16 %v1873, %v1872
        %v1881 = vpack.c.b16 %v1875, %v1874
        %v1882 = vpack.c.b16 %v1877, %v1876
        %v1883 = vpack.c.b16 %v1879, %v1878
        %v1889 = vsel %vm422, %v1856, 0
        %1891 = vmatprep.subr.bf16.mxu0 0
        %1892 = vmatpush1.bf16.msra.mxu0 0
        %1893 = vmatprep.subr.bf16.mxu0 0
        %1894 = vmatpush1.bf16.msra.mxu0 0
        %1895 = vmatprep.subr.bf16.mxu0 0
        %1896 = vmatpush1.bf16.msra.mxu0 0
        %1897 = vmatprep.subr.bf16.mxu0 0
        %1898 = vmatpush1.bf16.msra.mxu0 0
        %1899 = vmatprep.subr.bf16.mxu0 0
        %1900 = vmatpush1.bf16.msra.mxu0 %v1883
        %1901 = vmatprep.subr.bf16.mxu0 0
        %1902 = vmatpush1.bf16.msra.mxu0 %v1882
        %1903 = vmatprep.subr.bf16.mxu0 0
        %1904 = vmatpush1.bf16.msra.mxu0 %v1881
        %1905 = vmatprep.subr.bf16.mxu0 0
        %1906 = vmatpush1.bf16.msra.mxu0 %v1880
        %1907 = vmatprep.subr.bf16.mxu0 0
        %1908 = vmatpush2.bf16.msra.mxu0 0
        %1909 = vmatprep.subr.bf16.mxu0 0
        %1910 = vmatpush2.bf16.msra.mxu0 0
        %1911 = vmatprep.subr.bf16.mxu0 0
        %1912 = vmatpush2.bf16.msra.mxu0 0
        %1913 = vmatprep.subr.bf16.mxu0 0
        %1914 = vmatpush2.bf16.msra.mxu0 0
        %1915 = vmatprep.subr.bf16.mxu0 0
        %1916 = vmatpush2.bf16.msra.mxu0 0
        %1917 = vmatprep.subr.bf16.mxu0 0
        %1918 = vmatpush2.bf16.msra.mxu0 0
        %1919 = vmatprep.subr.bf16.mxu0 0
        %1920 = vmatpush2.bf16.msra.mxu0 0
        %1921 = vmatprep.subr.bf16.mxu0 0
        %1922 = vmatpush2.bf16.msra.mxu0 0
        %1923 = vmatprep.mubr.bf16.mxu0 0
        %1924 = vmatmul.mubr.bf16.gmra.mxu0 %v1889
        %v1925 = vpop.f32.mrf.mxu0
        %v1926 = vadd.f32 %v1862, %v1925
        %v1927 = vpop.f32.mrf.mxu0
        %v1928 = vpop.f32.mrf.mxu0
        %v1929 = vpop.f32.mrf.mxu0
        %1930 = vdwg.mxu0
        %v1931 = vsel %vm422, %v1926, 0.0
        %1932 = vadd.xlane.f32.xlu0 %v1931
        %v1933 = vpop.xlane.xlu0 %1932
        %v1934 = vrcp.pop 64.0
        %v1935 = vmul.f32 %v1933, %v1934
        %v1936 = vsub.f32 %v1926, %v1935
        %v1937 = vmul.f32 %v1936, %v1936
        %v1938 = vsel %vm422, %v1937, 0.0
        %1939 = vadd.xlane.f32.xlu0 %v1938
        %v1940 = vpop.xlane.xlu0 %1939
        %v1941 = vmul.f32 %v1940, %v1934
        %v1942 = vadd.f32 %v1941, 1e-05
        %v1943 = vrsqrt.pop %v1942
        %v1944 = vmul.f32 %v1936, %v1943
        %v1945 = vld [vmem:[%s5 + $0x3] sm:$0x1]
        %v1947 = vlaneseq
        %v1948 = vshrl.u32 %v1947, 7
        %v1949 = vsub.s32 0, %v1948
        %v1950 = vrot.slane %v1945, %v1949
        %v1952 = vmul.f32 %v1944, %v1950
        %v1953 = vld [vmem:[%s5 + $0x4] sm:$0x1]
        %v1955 = vlaneseq
        %v1956 = vshrl.u32 %v1955, 7
        %v1957 = vsub.s32 0, %v1956
        %v1958 = vrot.slane %v1953, %v1957
        %v1960 = vadd.f32 %v1952, %v1958
        %v1961 = vadd.f32 %v1960, %v355
        %vm1962 = vcmask 57344
        %v1963 = vsel %vm1962, %v358, 0.0
        %1964 = vadd.xlane.f32.xlu0 %v1963
        %v1965 = vpop.xlane.xlu0 %1964
        %v1966 = vmax.f32 %v1965, 1.0
        %v1968 = vsel %vm470, %v358, 0
        %1970 = vmatprep.subr.mxu0 0.0
        %1971 = vmatpush1.msra.mxu0 0.0
        %1972 = vmatprep.subr.mxu0 0.0
        %1973 = vmatpush1.msra.mxu0 0.0
        %1974 = vmatprep.subr.mxu0 0.0
        %1975 = vmatpush1.msra.mxu0 0.0
        %1976 = vmatprep.subr.mxu0 0.0
        %1977 = vmatpush1.msra.mxu0 0.0
        %1978 = vmatprep.subr.mxu0 0.0
        %1979 = vmatpush1.msra.mxu0 0.0
        %1980 = vmatprep.subr.mxu0 0.0
        %1981 = vmatpush1.msra.mxu0 0.0
        %1982 = vmatprep.subr.mxu0 0.0
        %1983 = vmatpush1.msra.mxu0 0.0
        %1984 = vmatprep.subr.mxu0 0.0
        %1985 = vmatpush1.msra.mxu0 0.0
        %1986 = vmatprep.subr.mxu0 0.0
        %1987 = vmatpush1.msra.mxu0 0.0
        %1988 = vmatprep.subr.mxu0 0.0
        %1989 = vmatpush1.msra.mxu0 0.0
        %1990 = vmatprep.subr.mxu0 0.0
        %1991 = vmatpush1.msra.mxu0 0.0
        %1992 = vmatprep.subr.mxu0 0.0
        %1993 = vmatpush1.msra.mxu0 0.0
        %1994 = vmatprep.subr.mxu0 0.0
        %1995 = vmatpush1.msra.mxu0 0.0
        %1996 = vmatprep.subr.mxu0 0.0
        %1997 = vmatpush1.msra.mxu0 0.0
        %1998 = vmatprep.subr.mxu0 0.0
        %1999 = vmatpush1.msra.mxu0 0.0
        %2000 = vmatprep.subr.mxu0 0.0
        %2001 = vmatpush1.msra.mxu0 %v1961
        %2002 = vmatprep.subr.mxu0 0.0
        %2003 = vmatpush2.msra.mxu0 0.0
        %2004 = vmatprep.subr.mxu0 0.0
        %2005 = vmatpush2.msra.mxu0 0.0
        %2006 = vmatprep.subr.mxu0 0.0
        %2007 = vmatpush2.msra.mxu0 0.0
        %2008 = vmatprep.subr.mxu0 0.0
        %2009 = vmatpush2.msra.mxu0 0.0
        %2010 = vmatprep.subr.mxu0 0.0
        %2011 = vmatpush2.msra.mxu0 0.0
        %2012 = vmatprep.subr.mxu0 0.0
        %2013 = vmatpush2.msra.mxu0 0.0
        %2014 = vmatprep.subr.mxu0 0.0
        %2015 = vmatpush2.msra.mxu0 0.0
        %2016 = vmatprep.subr.mxu0 0.0
        %2017 = vmatpush2.msra.mxu0 0.0
        %2018 = vmatprep.subr.mxu0 0.0
        %2019 = vmatpush2.msra.mxu0 0.0
        %2020 = vmatprep.subr.mxu0 0.0
        %2021 = vmatpush2.msra.mxu0 0.0
        %2022 = vmatprep.subr.mxu0 0.0
        %2023 = vmatpush2.msra.mxu0 0.0
        %2024 = vmatprep.subr.mxu0 0.0
        %2025 = vmatpush2.msra.mxu0 0.0
        %2026 = vmatprep.subr.mxu0 0.0
        %2027 = vmatpush2.msra.mxu0 0.0
        %2028 = vmatprep.subr.mxu0 0.0
        %2029 = vmatpush2.msra.mxu0 0.0
        %2030 = vmatprep.subr.mxu0 0.0
        %2031 = vmatpush2.msra.mxu0 0.0
        %2032 = vmatprep.subr.mxu0 0.0
        %2033 = vmatpush2.msra.mxu0 0.0
        %2034 = vmatprep.mubr.f32.mxu0 0.0
        %2035 = vmatmul.mubr.f32.gmra.mxu0 %v1968
        %v2036 = vpop.f32.mrf.mxu0
        %v2037 = vadd.f32 0.0, %v2036
        %v2038 = vpop.f32.mrf.mxu0
        %2039 = vdwg.mxu0
        %v2040 = vrcp.pop %v1966
        %v2041 = vmul.f32 %v2037, %v2040
        %v2042 = vld [vmem:[#allocation2 + $0xc] sm:$0xf]
        %v2043 = vld [vmem:[#allocation2 + $0x68] sm:$0xf]
        %v2044 = vld [vmem:[#allocation2 + $0xc4] sm:$0xf]
        %v2045 = vld [vmem:[#allocation2 + $0x120] sm:$0xf]
        %v2046 = vld [vmem:[#allocation2 + $0x17c] sm:$0xf]
        %v2047 = vld [vmem:[#allocation2 + $0x1d8] sm:$0xf]
        %v2048 = vld [vmem:[#allocation2 + $0x234] sm:$0xf]
        %v2049 = vld [vmem:[#allocation2 + $0x290] sm:$0xf]
        %v2050 = vpack.c.bf16 %v2041, %v2041
        %v2051 = vld [vmem:[%s5 + $0x5] sm:$0x1]
        %v2060 = vunpack.c.l.b16 %v2042
        %v2061 = vunpack.c.l.b16 %v2043
        %v2062 = vunpack.c.l.b16 %v2044
        %v2063 = vunpack.c.l.b16 %v2045
        %v2064 = vunpack.c.l.b16 %v2046
        %v2065 = vunpack.c.l.b16 %v2047
        %v2066 = vunpack.c.l.b16 %v2048
        %v2067 = vunpack.c.l.b16 %v2049
        %v2068 = vpack.c.b16 %v2061, %v2060
        %v2069 = vpack.c.b16 %v2063, %v2062
        %v2070 = vpack.c.b16 %v2065, %v2064
        %v2071 = vpack.c.b16 %v2067, %v2066
        %v2077 = vsel %vm422, %v2050, 0
        %2079 = vmatprep.subr.bf16.mxu0 0
        %2080 = vmatpush1.bf16.msra.mxu0 0
        %2081 = vmatprep.subr.bf16.mxu0 0
        %2082 = vmatpush1.bf16.msra.mxu0 0
        %2083 = vmatprep.subr.bf16.mxu0 0
        %2084 = vmatpush1.bf16.msra.mxu0 0
        %2085 = vmatprep.subr.bf16.mxu0 0
        %2086 = vmatpush1.bf16.msra.mxu0 0
        %2087 = vmatprep.subr.bf16.mxu0 0
        %2088 = vmatpush1.bf16.msra.mxu0 %v2071
        %2089 = vmatprep.subr.bf16.mxu0 0
        %2090 = vmatpush1.bf16.msra.mxu0 %v2070
        %2091 = vmatprep.subr.bf16.mxu0 0
        %2092 = vmatpush1.bf16.msra.mxu0 %v2069
        %2093 = vmatprep.subr.bf16.mxu0 0
        %2094 = vmatpush1.bf16.msra.mxu0 %v2068
        %2095 = vmatprep.subr.bf16.mxu0 0
        %2096 = vmatpush2.bf16.msra.mxu0 0
        %2097 = vmatprep.subr.bf16.mxu0 0
        %2098 = vmatpush2.bf16.msra.mxu0 0
        %2099 = vmatprep.subr.bf16.mxu0 0
        %2100 = vmatpush2.bf16.msra.mxu0 0
        %2101 = vmatprep.subr.bf16.mxu0 0
        %2102 = vmatpush2.bf16.msra.mxu0 0
        %2103 = vmatprep.subr.bf16.mxu0 0
        %2104 = vmatpush2.bf16.msra.mxu0 0
        %2105 = vmatprep.subr.bf16.mxu0 0
        %2106 = vmatpush2.bf16.msra.mxu0 0
        %2107 = vmatprep.subr.bf16.mxu0 0
        %2108 = vmatpush2.bf16.msra.mxu0 0
        %2109 = vmatprep.subr.bf16.mxu0 0
        %2110 = vmatpush2.bf16.msra.mxu0 0
        %2111 = vmatprep.mubr.bf16.mxu0 0
        %2112 = vmatmul.mubr.bf16.gmra.mxu0 %v2077
        %v2113 = vpop.f32.mrf.mxu0
        %v2114 = vadd.f32 %v2051, %v2113
        %v2115 = vpop.f32.mrf.mxu0
        %v2116 = vpop.f32.mrf.mxu0
        %v2117 = vpop.f32.mrf.mxu0
        %2118 = vdwg.mxu0
        %v2119 = vlaneseq
        %v2120 = vshrl.u32 %v2119, 7
        %v2121 = vlaneseq
        %v2122 = vand.u32 %v2121, 127
        %vm2123 = vcmp.gt.s32.totalorder %v2122, %v2120
        %v2124 = vsel %vm2123, -1e+30, 0.0
        %vm2125 = vcmp.eq.s32.totalorder %v2122, %v2120
        %v2126 = vsel %vm2125, 0.0, -1e+30
        %v2127 = vld [vmem:[#allocation2 + $0x10] sm:$0xff]
        %v2128 = vld [vmem:[#allocation2 + $0x6c] sm:$0xff]
        %v2129 = vld [vmem:[#allocation2 + $0xc8] sm:$0xff]
        %v2130 = vld [vmem:[#allocation2 + $0x124] sm:$0xff]
        %v2131 = vld [vmem:[#allocation2 + $0x180] sm:$0xff]
        %v2132 = vld [vmem:[#allocation2 + $0x1dc] sm:$0xff]
        %v2133 = vld [vmem:[#allocation2 + $0x238] sm:$0xff]
        %v2134 = vld [vmem:[#allocation2 + $0x294] sm:$0xff]
        %v2135 = vpack.c.bf16 %v356, %v356
        %v2136 = vld [vmem:[%s5 + $0x6] sm:$0x3]
        %v2138 = vlaneseq
        %v2139 = vshrl.u32 %v2138, 7
        %v2140 = vsub.s32 0, %v2139
        %v2141 = vrot.slane %v2136, %v2140
        %v2142 = vlaneseq
        %v2143 = vshrl.u32 %v2142, 7
        %v2144 = vsub.s32 1, %v2143
        %v2145 = vrot.slane %v2136, %v2144
        %v2156 = vunpack.c.l.b16 %v2127
        %v2157 = vunpack.c.h.b16 %v2127
        %v2158 = vunpack.c.l.b16 %v2128
        %v2159 = vunpack.c.h.b16 %v2128
        %v2160 = vunpack.c.l.b16 %v2129
        %v2161 = vunpack.c.h.b16 %v2129
        %v2162 = vunpack.c.l.b16 %v2130
        %v2163 = vunpack.c.h.b16 %v2130
        %v2164 = vunpack.c.l.b16 %v2131
        %v2165 = vunpack.c.h.b16 %v2131
        %v2166 = vunpack.c.l.b16 %v2132
        %v2167 = vunpack.c.h.b16 %v2132
        %v2168 = vunpack.c.l.b16 %v2133
        %v2169 = vunpack.c.h.b16 %v2133
        %v2170 = vunpack.c.l.b16 %v2134
        %v2171 = vunpack.c.h.b16 %v2134
        %v2172 = vpack.c.b16 %v2158, %v2156
        %v2173 = vpack.c.b16 %v2159, %v2157
        %v2174 = vpack.c.b16 %v2162, %v2160
        %v2175 = vpack.c.b16 %v2163, %v2161
        %v2176 = vpack.c.b16 %v2166, %v2164
        %v2177 = vpack.c.b16 %v2167, %v2165
        %v2178 = vpack.c.b16 %v2170, %v2168
        %v2179 = vpack.c.b16 %v2171, %v2169
        %v2189 = vsel %vm422, %v2135, 0
        %2191 = vmatprep.subr.bf16.mxu0 0
        %2192 = vmatpush1.bf16.msra.mxu0 0
        %2193 = vmatprep.subr.bf16.mxu0 0
        %2194 = vmatpush1.bf16.msra.mxu0 0
        %2195 = vmatprep.subr.bf16.mxu0 0
        %2196 = vmatpush1.bf16.msra.mxu0 0
        %2197 = vmatprep.subr.bf16.mxu0 0
        %2198 = vmatpush1.bf16.msra.mxu0 0
        %2199 = vmatprep.subr.bf16.mxu0 %v2179
        %2200 = vmatpush1.bf16.msra.mxu0 %v2178
        %2201 = vmatprep.subr.bf16.mxu0 %v2177
        %2202 = vmatpush1.bf16.msra.mxu0 %v2176
        %2203 = vmatprep.subr.bf16.mxu0 %v2175
        %2204 = vmatpush1.bf16.msra.mxu0 %v2174
        %2205 = vmatprep.subr.bf16.mxu0 %v2173
        %2206 = vmatpush1.bf16.msra.mxu0 %v2172
        %2207 = vmatprep.subr.bf16.mxu0 0
        %2208 = vmatpush2.bf16.msra.mxu0 0
        %2209 = vmatprep.subr.bf16.mxu0 0
        %2210 = vmatpush2.bf16.msra.mxu0 0
        %2211 = vmatprep.subr.bf16.mxu0 0
        %2212 = vmatpush2.bf16.msra.mxu0 0
        %2213 = vmatprep.subr.bf16.mxu0 0
        %2214 = vmatpush2.bf16.msra.mxu0 0
        %2215 = vmatprep.subr.bf16.mxu0 0
        %2216 = vmatpush2.bf16.msra.mxu0 0
        %2217 = vmatprep.subr.bf16.mxu0 0
        %2218 = vmatpush2.bf16.msra.mxu0 0
        %2219 = vmatprep.subr.bf16.mxu0 0
        %2220 = vmatpush2.bf16.msra.mxu0 0
        %2221 = vmatprep.subr.bf16.mxu0 0
        %2222 = vmatpush2.bf16.msra.mxu0 0
        %2223 = vmatprep.mubr.bf16.mxu0 0
        %2224 = vmatmul.mubr.bf16.gmra.mxu0 %v2189
        %v2225 = vpop.f32.mrf.mxu0
        %v2226 = vadd.f32 %v2141, %v2225
        %v2227 = vpop.f32.mrf.mxu0
        %v2228 = vadd.f32 %v2145, %v2227
        %v2229 = vpop.f32.mrf.mxu0
        %v2230 = vpop.f32.mrf.mxu0
        %2231 = vdwg.mxu0
        %2233 = vrot.lane.b32.xlu0 %v2226, 64
        %v2234 = vpop.permute.xlu0 %2233
        %v2235 = vsel %vm1840, %v2226, 0
        %v2237 = vsel %vm1840, %v2234, 0
        %2239 = vmatprep.subr.mxu0 0.0
        %2240 = vmatpush1.xpose.msra.mxu0 0.0
        %2241 = vmatprep.subr.mxu0 0.0
        %2242 = vmatpush1.xpose.msra.mxu0 0.0
        %2243 = vmatprep.subr.mxu0 0.0
        %2244 = vmatpush1.xpose.msra.mxu0 0.0
        %2245 = vmatprep.subr.mxu0 0.0
        %2246 = vmatpush1.xpose.msra.mxu0 0.0
        %2247 = vmatprep.subr.mxu0 0.0
        %2248 = vmatpush1.xpose.msra.mxu0 0.0
        %2249 = vmatprep.subr.mxu0 0.0
        %2250 = vmatpush1.xpose.msra.mxu0 0.0
        %2251 = vmatprep.subr.mxu0 0.0
        %2252 = vmatpush1.xpose.msra.mxu0 0.0
        %2253 = vmatprep.subr.mxu0 0.0
        %2254 = vmatpush1.xpose.msra.mxu0 0.0
        %2255 = vmatprep.subr.mxu0 0.0
        %2256 = vmatpush1.xpose.msra.mxu0 0.0
        %2257 = vmatprep.subr.mxu0 0.0
        %2258 = vmatpush1.xpose.msra.mxu0 0.0
        %2259 = vmatprep.subr.mxu0 0.0
        %2260 = vmatpush1.xpose.msra.mxu0 0.0
        %2261 = vmatprep.subr.mxu0 0.0
        %2262 = vmatpush1.xpose.msra.mxu0 0.0
        %2263 = vmatprep.subr.mxu0 0.0
        %2264 = vmatpush1.xpose.msra.mxu0 0.0
        %2265 = vmatprep.subr.mxu0 0.0
        %2266 = vmatpush1.xpose.msra.mxu0 0.0
        %2267 = vmatprep.subr.mxu0 0.0
        %2268 = vmatpush1.xpose.msra.mxu0 0.0
        %2269 = vmatprep.subr.mxu0 0.0
        %2270 = vmatpush1.xpose.msra.mxu0 %v2237
        %2271 = vmatprep.subr.mxu0 0.0
        %2272 = vmatpush2.xpose.msra.mxu0 0.0
        %2273 = vmatprep.subr.mxu0 0.0
        %2274 = vmatpush2.xpose.msra.mxu0 0.0
        %2275 = vmatprep.subr.mxu0 0.0
        %2276 = vmatpush2.xpose.msra.mxu0 0.0
        %2277 = vmatprep.subr.mxu0 0.0
        %2278 = vmatpush2.xpose.msra.mxu0 0.0
        %2279 = vmatprep.subr.mxu0 0.0
        %2280 = vmatpush2.xpose.msra.mxu0 0.0
        %2281 = vmatprep.subr.mxu0 0.0
        %2282 = vmatpush2.xpose.msra.mxu0 0.0
        %2283 = vmatprep.subr.mxu0 0.0
        %2284 = vmatpush2.xpose.msra.mxu0 0.0
        %2285 = vmatprep.subr.mxu0 0.0
        %2286 = vmatpush2.xpose.msra.mxu0 0.0
        %2287 = vmatprep.subr.mxu0 0.0
        %2288 = vmatpush2.xpose.msra.mxu0 0.0
        %2289 = vmatprep.subr.mxu0 0.0
        %2290 = vmatpush2.xpose.msra.mxu0 0.0
        %2291 = vmatprep.subr.mxu0 0.0
        %2292 = vmatpush2.xpose.msra.mxu0 0.0
        %2293 = vmatprep.subr.mxu0 0.0
        %2294 = vmatpush2.xpose.msra.mxu0 0.0
        %2295 = vmatprep.subr.mxu0 0.0
        %2296 = vmatpush2.xpose.msra.mxu0 0.0
        %2297 = vmatprep.subr.mxu0 0.0
        %2298 = vmatpush2.xpose.msra.mxu0 0.0
        %2299 = vmatprep.subr.mxu0 0.0
        %2300 = vmatpush2.xpose.msra.mxu0 0.0
        %2301 = vmatprep.subr.mxu0 0.0
        %2302 = vmatpush2.xpose.msra.mxu0 0.0
        %2303 = vmatprep.mubr.f32.mxu0 0.0
        %2304 = vmatmul.mubr.f32.gmra.mxu0 %v2235
        %v2305 = vpop.f32.mrf.mxu0
        %v2306 = vadd.f32 0.0, %v2305
        %v2307 = vpop.f32.mrf.mxu0
        %2308 = vdwg.mxu0
        %v2309 = vmul.f32 %v2306, 0.17677669
        %v2310 = vadd.f32 %v2309, %v2124
        %2311 = vrot.lane.b32.xlu0 %v2226, 96
        %v2312 = vpop.permute.xlu0 %2311
        %2313 = vrot.lane.b32.xlu0 %v2226, 32
        %v2314 = vpop.permute.xlu0 %2313
        %v2315 = vsel %vm1840, %v2312, 0
        %v2317 = vsel %vm1840, %v2314, 0
        %2319 = vmatprep.subr.mxu0 0.0
        %2320 = vmatpush1.xpose.msra.mxu0 0.0
        %2321 = vmatprep.subr.mxu0 0.0
        %2322 = vmatpush1.xpose.msra.mxu0 0.0
        %2323 = vmatprep.subr.mxu0 0.0
        %2324 = vmatpush1.xpose.msra.mxu0 0.0
        %2325 = vmatprep.subr.mxu0 0.0
        %2326 = vmatpush1.xpose.msra.mxu0 0.0
        %2327 = vmatprep.subr.mxu0 0.0
        %2328 = vmatpush1.xpose.msra.mxu0 0.0
        %2329 = vmatprep.subr.mxu0 0.0
        %2330 = vmatpush1.xpose.msra.mxu0 0.0
        %2331 = vmatprep.subr.mxu0 0.0
        %2332 = vmatpush1.xpose.msra.mxu0 0.0
        %2333 = vmatprep.subr.mxu0 0.0
        %2334 = vmatpush1.xpose.msra.mxu0 0.0
        %2335 = vmatprep.subr.mxu0 0.0
        %2336 = vmatpush1.xpose.msra.mxu0 0.0
        %2337 = vmatprep.subr.mxu0 0.0
        %2338 = vmatpush1.xpose.msra.mxu0 0.0
        %2339 = vmatprep.subr.mxu0 0.0
        %2340 = vmatpush1.xpose.msra.mxu0 0.0
        %2341 = vmatprep.subr.mxu0 0.0
        %2342 = vmatpush1.xpose.msra.mxu0 0.0
        %2343 = vmatprep.subr.mxu0 0.0
        %2344 = vmatpush1.xpose.msra.mxu0 0.0
        %2345 = vmatprep.subr.mxu0 0.0
        %2346 = vmatpush1.xpose.msra.mxu0 0.0
        %2347 = vmatprep.subr.mxu0 0.0
        %2348 = vmatpush1.xpose.msra.mxu0 0.0
        %2349 = vmatprep.subr.mxu0 0.0
        %2350 = vmatpush1.xpose.msra.mxu0 %v2317
        %2351 = vmatprep.subr.mxu0 0.0
        %2352 = vmatpush2.xpose.msra.mxu0 0.0
        %2353 = vmatprep.subr.mxu0 0.0
        %2354 = vmatpush2.xpose.msra.mxu0 0.0
        %2355 = vmatprep.subr.mxu0 0.0
        %2356 = vmatpush2.xpose.msra.mxu0 0.0
        %2357 = vmatprep.subr.mxu0 0.0
        %2358 = vmatpush2.xpose.msra.mxu0 0.0
        %2359 = vmatprep.subr.mxu0 0.0
        %2360 = vmatpush2.xpose.msra.mxu0 0.0
        %2361 = vmatprep.subr.mxu0 0.0
        %2362 = vmatpush2.xpose.msra.mxu0 0.0
        %2363 = vmatprep.subr.mxu0 0.0
        %2364 = vmatpush2.xpose.msra.mxu0 0.0
        %2365 = vmatprep.subr.mxu0 0.0
        %2366 = vmatpush2.xpose.msra.mxu0 0.0
        %2367 = vmatprep.subr.mxu0 0.0
        %2368 = vmatpush2.xpose.msra.mxu0 0.0
        %2369 = vmatprep.subr.mxu0 0.0
        %2370 = vmatpush2.xpose.msra.mxu0 0.0
        %2371 = vmatprep.subr.mxu0 0.0
        %2372 = vmatpush2.xpose.msra.mxu0 0.0
        %2373 = vmatprep.subr.mxu0 0.0
        %2374 = vmatpush2.xpose.msra.mxu0 0.0
        %2375 = vmatprep.subr.mxu0 0.0
        %2376 = vmatpush2.xpose.msra.mxu0 0.0
        %2377 = vmatprep.subr.mxu0 0.0
        %2378 = vmatpush2.xpose.msra.mxu0 0.0
        %2379 = vmatprep.subr.mxu0 0.0
        %2380 = vmatpush2.xpose.msra.mxu0 0.0
        %2381 = vmatprep.subr.mxu0 0.0
        %2382 = vmatpush2.xpose.msra.mxu0 0.0
        %2383 = vmatprep.mubr.f32.mxu0 0.0
        %2384 = vmatmul.mubr.f32.gmra.mxu0 %v2315
        %v2385 = vpop.f32.mrf.mxu0
        %v2386 = vadd.f32 0.0, %v2385
        %v2387 = vpop.f32.mrf.mxu0
        %2388 = vdwg.mxu0
        %v2389 = vmul.f32 %v2386, 0.17677669
        %v2390 = vadd.f32 %v2389, %v2124
        %v2391 = vsel %vm470, %v2310, -inf
        %2392 = vmax.xlane.f32.xlu0 %v2391
        %v2393 = vpop.xlane.xlu0 %2392
        %v2394 = vsel %vm470, %v2390, -inf
        %2395 = vmax.xlane.f32.xlu0 %v2394
        %v2396 = vpop.xlane.xlu0 %2395
        %v2397 = vsub.f32 %v2310, %v2393
        %v2398 = vsub.f32 %v2390, %v2396
        %v2399 = vmul.f32 %v2397, 1.442695
        %v2400 = vpow.pop %v2399
        %v2401 = vmul.f32 %v2398, 1.442695
        %v2402 = vpow.pop %v2401
        %v2403 = vsel %vm470, %v2400, 0.0
        %2404 = vadd.xlane.f32.xlu0 %v2403
        %v2405 = vpop.xlane.xlu0 %2404
        %v2406 = vsel %vm470, %v2402, 0.0
        %2407 = vadd.xlane.f32.xlu0 %v2406
        %v2408 = vpop.xlane.xlu0 %2407
        %v2409 = vrcp.pop %v2405
        %v2410 = vrcp.pop %v2408
        %v2411 = vmul.f32 %v2400, %v2409
        %v2412 = vmul.f32 %v2402, %v2410
        %v2414 = vsel %vm470, %v2411, 0
        %2416 = vmatprep.subr.mxu0 0.0
        %2417 = vmatpush1.msra.mxu0 0.0
        %2418 = vmatprep.subr.mxu0 0.0
        %2419 = vmatpush1.msra.mxu0 0.0
        %2420 = vmatprep.subr.mxu0 0.0
        %2421 = vmatpush1.msra.mxu0 0.0
        %2422 = vmatprep.subr.mxu0 0.0
        %2423 = vmatpush1.msra.mxu0 0.0
        %2424 = vmatprep.subr.mxu0 0.0
        %2425 = vmatpush1.msra.mxu0 0.0
        %2426 = vmatprep.subr.mxu0 0.0
        %2427 = vmatpush1.msra.mxu0 0.0
        %2428 = vmatprep.subr.mxu0 0.0
        %2429 = vmatpush1.msra.mxu0 0.0
        %2430 = vmatprep.subr.mxu0 0.0
        %2431 = vmatpush1.msra.mxu0 0.0
        %2432 = vmatprep.subr.mxu0 0.0
        %2433 = vmatpush1.msra.mxu0 0.0
        %2434 = vmatprep.subr.mxu0 0.0
        %2435 = vmatpush1.msra.mxu0 0.0
        %2436 = vmatprep.subr.mxu0 0.0
        %2437 = vmatpush1.msra.mxu0 0.0
        %2438 = vmatprep.subr.mxu0 0.0
        %2439 = vmatpush1.msra.mxu0 0.0
        %2440 = vmatprep.subr.mxu0 0.0
        %2441 = vmatpush1.msra.mxu0 0.0
        %2442 = vmatprep.subr.mxu0 0.0
        %2443 = vmatpush1.msra.mxu0 0.0
        %2444 = vmatprep.subr.mxu0 0.0
        %2445 = vmatpush1.msra.mxu0 0.0
        %2446 = vmatprep.subr.mxu0 0.0
        %2447 = vmatpush1.msra.mxu0 %v2228
        %2448 = vmatprep.subr.mxu0 0.0
        %2449 = vmatpush2.msra.mxu0 0.0
        %2450 = vmatprep.subr.mxu0 0.0
        %2451 = vmatpush2.msra.mxu0 0.0
        %2452 = vmatprep.subr.mxu0 0.0
        %2453 = vmatpush2.msra.mxu0 0.0
        %2454 = vmatprep.subr.mxu0 0.0
        %2455 = vmatpush2.msra.mxu0 0.0
        %2456 = vmatprep.subr.mxu0 0.0
        %2457 = vmatpush2.msra.mxu0 0.0
        %2458 = vmatprep.subr.mxu0 0.0
        %2459 = vmatpush2.msra.mxu0 0.0
        %2460 = vmatprep.subr.mxu0 0.0
        %2461 = vmatpush2.msra.mxu0 0.0
        %2462 = vmatprep.subr.mxu0 0.0
        %2463 = vmatpush2.msra.mxu0 0.0
        %2464 = vmatprep.subr.mxu0 0.0
        %2465 = vmatpush2.msra.mxu0 0.0
        %2466 = vmatprep.subr.mxu0 0.0
        %2467 = vmatpush2.msra.mxu0 0.0
        %2468 = vmatprep.subr.mxu0 0.0
        %2469 = vmatpush2.msra.mxu0 0.0
        %2470 = vmatprep.subr.mxu0 0.0
        %2471 = vmatpush2.msra.mxu0 0.0
        %2472 = vmatprep.subr.mxu0 0.0
        %2473 = vmatpush2.msra.mxu0 0.0
        %2474 = vmatprep.subr.mxu0 0.0
        %2475 = vmatpush2.msra.mxu0 0.0
        %2476 = vmatprep.subr.mxu0 0.0
        %2477 = vmatpush2.msra.mxu0 0.0
        %2478 = vmatprep.subr.mxu0 0.0
        %2479 = vmatpush2.msra.mxu0 0.0
        %2480 = vmatprep.mubr.f32.mxu0 0.0
        %2481 = vmatmul.mubr.f32.gmra.mxu0 %v2414
        %v2482 = vpop.f32.mrf.mxu0
        %v2483 = vadd.f32 0.0, %v2482
        %v2484 = vpop.f32.mrf.mxu0
        %2485 = vdwg.mxu0
        %2487 = vrot.lane.b32.xlu0 %v2228, 96
        %v2488 = vpop.permute.xlu0 %2487
        %v2491 = vsel %vm470, %v2412, 0
        %2493 = vmatprep.subr.mxu0 0.0
        %2494 = vmatpush1.msra.mxu0 0.0
        %2495 = vmatprep.subr.mxu0 0.0
        %2496 = vmatpush1.msra.mxu0 0.0
        %2497 = vmatprep.subr.mxu0 0.0
        %2498 = vmatpush1.msra.mxu0 0.0
        %2499 = vmatprep.subr.mxu0 0.0
        %2500 = vmatpush1.msra.mxu0 0.0
        %2501 = vmatprep.subr.mxu0 0.0
        %2502 = vmatpush1.msra.mxu0 0.0
        %2503 = vmatprep.subr.mxu0 0.0
        %2504 = vmatpush1.msra.mxu0 0.0
        %2505 = vmatprep.subr.mxu0 0.0
        %2506 = vmatpush1.msra.mxu0 0.0
        %2507 = vmatprep.subr.mxu0 0.0
        %2508 = vmatpush1.msra.mxu0 0.0
        %2509 = vmatprep.subr.mxu0 0.0
        %2510 = vmatpush1.msra.mxu0 0.0
        %2511 = vmatprep.subr.mxu0 0.0
        %2512 = vmatpush1.msra.mxu0 0.0
        %2513 = vmatprep.subr.mxu0 0.0
        %2514 = vmatpush1.msra.mxu0 0.0
        %2515 = vmatprep.subr.mxu0 0.0
        %2516 = vmatpush1.msra.mxu0 0.0
        %2517 = vmatprep.subr.mxu0 0.0
        %2518 = vmatpush1.msra.mxu0 0.0
        %2519 = vmatprep.subr.mxu0 0.0
        %2520 = vmatpush1.msra.mxu0 0.0
        %2521 = vmatprep.subr.mxu0 0.0
        %2522 = vmatpush1.msra.mxu0 0.0
        %2523 = vmatprep.subr.mxu0 0.0
        %2524 = vmatpush1.msra.mxu0 %v2488
        %2525 = vmatprep.subr.mxu0 0.0
        %2526 = vmatpush2.msra.mxu0 0.0
        %2527 = vmatprep.subr.mxu0 0.0
        %2528 = vmatpush2.msra.mxu0 0.0
        %2529 = vmatprep.subr.mxu0 0.0
        %2530 = vmatpush2.msra.mxu0 0.0
        %2531 = vmatprep.subr.mxu0 0.0
        %2532 = vmatpush2.msra.mxu0 0.0
        %2533 = vmatprep.subr.mxu0 0.0
        %2534 = vmatpush2.msra.mxu0 0.0
        %2535 = vmatprep.subr.mxu0 0.0
        %2536 = vmatpush2.msra.mxu0 0.0
        %2537 = vmatprep.subr.mxu0 0.0
        %2538 = vmatpush2.msra.mxu0 0.0
        %2539 = vmatprep.subr.mxu0 0.0
        %2540 = vmatpush2.msra.mxu0 0.0
        %2541 = vmatprep.subr.mxu0 0.0
        %2542 = vmatpush2.msra.mxu0 0.0
        %2543 = vmatprep.subr.mxu0 0.0
        %2544 = vmatpush2.msra.mxu0 0.0
        %2545 = vmatprep.subr.mxu0 0.0
        %2546 = vmatpush2.msra.mxu0 0.0
        %2547 = vmatprep.subr.mxu0 0.0
        %2548 = vmatpush2.msra.mxu0 0.0
        %2549 = vmatprep.subr.mxu0 0.0
        %2550 = vmatpush2.msra.mxu0 0.0
        %2551 = vmatprep.subr.mxu0 0.0
        %2552 = vmatpush2.msra.mxu0 0.0
        %2553 = vmatprep.subr.mxu0 0.0
        %2554 = vmatpush2.msra.mxu0 0.0
        %2555 = vmatprep.subr.mxu0 0.0
        %2556 = vmatpush2.msra.mxu0 0.0
        %2557 = vmatprep.mubr.f32.mxu0 0.0
        %2558 = vmatmul.mubr.f32.gmra.mxu0 %v2491
        %v2559 = vpop.f32.mrf.mxu0
        %v2560 = vadd.f32 0.0, %v2559
        %v2561 = vpop.f32.mrf.mxu0
        %2562 = vdwg.mxu0
        %2564 = vrot.lane.b32.xlu0 %v2560, 32
        %v2565 = vpop.permute.xlu0 %2564
        %v2567 = vsel %vm1840, %v2483, %v2565
        %v2568 = vld [vmem:[#allocation2 + $0x18] sm:$0xf]
        %v2569 = vld [vmem:[#allocation2 + $0x74] sm:$0xf]
        %v2570 = vld [vmem:[#allocation2 + $0xd0] sm:$0xf]
        %v2571 = vld [vmem:[#allocation2 + $0x12c] sm:$0xf]
        %v2572 = vld [vmem:[#allocation2 + $0x188] sm:$0xf]
        %v2573 = vld [vmem:[#allocation2 + $0x1e4] sm:$0xf]
        %v2574 = vld [vmem:[#allocation2 + $0x240] sm:$0xf]
        %v2575 = vld [vmem:[#allocation2 + $0x29c] sm:$0xf]
        %v2576 = vpack.c.bf16 %v2567, %v2567
        %v2577 = vld [vmem:[%s5 + $0x8] sm:$0x1]
        %v2579 = vlaneseq
        %v2580 = vshrl.u32 %v2579, 7
        %v2581 = vsub.s32 0, %v2580
        %v2582 = vrot.slane %v2577, %v2581
        %v2592 = vunpack.c.l.b16 %v2568
        %v2593 = vunpack.c.l.b16 %v2569
        %v2594 = vunpack.c.l.b16 %v2570
        %v2595 = vunpack.c.l.b16 %v2571
        %v2596 = vunpack.c.l.b16 %v2572
        %v2597 = vunpack.c.l.b16 %v2573
        %v2598 = vunpack.c.l.b16 %v2574
        %v2599 = vunpack.c.l.b16 %v2575
        %v2600 = vpack.c.b16 %v2593, %v2592
        %v2601 = vpack.c.b16 %v2595, %v2594
        %v2602 = vpack.c.b16 %v2597, %v2596
        %v2603 = vpack.c.b16 %v2599, %v2598
        %v2609 = vsel %vm422, %v2576, 0
        %2611 = vmatprep.subr.bf16.mxu0 0
        %2612 = vmatpush1.bf16.msra.mxu0 0
        %2613 = vmatprep.subr.bf16.mxu0 0
        %2614 = vmatpush1.bf16.msra.mxu0 0
        %2615 = vmatprep.subr.bf16.mxu0 0
        %2616 = vmatpush1.bf16.msra.mxu0 0
        %2617 = vmatprep.subr.bf16.mxu0 0
        %2618 = vmatpush1.bf16.msra.mxu0 0
        %2619 = vmatprep.subr.bf16.mxu0 0
        %2620 = vmatpush1.bf16.msra.mxu0 %v2603
        %2621 = vmatprep.subr.bf16.mxu0 0
        %2622 = vmatpush1.bf16.msra.mxu0 %v2602
        %2623 = vmatprep.subr.bf16.mxu0 0
        %2624 = vmatpush1.bf16.msra.mxu0 %v2601
        %2625 = vmatprep.subr.bf16.mxu0 0
        %2626 = vmatpush1.bf16.msra.mxu0 %v2600
        %2627 = vmatprep.subr.bf16.mxu0 0
        %2628 = vmatpush2.bf16.msra.mxu0 0
        %2629 = vmatprep.subr.bf16.mxu0 0
        %2630 = vmatpush2.bf16.msra.mxu0 0
        %2631 = vmatprep.subr.bf16.mxu0 0
        %2632 = vmatpush2.bf16.msra.mxu0 0
        %2633 = vmatprep.subr.bf16.mxu0 0
        %2634 = vmatpush2.bf16.msra.mxu0 0
        %2635 = vmatprep.subr.bf16.mxu0 0
        %2636 = vmatpush2.bf16.msra.mxu0 0
        %2637 = vmatprep.subr.bf16.mxu0 0
        %2638 = vmatpush2.bf16.msra.mxu0 0
        %2639 = vmatprep.subr.bf16.mxu0 0
        %2640 = vmatpush2.bf16.msra.mxu0 0
        %2641 = vmatprep.subr.bf16.mxu0 0
        %2642 = vmatpush2.bf16.msra.mxu0 0
        %2643 = vmatprep.mubr.bf16.mxu0 0
        %2644 = vmatmul.mubr.bf16.gmra.mxu0 %v2609
        %v2645 = vpop.f32.mrf.mxu0
        %v2646 = vadd.f32 %v2582, %v2645
        %v2647 = vpop.f32.mrf.mxu0
        %v2648 = vpop.f32.mrf.mxu0
        %v2649 = vpop.f32.mrf.mxu0
        %2650 = vdwg.mxu0
        %v2651 = vadd.f32 %v356, %v2646
        %v2652 = vsel %vm422, %v2651, 0.0
        %2653 = vadd.xlane.f32.xlu0 %v2652
        %v2654 = vpop.xlane.xlu0 %2653
        %v2655 = vmul.f32 %v2654, %v1934
        %v2656 = vsub.f32 %v2651, %v2655
        %v2657 = vmul.f32 %v2656, %v2656
        %v2658 = vsel %vm422, %v2657, 0.0
        %2659 = vadd.xlane.f32.xlu0 %v2658
        %v2660 = vpop.xlane.xlu0 %2659
        %v2661 = vmul.f32 %v2660, %v1934
        %v2662 = vadd.f32 %v2661, 1e-05
        %v2663 = vrsqrt.pop %v2662
        %v2664 = vmul.f32 %v2656, %v2663
        %v2665 = vld [vmem:[%s5 + $0xc] sm:$0x1]
        %v2667 = vlaneseq
        %v2668 = vshrl.u32 %v2667, 7
        %v2669 = vsub.s32 0, %v2668
        %v2670 = vrot.slane %v2665, %v2669
        %v2672 = vmul.f32 %v2664, %v2670
        %v2673 = vld [vmem:[%s5 + $0xd] sm:$0x1]
        %v2675 = vlaneseq
        %v2676 = vshrl.u32 %v2675, 7
        %v2677 = vsub.s32 0, %v2676
        %v2678 = vrot.slane %v2673, %v2677
        %v2680 = vadd.f32 %v2672, %v2678
        %v2681 = vld [vmem:[#allocation2 + $0x1c] sm:$0xf]
        %v2682 = vld [vmem:[#allocation2 + $0x78] sm:$0xf]
        %v2683 = vld [vmem:[#allocation2 + $0xd4] sm:$0xf]
        %v2684 = vld [vmem:[#allocation2 + $0x130] sm:$0xf]
        %v2685 = vld [vmem:[#allocation2 + $0x18c] sm:$0xf]
        %v2686 = vld [vmem:[#allocation2 + $0x1e8] sm:$0xf]
        %v2687 = vld [vmem:[#allocation2 + $0x244] sm:$0xf]
        %v2688 = vld [vmem:[#allocation2 + $0x2a0] sm:$0xf]
        %v2689 = vpack.c.bf16 %v2680, %v2680
        %v2690 = vld [vmem:[%s5 + $0x9] sm:$0x1]
        %v2692 = vlaneseq
        %v2693 = vshrl.u32 %v2692, 7
        %v2694 = vsub.s32 0, %v2693
        %v2695 = vrot.slane %v2690, %v2694
        %v2705 = vunpack.c.l.b16 %v2681
        %v2706 = vunpack.c.l.b16 %v2682
        %v2707 = vunpack.c.l.b16 %v2683
        %v2708 = vunpack.c.l.b16 %v2684
        %v2709 = vunpack.c.l.b16 %v2685
        %v2710 = vunpack.c.l.b16 %v2686
        %v2711 = vunpack.c.l.b16 %v2687
        %v2712 = vunpack.c.l.b16 %v2688
        %v2713 = vpack.c.b16 %v2706, %v2705
        %v2714 = vpack.c.b16 %v2708, %v2707
        %v2715 = vpack.c.b16 %v2710, %v2709
        %v2716 = vpack.c.b16 %v2712, %v2711
        %v2722 = vsel %vm422, %v2689, 0
        %2724 = vmatprep.subr.bf16.mxu0 0
        %2725 = vmatpush1.bf16.msra.mxu0 0
        %2726 = vmatprep.subr.bf16.mxu0 0
        %2727 = vmatpush1.bf16.msra.mxu0 0
        %2728 = vmatprep.subr.bf16.mxu0 0
        %2729 = vmatpush1.bf16.msra.mxu0 0
        %2730 = vmatprep.subr.bf16.mxu0 0
        %2731 = vmatpush1.bf16.msra.mxu0 0
        %2732 = vmatprep.subr.bf16.mxu0 0
        %2733 = vmatpush1.bf16.msra.mxu0 %v2716
        %2734 = vmatprep.subr.bf16.mxu0 0
        %2735 = vmatpush1.bf16.msra.mxu0 %v2715
        %2736 = vmatprep.subr.bf16.mxu0 0
        %2737 = vmatpush1.bf16.msra.mxu0 %v2714
        %2738 = vmatprep.subr.bf16.mxu0 0
        %2739 = vmatpush1.bf16.msra.mxu0 %v2713
        %2740 = vmatprep.subr.bf16.mxu0 0
        %2741 = vmatpush2.bf16.msra.mxu0 0
        %2742 = vmatprep.subr.bf16.mxu0 0
        %2743 = vmatpush2.bf16.msra.mxu0 0
        %2744 = vmatprep.subr.bf16.mxu0 0
        %2745 = vmatpush2.bf16.msra.mxu0 0
        %2746 = vmatprep.subr.bf16.mxu0 0
        %2747 = vmatpush2.bf16.msra.mxu0 0
        %2748 = vmatprep.subr.bf16.mxu0 0
        %2749 = vmatpush2.bf16.msra.mxu0 0
        %2750 = vmatprep.subr.bf16.mxu0 0
        %2751 = vmatpush2.bf16.msra.mxu0 0
        %2752 = vmatprep.subr.bf16.mxu0 0
        %2753 = vmatpush2.bf16.msra.mxu0 0
        %2754 = vmatprep.subr.bf16.mxu0 0
        %2755 = vmatpush2.bf16.msra.mxu0 0
        %2756 = vmatprep.mubr.bf16.mxu0 0
        %2757 = vmatmul.mubr.bf16.gmra.mxu0 %v2722
        %v2758 = vpop.f32.mrf.mxu0
        %v2759 = vadd.f32 %v2695, %v2758
        %v2760 = vpop.f32.mrf.mxu0
        %v2761 = vpop.f32.mrf.mxu0
        %v2762 = vpop.f32.mrf.mxu0
        %2763 = vdwg.mxu0
        %v2764 = vld [vmem:[#allocation2 + $0x20] sm:$0xf]
        %v2765 = vld [vmem:[#allocation2 + $0x7c] sm:$0xf]
        %v2766 = vld [vmem:[#allocation2 + $0xd8] sm:$0xf]
        %v2767 = vld [vmem:[#allocation2 + $0x134] sm:$0xf]
        %v2768 = vld [vmem:[#allocation2 + $0x190] sm:$0xf]
        %v2769 = vld [vmem:[#allocation2 + $0x1ec] sm:$0xf]
        %v2770 = vld [vmem:[#allocation2 + $0x248] sm:$0xf]
        %v2771 = vld [vmem:[#allocation2 + $0x2a4] sm:$0xf]
        %v2772 = vpack.c.bf16 %v357, %v357
        %v2773 = vld [vmem:[%s5 + $0xa] sm:$0x1]
        %v2775 = vlaneseq
        %v2776 = vshrl.u32 %v2775, 7
        %v2777 = vsub.s32 0, %v2776
        %v2778 = vrot.slane %v2773, %v2777
        %v2788 = vunpack.c.l.b16 %v2764
        %v2789 = vunpack.c.l.b16 %v2765
        %v2790 = vunpack.c.l.b16 %v2766
        %v2791 = vunpack.c.l.b16 %v2767
        %v2792 = vunpack.c.l.b16 %v2768
        %v2793 = vunpack.c.l.b16 %v2769
        %v2794 = vunpack.c.l.b16 %v2770
        %v2795 = vunpack.c.l.b16 %v2771
        %v2796 = vpack.c.b16 %v2789, %v2788
        %v2797 = vpack.c.b16 %v2791, %v2790
        %v2798 = vpack.c.b16 %v2793, %v2792
        %v2799 = vpack.c.b16 %v2795, %v2794
        %v2805 = vsel %vm422, %v2772, 0
        %2807 = vmatprep.subr.bf16.mxu0 0
        %2808 = vmatpush1.bf16.msra.mxu0 0
        %2809 = vmatprep.subr.bf16.mxu0 0
        %2810 = vmatpush1.bf16.msra.mxu0 0
        %2811 = vmatprep.subr.bf16.mxu0 0
        %2812 = vmatpush1.bf16.msra.mxu0 0
        %2813 = vmatprep.subr.bf16.mxu0 0
        %2814 = vmatpush1.bf16.msra.mxu0 0
        %2815 = vmatprep.subr.bf16.mxu0 0
        %2816 = vmatpush1.bf16.msra.mxu0 %v2799
        %2817 = vmatprep.subr.bf16.mxu0 0
        %2818 = vmatpush1.bf16.msra.mxu0 %v2798
        %2819 = vmatprep.subr.bf16.mxu0 0
        %2820 = vmatpush1.bf16.msra.mxu0 %v2797
        %2821 = vmatprep.subr.bf16.mxu0 0
        %2822 = vmatpush1.bf16.msra.mxu0 %v2796
        %2823 = vmatprep.subr.bf16.mxu0 0
        %2824 = vmatpush2.bf16.msra.mxu0 0
        %2825 = vmatprep.subr.bf16.mxu0 0
        %2826 = vmatpush2.bf16.msra.mxu0 0
        %2827 = vmatprep.subr.bf16.mxu0 0
        %2828 = vmatpush2.bf16.msra.mxu0 0
        %2829 = vmatprep.subr.bf16.mxu0 0
        %2830 = vmatpush2.bf16.msra.mxu0 0
        %2831 = vmatprep.subr.bf16.mxu0 0
        %2832 = vmatpush2.bf16.msra.mxu0 0
        %2833 = vmatprep.subr.bf16.mxu0 0
        %2834 = vmatpush2.bf16.msra.mxu0 0
        %2835 = vmatprep.subr.bf16.mxu0 0
        %2836 = vmatpush2.bf16.msra.mxu0 0
        %2837 = vmatprep.subr.bf16.mxu0 0
        %2838 = vmatpush2.bf16.msra.mxu0 0
        %2839 = vmatprep.mubr.bf16.mxu0 0
        %2840 = vmatmul.mubr.bf16.gmra.mxu0 %v2805
        %v2841 = vpop.f32.mrf.mxu0
        %v2842 = vadd.f32 %v2778, %v2841
        %v2843 = vpop.f32.mrf.mxu0
        %v2844 = vpop.f32.mrf.mxu0
        %v2845 = vpop.f32.mrf.mxu0
        %2846 = vdwg.mxu0
        %v2848 = vsel %vm1840, %v2759, 0
        %v2851 = vsel %vm1840, %v2842, 0
        %2853 = vmatprep.subr.mxu0 0.0
        %2854 = vmatpush1.xpose.msra.mxu0 0.0
        %2855 = vmatprep.subr.mxu0 0.0
        %2856 = vmatpush1.xpose.msra.mxu0 0.0
        %2857 = vmatprep.subr.mxu0 0.0
        %2858 = vmatpush1.xpose.msra.mxu0 0.0
        %2859 = vmatprep.subr.mxu0 0.0
        %2860 = vmatpush1.xpose.msra.mxu0 0.0
        %2861 = vmatprep.subr.mxu0 0.0
        %2862 = vmatpush1.xpose.msra.mxu0 0.0
        %2863 = vmatprep.subr.mxu0 0.0
        %2864 = vmatpush1.xpose.msra.mxu0 0.0
        %2865 = vmatprep.subr.mxu0 0.0
        %2866 = vmatpush1.xpose.msra.mxu0 0.0
        %2867 = vmatprep.subr.mxu0 0.0
        %2868 = vmatpush1.xpose.msra.mxu0 0.0
        %2869 = vmatprep.subr.mxu0 0.0
        %2870 = vmatpush1.xpose.msra.mxu0 0.0
        %2871 = vmatprep.subr.mxu0 0.0
        %2872 = vmatpush1.xpose.msra.mxu0 0.0
        %2873 = vmatprep.subr.mxu0 0.0
        %2874 = vmatpush1.xpose.msra.mxu0 0.0
        %2875 = vmatprep.subr.mxu0 0.0
        %2876 = vmatpush1.xpose.msra.mxu0 0.0
        %2877 = vmatprep.subr.mxu0 0.0
        %2878 = vmatpush1.xpose.msra.mxu0 0.0
        %2879 = vmatprep.subr.mxu0 0.0
        %2880 = vmatpush1.xpose.msra.mxu0 0.0
        %2881 = vmatprep.subr.mxu0 0.0
        %2882 = vmatpush1.xpose.msra.mxu0 0.0
        %2883 = vmatprep.subr.mxu0 0.0
        %2884 = vmatpush1.xpose.msra.mxu0 %v2851
        %2885 = vmatprep.subr.mxu0 0.0
        %2886 = vmatpush2.xpose.msra.mxu0 0.0
        %2887 = vmatprep.subr.mxu0 0.0
        %2888 = vmatpush2.xpose.msra.mxu0 0.0
        %2889 = vmatprep.subr.mxu0 0.0
        %2890 = vmatpush2.xpose.msra.mxu0 0.0
        %2891 = vmatprep.subr.mxu0 0.0
        %2892 = vmatpush2.xpose.msra.mxu0 0.0
        %2893 = vmatprep.subr.mxu0 0.0
        %2894 = vmatpush2.xpose.msra.mxu0 0.0
        %2895 = vmatprep.subr.mxu0 0.0
        %2896 = vmatpush2.xpose.msra.mxu0 0.0
        %2897 = vmatprep.subr.mxu0 0.0
        %2898 = vmatpush2.xpose.msra.mxu0 0.0
        %2899 = vmatprep.subr.mxu0 0.0
        %2900 = vmatpush2.xpose.msra.mxu0 0.0
        %2901 = vmatprep.subr.mxu0 0.0
        %2902 = vmatpush2.xpose.msra.mxu0 0.0
        %2903 = vmatprep.subr.mxu0 0.0
        %2904 = vmatpush2.xpose.msra.mxu0 0.0
        %2905 = vmatprep.subr.mxu0 0.0
        %2906 = vmatpush2.xpose.msra.mxu0 0.0
        %2907 = vmatprep.subr.mxu0 0.0
        %2908 = vmatpush2.xpose.msra.mxu0 0.0
        %2909 = vmatprep.subr.mxu0 0.0
        %2910 = vmatpush2.xpose.msra.mxu0 0.0
        %2911 = vmatprep.subr.mxu0 0.0
        %2912 = vmatpush2.xpose.msra.mxu0 0.0
        %2913 = vmatprep.subr.mxu0 0.0
        %2914 = vmatpush2.xpose.msra.mxu0 0.0
        %2915 = vmatprep.subr.mxu0 0.0
        %2916 = vmatpush2.xpose.msra.mxu0 0.0
        %2917 = vmatprep.mubr.f32.mxu0 0.0
        %2918 = vmatmul.mubr.f32.gmra.mxu0 %v2848
        %v2919 = vpop.f32.mrf.mxu0
        %v2920 = vadd.f32 0.0, %v2919
        %v2921 = vpop.f32.mrf.mxu0
        %2922 = vdwg.mxu0
        %v2923 = vmul.f32 %v2920, 0.17677669
        %v2924 = vadd.f32 %v2923, %v2126
        %2925 = vrot.lane.b32.xlu0 %v2759, 96
        %v2926 = vpop.permute.xlu0 %2925
        %2927 = vrot.lane.b32.xlu0 %v2842, 96
        %v2928 = vpop.permute.xlu0 %2927
        %v2929 = vsel %vm1840, %v2926, 0
        %v2931 = vsel %vm1840, %v2928, 0
        %2933 = vmatprep.subr.mxu0 0.0
        %2934 = vmatpush1.xpose.msra.mxu0 0.0
        %2935 = vmatprep.subr.mxu0 0.0
        %2936 = vmatpush1.xpose.msra.mxu0 0.0
        %2937 = vmatprep.subr.mxu0 0.0
        %2938 = vmatpush1.xpose.msra.mxu0 0.0
        %2939 = vmatprep.subr.mxu0 0.0
        %2940 = vmatpush1.xpose.msra.mxu0 0.0
        %2941 = vmatprep.subr.mxu0 0.0
        %2942 = vmatpush1.xpose.msra.mxu0 0.0
        %2943 = vmatprep.subr.mxu0 0.0
        %2944 = vmatpush1.xpose.msra.mxu0 0.0
        %2945 = vmatprep.subr.mxu0 0.0
        %2946 = vmatpush1.xpose.msra.mxu0 0.0
        %2947 = vmatprep.subr.mxu0 0.0
        %2948 = vmatpush1.xpose.msra.mxu0 0.0
        %2949 = vmatprep.subr.mxu0 0.0
        %2950 = vmatpush1.xpose.msra.mxu0 0.0
        %2951 = vmatprep.subr.mxu0 0.0
        %2952 = vmatpush1.xpose.msra.mxu0 0.0
        %2953 = vmatprep.subr.mxu0 0.0
        %2954 = vmatpush1.xpose.msra.mxu0 0.0
        %2955 = vmatprep.subr.mxu0 0.0
        %2956 = vmatpush1.xpose.msra.mxu0 0.0
        %2957 = vmatprep.subr.mxu0 0.0
        %2958 = vmatpush1.xpose.msra.mxu0 0.0
        %2959 = vmatprep.subr.mxu0 0.0
        %2960 = vmatpush1.xpose.msra.mxu0 0.0
        %2961 = vmatprep.subr.mxu0 0.0
        %2962 = vmatpush1.xpose.msra.mxu0 0.0
        %2963 = vmatprep.subr.mxu0 0.0
        %2964 = vmatpush1.xpose.msra.mxu0 %v2931
        %2965 = vmatprep.subr.mxu0 0.0
        %2966 = vmatpush2.xpose.msra.mxu0 0.0
        %2967 = vmatprep.subr.mxu0 0.0
        %2968 = vmatpush2.xpose.msra.mxu0 0.0
        %2969 = vmatprep.subr.mxu0 0.0
        %2970 = vmatpush2.xpose.msra.mxu0 0.0
        %2971 = vmatprep.subr.mxu0 0.0
        %2972 = vmatpush2.xpose.msra.mxu0 0.0
        %2973 = vmatprep.subr.mxu0 0.0
        %2974 = vmatpush2.xpose.msra.mxu0 0.0
        %2975 = vmatprep.subr.mxu0 0.0
        %2976 = vmatpush2.xpose.msra.mxu0 0.0
        %2977 = vmatprep.subr.mxu0 0.0
        %2978 = vmatpush2.xpose.msra.mxu0 0.0
        %2979 = vmatprep.subr.mxu0 0.0
        %2980 = vmatpush2.xpose.msra.mxu0 0.0
        %2981 = vmatprep.subr.mxu0 0.0
        %2982 = vmatpush2.xpose.msra.mxu0 0.0
        %2983 = vmatprep.subr.mxu0 0.0
        %2984 = vmatpush2.xpose.msra.mxu0 0.0
        %2985 = vmatprep.subr.mxu0 0.0
        %2986 = vmatpush2.xpose.msra.mxu0 0.0
        %2987 = vmatprep.subr.mxu0 0.0
        %2988 = vmatpush2.xpose.msra.mxu0 0.0
        %2989 = vmatprep.subr.mxu0 0.0
        %2990 = vmatpush2.xpose.msra.mxu0 0.0
        %2991 = vmatprep.subr.mxu0 0.0
        %2992 = vmatpush2.xpose.msra.mxu0 0.0
        %2993 = vmatprep.subr.mxu0 0.0
        %2994 = vmatpush2.xpose.msra.mxu0 0.0
        %2995 = vmatprep.subr.mxu0 0.0
        %2996 = vmatpush2.xpose.msra.mxu0 0.0
        %2997 = vmatprep.mubr.f32.mxu0 0.0
        %2998 = vmatmul.mubr.f32.gmra.mxu0 %v2929
        %v2999 = vpop.f32.mrf.mxu0
        %v3000 = vadd.f32 0.0, %v2999
        %v3001 = vpop.f32.mrf.mxu0
        %3002 = vdwg.mxu0
        %v3003 = vmul.f32 %v3000, 0.17677669
        %v3004 = vadd.f32 %v3003, %v2126
        %v3005 = vsel %vm470, %v2924, -inf
        %3006 = vmax.xlane.f32.xlu0 %v3005
        %v3007 = vpop.xlane.xlu0 %3006
        %v3008 = vsel %vm470, %v3004, -inf
        %3009 = vmax.xlane.f32.xlu0 %v3008
        %v3010 = vpop.xlane.xlu0 %3009
        %v3011 = vsub.f32 %v2924, %v3007
        %v3012 = vsub.f32 %v3004, %v3010
        %v3013 = vmul.f32 %v3011, 1.442695
        %v3014 = vpow.pop %v3013
        %v3015 = vmul.f32 %v3012, 1.442695
        %v3016 = vpow.pop %v3015
        %v3017 = vsel %vm470, %v3014, 0.0
        %3018 = vadd.xlane.f32.xlu0 %v3017
        %v3019 = vpop.xlane.xlu0 %3018
        %v3020 = vsel %vm470, %v3016, 0.0
        %3021 = vadd.xlane.f32.xlu0 %v3020
        %v3022 = vpop.xlane.xlu0 %3021
        %v3023 = vrcp.pop %v3019
        %v3024 = vrcp.pop %v3022
        %v3025 = vmul.f32 %v3014, %v3023
        %v3026 = vmul.f32 %v3016, %v3024
        %3027 = vrot.lane.b32.xlu0 %v2842, 64
        %v3028 = vpop.permute.xlu0 %3027
        %v3031 = vsel %vm470, %v3025, 0
        %3033 = vmatprep.subr.mxu0 0.0
        %3034 = vmatpush1.msra.mxu0 0.0
        %3035 = vmatprep.subr.mxu0 0.0
        %3036 = vmatpush1.msra.mxu0 0.0
        %3037 = vmatprep.subr.mxu0 0.0
        %3038 = vmatpush1.msra.mxu0 0.0
        %3039 = vmatprep.subr.mxu0 0.0
        %3040 = vmatpush1.msra.mxu0 0.0
        %3041 = vmatprep.subr.mxu0 0.0
        %3042 = vmatpush1.msra.mxu0 0.0
        %3043 = vmatprep.subr.mxu0 0.0
        %3044 = vmatpush1.msra.mxu0 0.0
        %3045 = vmatprep.subr.mxu0 0.0
        %3046 = vmatpush1.msra.mxu0 0.0
        %3047 = vmatprep.subr.mxu0 0.0
        %3048 = vmatpush1.msra.mxu0 0.0
        %3049 = vmatprep.subr.mxu0 0.0
        %3050 = vmatpush1.msra.mxu0 0.0
        %3051 = vmatprep.subr.mxu0 0.0
        %3052 = vmatpush1.msra.mxu0 0.0
        %3053 = vmatprep.subr.mxu0 0.0
        %3054 = vmatpush1.msra.mxu0 0.0
        %3055 = vmatprep.subr.mxu0 0.0
        %3056 = vmatpush1.msra.mxu0 0.0
        %3057 = vmatprep.subr.mxu0 0.0
        %3058 = vmatpush1.msra.mxu0 0.0
        %3059 = vmatprep.subr.mxu0 0.0
        %3060 = vmatpush1.msra.mxu0 0.0
        %3061 = vmatprep.subr.mxu0 0.0
        %3062 = vmatpush1.msra.mxu0 0.0
        %3063 = vmatprep.subr.mxu0 0.0
        %3064 = vmatpush1.msra.mxu0 %v3028
        %3065 = vmatprep.subr.mxu0 0.0
        %3066 = vmatpush2.msra.mxu0 0.0
        %3067 = vmatprep.subr.mxu0 0.0
        %3068 = vmatpush2.msra.mxu0 0.0
        %3069 = vmatprep.subr.mxu0 0.0
        %3070 = vmatpush2.msra.mxu0 0.0
        %3071 = vmatprep.subr.mxu0 0.0
        %3072 = vmatpush2.msra.mxu0 0.0
        %3073 = vmatprep.subr.mxu0 0.0
        %3074 = vmatpush2.msra.mxu0 0.0
        %3075 = vmatprep.subr.mxu0 0.0
        %3076 = vmatpush2.msra.mxu0 0.0
        %3077 = vmatprep.subr.mxu0 0.0
        %3078 = vmatpush2.msra.mxu0 0.0
        %3079 = vmatprep.subr.mxu0 0.0
        %3080 = vmatpush2.msra.mxu0 0.0
        %3081 = vmatprep.subr.mxu0 0.0
        %3082 = vmatpush2.msra.mxu0 0.0
        %3083 = vmatprep.subr.mxu0 0.0
        %3084 = vmatpush2.msra.mxu0 0.0
        %3085 = vmatprep.subr.mxu0 0.0
        %3086 = vmatpush2.msra.mxu0 0.0
        %3087 = vmatprep.subr.mxu0 0.0
        %3088 = vmatpush2.msra.mxu0 0.0
        %3089 = vmatprep.subr.mxu0 0.0
        %3090 = vmatpush2.msra.mxu0 0.0
        %3091 = vmatprep.subr.mxu0 0.0
        %3092 = vmatpush2.msra.mxu0 0.0
        %3093 = vmatprep.subr.mxu0 0.0
        %3094 = vmatpush2.msra.mxu0 0.0
        %3095 = vmatprep.subr.mxu0 0.0
        %3096 = vmatpush2.msra.mxu0 0.0
        %3097 = vmatprep.mubr.f32.mxu0 0.0
        %3098 = vmatmul.mubr.f32.gmra.mxu0 %v3031
        %v3099 = vpop.f32.mrf.mxu0
        %v3100 = vadd.f32 0.0, %v3099
        %v3101 = vpop.f32.mrf.mxu0
        %3102 = vdwg.mxu0
        %3103 = vrot.lane.b32.xlu0 %v2842, 32
        %v3104 = vpop.permute.xlu0 %3103
        %v3107 = vsel %vm470, %v3026, 0
        %3109 = vmatprep.subr.mxu0 0.0
        %3110 = vmatpush1.msra.mxu0 0.0
        %3111 = vmatprep.subr.mxu0 0.0
        %3112 = vmatpush1.msra.mxu0 0.0
        %3113 = vmatprep.subr.mxu0 0.0
        %3114 = vmatpush1.msra.mxu0 0.0
        %3115 = vmatprep.subr.mxu0 0.0
        %3116 = vmatpush1.msra.mxu0 0.0
        %3117 = vmatprep.subr.mxu0 0.0
        %3118 = vmatpush1.msra.mxu0 0.0
        %3119 = vmatprep.subr.mxu0 0.0
        %3120 = vmatpush1.msra.mxu0 0.0
        %3121 = vmatprep.subr.mxu0 0.0
        %3122 = vmatpush1.msra.mxu0 0.0
        %3123 = vmatprep.subr.mxu0 0.0
        %3124 = vmatpush1.msra.mxu0 0.0
        %3125 = vmatprep.subr.mxu0 0.0
        %3126 = vmatpush1.msra.mxu0 0.0
        %3127 = vmatprep.subr.mxu0 0.0
        %3128 = vmatpush1.msra.mxu0 0.0
        %3129 = vmatprep.subr.mxu0 0.0
        %3130 = vmatpush1.msra.mxu0 0.0
        %3131 = vmatprep.subr.mxu0 0.0
        %3132 = vmatpush1.msra.mxu0 0.0
        %3133 = vmatprep.subr.mxu0 0.0
        %3134 = vmatpush1.msra.mxu0 0.0
        %3135 = vmatprep.subr.mxu0 0.0
        %3136 = vmatpush1.msra.mxu0 0.0
        %3137 = vmatprep.subr.mxu0 0.0
        %3138 = vmatpush1.msra.mxu0 0.0
        %3139 = vmatprep.subr.mxu0 0.0
        %3140 = vmatpush1.msra.mxu0 %v3104
        %3141 = vmatprep.subr.mxu0 0.0
        %3142 = vmatpush2.msra.mxu0 0.0
        %3143 = vmatprep.subr.mxu0 0.0
        %3144 = vmatpush2.msra.mxu0 0.0
        %3145 = vmatprep.subr.mxu0 0.0
        %3146 = vmatpush2.msra.mxu0 0.0
        %3147 = vmatprep.subr.mxu0 0.0
        %3148 = vmatpush2.msra.mxu0 0.0
        %3149 = vmatprep.subr.mxu0 0.0
        %3150 = vmatpush2.msra.mxu0 0.0
        %3151 = vmatprep.subr.mxu0 0.0
        %3152 = vmatpush2.msra.mxu0 0.0
        %3153 = vmatprep.subr.mxu0 0.0
        %3154 = vmatpush2.msra.mxu0 0.0
        %3155 = vmatprep.subr.mxu0 0.0
        %3156 = vmatpush2.msra.mxu0 0.0
        %3157 = vmatprep.subr.mxu0 0.0
        %3158 = vmatpush2.msra.mxu0 0.0
        %3159 = vmatprep.subr.mxu0 0.0
        %3160 = vmatpush2.msra.mxu0 0.0
        %3161 = vmatprep.subr.mxu0 0.0
        %3162 = vmatpush2.msra.mxu0 0.0
        %3163 = vmatprep.subr.mxu0 0.0
        %3164 = vmatpush2.msra.mxu0 0.0
        %3165 = vmatprep.subr.mxu0 0.0
        %3166 = vmatpush2.msra.mxu0 0.0
        %3167 = vmatprep.subr.mxu0 0.0
        %3168 = vmatpush2.msra.mxu0 0.0
        %3169 = vmatprep.subr.mxu0 0.0
        %3170 = vmatpush2.msra.mxu0 0.0
        %3171 = vmatprep.subr.mxu0 0.0
        %3172 = vmatpush2.msra.mxu0 0.0
        %3173 = vmatprep.mubr.f32.mxu0 0.0
        %3174 = vmatmul.mubr.f32.gmra.mxu0 %v3107
        %v3175 = vpop.f32.mrf.mxu0
        %v3176 = vadd.f32 0.0, %v3175
        %v3177 = vpop.f32.mrf.mxu0
        %3178 = vdwg.mxu0
        %3180 = vrot.lane.b32.xlu0 %v3176, 32
        %v3181 = vpop.permute.xlu0 %3180
        %v3183 = vsel %vm1840, %v3100, %v3181
        %v3184 = vld [vmem:[#allocation2 + $0x24] sm:$0xf]
        %v3185 = vld [vmem:[#allocation2 + $0x80] sm:$0xf]
        %v3186 = vld [vmem:[#allocation2 + $0xdc] sm:$0xf]
        %v3187 = vld [vmem:[#allocation2 + $0x138] sm:$0xf]
        %v3188 = vld [vmem:[#allocation2 + $0x194] sm:$0xf]
        %v3189 = vld [vmem:[#allocation2 + $0x1f0] sm:$0xf]
        %v3190 = vld [vmem:[#allocation2 + $0x24c] sm:$0xf]
        %v3191 = vld [vmem:[#allocation2 + $0x2a8] sm:$0xf]
        %v3192 = vpack.c.bf16 %v3183, %v3183
        %v3193 = vld [vmem:[%s5 + $0xb] sm:$0x1]
        %v3195 = vlaneseq
        %v3196 = vshrl.u32 %v3195, 7
        %v3197 = vsub.s32 0, %v3196
        %v3198 = vrot.slane %v3193, %v3197
        %v3208 = vunpack.c.l.b16 %v3184
        %v3209 = vunpack.c.l.b16 %v3185
        %v3210 = vunpack.c.l.b16 %v3186
        %v3211 = vunpack.c.l.b16 %v3187
        %v3212 = vunpack.c.l.b16 %v3188
        %v3213 = vunpack.c.l.b16 %v3189
        %v3214 = vunpack.c.l.b16 %v3190
        %v3215 = vunpack.c.l.b16 %v3191
        %v3216 = vpack.c.b16 %v3209, %v3208
        %v3217 = vpack.c.b16 %v3211, %v3210
        %v3218 = vpack.c.b16 %v3213, %v3212
        %v3219 = vpack.c.b16 %v3215, %v3214
        %v3225 = vsel %vm422, %v3192, 0
        %3227 = vmatprep.subr.bf16.mxu0 0
        %3228 = vmatpush1.bf16.msra.mxu0 0
        %3229 = vmatprep.subr.bf16.mxu0 0
        %3230 = vmatpush1.bf16.msra.mxu0 0
        %3231 = vmatprep.subr.bf16.mxu0 0
        %3232 = vmatpush1.bf16.msra.mxu0 0
        %3233 = vmatprep.subr.bf16.mxu0 0
        %3234 = vmatpush1.bf16.msra.mxu0 0
        %3235 = vmatprep.subr.bf16.mxu0 0
        %3236 = vmatpush1.bf16.msra.mxu0 %v3219
        %3237 = vmatprep.subr.bf16.mxu0 0
        %3238 = vmatpush1.bf16.msra.mxu0 %v3218
        %3239 = vmatprep.subr.bf16.mxu0 0
        %3240 = vmatpush1.bf16.msra.mxu0 %v3217
        %3241 = vmatprep.subr.bf16.mxu0 0
        %3242 = vmatpush1.bf16.msra.mxu0 %v3216
        %3243 = vmatprep.subr.bf16.mxu0 0
        %3244 = vmatpush2.bf16.msra.mxu0 0
        %3245 = vmatprep.subr.bf16.mxu0 0
        %3246 = vmatpush2.bf16.msra.mxu0 0
        %3247 = vmatprep.subr.bf16.mxu0 0
        %3248 = vmatpush2.bf16.msra.mxu0 0
        %3249 = vmatprep.subr.bf16.mxu0 0
        %3250 = vmatpush2.bf16.msra.mxu0 0
        %3251 = vmatprep.subr.bf16.mxu0 0
        %3252 = vmatpush2.bf16.msra.mxu0 0
        %3253 = vmatprep.subr.bf16.mxu0 0
        %3254 = vmatpush2.bf16.msra.mxu0 0
        %3255 = vmatprep.subr.bf16.mxu0 0
        %3256 = vmatpush2.bf16.msra.mxu0 0
        %3257 = vmatprep.subr.bf16.mxu0 0
        %3258 = vmatpush2.bf16.msra.mxu0 0
        %3259 = vmatprep.mubr.bf16.mxu0 0
        %3260 = vmatmul.mubr.bf16.gmra.mxu0 %v3225
        %v3261 = vpop.f32.mrf.mxu0
        %v3262 = vadd.f32 %v3198, %v3261
        %v3263 = vpop.f32.mrf.mxu0
        %v3264 = vpop.f32.mrf.mxu0
        %v3265 = vpop.f32.mrf.mxu0
        %3266 = vdwg.mxu0
        %v3267 = vadd.f32 %v2680, %v3262
        %v3268 = vsel %vm422, %v3267, 0.0
        %3269 = vadd.xlane.f32.xlu0 %v3268
        %v3270 = vpop.xlane.xlu0 %3269
        %v3271 = vmul.f32 %v3270, %v1934
        %v3272 = vsub.f32 %v3267, %v3271
        %v3273 = vmul.f32 %v3272, %v3272
        %v3274 = vsel %vm422, %v3273, 0.0
        %3275 = vadd.xlane.f32.xlu0 %v3274
        %v3276 = vpop.xlane.xlu0 %3275
        %v3277 = vmul.f32 %v3276, %v1934
        %v3278 = vadd.f32 %v3277, 1e-05
        %v3279 = vrsqrt.pop %v3278
        %v3280 = vmul.f32 %v3272, %v3279
        %v3281 = vld [vmem:[%s5 + $0xe] sm:$0x1]
        %v3283 = vlaneseq
        %v3284 = vshrl.u32 %v3283, 7
        %v3285 = vsub.s32 0, %v3284
        %v3286 = vrot.slane %v3281, %v3285
        %v3288 = vmul.f32 %v3280, %v3286
        %v3289 = vld [vmem:[%s5 + $0xf] sm:$0x1]
        %v3291 = vlaneseq
        %v3292 = vshrl.u32 %v3291, 7
        %v3293 = vsub.s32 0, %v3292
        %v3294 = vrot.slane %v3289, %v3293
        %v3296 = vadd.f32 %v3288, %v3294
        %v3297 = vld [vmem:[#allocation2 + $0x28] sm:$0xff]
        %v3298 = vld [vmem:[#allocation2 + $0x30] sm:$0xf]
        %v3299 = vld [vmem:[#allocation2 + $0x84] sm:$0xff]
        %v3300 = vld [vmem:[#allocation2 + $0x8c] sm:$0xf]
        %v3301 = vld [vmem:[#allocation2 + $0xe0] sm:$0xff]
        %v3302 = vld [vmem:[#allocation2 + $0xe8] sm:$0xf]
        %v3303 = vld [vmem:[#allocation2 + $0x13c] sm:$0xff]
        %v3304 = vld [vmem:[#allocation2 + $0x144] sm:$0xf]
        %v3305 = vld [vmem:[#allocation2 + $0x198] sm:$0xff]
        %v3306 = vld [vmem:[#allocation2 + $0x1a0] sm:$0xf]
        %v3307 = vld [vmem:[#allocation2 + $0x1f4] sm:$0xff]
        %v3308 = vld [vmem:[#allocation2 + $0x1fc] sm:$0xf]
        %v3309 = vld [vmem:[#allocation2 + $0x250] sm:$0xff]
        %v3310 = vld [vmem:[#allocation2 + $0x258] sm:$0xf]
        %v3311 = vld [vmem:[#allocation2 + $0x2ac] sm:$0xff]
        %v3312 = vld [vmem:[#allocation2 + $0x2b4] sm:$0xf]
        %v3313 = vpack.c.bf16 %v3296, %v3296
        %v3314 = vld [vmem:[%s5 + $0x12] sm:$0x7]
        %v3316 = vlaneseq
        %v3317 = vshrl.u32 %v3316, 7
        %v3318 = vsub.s32 0, %v3317
        %v3319 = vrot.slane %v3314, %v3318
        %v3320 = vlaneseq
        %v3321 = vshrl.u32 %v3320, 7
        %v3322 = vsub.s32 1, %v3321
        %v3323 = vrot.slane %v3314, %v3322
        %v3324 = vlaneseq
        %v3325 = vshrl.u32 %v3324, 7
        %v3326 = vsub.s32 2, %v3325
        %v3327 = vrot.slane %v3314, %v3326
        %v3347 = vunpack.c.l.b16 %v3297
        %v3348 = vunpack.c.h.b16 %v3297
        %v3349 = vunpack.c.l.b16 %v3298
        %v3350 = vunpack.c.l.b16 %v3299
        %v3351 = vunpack.c.h.b16 %v3299
        %v3352 = vunpack.c.l.b16 %v3300
        %v3353 = vunpack.c.l.b16 %v3301
        %v3354 = vunpack.c.h.b16 %v3301
        %v3355 = vunpack.c.l.b16 %v3302
        %v3356 = vunpack.c.l.b16 %v3303
        %v3357 = vunpack.c.h.b16 %v3303
        %v3358 = vunpack.c.l.b16 %v3304
        %v3359 = vunpack.c.l.b16 %v3305
        %v3360 = vunpack.c.h.b16 %v3305
        %v3361 = vunpack.c.l.b16 %v3306
        %v3362 = vunpack.c.l.b16 %v3307
        %v3363 = vunpack.c.h.b16 %v3307
        %v3364 = vunpack.c.l.b16 %v3308
        %v3365 = vunpack.c.l.b16 %v3309
        %v3366 = vunpack.c.h.b16 %v3309
        %v3367 = vunpack.c.l.b16 %v3310
        %v3368 = vunpack.c.l.b16 %v3311
        %v3369 = vunpack.c.h.b16 %v3311
        %v3370 = vunpack.c.l.b16 %v3312
        %v3371 = vpack.c.b16 %v3350, %v3347
        %v3372 = vpack.c.b16 %v3351, %v3348
        %v3373 = vpack.c.b16 %v3352, %v3349
        %v3374 = vpack.c.b16 %v3356, %v3353
        %v3375 = vpack.c.b16 %v3357, %v3354
        %v3376 = vpack.c.b16 %v3358, %v3355
        %v3377 = vpack.c.b16 %v3362, %v3359
        %v3378 = vpack.c.b16 %v3363, %v3360
        %v3379 = vpack.c.b16 %v3364, %v3361
        %v3380 = vpack.c.b16 %v3368, %v3365
        %v3381 = vpack.c.b16 %v3369, %v3366
        %v3382 = vpack.c.b16 %v3370, %v3367
        %v3396 = vsel %vm422, %v3313, 0
        %3398 = vmatprep.subr.bf16.mxu0 0
        %3399 = vmatpush1.bf16.msra.mxu0 0
        %3400 = vmatprep.subr.bf16.mxu0 0
        %3401 = vmatpush1.bf16.msra.mxu0 0
        %3402 = vmatprep.subr.bf16.mxu0 0
        %3403 = vmatpush1.bf16.msra.mxu0 0
        %3404 = vmatprep.subr.bf16.mxu0 0
        %3405 = vmatpush1.bf16.msra.mxu0 0
        %3406 = vmatprep.subr.bf16.mxu0 %v3381
        %3407 = vmatpush1.bf16.msra.mxu0 %v3380
        %3408 = vmatprep.subr.bf16.mxu0 %v3378
        %3409 = vmatpush1.bf16.msra.mxu0 %v3377
        %3410 = vmatprep.subr.bf16.mxu0 %v3375
        %3411 = vmatpush1.bf16.msra.mxu0 %v3374
        %3412 = vmatprep.subr.bf16.mxu0 %v3372
        %3413 = vmatpush1.bf16.msra.mxu0 %v3371
        %3414 = vmatprep.subr.bf16.mxu0 0
        %3415 = vmatpush2.bf16.msra.mxu0 0
        %3416 = vmatprep.subr.bf16.mxu0 0
        %3417 = vmatpush2.bf16.msra.mxu0 0
        %3418 = vmatprep.subr.bf16.mxu0 0
        %3419 = vmatpush2.bf16.msra.mxu0 0
        %3420 = vmatprep.subr.bf16.mxu0 0
        %3421 = vmatpush2.bf16.msra.mxu0 0
        %3422 = vmatprep.subr.bf16.mxu0 0
        %3423 = vmatpush2.bf16.msra.mxu0 0
        %3424 = vmatprep.subr.bf16.mxu0 0
        %3425 = vmatpush2.bf16.msra.mxu0 0
        %3426 = vmatprep.subr.bf16.mxu0 0
        %3427 = vmatpush2.bf16.msra.mxu0 0
        %3428 = vmatprep.subr.bf16.mxu0 0
        %3429 = vmatpush2.bf16.msra.mxu0 0
        %3430 = vmatprep.mubr.bf16.mxu0 0
        %3431 = vmatmul.mubr.bf16.gmra.mxu0 %v3396
        %v3432 = vpop.f32.mrf.mxu0
        %v3433 = vadd.f32 %v3319, %v3432
        %v3434 = vpop.f32.mrf.mxu0
        %v3435 = vadd.f32 %v3323, %v3434
        %v3436 = vpop.f32.mrf.mxu0
        %v3437 = vpop.f32.mrf.mxu0
        %3438 = vdwg.mxu0
        %3439 = vmatprep.subr.bf16.mxu0 0
        %3440 = vmatpush1.bf16.msra.mxu0 0
        %3441 = vmatprep.subr.bf16.mxu0 0
        %3442 = vmatpush1.bf16.msra.mxu0 0
        %3443 = vmatprep.subr.bf16.mxu0 0
        %3444 = vmatpush1.bf16.msra.mxu0 0
        %3445 = vmatprep.subr.bf16.mxu0 0
        %3446 = vmatpush1.bf16.msra.mxu0 0
        %3447 = vmatprep.subr.bf16.mxu0 0
        %3448 = vmatpush1.bf16.msra.mxu0 %v3382
        %3449 = vmatprep.subr.bf16.mxu0 0
        %3450 = vmatpush1.bf16.msra.mxu0 %v3379
        %3451 = vmatprep.subr.bf16.mxu0 0
        %3452 = vmatpush1.bf16.msra.mxu0 %v3376
        %3453 = vmatprep.subr.bf16.mxu0 0
        %3454 = vmatpush1.bf16.msra.mxu0 %v3373
        %3455 = vmatprep.subr.bf16.mxu0 0
        %3456 = vmatpush2.bf16.msra.mxu0 0
        %3457 = vmatprep.subr.bf16.mxu0 0
        %3458 = vmatpush2.bf16.msra.mxu0 0
        %3459 = vmatprep.subr.bf16.mxu0 0
        %3460 = vmatpush2.bf16.msra.mxu0 0
        %3461 = vmatprep.subr.bf16.mxu0 0
        %3462 = vmatpush2.bf16.msra.mxu0 0
        %3463 = vmatprep.subr.bf16.mxu0 0
        %3464 = vmatpush2.bf16.msra.mxu0 0
        %3465 = vmatprep.subr.bf16.mxu0 0
        %3466 = vmatpush2.bf16.msra.mxu0 0
        %3467 = vmatprep.subr.bf16.mxu0 0
        %3468 = vmatpush2.bf16.msra.mxu0 0
        %3469 = vmatprep.subr.bf16.mxu0 0
        %3470 = vmatpush2.bf16.msra.mxu0 0
        %3471 = vmatprep.mubr.bf16.mxu0 0
        %3472 = vmatmul.mubr.bf16.gmra.mxu0 %v3396
        %v3473 = vpop.f32.mrf.mxu0
        %v3474 = vadd.f32 %v3327, %v3473
        %v3475 = vpop.f32.mrf.mxu0
        %v3476 = vpop.f32.mrf.mxu0
        %v3477 = vpop.f32.mrf.mxu0
        %3478 = vdwg.mxu0
        %v3479 = vmax.f32 %v3433, 0.0
        %v3480 = vmax.f32 %v3435, 0.0
        %v3481 = vmax.f32 %v3474, 0.0
        %v3482 = vld [vmem:[#allocation4] sm:$0xf]
        %v3483 = vld [vmem:[#allocation4 + $0x8] sm:$0xf]
        %v3484 = vld [vmem:[#allocation4 + $0x10] sm:$0xf]
        %v3485 = vld [vmem:[#allocation4 + $0x18] sm:$0xf]
        %v3486 = vld [vmem:[#allocation4 + $0x20] sm:$0xf]
        %v3487 = vld [vmem:[#allocation4 + $0x28] sm:$0xf]
        %v3488 = vld [vmem:[#allocation4 + $0x30] sm:$0xf]
        %v3489 = vld [vmem:[#allocation4 + $0x38] sm:$0xf]
        %v3490 = vld [vmem:[#allocation4 + $0x40] sm:$0xf]
        %v3491 = vld [vmem:[#allocation4 + $0x48] sm:$0xf]
        %v3492 = vld [vmem:[#allocation4 + $0x50] sm:$0xf]
        %v3493 = vld [vmem:[#allocation4 + $0x58] sm:$0xf]
        %v3494 = vld [vmem:[#allocation4 + $0x60] sm:$0xf]
        %v3495 = vld [vmem:[#allocation4 + $0x68] sm:$0xf]
        %v3496 = vld [vmem:[#allocation4 + $0x70] sm:$0xf]
        %v3497 = vld [vmem:[#allocation4 + $0x78] sm:$0xf]
        %v3498 = vld [vmem:[#allocation4 + $0x80] sm:$0xf]
        %v3499 = vld [vmem:[#allocation4 + $0x88] sm:$0xf]
        %v3500 = vld [vmem:[#allocation4 + $0x90] sm:$0xf]
        %v3501 = vld [vmem:[#allocation4 + $0x98] sm:$0xf]
        %v3502 = vld [vmem:[#allocation4 + $0xa0] sm:$0xf]
        %v3503 = vld [vmem:[#allocation4 + $0xa8] sm:$0xf]
        %v3504 = vld [vmem:[#allocation4 + $0xb0] sm:$0xf]
        %v3505 = vld [vmem:[#allocation4 + $0xb8] sm:$0xf]
        %v3506 = vld [vmem:[#allocation4 + $0xc0] sm:$0xf]
        %v3507 = vld [vmem:[#allocation4 + $0xc8] sm:$0xf]
        %v3508 = vld [vmem:[#allocation4 + $0xd0] sm:$0xf]
        %v3509 = vld [vmem:[#allocation4 + $0xd8] sm:$0xf]
        %v3510 = vld [vmem:[#allocation4 + $0xe0] sm:$0xf]
        %v3511 = vld [vmem:[#allocation4 + $0xe8] sm:$0xf]
        %v3512 = vld [vmem:[#allocation4 + $0xf0] sm:$0xf]
        %v3513 = vld [vmem:[#allocation4 + $0xf8] sm:$0xf]
        %v3514 = vld [vmem:[#allocation4 + $0x100] sm:$0xf]
        %v3515 = vld [vmem:[#allocation4 + $0x108] sm:$0xf]
        %v3516 = vld [vmem:[#allocation4 + $0x110] sm:$0xf]
        %v3517 = vld [vmem:[#allocation4 + $0x118] sm:$0xf]
        %v3518 = vld [vmem:[#allocation4 + $0x120] sm:$0xf]
        %v3519 = vld [vmem:[#allocation4 + $0x128] sm:$0xf]
        %v3520 = vld [vmem:[#allocation4 + $0x130] sm:$0xf]
        %v3521 = vld [vmem:[#allocation4 + $0x138] sm:$0xf]
        %v3522 = vld [vmem:[#allocation4 + $0x140] sm:$0xf]
        %v3523 = vld [vmem:[#allocation4 + $0x148] sm:$0xf]
        %v3524 = vld [vmem:[#allocation4 + $0x150] sm:$0xf]
        %v3525 = vld [vmem:[#allocation4 + $0x158] sm:$0xf]
        %v3526 = vld [vmem:[#allocation4 + $0x160] sm:$0xf]
        %v3527 = vld [vmem:[#allocation4 + $0x168] sm:$0xf]
        %v3528 = vld [vmem:[#allocation4 + $0x170] sm:$0xf]
        %v3529 = vld [vmem:[#allocation4 + $0x178] sm:$0xf]
        %v3530 = vpack.c.bf16 %v3479, %v3479
        %v3531 = vpack.c.bf16 %v3480, %v3480
        %v3532 = vpack.c.bf16 %v3481, %v3481
        %v3533 = vld [vmem:[%s5 + $0x15] sm:$0x1]
        %v3535 = vlaneseq
        %v3536 = vshrl.u32 %v3535, 7
        %v3537 = vsub.s32 0, %v3536
        %v3538 = vrot.slane %v3533, %v3537
        %v3588 = vunpack.c.l.b16 %v3482
        %v3589 = vunpack.c.l.b16 %v3483
        %v3590 = vunpack.c.l.b16 %v3484
        %v3591 = vunpack.c.l.b16 %v3485
        %v3592 = vunpack.c.l.b16 %v3486
        %v3593 = vunpack.c.l.b16 %v3487
        %v3594 = vunpack.c.l.b16 %v3488
        %v3595 = vunpack.c.l.b16 %v3489
        %v3596 = vunpack.c.l.b16 %v3490
        %v3597 = vunpack.c.l.b16 %v3491
        %v3598 = vunpack.c.l.b16 %v3492
        %v3599 = vunpack.c.l.b16 %v3493
        %v3600 = vunpack.c.l.b16 %v3494
        %v3601 = vunpack.c.l.b16 %v3495
        %v3602 = vunpack.c.l.b16 %v3496
        %v3603 = vunpack.c.l.b16 %v3497
        %v3604 = vunpack.c.l.b16 %v3498
        %v3605 = vunpack.c.l.b16 %v3499
        %v3606 = vunpack.c.l.b16 %v3500
        %v3607 = vunpack.c.l.b16 %v3501
        %v3608 = vunpack.c.l.b16 %v3502
        %v3609 = vunpack.c.l.b16 %v3503
        %v3610 = vunpack.c.l.b16 %v3504
        %v3611 = vunpack.c.l.b16 %v3505
        %v3612 = vunpack.c.l.b16 %v3506
        %v3613 = vunpack.c.l.b16 %v3507
        %v3614 = vunpack.c.l.b16 %v3508
        %v3615 = vunpack.c.l.b16 %v3509
        %v3616 = vunpack.c.l.b16 %v3510
        %v3617 = vunpack.c.l.b16 %v3511
        %v3618 = vunpack.c.l.b16 %v3512
        %v3619 = vunpack.c.l.b16 %v3513
        %v3620 = vunpack.c.l.b16 %v3514
        %v3621 = vunpack.c.l.b16 %v3515
        %v3622 = vunpack.c.l.b16 %v3516
        %v3623 = vunpack.c.l.b16 %v3517
        %v3624 = vunpack.c.l.b16 %v3518
        %v3625 = vunpack.c.l.b16 %v3519
        %v3626 = vunpack.c.l.b16 %v3520
        %v3627 = vunpack.c.l.b16 %v3521
        %v3628 = vunpack.c.l.b16 %v3522
        %v3629 = vunpack.c.l.b16 %v3523
        %v3630 = vunpack.c.l.b16 %v3524
        %v3631 = vunpack.c.l.b16 %v3525
        %v3632 = vunpack.c.l.b16 %v3526
        %v3633 = vunpack.c.l.b16 %v3527
        %v3634 = vunpack.c.l.b16 %v3528
        %v3635 = vunpack.c.l.b16 %v3529
        %v3636 = vpack.c.b16 %v3589, %v3588
        %v3637 = vpack.c.b16 %v3591, %v3590
        %v3638 = vpack.c.b16 %v3593, %v3592
        %v3639 = vpack.c.b16 %v3595, %v3594
        %v3640 = vpack.c.b16 %v3597, %v3596
        %v3641 = vpack.c.b16 %v3599, %v3598
        %v3642 = vpack.c.b16 %v3601, %v3600
        %v3643 = vpack.c.b16 %v3603, %v3602
        %v3644 = vpack.c.b16 %v3605, %v3604
        %v3645 = vpack.c.b16 %v3607, %v3606
        %v3646 = vpack.c.b16 %v3609, %v3608
        %v3647 = vpack.c.b16 %v3611, %v3610
        %v3648 = vpack.c.b16 %v3613, %v3612
        %v3649 = vpack.c.b16 %v3615, %v3614
        %v3650 = vpack.c.b16 %v3617, %v3616
        %v3651 = vpack.c.b16 %v3619, %v3618
        %v3652 = vpack.c.b16 %v3621, %v3620
        %v3653 = vpack.c.b16 %v3623, %v3622
        %v3654 = vpack.c.b16 %v3625, %v3624
        %v3655 = vpack.c.b16 %v3627, %v3626
        %v3656 = vpack.c.b16 %v3629, %v3628
        %v3657 = vpack.c.b16 %v3631, %v3630
        %v3658 = vpack.c.b16 %v3633, %v3632
        %v3659 = vpack.c.b16 %v3635, %v3634
        %3684 = vmatprep.subr.bf16.mxu0 0
        %3685 = vmatpush1.bf16.msra.mxu0 %v3643
        %3686 = vmatprep.subr.bf16.mxu0 0
        %3687 = vmatpush1.bf16.msra.mxu0 %v3642
        %3688 = vmatprep.subr.bf16.mxu0 0
        %3689 = vmatpush1.bf16.msra.mxu0 %v3641
        %3690 = vmatprep.subr.bf16.mxu0 0
        %3691 = vmatpush1.bf16.msra.mxu0 %v3640
        %3692 = vmatprep.subr.bf16.mxu0 0
        %3693 = vmatpush1.bf16.msra.mxu0 %v3639
        %3694 = vmatprep.subr.bf16.mxu0 0
        %3695 = vmatpush1.bf16.msra.mxu0 %v3638
        %3696 = vmatprep.subr.bf16.mxu0 0
        %3697 = vmatpush1.bf16.msra.mxu0 %v3637
        %3698 = vmatprep.subr.bf16.mxu0 0
        %3699 = vmatpush1.bf16.msra.mxu0 %v3636
        %3700 = vmatprep.subr.bf16.mxu0 0
        %3701 = vmatpush2.bf16.msra.mxu0 %v3651
        %3702 = vmatprep.subr.bf16.mxu0 0
        %3703 = vmatpush2.bf16.msra.mxu0 %v3650
        %3704 = vmatprep.subr.bf16.mxu0 0
        %3705 = vmatpush2.bf16.msra.mxu0 %v3649
        %3706 = vmatprep.subr.bf16.mxu0 0
        %3707 = vmatpush2.bf16.msra.mxu0 %v3648
        %3708 = vmatprep.subr.bf16.mxu0 0
        %3709 = vmatpush2.bf16.msra.mxu0 %v3647
        %3710 = vmatprep.subr.bf16.mxu0 0
        %3711 = vmatpush2.bf16.msra.mxu0 %v3646
        %3712 = vmatprep.subr.bf16.mxu0 0
        %3713 = vmatpush2.bf16.msra.mxu0 %v3645
        %3714 = vmatprep.subr.bf16.mxu0 0
        %3715 = vmatpush2.bf16.msra.mxu0 %v3644
        %3716 = vmatprep.mubr.bf16.mxu0 %v3531
        %3717 = vmatmul.mubr.bf16.gmra.mxu0 %v3530
        %v3718 = vpop.f32.mrf.mxu0
        %v3719 = vadd.f32 %v3538, %v3718
        %v3720 = vpop.f32.mrf.mxu0
        %v3721 = vpop.f32.mrf.mxu0
        %v3722 = vpop.f32.mrf.mxu0
        %3723 = vdwg.mxu0
        %3724 = vmatprep.subr.bf16.mxu0 0
        %3725 = vmatpush1.bf16.msra.mxu0 %v3659
        %3726 = vmatprep.subr.bf16.mxu0 0
        %3727 = vmatpush1.bf16.msra.mxu0 %v3658
        %3728 = vmatprep.subr.bf16.mxu0 0
        %3729 = vmatpush1.bf16.msra.mxu0 %v3657
        %3730 = vmatprep.subr.bf16.mxu0 0
        %3731 = vmatpush1.bf16.msra.mxu0 %v3656
        %3732 = vmatprep.subr.bf16.mxu0 0
        %3733 = vmatpush1.bf16.msra.mxu0 %v3655
        %3734 = vmatprep.subr.bf16.mxu0 0
        %3735 = vmatpush1.bf16.msra.mxu0 %v3654
        %3736 = vmatprep.subr.bf16.mxu0 0
        %3737 = vmatpush1.bf16.msra.mxu0 %v3653
        %3738 = vmatprep.subr.bf16.mxu0 0
        %3739 = vmatpush1.bf16.msra.mxu0 %v3652
        %3740 = vmatprep.subr.bf16.mxu0 0
        %3741 = vmatpush2.bf16.msra.mxu0 0
        %3742 = vmatprep.subr.bf16.mxu0 0
        %3743 = vmatpush2.bf16.msra.mxu0 0
        %3744 = vmatprep.subr.bf16.mxu0 0
        %3745 = vmatpush2.bf16.msra.mxu0 0
        %3746 = vmatprep.subr.bf16.mxu0 0
        %3747 = vmatpush2.bf16.msra.mxu0 0
        %3748 = vmatprep.subr.bf16.mxu0 0
        %3749 = vmatpush2.bf16.msra.mxu0 0
        %3750 = vmatprep.subr.bf16.mxu0 0
        %3751 = vmatpush2.bf16.msra.mxu0 0
        %3752 = vmatprep.subr.bf16.mxu0 0
        %3753 = vmatpush2.bf16.msra.mxu0 0
        %3754 = vmatprep.subr.bf16.mxu0 0
        %3755 = vmatpush2.bf16.msra.mxu0 0
        %3756 = vmatprep.mubr.bf16.mxu0 0
        %3757 = vmatmul.mubr.bf16.gmra.mxu0 %v3532
        %v3758 = vpop.f32.mrf.mxu0
        %v3759 = vadd.f32 %v3719, %v3758
        %v3760 = vpop.f32.mrf.mxu0
        %v3761 = vpop.f32.mrf.mxu0
        %v3762 = vpop.f32.mrf.mxu0
        %3763 = vdwg.mxu0
        %v3764 = vadd.f32 %v3296, %v3759
        %v3765 = vsel %vm422, %v3764, 0.0
        %3766 = vadd.xlane.f32.xlu0 %v3765
        %v3767 = vpop.xlane.xlu0 %3766
        %v3768 = vmul.f32 %v3767, %v1934
        %v3769 = vsub.f32 %v3764, %v3768
        %v3770 = vmul.f32 %v3769, %v3769
        %v3771 = vsel %vm422, %v3770, 0.0
        %3772 = vadd.xlane.f32.xlu0 %v3771
        %v3773 = vpop.xlane.xlu0 %3772
        %v3774 = vmul.f32 %v3773, %v1934
        %v3775 = vadd.f32 %v3774, 1e-05
        %v3776 = vrsqrt.pop %v3775
        %v3777 = vmul.f32 %v3769, %v3776
        %v3778 = vld [vmem:[%s5 + $0x10] sm:$0x1]
        %v3780 = vlaneseq
        %v3781 = vshrl.u32 %v3780, 7
        %v3782 = vsub.s32 0, %v3781
        %v3783 = vrot.slane %v3778, %v3782
        %v3785 = vmul.f32 %v3777, %v3783
        %v3786 = vld [vmem:[%s5 + $0x11] sm:$0x1]
        %v3788 = vlaneseq
        %v3789 = vshrl.u32 %v3788, 7
        %v3790 = vsub.s32 0, %v3789
        %v3791 = vrot.slane %v3786, %v3790
        %v3793 = vadd.f32 %v3785, %v3791
        %v3794 = vld [vmem:[#allocation2 + $0x34] sm:$0xff]
        %v3795 = vld [vmem:[#allocation2 + $0x90] sm:$0xff]
        %v3796 = vld [vmem:[#allocation2 + $0xec] sm:$0xff]
        %v3797 = vld [vmem:[#allocation2 + $0x148] sm:$0xff]
        %v3798 = vld [vmem:[#allocation2 + $0x1a4] sm:$0xff]
        %v3799 = vld [vmem:[#allocation2 + $0x200] sm:$0xff]
        %v3800 = vld [vmem:[#allocation2 + $0x25c] sm:$0xff]
        %v3801 = vld [vmem:[#allocation2 + $0x2b8] sm:$0xff]
        %v3802 = vpack.c.bf16 %v3793, %v3793
        %v3803 = vld [vmem:[%s5 + $0x16] sm:$0x3]
        %v3805 = vlaneseq
        %v3806 = vshrl.u32 %v3805, 7
        %v3807 = vsub.s32 0, %v3806
        %v3808 = vrot.slane %v3803, %v3807
        %v3809 = vlaneseq
        %v3810 = vshrl.u32 %v3809, 7
        %v3811 = vsub.s32 1, %v3810
        %v3812 = vrot.slane %v3803, %v3811
        %v3823 = vunpack.c.l.b16 %v3794
        %v3824 = vunpack.c.h.b16 %v3794
        %v3825 = vunpack.c.l.b16 %v3795
        %v3826 = vunpack.c.h.b16 %v3795
        %v3827 = vunpack.c.l.b16 %v3796
        %v3828 = vunpack.c.h.b16 %v3796
        %v3829 = vunpack.c.l.b16 %v3797
        %v3830 = vunpack.c.h.b16 %v3797
        %v3831 = vunpack.c.l.b16 %v3798
        %v3832 = vunpack.c.h.b16 %v3798
        %v3833 = vunpack.c.l.b16 %v3799
        %v3834 = vunpack.c.h.b16 %v3799
        %v3835 = vunpack.c.l.b16 %v3800
        %v3836 = vunpack.c.h.b16 %v3800
        %v3837 = vunpack.c.l.b16 %v3801
        %v3838 = vunpack.c.h.b16 %v3801
        %v3839 = vpack.c.b16 %v3825, %v3823
        %v3840 = vpack.c.b16 %v3826, %v3824
        %v3841 = vpack.c.b16 %v3829, %v3827
        %v3842 = vpack.c.b16 %v3830, %v3828
        %v3843 = vpack.c.b16 %v3833, %v3831
        %v3844 = vpack.c.b16 %v3834, %v3832
        %v3845 = vpack.c.b16 %v3837, %v3835
        %v3846 = vpack.c.b16 %v3838, %v3836
        %v3856 = vsel %vm422, %v3802, 0
        %3858 = vmatprep.subr.bf16.mxu0 0
        %3859 = vmatpush1.bf16.msra.mxu0 0
        %3860 = vmatprep.subr.bf16.mxu0 0
        %3861 = vmatpush1.bf16.msra.mxu0 0
        %3862 = vmatprep.subr.bf16.mxu0 0
        %3863 = vmatpush1.bf16.msra.mxu0 0
        %3864 = vmatprep.subr.bf16.mxu0 0
        %3865 = vmatpush1.bf16.msra.mxu0 0
        %3866 = vmatprep.subr.bf16.mxu0 %v3846
        %3867 = vmatpush1.bf16.msra.mxu0 %v3845
        %3868 = vmatprep.subr.bf16.mxu0 %v3844
        %3869 = vmatpush1.bf16.msra.mxu0 %v3843
        %3870 = vmatprep.subr.bf16.mxu0 %v3842
        %3871 = vmatpush1.bf16.msra.mxu0 %v3841
        %3872 = vmatprep.subr.bf16.mxu0 %v3840
        %3873 = vmatpush1.bf16.msra.mxu0 %v3839
        %3874 = vmatprep.subr.bf16.mxu0 0
        %3875 = vmatpush2.bf16.msra.mxu0 0
        %3876 = vmatprep.subr.bf16.mxu0 0
        %3877 = vmatpush2.bf16.msra.mxu0 0
        %3878 = vmatprep.subr.bf16.mxu0 0
        %3879 = vmatpush2.bf16.msra.mxu0 0
        %3880 = vmatprep.subr.bf16.mxu0 0
        %3881 = vmatpush2.bf16.msra.mxu0 0
        %3882 = vmatprep.subr.bf16.mxu0 0
        %3883 = vmatpush2.bf16.msra.mxu0 0
        %3884 = vmatprep.subr.bf16.mxu0 0
        %3885 = vmatpush2.bf16.msra.mxu0 0
        %3886 = vmatprep.subr.bf16.mxu0 0
        %3887 = vmatpush2.bf16.msra.mxu0 0
        %3888 = vmatprep.subr.bf16.mxu0 0
        %3889 = vmatpush2.bf16.msra.mxu0 0
        %3890 = vmatprep.mubr.bf16.mxu0 0
        %3891 = vmatmul.mubr.bf16.gmra.mxu0 %v3856
        %v3892 = vpop.f32.mrf.mxu0
        %v3893 = vadd.f32 %v3808, %v3892
        %v3894 = vpop.f32.mrf.mxu0
        %v3895 = vadd.f32 %v3812, %v3894
        %v3896 = vpop.f32.mrf.mxu0
        %v3897 = vpop.f32.mrf.mxu0
        %3898 = vdwg.mxu0
        %3900 = vrot.lane.b32.xlu0 %v3893, 64
        %v3901 = vpop.permute.xlu0 %3900
        %v3902 = vsel %vm1840, %v3893, 0
        %v3904 = vsel %vm1840, %v3901, 0
        %3906 = vmatprep.subr.mxu0 0.0
        %3907 = vmatpush1.xpose.msra.mxu0 0.0
        %3908 = vmatprep.subr.mxu0 0.0
        %3909 = vmatpush1.xpose.msra.mxu0 0.0
        %3910 = vmatprep.subr.mxu0 0.0
        %3911 = vmatpush1.xpose.msra.mxu0 0.0
        %3912 = vmatprep.subr.mxu0 0.0
        %3913 = vmatpush1.xpose.msra.mxu0 0.0
        %3914 = vmatprep.subr.mxu0 0.0
        %3915 = vmatpush1.xpose.msra.mxu0 0.0
        %3916 = vmatprep.subr.mxu0 0.0
        %3917 = vmatpush1.xpose.msra.mxu0 0.0
        %3918 = vmatprep.subr.mxu0 0.0
        %3919 = vmatpush1.xpose.msra.mxu0 0.0
        %3920 = vmatprep.subr.mxu0 0.0
        %3921 = vmatpush1.xpose.msra.mxu0 0.0
        %3922 = vmatprep.subr.mxu0 0.0
        %3923 = vmatpush1.xpose.msra.mxu0 0.0
        %3924 = vmatprep.subr.mxu0 0.0
        %3925 = vmatpush1.xpose.msra.mxu0 0.0
        %3926 = vmatprep.subr.mxu0 0.0
        %3927 = vmatpush1.xpose.msra.mxu0 0.0
        %3928 = vmatprep.subr.mxu0 0.0
        %3929 = vmatpush1.xpose.msra.mxu0 0.0
        %3930 = vmatprep.subr.mxu0 0.0
        %3931 = vmatpush1.xpose.msra.mxu0 0.0
        %3932 = vmatprep.subr.mxu0 0.0
        %3933 = vmatpush1.xpose.msra.mxu0 0.0
        %3934 = vmatprep.subr.mxu0 0.0
        %3935 = vmatpush1.xpose.msra.mxu0 0.0
        %3936 = vmatprep.subr.mxu0 0.0
        %3937 = vmatpush1.xpose.msra.mxu0 %v3904
        %3938 = vmatprep.subr.mxu0 0.0
        %3939 = vmatpush2.xpose.msra.mxu0 0.0
        %3940 = vmatprep.subr.mxu0 0.0
        %3941 = vmatpush2.xpose.msra.mxu0 0.0
        %3942 = vmatprep.subr.mxu0 0.0
        %3943 = vmatpush2.xpose.msra.mxu0 0.0
        %3944 = vmatprep.subr.mxu0 0.0
        %3945 = vmatpush2.xpose.msra.mxu0 0.0
        %3946 = vmatprep.subr.mxu0 0.0
        %3947 = vmatpush2.xpose.msra.mxu0 0.0
        %3948 = vmatprep.subr.mxu0 0.0
        %3949 = vmatpush2.xpose.msra.mxu0 0.0
        %3950 = vmatprep.subr.mxu0 0.0
        %3951 = vmatpush2.xpose.msra.mxu0 0.0
        %3952 = vmatprep.subr.mxu0 0.0
        %3953 = vmatpush2.xpose.msra.mxu0 0.0
        %3954 = vmatprep.subr.mxu0 0.0
        %3955 = vmatpush2.xpose.msra.mxu0 0.0
        %3956 = vmatprep.subr.mxu0 0.0
        %3957 = vmatpush2.xpose.msra.mxu0 0.0
        %3958 = vmatprep.subr.mxu0 0.0
        %3959 = vmatpush2.xpose.msra.mxu0 0.0
        %3960 = vmatprep.subr.mxu0 0.0
        %3961 = vmatpush2.xpose.msra.mxu0 0.0
        %3962 = vmatprep.subr.mxu0 0.0
        %3963 = vmatpush2.xpose.msra.mxu0 0.0
        %3964 = vmatprep.subr.mxu0 0.0
        %3965 = vmatpush2.xpose.msra.mxu0 0.0
        %3966 = vmatprep.subr.mxu0 0.0
        %3967 = vmatpush2.xpose.msra.mxu0 0.0
        %3968 = vmatprep.subr.mxu0 0.0
        %3969 = vmatpush2.xpose.msra.mxu0 0.0
        %3970 = vmatprep.mubr.f32.mxu0 0.0
        %3971 = vmatmul.mubr.f32.gmra.mxu0 %v3902
        %v3972 = vpop.f32.mrf.mxu0
        %v3973 = vadd.f32 0.0, %v3972
        %v3974 = vpop.f32.mrf.mxu0
        %3975 = vdwg.mxu0
        %v3976 = vmul.f32 %v3973, 0.17677669
        %v3977 = vadd.f32 %v3976, %v2124
        %3978 = vrot.lane.b32.xlu0 %v3893, 96
        %v3979 = vpop.permute.xlu0 %3978
        %3980 = vrot.lane.b32.xlu0 %v3893, 32
        %v3981 = vpop.permute.xlu0 %3980
        %v3982 = vsel %vm1840, %v3979, 0
        %v3984 = vsel %vm1840, %v3981, 0
        %3986 = vmatprep.subr.mxu0 0.0
        %3987 = vmatpush1.xpose.msra.mxu0 0.0
        %3988 = vmatprep.subr.mxu0 0.0
        %3989 = vmatpush1.xpose.msra.mxu0 0.0
        %3990 = vmatprep.subr.mxu0 0.0
        %3991 = vmatpush1.xpose.msra.mxu0 0.0
        %3992 = vmatprep.subr.mxu0 0.0
        %3993 = vmatpush1.xpose.msra.mxu0 0.0
        %3994 = vmatprep.subr.mxu0 0.0
        %3995 = vmatpush1.xpose.msra.mxu0 0.0
        %3996 = vmatprep.subr.mxu0 0.0
        %3997 = vmatpush1.xpose.msra.mxu0 0.0
        %3998 = vmatprep.subr.mxu0 0.0
        %3999 = vmatpush1.xpose.msra.mxu0 0.0
        %4000 = vmatprep.subr.mxu0 0.0
        %4001 = vmatpush1.xpose.msra.mxu0 0.0
        %4002 = vmatprep.subr.mxu0 0.0
        %4003 = vmatpush1.xpose.msra.mxu0 0.0
        %4004 = vmatprep.subr.mxu0 0.0
        %4005 = vmatpush1.xpose.msra.mxu0 0.0
        %4006 = vmatprep.subr.mxu0 0.0
        %4007 = vmatpush1.xpose.msra.mxu0 0.0
        %4008 = vmatprep.subr.mxu0 0.0
        %4009 = vmatpush1.xpose.msra.mxu0 0.0
        %4010 = vmatprep.subr.mxu0 0.0
        %4011 = vmatpush1.xpose.msra.mxu0 0.0
        %4012 = vmatprep.subr.mxu0 0.0
        %4013 = vmatpush1.xpose.msra.mxu0 0.0
        %4014 = vmatprep.subr.mxu0 0.0
        %4015 = vmatpush1.xpose.msra.mxu0 0.0
        %4016 = vmatprep.subr.mxu0 0.0
        %4017 = vmatpush1.xpose.msra.mxu0 %v3984
        %4018 = vmatprep.subr.mxu0 0.0
        %4019 = vmatpush2.xpose.msra.mxu0 0.0
        %4020 = vmatprep.subr.mxu0 0.0
        %4021 = vmatpush2.xpose.msra.mxu0 0.0
        %4022 = vmatprep.subr.mxu0 0.0
        %4023 = vmatpush2.xpose.msra.mxu0 0.0
        %4024 = vmatprep.subr.mxu0 0.0
        %4025 = vmatpush2.xpose.msra.mxu0 0.0
        %4026 = vmatprep.subr.mxu0 0.0
        %4027 = vmatpush2.xpose.msra.mxu0 0.0
        %4028 = vmatprep.subr.mxu0 0.0
        %4029 = vmatpush2.xpose.msra.mxu0 0.0
        %4030 = vmatprep.subr.mxu0 0.0
        %4031 = vmatpush2.xpose.msra.mxu0 0.0
        %4032 = vmatprep.subr.mxu0 0.0
        %4033 = vmatpush2.xpose.msra.mxu0 0.0
        %4034 = vmatprep.subr.mxu0 0.0
        %4035 = vmatpush2.xpose.msra.mxu0 0.0
        %4036 = vmatprep.subr.mxu0 0.0
        %4037 = vmatpush2.xpose.msra.mxu0 0.0
        %4038 = vmatprep.subr.mxu0 0.0
        %4039 = vmatpush2.xpose.msra.mxu0 0.0
        %4040 = vmatprep.subr.mxu0 0.0
        %4041 = vmatpush2.xpose.msra.mxu0 0.0
        %4042 = vmatprep.subr.mxu0 0.0
        %4043 = vmatpush2.xpose.msra.mxu0 0.0
        %4044 = vmatprep.subr.mxu0 0.0
        %4045 = vmatpush2.xpose.msra.mxu0 0.0
        %4046 = vmatprep.subr.mxu0 0.0
        %4047 = vmatpush2.xpose.msra.mxu0 0.0
        %4048 = vmatprep.subr.mxu0 0.0
        %4049 = vmatpush2.xpose.msra.mxu0 0.0
        %4050 = vmatprep.mubr.f32.mxu0 0.0
        %4051 = vmatmul.mubr.f32.gmra.mxu0 %v3982
        %v4052 = vpop.f32.mrf.mxu0
        %v4053 = vadd.f32 0.0, %v4052
        %v4054 = vpop.f32.mrf.mxu0
        %4055 = vdwg.mxu0
        %v4056 = vmul.f32 %v4053, 0.17677669
        %v4057 = vadd.f32 %v4056, %v2124
        %v4058 = vsel %vm470, %v3977, -inf
        %4059 = vmax.xlane.f32.xlu0 %v4058
        %v4060 = vpop.xlane.xlu0 %4059
        %v4061 = vsel %vm470, %v4057, -inf
        %4062 = vmax.xlane.f32.xlu0 %v4061
        %v4063 = vpop.xlane.xlu0 %4062
        %v4064 = vsub.f32 %v3977, %v4060
        %v4065 = vsub.f32 %v4057, %v4063
        %v4066 = vmul.f32 %v4064, 1.442695
        %v4067 = vpow.pop %v4066
        %v4068 = vmul.f32 %v4065, 1.442695
        %v4069 = vpow.pop %v4068
        %v4070 = vsel %vm470, %v4067, 0.0
        %4071 = vadd.xlane.f32.xlu0 %v4070
        %v4072 = vpop.xlane.xlu0 %4071
        %v4073 = vsel %vm470, %v4069, 0.0
        %4074 = vadd.xlane.f32.xlu0 %v4073
        %v4075 = vpop.xlane.xlu0 %4074
        %v4076 = vrcp.pop %v4072
        %v4077 = vrcp.pop %v4075
        %v4078 = vmul.f32 %v4067, %v4076
        %v4079 = vmul.f32 %v4069, %v4077
        %v4081 = vsel %vm470, %v4078, 0
        %4083 = vmatprep.subr.mxu0 0.0
        %4084 = vmatpush1.msra.mxu0 0.0
        %4085 = vmatprep.subr.mxu0 0.0
        %4086 = vmatpush1.msra.mxu0 0.0
        %4087 = vmatprep.subr.mxu0 0.0
        %4088 = vmatpush1.msra.mxu0 0.0
        %4089 = vmatprep.subr.mxu0 0.0
        %4090 = vmatpush1.msra.mxu0 0.0
        %4091 = vmatprep.subr.mxu0 0.0
        %4092 = vmatpush1.msra.mxu0 0.0
        %4093 = vmatprep.subr.mxu0 0.0
        %4094 = vmatpush1.msra.mxu0 0.0
        %4095 = vmatprep.subr.mxu0 0.0
        %4096 = vmatpush1.msra.mxu0 0.0
        %4097 = vmatprep.subr.mxu0 0.0
        %4098 = vmatpush1.msra.mxu0 0.0
        %4099 = vmatprep.subr.mxu0 0.0
        %4100 = vmatpush1.msra.mxu0 0.0
        %4101 = vmatprep.subr.mxu0 0.0
        %4102 = vmatpush1.msra.mxu0 0.0
        %4103 = vmatprep.subr.mxu0 0.0
        %4104 = vmatpush1.msra.mxu0 0.0
        %4105 = vmatprep.subr.mxu0 0.0
        %4106 = vmatpush1.msra.mxu0 0.0
        %4107 = vmatprep.subr.mxu0 0.0
        %4108 = vmatpush1.msra.mxu0 0.0
        %4109 = vmatprep.subr.mxu0 0.0
        %4110 = vmatpush1.msra.mxu0 0.0
        %4111 = vmatprep.subr.mxu0 0.0
        %4112 = vmatpush1.msra.mxu0 0.0
        %4113 = vmatprep.subr.mxu0 0.0
        %4114 = vmatpush1.msra.mxu0 %v3895
        %4115 = vmatprep.subr.mxu0 0.0
        %4116 = vmatpush2.msra.mxu0 0.0
        %4117 = vmatprep.subr.mxu0 0.0
        %4118 = vmatpush2.msra.mxu0 0.0
        %4119 = vmatprep.subr.mxu0 0.0
        %4120 = vmatpush2.msra.mxu0 0.0
        %4121 = vmatprep.subr.mxu0 0.0
        %4122 = vmatpush2.msra.mxu0 0.0
        %4123 = vmatprep.subr.mxu0 0.0
        %4124 = vmatpush2.msra.mxu0 0.0
        %4125 = vmatprep.subr.mxu0 0.0
        %4126 = vmatpush2.msra.mxu0 0.0
        %4127 = vmatprep.subr.mxu0 0.0
        %4128 = vmatpush2.msra.mxu0 0.0
        %4129 = vmatprep.subr.mxu0 0.0
        %4130 = vmatpush2.msra.mxu0 0.0
        %4131 = vmatprep.subr.mxu0 0.0
        %4132 = vmatpush2.msra.mxu0 0.0
        %4133 = vmatprep.subr.mxu0 0.0
        %4134 = vmatpush2.msra.mxu0 0.0
        %4135 = vmatprep.subr.mxu0 0.0
        %4136 = vmatpush2.msra.mxu0 0.0
        %4137 = vmatprep.subr.mxu0 0.0
        %4138 = vmatpush2.msra.mxu0 0.0
        %4139 = vmatprep.subr.mxu0 0.0
        %4140 = vmatpush2.msra.mxu0 0.0
        %4141 = vmatprep.subr.mxu0 0.0
        %4142 = vmatpush2.msra.mxu0 0.0
        %4143 = vmatprep.subr.mxu0 0.0
        %4144 = vmatpush2.msra.mxu0 0.0
        %4145 = vmatprep.subr.mxu0 0.0
        %4146 = vmatpush2.msra.mxu0 0.0
        %4147 = vmatprep.mubr.f32.mxu0 0.0
        %4148 = vmatmul.mubr.f32.gmra.mxu0 %v4081
        %v4149 = vpop.f32.mrf.mxu0
        %v4150 = vadd.f32 0.0, %v4149
        %v4151 = vpop.f32.mrf.mxu0
        %4152 = vdwg.mxu0
        %4154 = vrot.lane.b32.xlu0 %v3895, 96
        %v4155 = vpop.permute.xlu0 %4154
        %v4158 = vsel %vm470, %v4079, 0
        %4160 = vmatprep.subr.mxu0 0.0
        %4161 = vmatpush1.msra.mxu0 0.0
        %4162 = vmatprep.subr.mxu0 0.0
        %4163 = vmatpush1.msra.mxu0 0.0
        %4164 = vmatprep.subr.mxu0 0.0
        %4165 = vmatpush1.msra.mxu0 0.0
        %4166 = vmatprep.subr.mxu0 0.0
        %4167 = vmatpush1.msra.mxu0 0.0
        %4168 = vmatprep.subr.mxu0 0.0
        %4169 = vmatpush1.msra.mxu0 0.0
        %4170 = vmatprep.subr.mxu0 0.0
        %4171 = vmatpush1.msra.mxu0 0.0
        %4172 = vmatprep.subr.mxu0 0.0
        %4173 = vmatpush1.msra.mxu0 0.0
        %4174 = vmatprep.subr.mxu0 0.0
        %4175 = vmatpush1.msra.mxu0 0.0
        %4176 = vmatprep.subr.mxu0 0.0
        %4177 = vmatpush1.msra.mxu0 0.0
        %4178 = vmatprep.subr.mxu0 0.0
        %4179 = vmatpush1.msra.mxu0 0.0
        %4180 = vmatprep.subr.mxu0 0.0
        %4181 = vmatpush1.msra.mxu0 0.0
        %4182 = vmatprep.subr.mxu0 0.0
        %4183 = vmatpush1.msra.mxu0 0.0
        %4184 = vmatprep.subr.mxu0 0.0
        %4185 = vmatpush1.msra.mxu0 0.0
        %4186 = vmatprep.subr.mxu0 0.0
        %4187 = vmatpush1.msra.mxu0 0.0
        %4188 = vmatprep.subr.mxu0 0.0
        %4189 = vmatpush1.msra.mxu0 0.0
        %4190 = vmatprep.subr.mxu0 0.0
        %4191 = vmatpush1.msra.mxu0 %v4155
        %4192 = vmatprep.subr.mxu0 0.0
        %4193 = vmatpush2.msra.mxu0 0.0
        %4194 = vmatprep.subr.mxu0 0.0
        %4195 = vmatpush2.msra.mxu0 0.0
        %4196 = vmatprep.subr.mxu0 0.0
        %4197 = vmatpush2.msra.mxu0 0.0
        %4198 = vmatprep.subr.mxu0 0.0
        %4199 = vmatpush2.msra.mxu0 0.0
        %4200 = vmatprep.subr.mxu0 0.0
        %4201 = vmatpush2.msra.mxu0 0.0
        %4202 = vmatprep.subr.mxu0 0.0
        %4203 = vmatpush2.msra.mxu0 0.0
        %4204 = vmatprep.subr.mxu0 0.0
        %4205 = vmatpush2.msra.mxu0 0.0
        %4206 = vmatprep.subr.mxu0 0.0
        %4207 = vmatpush2.msra.mxu0 0.0
        %4208 = vmatprep.subr.mxu0 0.0
        %4209 = vmatpush2.msra.mxu0 0.0
        %4210 = vmatprep.subr.mxu0 0.0
        %4211 = vmatpush2.msra.mxu0 0.0
        %4212 = vmatprep.subr.mxu0 0.0
        %4213 = vmatpush2.msra.mxu0 0.0
        %4214 = vmatprep.subr.mxu0 0.0
        %4215 = vmatpush2.msra.mxu0 0.0
        %4216 = vmatprep.subr.mxu0 0.0
        %4217 = vmatpush2.msra.mxu0 0.0
        %4218 = vmatprep.subr.mxu0 0.0
        %4219 = vmatpush2.msra.mxu0 0.0
        %4220 = vmatprep.subr.mxu0 0.0
        %4221 = vmatpush2.msra.mxu0 0.0
        %4222 = vmatprep.subr.mxu0 0.0
        %4223 = vmatpush2.msra.mxu0 0.0
        %4224 = vmatprep.mubr.f32.mxu0 0.0
        %4225 = vmatmul.mubr.f32.gmra.mxu0 %v4158
        %v4226 = vpop.f32.mrf.mxu0
        %v4227 = vadd.f32 0.0, %v4226
        %v4228 = vpop.f32.mrf.mxu0
        %4229 = vdwg.mxu0
        %4231 = vrot.lane.b32.xlu0 %v4227, 32
        %v4232 = vpop.permute.xlu0 %4231
        %v4234 = vsel %vm1840, %v4150, %v4232
        %v4235 = vld [vmem:[#allocation2 + $0x3c] sm:$0xf]
        %v4236 = vld [vmem:[#allocation2 + $0x98] sm:$0xf]
        %v4237 = vld [vmem:[#allocation2 + $0xf4] sm:$0xf]
        %v4238 = vld [vmem:[#allocation2 + $0x150] sm:$0xf]
        %v4239 = vld [vmem:[#allocation2 + $0x1ac] sm:$0xf]
        %v4240 = vld [vmem:[#allocation2 + $0x208] sm:$0xf]
        %v4241 = vld [vmem:[#allocation2 + $0x264] sm:$0xf]
        %v4242 = vld [vmem:[#allocation2 + $0x2c0] sm:$0xf]
        %v4243 = vpack.c.bf16 %v4234, %v4234
        %v4244 = vld [vmem:[%s5 + $0x18] sm:$0x1]
        %v4246 = vlaneseq
        %v4247 = vshrl.u32 %v4246, 7
        %v4248 = vsub.s32 0, %v4247
        %v4249 = vrot.slane %v4244, %v4248
        %v4259 = vunpack.c.l.b16 %v4235
        %v4260 = vunpack.c.l.b16 %v4236
        %v4261 = vunpack.c.l.b16 %v4237
        %v4262 = vunpack.c.l.b16 %v4238
        %v4263 = vunpack.c.l.b16 %v4239
        %v4264 = vunpack.c.l.b16 %v4240
        %v4265 = vunpack.c.l.b16 %v4241
        %v4266 = vunpack.c.l.b16 %v4242
        %v4267 = vpack.c.b16 %v4260, %v4259
        %v4268 = vpack.c.b16 %v4262, %v4261
        %v4269 = vpack.c.b16 %v4264, %v4263
        %v4270 = vpack.c.b16 %v4266, %v4265
        %v4276 = vsel %vm422, %v4243, 0
        %4278 = vmatprep.subr.bf16.mxu0 0
        %4279 = vmatpush1.bf16.msra.mxu0 0
        %4280 = vmatprep.subr.bf16.mxu0 0
        %4281 = vmatpush1.bf16.msra.mxu0 0
        %4282 = vmatprep.subr.bf16.mxu0 0
        %4283 = vmatpush1.bf16.msra.mxu0 0
        %4284 = vmatprep.subr.bf16.mxu0 0
        %4285 = vmatpush1.bf16.msra.mxu0 0
        %4286 = vmatprep.subr.bf16.mxu0 0
        %4287 = vmatpush1.bf16.msra.mxu0 %v4270
        %4288 = vmatprep.subr.bf16.mxu0 0
        %4289 = vmatpush1.bf16.msra.mxu0 %v4269
        %4290 = vmatprep.subr.bf16.mxu0 0
        %4291 = vmatpush1.bf16.msra.mxu0 %v4268
        %4292 = vmatprep.subr.bf16.mxu0 0
        %4293 = vmatpush1.bf16.msra.mxu0 %v4267
        %4294 = vmatprep.subr.bf16.mxu0 0
        %4295 = vmatpush2.bf16.msra.mxu0 0
        %4296 = vmatprep.subr.bf16.mxu0 0
        %4297 = vmatpush2.bf16.msra.mxu0 0
        %4298 = vmatprep.subr.bf16.mxu0 0
        %4299 = vmatpush2.bf16.msra.mxu0 0
        %4300 = vmatprep.subr.bf16.mxu0 0
        %4301 = vmatpush2.bf16.msra.mxu0 0
        %4302 = vmatprep.subr.bf16.mxu0 0
        %4303 = vmatpush2.bf16.msra.mxu0 0
        %4304 = vmatprep.subr.bf16.mxu0 0
        %4305 = vmatpush2.bf16.msra.mxu0 0
        %4306 = vmatprep.subr.bf16.mxu0 0
        %4307 = vmatpush2.bf16.msra.mxu0 0
        %4308 = vmatprep.subr.bf16.mxu0 0
        %4309 = vmatpush2.bf16.msra.mxu0 0
        %4310 = vmatprep.mubr.bf16.mxu0 0
        %4311 = vmatmul.mubr.bf16.gmra.mxu0 %v4276
        %v4312 = vpop.f32.mrf.mxu0
        %v4313 = vadd.f32 %v4249, %v4312
        %v4314 = vpop.f32.mrf.mxu0
        %v4315 = vpop.f32.mrf.mxu0
        %v4316 = vpop.f32.mrf.mxu0
        %4317 = vdwg.mxu0
        %v4318 = vadd.f32 %v3793, %v4313
        %v4319 = vsel %vm422, %v4318, 0.0
        %4320 = vadd.xlane.f32.xlu0 %v4319
        %v4321 = vpop.xlane.xlu0 %4320
        %v4322 = vmul.f32 %v4321, %v1934
        %v4323 = vsub.f32 %v4318, %v4322
        %v4324 = vmul.f32 %v4323, %v4323
        %v4325 = vsel %vm422, %v4324, 0.0
        %4326 = vadd.xlane.f32.xlu0 %v4325
        %v4327 = vpop.xlane.xlu0 %4326
        %v4328 = vmul.f32 %v4327, %v1934
        %v4329 = vadd.f32 %v4328, 1e-05
        %v4330 = vrsqrt.pop %v4329
        %v4331 = vmul.f32 %v4323, %v4330
        %v4332 = vld [vmem:[%s5 + $0x1c] sm:$0x1]
        %v4334 = vlaneseq
        %v4335 = vshrl.u32 %v4334, 7
        %v4336 = vsub.s32 0, %v4335
        %v4337 = vrot.slane %v4332, %v4336
        %v4339 = vmul.f32 %v4331, %v4337
        %v4340 = vld [vmem:[%s5 + $0x1d] sm:$0x1]
        %v4342 = vlaneseq
        %v4343 = vshrl.u32 %v4342, 7
        %v4344 = vsub.s32 0, %v4343
        %v4345 = vrot.slane %v4340, %v4344
        %v4347 = vadd.f32 %v4339, %v4345
        %v4348 = vld [vmem:[#allocation2 + $0x40] sm:$0xf]
        %v4349 = vld [vmem:[#allocation2 + $0x9c] sm:$0xf]
        %v4350 = vld [vmem:[#allocation2 + $0xf8] sm:$0xf]
        %v4351 = vld [vmem:[#allocation2 + $0x154] sm:$0xf]
        %v4352 = vld [vmem:[#allocation2 + $0x1b0] sm:$0xf]
        %v4353 = vld [vmem:[#allocation2 + $0x20c] sm:$0xf]
        %v4354 = vld [vmem:[#allocation2 + $0x268] sm:$0xf]
        %v4355 = vld [vmem:[#allocation2 + $0x2c4] sm:$0xf]
        %v4356 = vpack.c.bf16 %v4347, %v4347
        %v4357 = vld [vmem:[%s5 + $0x19] sm:$0x1]
        %v4359 = vlaneseq
        %v4360 = vshrl.u32 %v4359, 7
        %v4361 = vsub.s32 0, %v4360
        %v4362 = vrot.slane %v4357, %v4361
        %v4372 = vunpack.c.l.b16 %v4348
        %v4373 = vunpack.c.l.b16 %v4349
        %v4374 = vunpack.c.l.b16 %v4350
        %v4375 = vunpack.c.l.b16 %v4351
        %v4376 = vunpack.c.l.b16 %v4352
        %v4377 = vunpack.c.l.b16 %v4353
        %v4378 = vunpack.c.l.b16 %v4354
        %v4379 = vunpack.c.l.b16 %v4355
        %v4380 = vpack.c.b16 %v4373, %v4372
        %v4381 = vpack.c.b16 %v4375, %v4374
        %v4382 = vpack.c.b16 %v4377, %v4376
        %v4383 = vpack.c.b16 %v4379, %v4378
        %v4389 = vsel %vm422, %v4356, 0
        %4391 = vmatprep.subr.bf16.mxu0 0
        %4392 = vmatpush1.bf16.msra.mxu0 0
        %4393 = vmatprep.subr.bf16.mxu0 0
        %4394 = vmatpush1.bf16.msra.mxu0 0
        %4395 = vmatprep.subr.bf16.mxu0 0
        %4396 = vmatpush1.bf16.msra.mxu0 0
        %4397 = vmatprep.subr.bf16.mxu0 0
        %4398 = vmatpush1.bf16.msra.mxu0 0
        %4399 = vmatprep.subr.bf16.mxu0 0
        %4400 = vmatpush1.bf16.msra.mxu0 %v4383
        %4401 = vmatprep.subr.bf16.mxu0 0
        %4402 = vmatpush1.bf16.msra.mxu0 %v4382
        %4403 = vmatprep.subr.bf16.mxu0 0
        %4404 = vmatpush1.bf16.msra.mxu0 %v4381
        %4405 = vmatprep.subr.bf16.mxu0 0
        %4406 = vmatpush1.bf16.msra.mxu0 %v4380
        %4407 = vmatprep.subr.bf16.mxu0 0
        %4408 = vmatpush2.bf16.msra.mxu0 0
        %4409 = vmatprep.subr.bf16.mxu0 0
        %4410 = vmatpush2.bf16.msra.mxu0 0
        %4411 = vmatprep.subr.bf16.mxu0 0
        %4412 = vmatpush2.bf16.msra.mxu0 0
        %4413 = vmatprep.subr.bf16.mxu0 0
        %4414 = vmatpush2.bf16.msra.mxu0 0
        %4415 = vmatprep.subr.bf16.mxu0 0
        %4416 = vmatpush2.bf16.msra.mxu0 0
        %4417 = vmatprep.subr.bf16.mxu0 0
        %4418 = vmatpush2.bf16.msra.mxu0 0
        %4419 = vmatprep.subr.bf16.mxu0 0
        %4420 = vmatpush2.bf16.msra.mxu0 0
        %4421 = vmatprep.subr.bf16.mxu0 0
        %4422 = vmatpush2.bf16.msra.mxu0 0
        %4423 = vmatprep.mubr.bf16.mxu0 0
        %4424 = vmatmul.mubr.bf16.gmra.mxu0 %v4389
        %v4425 = vpop.f32.mrf.mxu0
        %v4426 = vadd.f32 %v4362, %v4425
        %v4427 = vpop.f32.mrf.mxu0
        %v4428 = vpop.f32.mrf.mxu0
        %v4429 = vpop.f32.mrf.mxu0
        %4430 = vdwg.mxu0
        %v4431 = vld [vmem:[#allocation2 + $0x44] sm:$0xf]
        %v4432 = vld [vmem:[#allocation2 + $0xa0] sm:$0xf]
        %v4433 = vld [vmem:[#allocation2 + $0xfc] sm:$0xf]
        %v4434 = vld [vmem:[#allocation2 + $0x158] sm:$0xf]
        %v4435 = vld [vmem:[#allocation2 + $0x1b4] sm:$0xf]
        %v4436 = vld [vmem:[#allocation2 + $0x210] sm:$0xf]
        %v4437 = vld [vmem:[#allocation2 + $0x26c] sm:$0xf]
        %v4438 = vld [vmem:[#allocation2 + $0x2c8] sm:$0xf]
        %v4439 = vld [vmem:[%s5 + $0x1a] sm:$0x1]
        %v4441 = vlaneseq
        %v4442 = vshrl.u32 %v4441, 7
        %v4443 = vsub.s32 0, %v4442
        %v4444 = vrot.slane %v4439, %v4443
        %v4454 = vunpack.c.l.b16 %v4431
        %v4455 = vunpack.c.l.b16 %v4432
        %v4456 = vunpack.c.l.b16 %v4433
        %v4457 = vunpack.c.l.b16 %v4434
        %v4458 = vunpack.c.l.b16 %v4435
        %v4459 = vunpack.c.l.b16 %v4436
        %v4460 = vunpack.c.l.b16 %v4437
        %v4461 = vunpack.c.l.b16 %v4438
        %v4462 = vpack.c.b16 %v4455, %v4454
        %v4463 = vpack.c.b16 %v4457, %v4456
        %v4464 = vpack.c.b16 %v4459, %v4458
        %v4465 = vpack.c.b16 %v4461, %v4460
        %4470 = vmatprep.subr.bf16.mxu0 0
        %4471 = vmatpush1.bf16.msra.mxu0 0
        %4472 = vmatprep.subr.bf16.mxu0 0
        %4473 = vmatpush1.bf16.msra.mxu0 0
        %4474 = vmatprep.subr.bf16.mxu0 0
        %4475 = vmatpush1.bf16.msra.mxu0 0
        %4476 = vmatprep.subr.bf16.mxu0 0
        %4477 = vmatpush1.bf16.msra.mxu0 0
        %4478 = vmatprep.subr.bf16.mxu0 0
        %4479 = vmatpush1.bf16.msra.mxu0 %v4465
        %4480 = vmatprep.subr.bf16.mxu0 0
        %4481 = vmatpush1.bf16.msra.mxu0 %v4464
        %4482 = vmatprep.subr.bf16.mxu0 0
        %4483 = vmatpush1.bf16.msra.mxu0 %v4463
        %4484 = vmatprep.subr.bf16.mxu0 0
        %4485 = vmatpush1.bf16.msra.mxu0 %v4462
        %4486 = vmatprep.subr.bf16.mxu0 0
        %4487 = vmatpush2.bf16.msra.mxu0 0
        %4488 = vmatprep.subr.bf16.mxu0 0
        %4489 = vmatpush2.bf16.msra.mxu0 0
        %4490 = vmatprep.subr.bf16.mxu0 0
        %4491 = vmatpush2.bf16.msra.mxu0 0
        %4492 = vmatprep.subr.bf16.mxu0 0
        %4493 = vmatpush2.bf16.msra.mxu0 0
        %4494 = vmatprep.subr.bf16.mxu0 0
        %4495 = vmatpush2.bf16.msra.mxu0 0
        %4496 = vmatprep.subr.bf16.mxu0 0
        %4497 = vmatpush2.bf16.msra.mxu0 0
        %4498 = vmatprep.subr.bf16.mxu0 0
        %4499 = vmatpush2.bf16.msra.mxu0 0
        %4500 = vmatprep.subr.bf16.mxu0 0
        %4501 = vmatpush2.bf16.msra.mxu0 0
        %4502 = vmatprep.mubr.bf16.mxu0 0
        %4503 = vmatmul.mubr.bf16.gmra.mxu0 %v2805
        %v4504 = vpop.f32.mrf.mxu0
        %v4505 = vadd.f32 %v4444, %v4504
        %v4506 = vpop.f32.mrf.mxu0
        %v4507 = vpop.f32.mrf.mxu0
        %v4508 = vpop.f32.mrf.mxu0
        %4509 = vdwg.mxu0
        %v4511 = vsel %vm1840, %v4426, 0
        %v4514 = vsel %vm1840, %v4505, 0
        %4516 = vmatprep.subr.mxu0 0.0
        %4517 = vmatpush1.xpose.msra.mxu0 0.0
        %4518 = vmatprep.subr.mxu0 0.0
        %4519 = vmatpush1.xpose.msra.mxu0 0.0
        %4520 = vmatprep.subr.mxu0 0.0
        %4521 = vmatpush1.xpose.msra.mxu0 0.0
        %4522 = vmatprep.subr.mxu0 0.0
        %4523 = vmatpush1.xpose.msra.mxu0 0.0
        %4524 = vmatprep.subr.mxu0 0.0
        %4525 = vmatpush1.xpose.msra.mxu0 0.0
        %4526 = vmatprep.subr.mxu0 0.0
        %4527 = vmatpush1.xpose.msra.mxu0 0.0
        %4528 = vmatprep.subr.mxu0 0.0
        %4529 = vmatpush1.xpose.msra.mxu0 0.0
        %4530 = vmatprep.subr.mxu0 0.0
        %4531 = vmatpush1.xpose.msra.mxu0 0.0
        %4532 = vmatprep.subr.mxu0 0.0
        %4533 = vmatpush1.xpose.msra.mxu0 0.0
        %4534 = vmatprep.subr.mxu0 0.0
        %4535 = vmatpush1.xpose.msra.mxu0 0.0
        %4536 = vmatprep.subr.mxu0 0.0
        %4537 = vmatpush1.xpose.msra.mxu0 0.0
        %4538 = vmatprep.subr.mxu0 0.0
        %4539 = vmatpush1.xpose.msra.mxu0 0.0
        %4540 = vmatprep.subr.mxu0 0.0
        %4541 = vmatpush1.xpose.msra.mxu0 0.0
        %4542 = vmatprep.subr.mxu0 0.0
        %4543 = vmatpush1.xpose.msra.mxu0 0.0
        %4544 = vmatprep.subr.mxu0 0.0
        %4545 = vmatpush1.xpose.msra.mxu0 0.0
        %4546 = vmatprep.subr.mxu0 0.0
        %4547 = vmatpush1.xpose.msra.mxu0 %v4514
        %4548 = vmatprep.subr.mxu0 0.0
        %4549 = vmatpush2.xpose.msra.mxu0 0.0
        %4550 = vmatprep.subr.mxu0 0.0
        %4551 = vmatpush2.xpose.msra.mxu0 0.0
        %4552 = vmatprep.subr.mxu0 0.0
        %4553 = vmatpush2.xpose.msra.mxu0 0.0
        %4554 = vmatprep.subr.mxu0 0.0
        %4555 = vmatpush2.xpose.msra.mxu0 0.0
        %4556 = vmatprep.subr.mxu0 0.0
        %4557 = vmatpush2.xpose.msra.mxu0 0.0
        %4558 = vmatprep.subr.mxu0 0.0
        %4559 = vmatpush2.xpose.msra.mxu0 0.0
        %4560 = vmatprep.subr.mxu0 0.0
        %4561 = vmatpush2.xpose.msra.mxu0 0.0
        %4562 = vmatprep.subr.mxu0 0.0
        %4563 = vmatpush2.xpose.msra.mxu0 0.0
        %4564 = vmatprep.subr.mxu0 0.0
        %4565 = vmatpush2.xpose.msra.mxu0 0.0
        %4566 = vmatprep.subr.mxu0 0.0
        %4567 = vmatpush2.xpose.msra.mxu0 0.0
        %4568 = vmatprep.subr.mxu0 0.0
        %4569 = vmatpush2.xpose.msra.mxu0 0.0
        %4570 = vmatprep.subr.mxu0 0.0
        %4571 = vmatpush2.xpose.msra.mxu0 0.0
        %4572 = vmatprep.subr.mxu0 0.0
        %4573 = vmatpush2.xpose.msra.mxu0 0.0
        %4574 = vmatprep.subr.mxu0 0.0
        %4575 = vmatpush2.xpose.msra.mxu0 0.0
        %4576 = vmatprep.subr.mxu0 0.0
        %4577 = vmatpush2.xpose.msra.mxu0 0.0
        %4578 = vmatprep.subr.mxu0 0.0
        %4579 = vmatpush2.xpose.msra.mxu0 0.0
        %4580 = vmatprep.mubr.f32.mxu0 0.0
        %4581 = vmatmul.mubr.f32.gmra.mxu0 %v4511
        %v4582 = vpop.f32.mrf.mxu0
        %v4583 = vadd.f32 0.0, %v4582
        %v4584 = vpop.f32.mrf.mxu0
        %4585 = vdwg.mxu0
        %v4586 = vmul.f32 %v4583, 0.17677669
        %v4587 = vadd.f32 %v4586, %v2126
        %4588 = vrot.lane.b32.xlu0 %v4426, 96
        %v4589 = vpop.permute.xlu0 %4588
        %4590 = vrot.lane.b32.xlu0 %v4505, 96
        %v4591 = vpop.permute.xlu0 %4590
        %v4592 = vsel %vm1840, %v4589, 0
        %v4594 = vsel %vm1840, %v4591, 0
        %4596 = vmatprep.subr.mxu0 0.0
        %4597 = vmatpush1.xpose.msra.mxu0 0.0
        %4598 = vmatprep.subr.mxu0 0.0
        %4599 = vmatpush1.xpose.msra.mxu0 0.0
        %4600 = vmatprep.subr.mxu0 0.0
        %4601 = vmatpush1.xpose.msra.mxu0 0.0
        %4602 = vmatprep.subr.mxu0 0.0
        %4603 = vmatpush1.xpose.msra.mxu0 0.0
        %4604 = vmatprep.subr.mxu0 0.0
        %4605 = vmatpush1.xpose.msra.mxu0 0.0
        %4606 = vmatprep.subr.mxu0 0.0
        %4607 = vmatpush1.xpose.msra.mxu0 0.0
        %4608 = vmatprep.subr.mxu0 0.0
        %4609 = vmatpush1.xpose.msra.mxu0 0.0
        %4610 = vmatprep.subr.mxu0 0.0
        %4611 = vmatpush1.xpose.msra.mxu0 0.0
        %4612 = vmatprep.subr.mxu0 0.0
        %4613 = vmatpush1.xpose.msra.mxu0 0.0
        %4614 = vmatprep.subr.mxu0 0.0
        %4615 = vmatpush1.xpose.msra.mxu0 0.0
        %4616 = vmatprep.subr.mxu0 0.0
        %4617 = vmatpush1.xpose.msra.mxu0 0.0
        %4618 = vmatprep.subr.mxu0 0.0
        %4619 = vmatpush1.xpose.msra.mxu0 0.0
        %4620 = vmatprep.subr.mxu0 0.0
        %4621 = vmatpush1.xpose.msra.mxu0 0.0
        %4622 = vmatprep.subr.mxu0 0.0
        %4623 = vmatpush1.xpose.msra.mxu0 0.0
        %4624 = vmatprep.subr.mxu0 0.0
        %4625 = vmatpush1.xpose.msra.mxu0 0.0
        %4626 = vmatprep.subr.mxu0 0.0
        %4627 = vmatpush1.xpose.msra.mxu0 %v4594
        %4628 = vmatprep.subr.mxu0 0.0
        %4629 = vmatpush2.xpose.msra.mxu0 0.0
        %4630 = vmatprep.subr.mxu0 0.0
        %4631 = vmatpush2.xpose.msra.mxu0 0.0
        %4632 = vmatprep.subr.mxu0 0.0
        %4633 = vmatpush2.xpose.msra.mxu0 0.0
        %4634 = vmatprep.subr.mxu0 0.0
        %4635 = vmatpush2.xpose.msra.mxu0 0.0
        %4636 = vmatprep.subr.mxu0 0.0
        %4637 = vmatpush2.xpose.msra.mxu0 0.0
        %4638 = vmatprep.subr.mxu0 0.0
        %4639 = vmatpush2.xpose.msra.mxu0 0.0
        %4640 = vmatprep.subr.mxu0 0.0
        %4641 = vmatpush2.xpose.msra.mxu0 0.0
        %4642 = vmatprep.subr.mxu0 0.0
        %4643 = vmatpush2.xpose.msra.mxu0 0.0
        %4644 = vmatprep.subr.mxu0 0.0
        %4645 = vmatpush2.xpose.msra.mxu0 0.0
        %4646 = vmatprep.subr.mxu0 0.0
        %4647 = vmatpush2.xpose.msra.mxu0 0.0
        %4648 = vmatprep.subr.mxu0 0.0
        %4649 = vmatpush2.xpose.msra.mxu0 0.0
        %4650 = vmatprep.subr.mxu0 0.0
        %4651 = vmatpush2.xpose.msra.mxu0 0.0
        %4652 = vmatprep.subr.mxu0 0.0
        %4653 = vmatpush2.xpose.msra.mxu0 0.0
        %4654 = vmatprep.subr.mxu0 0.0
        %4655 = vmatpush2.xpose.msra.mxu0 0.0
        %4656 = vmatprep.subr.mxu0 0.0
        %4657 = vmatpush2.xpose.msra.mxu0 0.0
        %4658 = vmatprep.subr.mxu0 0.0
        %4659 = vmatpush2.xpose.msra.mxu0 0.0
        %4660 = vmatprep.mubr.f32.mxu0 0.0
        %4661 = vmatmul.mubr.f32.gmra.mxu0 %v4592
        %v4662 = vpop.f32.mrf.mxu0
        %v4663 = vadd.f32 0.0, %v4662
        %v4664 = vpop.f32.mrf.mxu0
        %4665 = vdwg.mxu0
        %v4666 = vmul.f32 %v4663, 0.17677669
        %v4667 = vadd.f32 %v4666, %v2126
        %v4668 = vsel %vm470, %v4587, -inf
        %4669 = vmax.xlane.f32.xlu0 %v4668
        %v4670 = vpop.xlane.xlu0 %4669
        %v4671 = vsel %vm470, %v4667, -inf
        %4672 = vmax.xlane.f32.xlu0 %v4671
        %v4673 = vpop.xlane.xlu0 %4672
        %v4674 = vsub.f32 %v4587, %v4670
        %v4675 = vsub.f32 %v4667, %v4673
        %v4676 = vmul.f32 %v4674, 1.442695
        %v4677 = vpow.pop %v4676
        %v4678 = vmul.f32 %v4675, 1.442695
        %v4679 = vpow.pop %v4678
        %v4680 = vsel %vm470, %v4677, 0.0
        %4681 = vadd.xlane.f32.xlu0 %v4680
        %v4682 = vpop.xlane.xlu0 %4681
        %v4683 = vsel %vm470, %v4679, 0.0
        %4684 = vadd.xlane.f32.xlu0 %v4683
        %v4685 = vpop.xlane.xlu0 %4684
        %v4686 = vrcp.pop %v4682
        %v4687 = vrcp.pop %v4685
        %v4688 = vmul.f32 %v4677, %v4686
        %v4689 = vmul.f32 %v4679, %v4687
        %4690 = vrot.lane.b32.xlu0 %v4505, 64
        %v4691 = vpop.permute.xlu0 %4690
        %v4694 = vsel %vm470, %v4688, 0
        %4696 = vmatprep.subr.mxu0 0.0
        %4697 = vmatpush1.msra.mxu0 0.0
        %4698 = vmatprep.subr.mxu0 0.0
        %4699 = vmatpush1.msra.mxu0 0.0
        %4700 = vmatprep.subr.mxu0 0.0
        %4701 = vmatpush1.msra.mxu0 0.0
        %4702 = vmatprep.subr.mxu0 0.0
        %4703 = vmatpush1.msra.mxu0 0.0
        %4704 = vmatprep.subr.mxu0 0.0
        %4705 = vmatpush1.msra.mxu0 0.0
        %4706 = vmatprep.subr.mxu0 0.0
        %4707 = vmatpush1.msra.mxu0 0.0
        %4708 = vmatprep.subr.mxu0 0.0
        %4709 = vmatpush1.msra.mxu0 0.0
        %4710 = vmatprep.subr.mxu0 0.0
        %4711 = vmatpush1.msra.mxu0 0.0
        %4712 = vmatprep.subr.mxu0 0.0
        %4713 = vmatpush1.msra.mxu0 0.0
        %4714 = vmatprep.subr.mxu0 0.0
        %4715 = vmatpush1.msra.mxu0 0.0
        %4716 = vmatprep.subr.mxu0 0.0
        %4717 = vmatpush1.msra.mxu0 0.0
        %4718 = vmatprep.subr.mxu0 0.0
        %4719 = vmatpush1.msra.mxu0 0.0
        %4720 = vmatprep.subr.mxu0 0.0
        %4721 = vmatpush1.msra.mxu0 0.0
        %4722 = vmatprep.subr.mxu0 0.0
        %4723 = vmatpush1.msra.mxu0 0.0
        %4724 = vmatprep.subr.mxu0 0.0
        %4725 = vmatpush1.msra.mxu0 0.0
        %4726 = vmatprep.subr.mxu0 0.0
        %4727 = vmatpush1.msra.mxu0 %v4691
        %4728 = vmatprep.subr.mxu0 0.0
        %4729 = vmatpush2.msra.mxu0 0.0
        %4730 = vmatprep.subr.mxu0 0.0
        %4731 = vmatpush2.msra.mxu0 0.0
        %4732 = vmatprep.subr.mxu0 0.0
        %4733 = vmatpush2.msra.mxu0 0.0
        %4734 = vmatprep.subr.mxu0 0.0
        %4735 = vmatpush2.msra.mxu0 0.0
        %4736 = vmatprep.subr.mxu0 0.0
        %4737 = vmatpush2.msra.mxu0 0.0
        %4738 = vmatprep.subr.mxu0 0.0
        %4739 = vmatpush2.msra.mxu0 0.0
        %4740 = vmatprep.subr.mxu0 0.0
        %4741 = vmatpush2.msra.mxu0 0.0
        %4742 = vmatprep.subr.mxu0 0.0
        %4743 = vmatpush2.msra.mxu0 0.0
        %4744 = vmatprep.subr.mxu0 0.0
        %4745 = vmatpush2.msra.mxu0 0.0
        %4746 = vmatprep.subr.mxu0 0.0
        %4747 = vmatpush2.msra.mxu0 0.0
        %4748 = vmatprep.subr.mxu0 0.0
        %4749 = vmatpush2.msra.mxu0 0.0
        %4750 = vmatprep.subr.mxu0 0.0
        %4751 = vmatpush2.msra.mxu0 0.0
        %4752 = vmatprep.subr.mxu0 0.0
        %4753 = vmatpush2.msra.mxu0 0.0
        %4754 = vmatprep.subr.mxu0 0.0
        %4755 = vmatpush2.msra.mxu0 0.0
        %4756 = vmatprep.subr.mxu0 0.0
        %4757 = vmatpush2.msra.mxu0 0.0
        %4758 = vmatprep.subr.mxu0 0.0
        %4759 = vmatpush2.msra.mxu0 0.0
        %4760 = vmatprep.mubr.f32.mxu0 0.0
        %4761 = vmatmul.mubr.f32.gmra.mxu0 %v4694
        %v4762 = vpop.f32.mrf.mxu0
        %v4763 = vadd.f32 0.0, %v4762
        %v4764 = vpop.f32.mrf.mxu0
        %4765 = vdwg.mxu0
        %4766 = vrot.lane.b32.xlu0 %v4505, 32
        %v4767 = vpop.permute.xlu0 %4766
        %v4770 = vsel %vm470, %v4689, 0
        %4772 = vmatprep.subr.mxu0 0.0
        %4773 = vmatpush1.msra.mxu0 0.0
        %4774 = vmatprep.subr.mxu0 0.0
        %4775 = vmatpush1.msra.mxu0 0.0
        %4776 = vmatprep.subr.mxu0 0.0
        %4777 = vmatpush1.msra.mxu0 0.0
        %4778 = vmatprep.subr.mxu0 0.0
        %4779 = vmatpush1.msra.mxu0 0.0
        %4780 = vmatprep.subr.mxu0 0.0
        %4781 = vmatpush1.msra.mxu0 0.0
        %4782 = vmatprep.subr.mxu0 0.0
        %4783 = vmatpush1.msra.mxu0 0.0
        %4784 = vmatprep.subr.mxu0 0.0
        %4785 = vmatpush1.msra.mxu0 0.0
        %4786 = vmatprep.subr.mxu0 0.0
        %4787 = vmatpush1.msra.mxu0 0.0
        %4788 = vmatprep.subr.mxu0 0.0
        %4789 = vmatpush1.msra.mxu0 0.0
        %4790 = vmatprep.subr.mxu0 0.0
        %4791 = vmatpush1.msra.mxu0 0.0
        %4792 = vmatprep.subr.mxu0 0.0
        %4793 = vmatpush1.msra.mxu0 0.0
        %4794 = vmatprep.subr.mxu0 0.0
        %4795 = vmatpush1.msra.mxu0 0.0
        %4796 = vmatprep.subr.mxu0 0.0
        %4797 = vmatpush1.msra.mxu0 0.0
        %4798 = vmatprep.subr.mxu0 0.0
        %4799 = vmatpush1.msra.mxu0 0.0
        %4800 = vmatprep.subr.mxu0 0.0
        %4801 = vmatpush1.msra.mxu0 0.0
        %4802 = vmatprep.subr.mxu0 0.0
        %4803 = vmatpush1.msra.mxu0 %v4767
        %4804 = vmatprep.subr.mxu0 0.0
        %4805 = vmatpush2.msra.mxu0 0.0
        %4806 = vmatprep.subr.mxu0 0.0
        %4807 = vmatpush2.msra.mxu0 0.0
        %4808 = vmatprep.subr.mxu0 0.0
        %4809 = vmatpush2.msra.mxu0 0.0
        %4810 = vmatprep.subr.mxu0 0.0
        %4811 = vmatpush2.msra.mxu0 0.0
        %4812 = vmatprep.subr.mxu0 0.0
        %4813 = vmatpush2.msra.mxu0 0.0
        %4814 = vmatprep.subr.mxu0 0.0
        %4815 = vmatpush2.msra.mxu0 0.0
        %4816 = vmatprep.subr.mxu0 0.0
        %4817 = vmatpush2.msra.mxu0 0.0
        %4818 = vmatprep.subr.mxu0 0.0
        %4819 = vmatpush2.msra.mxu0 0.0
        %4820 = vmatprep.subr.mxu0 0.0
        %4821 = vmatpush2.msra.mxu0 0.0
        %4822 = vmatprep.subr.mxu0 0.0
        %4823 = vmatpush2.msra.mxu0 0.0
        %4824 = vmatprep.subr.mxu0 0.0
        %4825 = vmatpush2.msra.mxu0 0.0
        %4826 = vmatprep.subr.mxu0 0.0
        %4827 = vmatpush2.msra.mxu0 0.0
        %4828 = vmatprep.subr.mxu0 0.0
        %4829 = vmatpush2.msra.mxu0 0.0
        %4830 = vmatprep.subr.mxu0 0.0
        %4831 = vmatpush2.msra.mxu0 0.0
        %4832 = vmatprep.subr.mxu0 0.0
        %4833 = vmatpush2.msra.mxu0 0.0
        %4834 = vmatprep.subr.mxu0 0.0
        %4835 = vmatpush2.msra.mxu0 0.0
        %4836 = vmatprep.mubr.f32.mxu0 0.0
        %4837 = vmatmul.mubr.f32.gmra.mxu0 %v4770
        %v4838 = vpop.f32.mrf.mxu0
        %v4839 = vadd.f32 0.0, %v4838
        %v4840 = vpop.f32.mrf.mxu0
        %4841 = vdwg.mxu0
        %4843 = vrot.lane.b32.xlu0 %v4839, 32
        %v4844 = vpop.permute.xlu0 %4843
        %v4846 = vsel %vm1840, %v4763, %v4844
        %v4847 = vld [vmem:[#allocation2 + $0x48] sm:$0xf]
        %v4848 = vld [vmem:[#allocation2 + $0xa4] sm:$0xf]
        %v4849 = vld [vmem:[#allocation2 + $0x100] sm:$0xf]
        %v4850 = vld [vmem:[#allocation2 + $0x15c] sm:$0xf]
        %v4851 = vld [vmem:[#allocation2 + $0x1b8] sm:$0xf]
        %v4852 = vld [vmem:[#allocation2 + $0x214] sm:$0xf]
        %v4853 = vld [vmem:[#allocation2 + $0x270] sm:$0xf]
        %v4854 = vld [vmem:[#allocation2 + $0x2cc] sm:$0xf]
        %v4855 = vpack.c.bf16 %v4846, %v4846
        %v4856 = vld [vmem:[%s5 + $0x1b] sm:$0x1]
        %v4858 = vlaneseq
        %v4859 = vshrl.u32 %v4858, 7
        %v4860 = vsub.s32 0, %v4859
        %v4861 = vrot.slane %v4856, %v4860
        %v4871 = vunpack.c.l.b16 %v4847
        %v4872 = vunpack.c.l.b16 %v4848
        %v4873 = vunpack.c.l.b16 %v4849
        %v4874 = vunpack.c.l.b16 %v4850
        %v4875 = vunpack.c.l.b16 %v4851
        %v4876 = vunpack.c.l.b16 %v4852
        %v4877 = vunpack.c.l.b16 %v4853
        %v4878 = vunpack.c.l.b16 %v4854
        %v4879 = vpack.c.b16 %v4872, %v4871
        %v4880 = vpack.c.b16 %v4874, %v4873
        %v4881 = vpack.c.b16 %v4876, %v4875
        %v4882 = vpack.c.b16 %v4878, %v4877
        %v4888 = vsel %vm422, %v4855, 0
        %4890 = vmatprep.subr.bf16.mxu0 0
        %4891 = vmatpush1.bf16.msra.mxu0 0
        %4892 = vmatprep.subr.bf16.mxu0 0
        %4893 = vmatpush1.bf16.msra.mxu0 0
        %4894 = vmatprep.subr.bf16.mxu0 0
        %4895 = vmatpush1.bf16.msra.mxu0 0
        %4896 = vmatprep.subr.bf16.mxu0 0
        %4897 = vmatpush1.bf16.msra.mxu0 0
        %4898 = vmatprep.subr.bf16.mxu0 0
        %4899 = vmatpush1.bf16.msra.mxu0 %v4882
        %4900 = vmatprep.subr.bf16.mxu0 0
        %4901 = vmatpush1.bf16.msra.mxu0 %v4881
        %4902 = vmatprep.subr.bf16.mxu0 0
        %4903 = vmatpush1.bf16.msra.mxu0 %v4880
        %4904 = vmatprep.subr.bf16.mxu0 0
        %4905 = vmatpush1.bf16.msra.mxu0 %v4879
        %4906 = vmatprep.subr.bf16.mxu0 0
        %4907 = vmatpush2.bf16.msra.mxu0 0
        %4908 = vmatprep.subr.bf16.mxu0 0
        %4909 = vmatpush2.bf16.msra.mxu0 0
        %4910 = vmatprep.subr.bf16.mxu0 0
        %4911 = vmatpush2.bf16.msra.mxu0 0
        %4912 = vmatprep.subr.bf16.mxu0 0
        %4913 = vmatpush2.bf16.msra.mxu0 0
        %4914 = vmatprep.subr.bf16.mxu0 0
        %4915 = vmatpush2.bf16.msra.mxu0 0
        %4916 = vmatprep.subr.bf16.mxu0 0
        %4917 = vmatpush2.bf16.msra.mxu0 0
        %4918 = vmatprep.subr.bf16.mxu0 0
        %4919 = vmatpush2.bf16.msra.mxu0 0
        %4920 = vmatprep.subr.bf16.mxu0 0
        %4921 = vmatpush2.bf16.msra.mxu0 0
        %4922 = vmatprep.mubr.bf16.mxu0 0
        %4923 = vmatmul.mubr.bf16.gmra.mxu0 %v4888
        %v4924 = vpop.f32.mrf.mxu0
        %v4925 = vadd.f32 %v4861, %v4924
        %v4926 = vpop.f32.mrf.mxu0
        %v4927 = vpop.f32.mrf.mxu0
        %v4928 = vpop.f32.mrf.mxu0
        %4929 = vdwg.mxu0
        %v4930 = vadd.f32 %v4347, %v4925
        %v4931 = vsel %vm422, %v4930, 0.0
        %4932 = vadd.xlane.f32.xlu0 %v4931
        %v4933 = vpop.xlane.xlu0 %4932
        %v4934 = vmul.f32 %v4933, %v1934
        %v4935 = vsub.f32 %v4930, %v4934
        %v4936 = vmul.f32 %v4935, %v4935
        %v4937 = vsel %vm422, %v4936, 0.0
        %4938 = vadd.xlane.f32.xlu0 %v4937
        %v4939 = vpop.xlane.xlu0 %4938
        %v4940 = vmul.f32 %v4939, %v1934
        %v4941 = vadd.f32 %v4940, 1e-05
        %v4942 = vrsqrt.pop %v4941
        %v4943 = vmul.f32 %v4935, %v4942
        %v4944 = vld [vmem:[%s5 + $0x1e] sm:$0x1]
        %v4946 = vlaneseq
        %v4947 = vshrl.u32 %v4946, 7
        %v4948 = vsub.s32 0, %v4947
        %v4949 = vrot.slane %v4944, %v4948
        %v4951 = vmul.f32 %v4943, %v4949
        %v4952 = vld [vmem:[%s5 + $0x1f] sm:$0x1]
        %v4954 = vlaneseq
        %v4955 = vshrl.u32 %v4954, 7
        %v4956 = vsub.s32 0, %v4955
        %v4957 = vrot.slane %v4952, %v4956
        %v4959 = vadd.f32 %v4951, %v4957
        %v4960 = vld [vmem:[#allocation2 + $0x4c] sm:$0xff]
        %v4961 = vld [vmem:[#allocation2 + $0x54] sm:$0xf]
        %v4962 = vld [vmem:[#allocation2 + $0xa8] sm:$0xff]
        %v4963 = vld [vmem:[#allocation2 + $0xb0] sm:$0xf]
        %v4964 = vld [vmem:[#allocation2 + $0x104] sm:$0xff]
        %v4965 = vld [vmem:[#allocation2 + $0x10c] sm:$0xf]
        %v4966 = vld [vmem:[#allocation2 + $0x160] sm:$0xff]
        %v4967 = vld [vmem:[#allocation2 + $0x168] sm:$0xf]
        %v4968 = vld [vmem:[#allocation2 + $0x1bc] sm:$0xff]
        %v4969 = vld [vmem:[#allocation2 + $0x1c4] sm:$0xf]
        %v4970 = vld [vmem:[#allocation2 + $0x218] sm:$0xff]
        %v4971 = vld [vmem:[#allocation2 + $0x220] sm:$0xf]
        %v4972 = vld [vmem:[#allocation2 + $0x274] sm:$0xff]
        %v4973 = vld [vmem:[#allocation2 + $0x27c] sm:$0xf]
        %v4974 = vld [vmem:[#allocation2 + $0x2d0] sm:$0xff]
        %v4975 = vld [vmem:[#allocation2 + $0x2d8] sm:$0xf]
        %v4976 = vpack.c.bf16 %v4959, %v4959
        %v4977 = vld [vmem:[%s5 + $0x22] sm:$0x7]
        %v4979 = vlaneseq
        %v4980 = vshrl.u32 %v4979, 7
        %v4981 = vsub.s32 0, %v4980
        %v4982 = vrot.slane %v4977, %v4981
        %v4983 = vlaneseq
        %v4984 = vshrl.u32 %v4983, 7
        %v4985 = vsub.s32 1, %v4984
        %v4986 = vrot.slane %v4977, %v4985
        %v4987 = vlaneseq
        %v4988 = vshrl.u32 %v4987, 7
        %v4989 = vsub.s32 2, %v4988
        %v4990 = vrot.slane %v4977, %v4989
        %v5010 = vunpack.c.l.b16 %v4960
        %v5011 = vunpack.c.h.b16 %v4960
        %v5012 = vunpack.c.l.b16 %v4961
        %v5013 = vunpack.c.l.b16 %v4962
        %v5014 = vunpack.c.h.b16 %v4962
        %v5015 = vunpack.c.l.b16 %v4963
        %v5016 = vunpack.c.l.b16 %v4964
        %v5017 = vunpack.c.h.b16 %v4964
        %v5018 = vunpack.c.l.b16 %v4965
        %v5019 = vunpack.c.l.b16 %v4966
        %v5020 = vunpack.c.h.b16 %v4966
        %v5021 = vunpack.c.l.b16 %v4967
        %v5022 = vunpack.c.l.b16 %v4968
        %v5023 = vunpack.c.h.b16 %v4968
        %v5024 = vunpack.c.l.b16 %v4969
        %v5025 = vunpack.c.l.b16 %v4970
        %v5026 = vunpack.c.h.b16 %v4970
        %v5027 = vunpack.c.l.b16 %v4971
        %v5028 = vunpack.c.l.b16 %v4972
        %v5029 = vunpack.c.h.b16 %v4972
        %v5030 = vunpack.c.l.b16 %v4973
        %v5031 = vunpack.c.l.b16 %v4974
        %v5032 = vunpack.c.h.b16 %v4974
        %v5033 = vunpack.c.l.b16 %v4975
        %v5034 = vpack.c.b16 %v5013, %v5010
        %v5035 = vpack.c.b16 %v5014, %v5011
        %v5036 = vpack.c.b16 %v5015, %v5012
        %v5037 = vpack.c.b16 %v5019, %v5016
        %v5038 = vpack.c.b16 %v5020, %v5017
        %v5039 = vpack.c.b16 %v5021, %v5018
        %v5040 = vpack.c.b16 %v5025, %v5022
        %v5041 = vpack.c.b16 %v5026, %v5023
        %v5042 = vpack.c.b16 %v5027, %v5024
        %v5043 = vpack.c.b16 %v5031, %v5028
        %v5044 = vpack.c.b16 %v5032, %v5029
        %v5045 = vpack.c.b16 %v5033, %v5030
        %v5059 = vsel %vm422, %v4976, 0
        %5061 = vmatprep.subr.bf16.mxu0 0
        %5062 = vmatpush1.bf16.msra.mxu0 0
        %5063 = vmatprep.subr.bf16.mxu0 0
        %5064 = vmatpush1.bf16.msra.mxu0 0
        %5065 = vmatprep.subr.bf16.mxu0 0
        %5066 = vmatpush1.bf16.msra.mxu0 0
        %5067 = vmatprep.subr.bf16.mxu0 0
        %5068 = vmatpush1.bf16.msra.mxu0 0
        %5069 = vmatprep.subr.bf16.mxu0 %v5044
        %5070 = vmatpush1.bf16.msra.mxu0 %v5043
        %5071 = vmatprep.subr.bf16.mxu0 %v5041
        %5072 = vmatpush1.bf16.msra.mxu0 %v5040
        %5073 = vmatprep.subr.bf16.mxu0 %v5038
        %5074 = vmatpush1.bf16.msra.mxu0 %v5037
        %5075 = vmatprep.subr.bf16.mxu0 %v5035
        %5076 = vmatpush1.bf16.msra.mxu0 %v5034
        %5077 = vmatprep.subr.bf16.mxu0 0
        %5078 = vmatpush2.bf16.msra.mxu0 0
        %5079 = vmatprep.subr.bf16.mxu0 0
        %5080 = vmatpush2.bf16.msra.mxu0 0
        %5081 = vmatprep.subr.bf16.mxu0 0
        %5082 = vmatpush2.bf16.msra.mxu0 0
        %5083 = vmatprep.subr.bf16.mxu0 0
        %5084 = vmatpush2.bf16.msra.mxu0 0
        %5085 = vmatprep.subr.bf16.mxu0 0
        %5086 = vmatpush2.bf16.msra.mxu0 0
        %5087 = vmatprep.subr.bf16.mxu0 0
        %5088 = vmatpush2.bf16.msra.mxu0 0
        %5089 = vmatprep.subr.bf16.mxu0 0
        %5090 = vmatpush2.bf16.msra.mxu0 0
        %5091 = vmatprep.subr.bf16.mxu0 0
        %5092 = vmatpush2.bf16.msra.mxu0 0
        %5093 = vmatprep.mubr.bf16.mxu0 0
        %5094 = vmatmul.mubr.bf16.gmra.mxu0 %v5059
        %v5095 = vpop.f32.mrf.mxu0
        %v5096 = vadd.f32 %v4982, %v5095
        %v5097 = vpop.f32.mrf.mxu0
        %v5098 = vadd.f32 %v4986, %v5097
        %v5099 = vpop.f32.mrf.mxu0
        %v5100 = vpop.f32.mrf.mxu0
        %5101 = vdwg.mxu0
        %5102 = vmatprep.subr.bf16.mxu0 0
        %5103 = vmatpush1.bf16.msra.mxu0 0
        %5104 = vmatprep.subr.bf16.mxu0 0
        %5105 = vmatpush1.bf16.msra.mxu0 0
        %5106 = vmatprep.subr.bf16.mxu0 0
        %5107 = vmatpush1.bf16.msra.mxu0 0
        %5108 = vmatprep.subr.bf16.mxu0 0
        %5109 = vmatpush1.bf16.msra.mxu0 0
        %5110 = vmatprep.subr.bf16.mxu0 0
        %5111 = vmatpush1.bf16.msra.mxu0 %v5045
        %5112 = vmatprep.subr.bf16.mxu0 0
        %5113 = vmatpush1.bf16.msra.mxu0 %v5042
        %5114 = vmatprep.subr.bf16.mxu0 0
        %5115 = vmatpush1.bf16.msra.mxu0 %v5039
        %5116 = vmatprep.subr.bf16.mxu0 0
        %5117 = vmatpush1.bf16.msra.mxu0 %v5036
        %5118 = vmatprep.subr.bf16.mxu0 0
        %5119 = vmatpush2.bf16.msra.mxu0 0
        %5120 = vmatprep.subr.bf16.mxu0 0
        %5121 = vmatpush2.bf16.msra.mxu0 0
        %5122 = vmatprep.subr.bf16.mxu0 0
        %5123 = vmatpush2.bf16.msra.mxu0 0
        %5124 = vmatprep.subr.bf16.mxu0 0
        %5125 = vmatpush2.bf16.msra.mxu0 0
        %5126 = vmatprep.subr.bf16.mxu0 0
        %5127 = vmatpush2.bf16.msra.mxu0 0
        %5128 = vmatprep.subr.bf16.mxu0 0
        %5129 = vmatpush2.bf16.msra.mxu0 0
        %5130 = vmatprep.subr.bf16.mxu0 0
        %5131 = vmatpush2.bf16.msra.mxu0 0
        %5132 = vmatprep.subr.bf16.mxu0 0
        %5133 = vmatpush2.bf16.msra.mxu0 0
        %5134 = vmatprep.mubr.bf16.mxu0 0
        %5135 = vmatmul.mubr.bf16.gmra.mxu0 %v5059
        %v5136 = vpop.f32.mrf.mxu0
        %v5137 = vadd.f32 %v4990, %v5136
        %v5138 = vpop.f32.mrf.mxu0
        %v5139 = vpop.f32.mrf.mxu0
        %v5140 = vpop.f32.mrf.mxu0
        %5141 = vdwg.mxu0
        %v5142 = vmax.f32 %v5096, 0.0
        %v5143 = vmax.f32 %v5098, 0.0
        %v5144 = vmax.f32 %v5137, 0.0
        %v5145 = vld [vmem:[#allocation4 + $0x4] sm:$0xf]
        %v5146 = vld [vmem:[#allocation4 + $0xc] sm:$0xf]
        %v5147 = vld [vmem:[#allocation4 + $0x14] sm:$0xf]
        %v5148 = vld [vmem:[#allocation4 + $0x1c] sm:$0xf]
        %v5149 = vld [vmem:[#allocation4 + $0x24] sm:$0xf]
        %v5150 = vld [vmem:[#allocation4 + $0x2c] sm:$0xf]
        %v5151 = vld [vmem:[#allocation4 + $0x34] sm:$0xf]
        %v5152 = vld [vmem:[#allocation4 + $0x3c] sm:$0xf]
        %v5153 = vld [vmem:[#allocation4 + $0x44] sm:$0xf]
        %v5154 = vld [vmem:[#allocation4 + $0x4c] sm:$0xf]
        %v5155 = vld [vmem:[#allocation4 + $0x54] sm:$0xf]
        %v5156 = vld [vmem:[#allocation4 + $0x5c] sm:$0xf]
        %v5157 = vld [vmem:[#allocation4 + $0x64] sm:$0xf]
        %v5158 = vld [vmem:[#allocation4 + $0x6c] sm:$0xf]
        %v5159 = vld [vmem:[#allocation4 + $0x74] sm:$0xf]
        %v5160 = vld [vmem:[#allocation4 + $0x7c] sm:$0xf]
        %v5161 = vld [vmem:[#allocation4 + $0x84] sm:$0xf]
        %v5162 = vld [vmem:[#allocation4 + $0x8c] sm:$0xf]
        %v5163 = vld [vmem:[#allocation4 + $0x94] sm:$0xf]
        %v5164 = vld [vmem:[#allocation4 + $0x9c] sm:$0xf]
        %v5165 = vld [vmem:[#allocation4 + $0xa4] sm:$0xf]
        %v5166 = vld [vmem:[#allocation4 + $0xac] sm:$0xf]
        %v5167 = vld [vmem:[#allocation4 + $0xb4] sm:$0xf]
        %v5168 = vld [vmem:[#allocation4 + $0xbc] sm:$0xf]
        %v5169 = vld [vmem:[#allocation4 + $0xc4] sm:$0xf]
        %v5170 = vld [vmem:[#allocation4 + $0xcc] sm:$0xf]
        %v5171 = vld [vmem:[#allocation4 + $0xd4] sm:$0xf]
        %v5172 = vld [vmem:[#allocation4 + $0xdc] sm:$0xf]
        %v5173 = vld [vmem:[#allocation4 + $0xe4] sm:$0xf]
        %v5174 = vld [vmem:[#allocation4 + $0xec] sm:$0xf]
        %v5175 = vld [vmem:[#allocation4 + $0xf4] sm:$0xf]
        %v5176 = vld [vmem:[#allocation4 + $0xfc] sm:$0xf]
        %v5177 = vld [vmem:[#allocation4 + $0x104] sm:$0xf]
        %v5178 = vld [vmem:[#allocation4 + $0x10c] sm:$0xf]
        %v5179 = vld [vmem:[#allocation4 + $0x114] sm:$0xf]
        %v5180 = vld [vmem:[#allocation4 + $0x11c] sm:$0xf]
        %v5181 = vld [vmem:[#allocation4 + $0x124] sm:$0xf]
        %v5182 = vld [vmem:[#allocation4 + $0x12c] sm:$0xf]
        %v5183 = vld [vmem:[#allocation4 + $0x134] sm:$0xf]
        %v5184 = vld [vmem:[#allocation4 + $0x13c] sm:$0xf]
        %v5185 = vld [vmem:[#allocation4 + $0x144] sm:$0xf]
        %v5186 = vld [vmem:[#allocation4 + $0x14c] sm:$0xf]
        %v5187 = vld [vmem:[#allocation4 + $0x154] sm:$0xf]
        %v5188 = vld [vmem:[#allocation4 + $0x15c] sm:$0xf]
        %v5189 = vld [vmem:[#allocation4 + $0x164] sm:$0xf]
        %v5190 = vld [vmem:[#allocation4 + $0x16c] sm:$0xf]
        %v5191 = vld [vmem:[#allocation4 + $0x174] sm:$0xf]
        %v5192 = vld [vmem:[#allocation4 + $0x17c] sm:$0xf]
        %v5193 = vpack.c.bf16 %v5142, %v5142
        %v5194 = vpack.c.bf16 %v5143, %v5143
        %v5195 = vpack.c.bf16 %v5144, %v5144
        %v5196 = vld [vmem:[%s5 + $0x25] sm:$0x1]
        %v5198 = vlaneseq
        %v5199 = vshrl.u32 %v5198, 7
        %v5200 = vsub.s32 0, %v5199
        %v5201 = vrot.slane %v5196, %v5200
        %v5251 = vunpack.c.l.b16 %v5145
        %v5252 = vunpack.c.l.b16 %v5146
        %v5253 = vunpack.c.l.b16 %v5147
        %v5254 = vunpack.c.l.b16 %v5148
        %v5255 = vunpack.c.l.b16 %v5149
        %v5256 = vunpack.c.l.b16 %v5150
        %v5257 = vunpack.c.l.b16 %v5151
        %v5258 = vunpack.c.l.b16 %v5152
        %v5259 = vunpack.c.l.b16 %v5153
        %v5260 = vunpack.c.l.b16 %v5154
        %v5261 = vunpack.c.l.b16 %v5155
        %v5262 = vunpack.c.l.b16 %v5156
        %v5263 = vunpack.c.l.b16 %v5157
        %v5264 = vunpack.c.l.b16 %v5158
        %v5265 = vunpack.c.l.b16 %v5159
        %v5266 = vunpack.c.l.b16 %v5160
        %v5267 = vunpack.c.l.b16 %v5161
        %v5268 = vunpack.c.l.b16 %v5162
        %v5269 = vunpack.c.l.b16 %v5163
        %v5270 = vunpack.c.l.b16 %v5164
        %v5271 = vunpack.c.l.b16 %v5165
        %v5272 = vunpack.c.l.b16 %v5166
        %v5273 = vunpack.c.l.b16 %v5167
        %v5274 = vunpack.c.l.b16 %v5168
        %v5275 = vunpack.c.l.b16 %v5169
        %v5276 = vunpack.c.l.b16 %v5170
        %v5277 = vunpack.c.l.b16 %v5171
        %v5278 = vunpack.c.l.b16 %v5172
        %v5279 = vunpack.c.l.b16 %v5173
        %v5280 = vunpack.c.l.b16 %v5174
        %v5281 = vunpack.c.l.b16 %v5175
        %v5282 = vunpack.c.l.b16 %v5176
        %v5283 = vunpack.c.l.b16 %v5177
        %v5284 = vunpack.c.l.b16 %v5178
        %v5285 = vunpack.c.l.b16 %v5179
        %v5286 = vunpack.c.l.b16 %v5180
        %v5287 = vunpack.c.l.b16 %v5181
        %v5288 = vunpack.c.l.b16 %v5182
        %v5289 = vunpack.c.l.b16 %v5183
        %v5290 = vunpack.c.l.b16 %v5184
        %v5291 = vunpack.c.l.b16 %v5185
        %v5292 = vunpack.c.l.b16 %v5186
        %v5293 = vunpack.c.l.b16 %v5187
        %v5294 = vunpack.c.l.b16 %v5188
        %v5295 = vunpack.c.l.b16 %v5189
        %v5296 = vunpack.c.l.b16 %v5190
        %v5297 = vunpack.c.l.b16 %v5191
        %v5298 = vunpack.c.l.b16 %v5192
        %v5299 = vpack.c.b16 %v5252, %v5251
        %v5300 = vpack.c.b16 %v5254, %v5253
        %v5301 = vpack.c.b16 %v5256, %v5255
        %v5302 = vpack.c.b16 %v5258, %v5257
        %v5303 = vpack.c.b16 %v5260, %v5259
        %v5304 = vpack.c.b16 %v5262, %v5261
        %v5305 = vpack.c.b16 %v5264, %v5263
        %v5306 = vpack.c.b16 %v5266, %v5265
        %v5307 = vpack.c.b16 %v5268, %v5267
        %v5308 = vpack.c.b16 %v5270, %v5269
        %v5309 = vpack.c.b16 %v5272, %v5271
        %v5310 = vpack.c.b16 %v5274, %v5273
        %v5311 = vpack.c.b16 %v5276, %v5275
        %v5312 = vpack.c.b16 %v5278, %v5277
        %v5313 = vpack.c.b16 %v5280, %v5279
        %v5314 = vpack.c.b16 %v5282, %v5281
        %v5315 = vpack.c.b16 %v5284, %v5283
        %v5316 = vpack.c.b16 %v5286, %v5285
        %v5317 = vpack.c.b16 %v5288, %v5287
        %v5318 = vpack.c.b16 %v5290, %v5289
        %v5319 = vpack.c.b16 %v5292, %v5291
        %v5320 = vpack.c.b16 %v5294, %v5293
        %v5321 = vpack.c.b16 %v5296, %v5295
        %v5322 = vpack.c.b16 %v5298, %v5297
        %5347 = vmatprep.subr.bf16.mxu0 0
        %5348 = vmatpush1.bf16.msra.mxu0 %v5306
        %5349 = vmatprep.subr.bf16.mxu0 0
        %5350 = vmatpush1.bf16.msra.mxu0 %v5305
        %5351 = vmatprep.subr.bf16.mxu0 0
        %5352 = vmatpush1.bf16.msra.mxu0 %v5304
        %5353 = vmatprep.subr.bf16.mxu0 0
        %5354 = vmatpush1.bf16.msra.mxu0 %v5303
        %5355 = vmatprep.subr.bf16.mxu0 0
        %5356 = vmatpush1.bf16.msra.mxu0 %v5302
        %5357 = vmatprep.subr.bf16.mxu0 0
        %5358 = vmatpush1.bf16.msra.mxu0 %v5301
        %5359 = vmatprep.subr.bf16.mxu0 0
        %5360 = vmatpush1.bf16.msra.mxu0 %v5300
        %5361 = vmatprep.subr.bf16.mxu0 0
        %5362 = vmatpush1.bf16.msra.mxu0 %v5299
        %5363 = vmatprep.subr.bf16.mxu0 0
        %5364 = vmatpush2.bf16.msra.mxu0 %v5314
        %5365 = vmatprep.subr.bf16.mxu0 0
        %5366 = vmatpush2.bf16.msra.mxu0 %v5313
        %5367 = vmatprep.subr.bf16.mxu0 0
        %5368 = vmatpush2.bf16.msra.mxu0 %v5312
        %5369 = vmatprep.subr.bf16.mxu0 0
        %5370 = vmatpush2.bf16.msra.mxu0 %v5311
        %5371 = vmatprep.subr.bf16.mxu0 0
        %5372 = vmatpush2.bf16.msra.mxu0 %v5310
        %5373 = vmatprep.subr.bf16.mxu0 0
        %5374 = vmatpush2.bf16.msra.mxu0 %v5309
        %5375 = vmatprep.subr.bf16.mxu0 0
        %5376 = vmatpush2.bf16.msra.mxu0 %v5308
        %5377 = vmatprep.subr.bf16.mxu0 0
        %5378 = vmatpush2.bf16.msra.mxu0 %v5307
        %5379 = vmatprep.mubr.bf16.mxu0 %v5194
        %5380 = vmatmul.mubr.bf16.gmra.mxu0 %v5193
        %v5381 = vpop.f32.mrf.mxu0
        %v5382 = vadd.f32 %v5201, %v5381
        %v5383 = vpop.f32.mrf.mxu0
        %v5384 = vpop.f32.mrf.mxu0
        %v5385 = vpop.f32.mrf.mxu0
        %5386 = vdwg.mxu0
        %5387 = vmatprep.subr.bf16.mxu0 0
        %5388 = vmatpush1.bf16.msra.mxu0 %v5322
        %5389 = vmatprep.subr.bf16.mxu0 0
        %5390 = vmatpush1.bf16.msra.mxu0 %v5321
        %5391 = vmatprep.subr.bf16.mxu0 0
        %5392 = vmatpush1.bf16.msra.mxu0 %v5320
        %5393 = vmatprep.subr.bf16.mxu0 0
        %5394 = vmatpush1.bf16.msra.mxu0 %v5319
        %5395 = vmatprep.subr.bf16.mxu0 0
        %5396 = vmatpush1.bf16.msra.mxu0 %v5318
        %5397 = vmatprep.subr.bf16.mxu0 0
        %5398 = vmatpush1.bf16.msra.mxu0 %v5317
        %5399 = vmatprep.subr.bf16.mxu0 0
        %5400 = vmatpush1.bf16.msra.mxu0 %v5316
        %5401 = vmatprep.subr.bf16.mxu0 0
        %5402 = vmatpush1.bf16.msra.mxu0 %v5315
        %5403 = vmatprep.subr.bf16.mxu0 0
        %5404 = vmatpush2.bf16.msra.mxu0 0
        %5405 = vmatprep.subr.bf16.mxu0 0
        %5406 = vmatpush2.bf16.msra.mxu0 0
        %5407 = vmatprep.subr.bf16.mxu0 0
        %5408 = vmatpush2.bf16.msra.mxu0 0
        %5409 = vmatprep.subr.bf16.mxu0 0
        %5410 = vmatpush2.bf16.msra.mxu0 0
        %5411 = vmatprep.subr.bf16.mxu0 0
        %5412 = vmatpush2.bf16.msra.mxu0 0
        %5413 = vmatprep.subr.bf16.mxu0 0
        %5414 = vmatpush2.bf16.msra.mxu0 0
        %5415 = vmatprep.subr.bf16.mxu0 0
        %5416 = vmatpush2.bf16.msra.mxu0 0
        %5417 = vmatprep.subr.bf16.mxu0 0
        %5418 = vmatpush2.bf16.msra.mxu0 0
        %5419 = vmatprep.mubr.bf16.mxu0 0
        %5420 = vmatmul.mubr.bf16.gmra.mxu0 %v5195
        %v5421 = vpop.f32.mrf.mxu0
        %v5422 = vadd.f32 %v5382, %v5421
        %v5423 = vpop.f32.mrf.mxu0
        %v5424 = vpop.f32.mrf.mxu0
        %v5425 = vpop.f32.mrf.mxu0
        %5426 = vdwg.mxu0
        %v5427 = vadd.f32 %v4959, %v5422
        %v5428 = vsel %vm422, %v5427, 0.0
        %5429 = vadd.xlane.f32.xlu0 %v5428
        %v5430 = vpop.xlane.xlu0 %5429
        %v5431 = vmul.f32 %v5430, %v1934
        %v5432 = vsub.f32 %v5427, %v5431
        %v5433 = vmul.f32 %v5432, %v5432
        %v5434 = vsel %vm422, %v5433, 0.0
        %5435 = vadd.xlane.f32.xlu0 %v5434
        %v5436 = vpop.xlane.xlu0 %5435
        %v5437 = vmul.f32 %v5436, %v1934
        %v5438 = vadd.f32 %v5437, 1e-05
        %v5439 = vrsqrt.pop %v5438
        %v5440 = vmul.f32 %v5432, %v5439
        %v5441 = vld [vmem:[%s5 + $0x20] sm:$0x1]
        %v5443 = vlaneseq
        %v5444 = vshrl.u32 %v5443, 7
        %v5445 = vsub.s32 0, %v5444
        %v5446 = vrot.slane %v5441, %v5445
        %v5448 = vmul.f32 %v5440, %v5446
        %v5449 = vld [vmem:[%s5 + $0x21] sm:$0x1]
        %v5451 = vlaneseq
        %v5452 = vshrl.u32 %v5451, 7
        %v5453 = vsub.s32 0, %v5452
        %v5454 = vrot.slane %v5449, %v5453
        %v5456 = vadd.f32 %v5448, %v5454
        %v5457 = vld [vmem:[#allocation2 + $0x58] sm:$0xf]
        %v5458 = vld [vmem:[#allocation2 + $0xb4] sm:$0xf]
        %v5459 = vld [vmem:[#allocation2 + $0x110] sm:$0xf]
        %v5460 = vld [vmem:[#allocation2 + $0x16c] sm:$0xf]
        %v5461 = vld [vmem:[#allocation2 + $0x1c8] sm:$0xf]
        %v5462 = vld [vmem:[#allocation2 + $0x224] sm:$0xf]
        %v5463 = vld [vmem:[#allocation2 + $0x280] sm:$0xf]
        %v5464 = vld [vmem:[#allocation2 + $0x2dc] sm:$0xf]
        %v5465 = vpack.c.bf16 %v5456, %v5456
        %v5466 = vld [vmem:[%s5 + $0x26] sm:$0x1]
        %v5468 = vlaneseq
        %v5469 = vshrl.u32 %v5468, 7
        %v5470 = vsub.s32 0, %v5469
        %v5471 = vrot.slane %v5466, %v5470
        %v5481 = vunpack.c.l.b16 %v5457
        %v5482 = vunpack.c.l.b16 %v5458
        %v5483 = vunpack.c.l.b16 %v5459
        %v5484 = vunpack.c.l.b16 %v5460
        %v5485 = vunpack.c.l.b16 %v5461
        %v5486 = vunpack.c.l.b16 %v5462
        %v5487 = vunpack.c.l.b16 %v5463
        %v5488 = vunpack.c.l.b16 %v5464
        %v5489 = vpack.c.b16 %v5482, %v5481
        %v5490 = vpack.c.b16 %v5484, %v5483
        %v5491 = vpack.c.b16 %v5486, %v5485
        %v5492 = vpack.c.b16 %v5488, %v5487
        %v5498 = vsel %vm422, %v5465, 0
        %5500 = vmatprep.subr.bf16.mxu0 0
        %5501 = vmatpush1.bf16.msra.mxu0 0
        %5502 = vmatprep.subr.bf16.mxu0 0
        %5503 = vmatpush1.bf16.msra.mxu0 0
        %5504 = vmatprep.subr.bf16.mxu0 0
        %5505 = vmatpush1.bf16.msra.mxu0 0
        %5506 = vmatprep.subr.bf16.mxu0 0
        %5507 = vmatpush1.bf16.msra.mxu0 0
        %5508 = vmatprep.subr.bf16.mxu0 0
        %5509 = vmatpush1.bf16.msra.mxu0 %v5492
        %5510 = vmatprep.subr.bf16.mxu0 0
        %5511 = vmatpush1.bf16.msra.mxu0 %v5491
        %5512 = vmatprep.subr.bf16.mxu0 0
        %5513 = vmatpush1.bf16.msra.mxu0 %v5490
        %5514 = vmatprep.subr.bf16.mxu0 0
        %5515 = vmatpush1.bf16.msra.mxu0 %v5489
        %5516 = vmatprep.subr.bf16.mxu0 0
        %5517 = vmatpush2.bf16.msra.mxu0 0
        %5518 = vmatprep.subr.bf16.mxu0 0
        %5519 = vmatpush2.bf16.msra.mxu0 0
        %5520 = vmatprep.subr.bf16.mxu0 0
        %5521 = vmatpush2.bf16.msra.mxu0 0
        %5522 = vmatprep.subr.bf16.mxu0 0
        %5523 = vmatpush2.bf16.msra.mxu0 0
        %5524 = vmatprep.subr.bf16.mxu0 0
        %5525 = vmatpush2.bf16.msra.mxu0 0
        %5526 = vmatprep.subr.bf16.mxu0 0
        %5527 = vmatpush2.bf16.msra.mxu0 0
        %5528 = vmatprep.subr.bf16.mxu0 0
        %5529 = vmatpush2.bf16.msra.mxu0 0
        %5530 = vmatprep.subr.bf16.mxu0 0
        %5531 = vmatpush2.bf16.msra.mxu0 0
        %5532 = vmatprep.mubr.bf16.mxu0 0
        %5533 = vmatmul.mubr.bf16.gmra.mxu0 %v5498
        %v5534 = vpop.f32.mrf.mxu0
        %v5535 = vadd.f32 %v5471, %v5534
        %v5536 = vpop.f32.mrf.mxu0
        %v5537 = vpop.f32.mrf.mxu0
        %v5538 = vpop.f32.mrf.mxu0
        %5539 = vdwg.mxu0
        %5540 = vmax.xlane.f32.xlu0 %v5535
        %v5541 = vpop.xlane.xlu0 %5540
        %v5542 = vsub.f32 %v5535, %v5541
        %v5543 = vmul.f32 %v5542, 1.442695
        %v5544 = vpow.pop %v5543
        %5545 = vadd.xlane.f32.xlu0 %v5544
        %v5546 = vpop.xlane.xlu0 %5545
        %v5547 = vlog2.pop %v5546
        %v5548 = vmul.f32 %v5547, 0.6931472
        %v5549 = vsub.f32 %v5542, %v5548
        %5550 = vst [vmem:[%s353] sm:$0xff] %v5549
        %5551 = vst [vmem:[%s353 + $0x8] sm:$0x1] %v2114
        %p5552 = scmp.lt.s32.totalorder %s20, 1
        %s5553 = scalar_select %p5552, %s20, 1
        %s5554 = smul.addr %s5553, 2
        %s5555 = smul.addr %s5554, 8
        %s5556 = scalar_lea.vmem %s7, %s5555
        // Predicated region
        $region57: #{decoder_forward.1} parent=47 // pred_check
          %p5557 = pneg %p205
        $region58: #{decoder_forward.1} parent=47 // pred_check_branch
          %5559 = sbr.rel (%p5557) target = $region60
        $region59: #{decoder_forward.1} parent=47 // pred_region
          _
        $region60: #{decoder_forward.1} parent=47 // pred_fallthru
          _
      $region48: #{decoder_forward.1} parent=5 // pred_fallthru
        _
      %p5560 = scmp.le.s32.totalorder 2, %s15
      // Predicated region
      $region61: #{decoder_forward.1} parent=5 // pred_check
        %p5561 = pneg %p5560
      $region62: #{decoder_forward.1} parent=5 // pred_check_branch
        %5563 = sbr.rel (%p5561) target = $region64
      $region63: #{decoder_forward.1} parent=5 // pred_region
        %s5564 = ssub.s32 %s15, 2
        // Predicated region
        $region65: #{decoder_forward.1} parent=63 // pred_check
          %p5565 = pneg %p211
        $region66: #{decoder_forward.1} parent=63 // pred_check_branch
          %5567 = sbr.rel (%p5565) target = $region68
        $region67: #{decoder_forward.1} parent=63 // pred_region
          %p5568 = scmp.lt.s32.totalorder %s21, 1
          %s5569 = scalar_select %p5568, %s21, 1
          %s5570 = smul.addr %s5569, 2
          %s5571 = smul.addr %s5570, 8
          %s5572 = scalar_lea.vmem %s7, %s5571
        $region68: #{decoder_forward.1} parent=63 // pred_fallthru
          _
      $region64: #{decoder_forward.1} parent=5 // pred_fallthru
        _
    $region6: #{decoder_forward.1} parent=1 // loop_footer
      %s19 = sadd.s32 1, %s15
    $region7: #{decoder_forward.1} parent=1 // loop_footer_branch
      %14 = sbr.rel target = $region3
    $region8: #{decoder_forward.1} parent=1 // loop_exit
      _
    %5573 = vsyncpa [#allocation3], 1
    %s5574 = scalar_lea.sflag [#allocation3], 1
    %5575 = vsyncpa %s5574, 1
    %5576 = vsyncpa [#allocation5], 1

</llo_original>
